<compile_context>
chip_gen: v5e
topology: v5e:2x2
jax: 0.10.0
libtpu: 0.0.40
codegen_flags: <defaults>
</compile_context>

<pallas_src>
import math

import jax
import jax.numpy as jnp
import numpy as np
from jax.experimental import pallas as pl
from jax.experimental.pallas import tpu as pltpu

# Geometry implied by the PyTorch module (fc1 takes 12*5*26 features).
N_BATCH = 2
C_IN, H, W_IN = 3, 5, 30          # conv input channels / spatial
C1, C2 = 6, 12                    # conv1 / conv2 output channels
W1_OUT, W2_OUT = 28, 26           # widths after the two (1,3) convs
KW = 3                            # conv kernel width
N_BR = 3                          # number of parallel branches
FC1_OUT, FC2_OUT = 12, 6

W_PAD = 32                        # per-h-row lane stride (>= W_IN)
SPAN = 256                        # per-sample lane span (2 full vregs, >= H*W_PAD)
ROWS2 = N_BR * C2                 # 36 conv2 output rows (branch, channel)
BR_CHUNK = C2 * SPAN              # 3072 flat-feature columns per branch


# ----------------------------------------------------------------------------
# Kernel: one sample block per grid step.
# ----------------------------------------------------------------------------
def net_kernel(x_ref, w1_ref, b1_ref, w2_ref, b2_ref,
               wf1_ref, bf1_ref, wf2_ref, bf2_ref, lw_ref, lb_ref,
               out_ref, y2_ref, flat_ref):
    nb = flat_ref.shape[0]               # samples in this block
    L = y2_ref.shape[1]                  # nb * SPAN
    L1 = L - 4                           # conv1 working length (slack for conv2 shifts)
    L2 = L - 8                           # conv2 working length (slack for conv1+conv2 shifts)

    x = x_ref[...]                                                    # (9, L)

    # conv1 (+ReLU): three lane-shifted MXU pushes (kw taps), no kw-stack scratch.
    acc1 = (jnp.dot(w1_ref[0], x[:, 0:L1], preferred_element_type=jnp.float32)
            + jnp.dot(w1_ref[1], x[:, 1:L1 + 1], preferred_element_type=jnp.float32)
            + jnp.dot(w1_ref[2], x[:, 2:L1 + 2], preferred_element_type=jnp.float32))
    y1 = jnp.maximum(acc1 + b1_ref[...], 0.0)                          # (18, L1)

    # conv2 (+ReLU): same shift-stack trick on y1.
    acc2 = (jnp.dot(w2_ref[0], y1[:, 0:L2], preferred_element_type=jnp.float32)
            + jnp.dot(w2_ref[1], y1[:, 1:L2 + 1], preferred_element_type=jnp.float32)
            + jnp.dot(w2_ref[2], y1[:, 2:L2 + 2], preferred_element_type=jnp.float32))
    y2_ref[:, 0:L2] = jnp.maximum(acc2 + b2_ref[...], 0.0)             # (36, L2)
    # Keep the (zero-weight) tail lanes finite so 0 * garbage cannot become NaN.
    y2_ref[:, L2:L] = jnp.zeros((ROWS2, L - L2), jnp.float32)

    # Relayout conv2 output -> flat fc1 features: every copy is a 128-aligned
    # whole-span (256-lane) single-row move.
    for r in range(ROWS2):
        for i in range(nb):
            flat_ref[i, r * SPAN:(r + 1) * SPAN] = y2_ref[r, i * SPAN:(i + 1) * SPAN]

    # Per-branch FC head: fc1 (bf16 operands, f32 accumulate) -> fc2 -> last_fc
    # partial dot.  No zero-block weights are DMA'd and no concatenation needed.
    parts = []
    for br in range(N_BR):
        a = flat_ref[:, br * BR_CHUNK:(br + 1) * BR_CHUNK].astype(jnp.bfloat16)
        f1 = jnp.maximum(
            jnp.dot(a, wf1_ref[br], preferred_element_type=jnp.float32)
            + bf1_ref[br], 0.0)                                        # (nb, 12)
        f2 = jnp.maximum(
            jnp.dot(f1, wf2_ref[br], preferred_element_type=jnp.float32)
            + bf2_ref[br], 0.0)                                        # (nb, 6)
        parts.append(jnp.sum(f2 * lw_ref[br], axis=1, keepdims=True))  # (nb, 1)

    logits = parts[0] + parts[1] + parts[2] + lb_ref[...]
    out_ref[...] = jax.nn.sigmoid(logits)                              # (nb, 1)


# ----------------------------------------------------------------------------
# One-time weight packing (amortized across forward calls).
# ----------------------------------------------------------------------------
def pack_params(params):
    f32 = jnp.float32

    # conv1: (kw, out_row=br*6+co, in_row=br*3+cin), block-diagonal over branches.
    w1 = jnp.zeros((KW, N_BR * C1, N_BR * C_IN), f32)
    for br in range(N_BR):
        wbr = jnp.transpose(params["c1w"][br][:, :, 0, :], (2, 0, 1))   # (kw, co, cin)
        w1 = w1.at[:, br * C1:(br + 1) * C1, br * C_IN:(br + 1) * C_IN].set(wbr)
    b1 = params["c1b"].reshape(N_BR * C1, 1).astype(f32)

    # conv2: (kw, out_row=br*12+c2, in_row=br*6+c1), block-diagonal over branches.
    w2 = jnp.zeros((KW, N_BR * C2, N_BR * C1), f32)
    for br in range(N_BR):
        wbr = jnp.transpose(params["c2w"][br][:, :, 0, :], (2, 0, 1))   # (kw, c2, c1)
        w2 = w2.at[:, br * C2:(br + 1) * C2, br * C1:(br + 1) * C1].set(wbr)
    b2 = params["c2b"].reshape(N_BR * C2, 1).astype(f32)

    # fc1 per branch: feature (c, h, w) -> row c*SPAN + h*W_PAD + w; zero rows on
    # pad / w>=26 lanes; stored in bf16 (accumulation stays f32 in-kernel).
    fw = params["fc1w"].reshape(N_BR, FC1_OUT, C2, H, W2_OUT)           # (br, j, c, h, w)
    fw = jnp.transpose(fw, (0, 2, 3, 4, 1))                             # (br, c, h, w, j)
    fw = jnp.pad(fw, ((0, 0), (0, 0), (0, 0), (0, W_PAD - W2_OUT), (0, 0)))
    fw = fw.reshape(N_BR, C2, H * W_PAD, FC1_OUT)
    fw = jnp.pad(fw, ((0, 0), (0, 0), (0, SPAN - H * W_PAD), (0, 0)))
    wf1 = fw.reshape(N_BR, BR_CHUNK, FC1_OUT).astype(jnp.bfloat16)      # (3, 3072, 12)
    bf1 = params["fc1b"].reshape(N_BR, 1, FC1_OUT).astype(f32)          # (3, 1, 12)

    # fc2 / last_fc per branch.
    wf2 = jnp.transpose(params["fc2w"], (0, 2, 1)).astype(f32)          # (3, 12, 6)
    bf2 = params["fc2b"].reshape(N_BR, 1, FC2_OUT).astype(f32)          # (3, 1, 6)
    lw = params["lw"].reshape(N_BR, 1, FC2_OUT).astype(f32)             # (3, 1, 6)
    lb = params["lb"].reshape(1, 1).astype(f32)

    return dict(w1=w1, b1=b1, w2=w2, b2=b2, wf1=wf1, bf1=bf1,
                wf2=wf2, bf2=bf2, lw=lw, lb=lb)


# ----------------------------------------------------------------------------
# Per-call wrapper: input packing (only per-call XLA work) + pallas_call.
# ----------------------------------------------------------------------------
def _pick_block(n):
    # Out-spec constraint: the sample block must equal n or be a multiple of 8.
    # Cap at 256 samples so double-buffered blocks fit v7x's 64 MiB VMEM
    # (~100 KB f32 working set per sample).
    if n <= 8:
        return n
    for nb in (256, 128, 64, 32, 16, 8):
        if n % nb == 0:
            return nb
    return n


def _pack_inputs(features):
    n = features.shape[0]
    # (n, 3, 5, 30, 3) -> (br, cin, n, h, w); rows = br*3+cin, lanes = i*SPAN + h*32 + w.
    x = jnp.transpose(features.astype(jnp.float32), (4, 1, 0, 2, 3))
    x = jnp.pad(x, ((0, 0), (0, 0), (0, 0), (0, 0), (0, W_PAD - W_IN)))     # w: 30 -> 32
    x = x.reshape(N_BR, C_IN, n, H * W_PAD)
    x = jnp.pad(x, ((0, 0), (0, 0), (0, 0), (0, SPAN - H * W_PAD)))         # 160 -> 256
    return x.reshape(N_BR * C_IN, n * SPAN)                                 # (9, n*256)


def _resident(arr):
    nd = arr.ndim
    return pl.BlockSpec(arr.shape, lambda b, _nd=nd: (0,) * _nd)


def net_forward(features, packed):
    n = features.shape[0]
    nb = _pick_block(n)
    assert n % nb == 0, "sample count must be divisible by the sample block"
    grid = (n // nb,)

    x = _pack_inputs(features)

    return pl.pallas_call(
        net_kernel,
        out_shape=jax.ShapeDtypeStruct((n, 1), jnp.float32),
        grid=grid,
        in_specs=[
            pl.BlockSpec((N_BR * C_IN, nb * SPAN), lambda b: (0, b)),
            _resident(packed["w1"]), _resident(packed["b1"]),
            _resident(packed["w2"]), _resident(packed["b2"]),
            _resident(packed["wf1"]), _resident(packed["bf1"]),
            _resident(packed["wf2"]), _resident(packed["bf2"]),
            _resident(packed["lw"]), _resident(packed["lb"]),
        ],
        out_specs=pl.BlockSpec((nb, 1), lambda b: (b, 0)),
        scratch_shapes=[
            pltpu.VMEM((ROWS2, nb * SPAN), jnp.float32),     # conv2 output (channels x lanes)
            pltpu.VMEM((nb, ROWS2 * SPAN), jnp.float32),     # relayouted fc1 features
        ],
        compiler_params=pltpu.CompilerParams(
            dimension_semantics=("parallel",)),              # megacore-shard sample blocks
    )(x, packed["w1"], packed["b1"], packed["w2"], packed["b2"],
      packed["wf1"], packed["bf1"], packed["wf2"], packed["bf2"],
      packed["lw"], packed["lb"])


# ----------------------------------------------------------------------------
# Deterministic parameter init (PyTorch default U(-1/sqrt(fan_in), 1/sqrt(fan_in))),
# stacked over the 3 branches, kept in PyTorch weight conventions.
# ----------------------------------------------------------------------------
def init_params(key):
    ks = jax.random.split(key, 10)

    def u(k, shape, fan_in):
        b = 1.0 / math.sqrt(fan_in)
        return jax.random.uniform(k, shape, jnp.float32, -b, b)

    return dict(
        c1w=u(ks[0], (3, 6, 3, 1, 3), 3 * 1 * 3),
        c1b=u(ks[1], (3, 6), 3 * 1 * 3),
        c2w=u(ks[2], (3, 12, 6, 1, 3), 6 * 1 * 3),
        c2b=u(ks[3], (3, 12), 6 * 1 * 3),
        fc1w=u(ks[4], (3, 12, 12 * 5 * 26), 12 * 5 * 26),
        fc1b=u(ks[5], (3, 12), 12 * 5 * 26),
        fc2w=u(ks[6], (3, 6, 12), 12),
        fc2b=u(ks[7], (3, 6), 12),
        lw=u(ks[8], (1, 18), 18),
        lb=u(ks[9], (1,), 18),
    )


# ----------------------------------------------------------------------------
# Pure-JAX reference mirroring the PyTorch forward (correctness check).
# ----------------------------------------------------------------------------
def reference_forward(features, params):
    with jax.default_matmul_precision("float32"):
        outs = []
        for br in range(3):
            x = features[..., br]                                  # (N, 3, 5, 30) NCHW
            w1 = params["c1w"][br][:, :, 0, :]                     # (6, 3, 3)
            y = jnp.stack([x[:, :, :, kw:kw + W1_OUT] for kw in range(3)], -1)
            y = jnp.einsum("nchwk,ock->nohw", y, w1) + params["c1b"][br][None, :, None, None]
            y = jax.nn.relu(y)
            w2 = params["c2w"][br][:, :, 0, :]                     # (12, 6, 3)
            y2 = jnp.stack([y[:, :, :, kw:kw + W2_OUT] for kw in range(3)], -1)
            y2 = jnp.einsum("nchwk,ock->nohw", y2, w2) + params["c2b"][br][None, :, None, None]
            y2 = jax.nn.relu(y2)
            flat = y2.reshape(y2.shape[0], -1)                     # (N, 12*5*26) C,H,W order
            f1 = jax.nn.relu(flat @ params["fc1w"][br].T + params["fc1b"][br])
            f2 = jax.nn.relu(f1 @ params["fc2w"][br].T + params["fc2b"][br])
            outs.append(f2)
        concat = jnp.concatenate(outs, axis=1)                     # (N, 18)
        return jax.nn.sigmoid(concat @ params["lw"].T + params["lb"])


if __name__ == "__main__":
    key = jax.random.PRNGKey(0)
    kp, kx = jax.random.split(key)
    params = init_params(kp)
    packed = pack_params(params)        # one-time weight packing (not per-call work)

    # features[..., k] is the NCHW input of branch k; H=5, W=30 so that two
    # (1,3) convs give 12*5*26 features for fc1.
    features = jax.random.normal(kx, (N_BATCH, 3, 5, 30, 3), dtype=jnp.float32)

    fwd = jax.jit(net_forward)
    out = jax.block_until_ready(fwd(features, packed))
    ref = jax.block_until_ready(reference_forward(features, params))

    assert out.shape == (N_BATCH, 1)
    np.testing.assert_allclose(np.asarray(out), np.asarray(ref), rtol=5e-3, atol=5e-3)

    print("KERNEL_OK")
</pallas_src>

<mosaic_0001>
module attributes {stable_mosaic.version = 11 : i64} {
  func.func @net_kernel(%arg0: i32, %arg1: memref<9x512xf32, #tpu.memory_space<vmem>>, %arg2: memref<3x18x9xf32, #tpu.memory_space<vmem>>, %arg3: memref<18x1xf32, #tpu.memory_space<vmem>>, %arg4: memref<3x36x18xf32, #tpu.memory_space<vmem>>, %arg5: memref<36x1xf32, #tpu.memory_space<vmem>>, %arg6: memref<3x3072x12xbf16, #tpu.memory_space<vmem>>, %arg7: memref<3x1x12xf32, #tpu.memory_space<vmem>>, %arg8: memref<3x12x6xf32, #tpu.memory_space<vmem>>, %arg9: memref<3x1x6xf32, #tpu.memory_space<vmem>>, %arg10: memref<3x1x6xf32, #tpu.memory_space<vmem>>, %arg11: memref<1x1xf32, #tpu.memory_space<vmem>>, %arg12: memref<2x1xf32, #tpu.memory_space<vmem>>, %arg13: memref<36x512xf32, #tpu.memory_space<vmem>>, %arg14: memref<2x9216xf32, #tpu.memory_space<vmem>>) attributes {dimension_semantics = [#tpu.dimension_semantics<parallel>], iteration_bounds = array<i64: 1>, scalar_prefetch = 0 : i64, scratch_operands = 2 : i64, tpu.core_type = #tpu.core_type<tc>, window_params = [{transform_indices = @transform_0, window_bounds = array<i64: 9, 512>}, {pipeline_mode = #tpu.pipeline_mode<synchronous>, transform_indices = @transform_1, window_bounds = array<i64: 3, 18, 9>}, {pipeline_mode = #tpu.pipeline_mode<synchronous>, transform_indices = @transform_2, window_bounds = array<i64: 18, 1>}, {pipeline_mode = #tpu.pipeline_mode<synchronous>, transform_indices = @transform_3, window_bounds = array<i64: 3, 36, 18>}, {pipeline_mode = #tpu.pipeline_mode<synchronous>, transform_indices = @transform_4, window_bounds = array<i64: 36, 1>}, {pipeline_mode = #tpu.pipeline_mode<synchronous>, transform_indices = @transform_5, window_bounds = array<i64: 3, 3072, 12>}, {pipeline_mode = #tpu.pipeline_mode<synchronous>, transform_indices = @transform_6, window_bounds = array<i64: 3, 1, 12>}, {pipeline_mode = #tpu.pipeline_mode<synchronous>, transform_indices = @transform_7, window_bounds = array<i64: 3, 12, 6>}, {pipeline_mode = #tpu.pipeline_mode<synchronous>, transform_indices = @transform_8, window_bounds = array<i64: 3, 1, 6>}, {pipeline_mode = #tpu.pipeline_mode<synchronous>, transform_indices = @transform_9, window_bounds = array<i64: 3, 1, 6>}, {pipeline_mode = #tpu.pipeline_mode<synchronous>, transform_indices = @transform_10, window_bounds = array<i64: 1, 1>}, {transform_indices = @transform_11, window_bounds = array<i64: 2, 1>}]} {
    %c0 = arith.constant 0 : index
    %c0_0 = arith.constant 0 : index
    %0 = vector.load %arg1[%c0, %c0_0] : memref<9x512xf32, #tpu.memory_space<vmem>>, vector<9x512xf32>
    %c0_1 = arith.constant 0 : index
    %c0_2 = arith.constant 0 : index
    %c0_3 = arith.constant 0 : index
    %1 = vector.load %arg2[%c0_1, %c0_2, %c0_3] : memref<3x18x9xf32, #tpu.memory_space<vmem>>, vector<1x18x9xf32>
    %2 = vector.shape_cast %1 : vector<1x18x9xf32> to vector<18x9xf32>
    %3 = vector.extract_strided_slice %0 {offsets = [0, 0], sizes = [9, 508], strides = [1, 1]} : vector<9x512xf32> to vector<9x508xf32>
    %cst = arith.constant dense<0.000000e+00> : vector<18x508xf32>
    %4 = tpu.matmul %2, %3, %cst {dimension_numbers = #tpu.dot_dimension_numbers<[1], [0], [0], [1], [0, 0, 1, 1], [], []>} : vector<18x9xf32>, vector<9x508xf32>, vector<18x508xf32> -> vector<18x508xf32>
    %c1 = arith.constant 1 : index
    %c0_4 = arith.constant 0 : index
    %c0_5 = arith.constant 0 : index
    %5 = vector.load %arg2[%c1, %c0_4, %c0_5] : memref<3x18x9xf32, #tpu.memory_space<vmem>>, vector<1x18x9xf32>
    %6 = vector.shape_cast %5 : vector<1x18x9xf32> to vector<18x9xf32>
    %7 = vector.extract_strided_slice %0 {offsets = [0, 1], sizes = [9, 508], strides = [1, 1]} : vector<9x512xf32> to vector<9x508xf32>
    %cst_6 = arith.constant dense<0.000000e+00> : vector<18x508xf32>
    %8 = tpu.matmul %6, %7, %cst_6 {dimension_numbers = #tpu.dot_dimension_numbers<[1], [0], [0], [1], [0, 0, 1, 1], [], []>} : vector<18x9xf32>, vector<9x508xf32>, vector<18x508xf32> -> vector<18x508xf32>
    %9 = arith.addf %4, %8 : vector<18x508xf32>
    %c2 = arith.constant 2 : index
    %c0_7 = arith.constant 0 : index
    %c0_8 = arith.constant 0 : index
    %10 = vector.load %arg2[%c2, %c0_7, %c0_8] : memref<3x18x9xf32, #tpu.memory_space<vmem>>, vector<1x18x9xf32>
    %11 = vector.shape_cast %10 : vector<1x18x9xf32> to vector<18x9xf32>
    %12 = vector.extract_strided_slice %0 {offsets = [0, 2], sizes = [9, 508], strides = [1, 1]} : vector<9x512xf32> to vector<9x508xf32>
    %cst_9 = arith.constant dense<0.000000e+00> : vector<18x508xf32>
    %13 = tpu.matmul %11, %12, %cst_9 {dimension_numbers = #tpu.dot_dimension_numbers<[1], [0], [0], [1], [0, 0, 1, 1], [], []>} : vector<18x9xf32>, vector<9x508xf32>, vector<18x508xf32> -> vector<18x508xf32>
    %14 = arith.addf %9, %13 : vector<18x508xf32>
    %c0_10 = arith.constant 0 : index
    %c0_11 = arith.constant 0 : index
    %15 = vector.load %arg3[%c0_10, %c0_11] : memref<18x1xf32, #tpu.memory_space<vmem>>, vector<18x1xf32>
    %16 = vector.broadcast %15 : vector<18x1xf32> to vector<18x508xf32>
    %17 = arith.addf %14, %16 : vector<18x508xf32>
    %cst_12 = arith.constant 0.000000e+00 : f32
    %18 = vector.broadcast %cst_12 : f32 to vector<18x508xf32>
    %19 = arith.maximumf %17, %18 : vector<18x508xf32>
    %c0_13 = arith.constant 0 : index
    %c0_14 = arith.constant 0 : index
    %c0_15 = arith.constant 0 : index
    %20 = vector.load %arg4[%c0_13, %c0_14, %c0_15] : memref<3x36x18xf32, #tpu.memory_space<vmem>>, vector<1x36x18xf32>
    %21 = vector.shape_cast %20 : vector<1x36x18xf32> to vector<36x18xf32>
    %22 = vector.extract_strided_slice %19 {offsets = [0, 0], sizes = [18, 504], strides = [1, 1]} : vector<18x508xf32> to vector<18x504xf32>
    %cst_16 = arith.constant dense<0.000000e+00> : vector<36x504xf32>
    %23 = tpu.matmul %21, %22, %cst_16 {dimension_numbers = #tpu.dot_dimension_numbers<[1], [0], [0], [1], [0, 0, 1, 1], [], []>} : vector<36x18xf32>, vector<18x504xf32>, vector<36x504xf32> -> vector<36x504xf32>
    %c1_17 = arith.constant 1 : index
    %c0_18 = arith.constant 0 : index
    %c0_19 = arith.constant 0 : index
    %24 = vector.load %arg4[%c1_17, %c0_18, %c0_19] : memref<3x36x18xf32, #tpu.memory_space<vmem>>, vector<1x36x18xf32>
    %25 = vector.shape_cast %24 : vector<1x36x18xf32> to vector<36x18xf32>
    %26 = vector.extract_strided_slice %19 {offsets = [0, 1], sizes = [18, 504], strides = [1, 1]} : vector<18x508xf32> to vector<18x504xf32>
    %cst_20 = arith.constant dense<0.000000e+00> : vector<36x504xf32>
    %27 = tpu.matmul %25, %26, %cst_20 {dimension_numbers = #tpu.dot_dimension_numbers<[1], [0], [0], [1], [0, 0, 1, 1], [], []>} : vector<36x18xf32>, vector<18x504xf32>, vector<36x504xf32> -> vector<36x504xf32>
    %28 = arith.addf %23, %27 : vector<36x504xf32>
    %c2_21 = arith.constant 2 : index
    %c0_22 = arith.constant 0 : index
    %c0_23 = arith.constant 0 : index
    %29 = vector.load %arg4[%c2_21, %c0_22, %c0_23] : memref<3x36x18xf32, #tpu.memory_space<vmem>>, vector<1x36x18xf32>
    %30 = vector.shape_cast %29 : vector<1x36x18xf32> to vector<36x18xf32>
    %31 = vector.extract_strided_slice %19 {offsets = [0, 2], sizes = [18, 504], strides = [1, 1]} : vector<18x508xf32> to vector<18x504xf32>
    %cst_24 = arith.constant dense<0.000000e+00> : vector<36x504xf32>
    %32 = tpu.matmul %30, %31, %cst_24 {dimension_numbers = #tpu.dot_dimension_numbers<[1], [0], [0], [1], [0, 0, 1, 1], [], []>} : vector<36x18xf32>, vector<18x504xf32>, vector<36x504xf32> -> vector<36x504xf32>
    %33 = arith.addf %28, %32 : vector<36x504xf32>
    %c0_25 = arith.constant 0 : index
    %c0_26 = arith.constant 0 : index
    %34 = vector.load %arg5[%c0_25, %c0_26] : memref<36x1xf32, #tpu.memory_space<vmem>>, vector<36x1xf32>
    %35 = vector.broadcast %34 : vector<36x1xf32> to vector<36x504xf32>
    %36 = arith.addf %33, %35 : vector<36x504xf32>
    %cst_27 = arith.constant 0.000000e+00 : f32
    %37 = vector.broadcast %cst_27 : f32 to vector<36x504xf32>
    %38 = arith.maximumf %36, %37 : vector<36x504xf32>
    %c0_28 = arith.constant 0 : index
    %c0_29 = arith.constant 0 : index
    %39 = vector.load %arg13[%c0_28, %c0_29] : memref<36x512xf32, #tpu.memory_space<vmem>>, vector<36x504xf32>
    tpu.vector_store %arg13[%c0_28, %c0_29], %38 {strides = array<i32>} : memref<36x512xf32, #tpu.memory_space<vmem>>, vector<36x504xf32>,
    %cst_30 = arith.constant 0.000000e+00 : f32
    %40 = vector.broadcast %cst_30 : f32 to vector<36x8xf32>
    %c0_31 = arith.constant 0 : index
    %c504 = arith.constant 504 : index
    %41 = vector.load %arg13[%c0_31, %c504] : memref<36x512xf32, #tpu.memory_space<vmem>>, vector<36x8xf32>
    tpu.vector_store %arg13[%c0_31, %c504], %40 {strides = array<i32>} : memref<36x512xf32, #tpu.memory_space<vmem>>, vector<36x8xf32>,
    %c0_32 = arith.constant 0 : index
    %c0_33 = arith.constant 0 : index
    %42 = vector.load %arg13[%c0_32, %c0_33] : memref<36x512xf32, #tpu.memory_space<vmem>>, vector<1x256xf32>
    %43 = vector.shape_cast %42 : vector<1x256xf32> to vector<256xf32>
    %c0_34 = arith.constant 0 : index
    %c0_35 = arith.constant 0 : index
    %44 = vector.load %arg14[%c0_34, %c0_35] : memref<2x9216xf32, #tpu.memory_space<vmem>>, vector<1x256xf32>
    %45 = vector.shape_cast %44 : vector<1x256xf32> to vector<256xf32>
    %46 = vector.shape_cast %43 : vector<256xf32> to vector<1x256xf32>
    tpu.vector_store %arg14[%c0_34, %c0_35], %46 {strides = array<i32>} : memref<2x9216xf32, #tpu.memory_space<vmem>>, vector<1x256xf32>,
    %c0_36 = arith.constant 0 : index
    %c256 = arith.constant 256 : index
    %47 = vector.load %arg13[%c0_36, %c256] : memref<36x512xf32, #tpu.memory_space<vmem>>, vector<1x256xf32>
    %48 = vector.shape_cast %47 : vector<1x256xf32> to vector<256xf32>
    %c1_37 = arith.constant 1 : index
    %c0_38 = arith.constant 0 : index
    %49 = vector.load %arg14[%c1_37, %c0_38] : memref<2x9216xf32, #tpu.memory_space<vmem>>, vector<1x256xf32>
    %50 = vector.shape_cast %49 : vector<1x256xf32> to vector<256xf32>
    %51 = vector.shape_cast %48 : vector<256xf32> to vector<1x256xf32>
    tpu.vector_store %arg14[%c1_37, %c0_38], %51 {strides = array<i32>} : memref<2x9216xf32, #tpu.memory_space<vmem>>, vector<1x256xf32>,
    %c1_39 = arith.constant 1 : index
    %c0_40 = arith.constant 0 : index
    %52 = vector.load %arg13[%c1_39, %c0_40] : memref<36x512xf32, #tpu.memory_space<vmem>>, vector<1x256xf32>
    %53 = vector.shape_cast %52 : vector<1x256xf32> to vector<256xf32>
    %c0_41 = arith.constant 0 : index
    %c256_42 = arith.constant 256 : index
    %54 = vector.load %arg14[%c0_41, %c256_42] : memref<2x9216xf32, #tpu.memory_space<vmem>>, vector<1x256xf32>
    %55 = vector.shape_cast %54 : vector<1x256xf32> to vector<256xf32>
    %56 = vector.shape_cast %53 : vector<256xf32> to vector<1x256xf32>
    tpu.vector_store %arg14[%c0_41, %c256_42], %56 {strides = array<i32>} : memref<2x9216xf32, #tpu.memory_space<vmem>>, vector<1x256xf32>,
    %c1_43 = arith.constant 1 : index
    %c256_44 = arith.constant 256 : index
    %57 = vector.load %arg13[%c1_43, %c256_44] : memref<36x512xf32, #tpu.memory_space<vmem>>, vector<1x256xf32>
    %58 = vector.shape_cast %57 : vector<1x256xf32> to vector<256xf32>
    %c1_45 = arith.constant 1 : index
    %c256_46 = arith.constant 256 : index
    %59 = vector.load %arg14[%c1_45, %c256_46] : memref<2x9216xf32, #tpu.memory_space<vmem>>, vector<1x256xf32>
    %60 = vector.shape_cast %59 : vector<1x256xf32> to vector<256xf32>
    %61 = vector.shape_cast %58 : vector<256xf32> to vector<1x256xf32>
    tpu.vector_store %arg14[%c1_45, %c256_46], %61 {strides = array<i32>} : memref<2x9216xf32, #tpu.memory_space<vmem>>, vector<1x256xf32>,
    %c2_47 = arith.constant 2 : index
    %c0_48 = arith.constant 0 : index
    %62 = vector.load %arg13[%c2_47, %c0_48] : memref<36x512xf32, #tpu.memory_space<vmem>>, vector<1x256xf32>
    %63 = vector.shape_cast %62 : vector<1x256xf32> to vector<256xf32>
    %c0_49 = arith.constant 0 : index
    %c512 = arith.constant 512 : index
    %64 = vector.load %arg14[%c0_49, %c512] : memref<2x9216xf32, #tpu.memory_space<vmem>>, vector<1x256xf32>
    %65 = vector.shape_cast %64 : vector<1x256xf32> to vector<256xf32>
    %66 = vector.shape_cast %63 : vector<256xf32> to vector<1x256xf32>
    tpu.vector_store %arg14[%c0_49, %c512], %66 {strides = array<i32>} : memref<2x9216xf32, #tpu.memory_space<vmem>>, vector<1x256xf32>,
    %c2_50 = arith.constant 2 : index
    %c256_51 = arith.constant 256 : index
    %67 = vector.load %arg13[%c2_50, %c256_51] : memref<36x512xf32, #tpu.memory_space<vmem>>, vector<1x256xf32>
    %68 = vector.shape_cast %67 : vector<1x256xf32> to vector<256xf32>
    %c1_52 = arith.constant 1 : index
    %c512_53 = arith.constant 512 : index
    %69 = vector.load %arg14[%c1_52, %c512_53] : memref<2x9216xf32, #tpu.memory_space<vmem>>, vector<1x256xf32>
    %70 = vector.shape_cast %69 : vector<1x256xf32> to vector<256xf32>
    %71 = vector.shape_cast %68 : vector<256xf32> to vector<1x256xf32>
    tpu.vector_store %arg14[%c1_52, %c512_53], %71 {strides = array<i32>} : memref<2x9216xf32, #tpu.memory_space<vmem>>, vector<1x256xf32>,
    %c3 = arith.constant 3 : index
    %c0_54 = arith.constant 0 : index
    %72 = vector.load %arg13[%c3, %c0_54] : memref<36x512xf32, #tpu.memory_space<vmem>>, vector<1x256xf32>
    %73 = vector.shape_cast %72 : vector<1x256xf32> to vector<256xf32>
    %c0_55 = arith.constant 0 : index
    %c768 = arith.constant 768 : index
    %74 = vector.load %arg14[%c0_55, %c768] : memref<2x9216xf32, #tpu.memory_space<vmem>>, vector<1x256xf32>
    %75 = vector.shape_cast %74 : vector<1x256xf32> to vector<256xf32>
    %76 = vector.shape_cast %73 : vector<256xf32> to vector<1x256xf32>
    tpu.vector_store %arg14[%c0_55, %c768], %76 {strides = array<i32>} : memref<2x9216xf32, #tpu.memory_space<vmem>>, vector<1x256xf32>,
    %c3_56 = arith.constant 3 : index
    %c256_57 = arith.constant 256 : index
    %77 = vector.load %arg13[%c3_56, %c256_57] : memref<36x512xf32, #tpu.memory_space<vmem>>, vector<1x256xf32>
    %78 = vector.shape_cast %77 : vector<1x256xf32> to vector<256xf32>
    %c1_58 = arith.constant 1 : index
    %c768_59 = arith.constant 768 : index
    %79 = vector.load %arg14[%c1_58, %c768_59] : memref<2x9216xf32, #tpu.memory_space<vmem>>, vector<1x256xf32>
    %80 = vector.shape_cast %79 : vector<1x256xf32> to vector<256xf32>
    %81 = vector.shape_cast %78 : vector<256xf32> to vector<1x256xf32>
    tpu.vector_store %arg14[%c1_58, %c768_59], %81 {strides = array<i32>} : memref<2x9216xf32, #tpu.memory_space<vmem>>, vector<1x256xf32>,
    %c4 = arith.constant 4 : index
    %c0_60 = arith.constant 0 : index
    %82 = vector.load %arg13[%c4, %c0_60] : memref<36x512xf32, #tpu.memory_space<vmem>>, vector<1x256xf32>
    %83 = vector.shape_cast %82 : vector<1x256xf32> to vector<256xf32>
    %c0_61 = arith.constant 0 : index
    %c1024 = arith.constant 1024 : index
    %84 = vector.load %arg14[%c0_61, %c1024] : memref<2x9216xf32, #tpu.memory_space<vmem>>, vector<1x256xf32>
    %85 = vector.shape_cast %84 : vector<1x256xf32> to vector<256xf32>
    %86 = vector.shape_cast %83 : vector<256xf32> to vector<1x256xf32>
    tpu.vector_store %arg14[%c0_61, %c1024], %86 {strides = array<i32>} : memref<2x9216xf32, #tpu.memory_space<vmem>>, vector<1x256xf32>,
    %c4_62 = arith.constant 4 : index
    %c256_63 = arith.constant 256 : index
    %87 = vector.load %arg13[%c4_62, %c256_63] : memref<36x512xf32, #tpu.memory_space<vmem>>, vector<1x256xf32>
    %88 = vector.shape_cast %87 : vector<1x256xf32> to vector<256xf32>
    %c1_64 = arith.constant 1 : index
    %c1024_65 = arith.constant 1024 : index
    %89 = vector.load %arg14[%c1_64, %c1024_65] : memref<2x9216xf32, #tpu.memory_space<vmem>>, vector<1x256xf32>
    %90 = vector.shape_cast %89 : vector<1x256xf32> to vector<256xf32>
    %91 = vector.shape_cast %88 : vector<256xf32> to vector<1x256xf32>
    tpu.vector_store %arg14[%c1_64, %c1024_65], %91 {strides = array<i32>} : memref<2x9216xf32, #tpu.memory_space<vmem>>, vector<1x256xf32>,
    %c5 = arith.constant 5 : index
    %c0_66 = arith.constant 0 : index
    %92 = vector.load %arg13[%c5, %c0_66] : memref<36x512xf32, #tpu.memory_space<vmem>>, vector<1x256xf32>
    %93 = vector.shape_cast %92 : vector<1x256xf32> to vector<256xf32>
    %c0_67 = arith.constant 0 : index
    %c1280 = arith.constant 1280 : index
    %94 = vector.load %arg14[%c0_67, %c1280] : memref<2x9216xf32, #tpu.memory_space<vmem>>, vector<1x256xf32>
    %95 = vector.shape_cast %94 : vector<1x256xf32> to vector<256xf32>
    %96 = vector.shape_cast %93 : vector<256xf32> to vector<1x256xf32>
    tpu.vector_store %arg14[%c0_67, %c1280], %96 {strides = array<i32>} : memref<2x9216xf32, #tpu.memory_space<vmem>>, vector<1x256xf32>,
    %c5_68 = arith.constant 5 : index
    %c256_69 = arith.constant 256 : index
    %97 = vector.load %arg13[%c5_68, %c256_69] : memref<36x512xf32, #tpu.memory_space<vmem>>, vector<1x256xf32>
    %98 = vector.shape_cast %97 : vector<1x256xf32> to vector<256xf32>
    %c1_70 = arith.constant 1 : index
    %c1280_71 = arith.constant 1280 : index
    %99 = vector.load %arg14[%c1_70, %c1280_71] : memref<2x9216xf32, #tpu.memory_space<vmem>>, vector<1x256xf32>
    %100 = vector.shape_cast %99 : vector<1x256xf32> to vector<256xf32>
    %101 = vector.shape_cast %98 : vector<256xf32> to vector<1x256xf32>
    tpu.vector_store %arg14[%c1_70, %c1280_71], %101 {strides = array<i32>} : memref<2x9216xf32, #tpu.memory_space<vmem>>, vector<1x256xf32>,
    %c6 = arith.constant 6 : index
    %c0_72 = arith.constant 0 : index
    %102 = vector.load %arg13[%c6, %c0_72] : memref<36x512xf32, #tpu.memory_space<vmem>>, vector<1x256xf32>
    %103 = vector.shape_cast %102 : vector<1x256xf32> to vector<256xf32>
    %c0_73 = arith.constant 0 : index
    %c1536 = arith.constant 1536 : index
    %104 = vector.load %arg14[%c0_73, %c1536] : memref<2x9216xf32, #tpu.memory_space<vmem>>, vector<1x256xf32>
    %105 = vector.shape_cast %104 : vector<1x256xf32> to vector<256xf32>
    %106 = vector.shape_cast %103 : vector<256xf32> to vector<1x256xf32>
    tpu.vector_store %arg14[%c0_73, %c1536], %106 {strides = array<i32>} : memref<2x9216xf32, #tpu.memory_space<vmem>>, vector<1x256xf32>,
    %c6_74 = arith.constant 6 : index
    %c256_75 = arith.constant 256 : index
    %107 = vector.load %arg13[%c6_74, %c256_75] : memref<36x512xf32, #tpu.memory_space<vmem>>, vector<1x256xf32>
    %108 = vector.shape_cast %107 : vector<1x256xf32> to vector<256xf32>
    %c1_76 = arith.constant 1 : index
    %c1536_77 = arith.constant 1536 : index
    %109 = vector.load %arg14[%c1_76, %c1536_77] : memref<2x9216xf32, #tpu.memory_space<vmem>>, vector<1x256xf32>
    %110 = vector.shape_cast %109 : vector<1x256xf32> to vector<256xf32>
    %111 = vector.shape_cast %108 : vector<256xf32> to vector<1x256xf32>
    tpu.vector_store %arg14[%c1_76, %c1536_77], %111 {strides = array<i32>} : memref<2x9216xf32, #tpu.memory_space<vmem>>, vector<1x256xf32>,
    %c7 = arith.constant 7 : index
    %c0_78 = arith.constant 0 : index
    %112 = vector.load %arg13[%c7, %c0_78] : memref<36x512xf32, #tpu.memory_space<vmem>>, vector<1x256xf32>
    %113 = vector.shape_cast %112 : vector<1x256xf32> to vector<256xf32>
    %c0_79 = arith.constant 0 : index
    %c1792 = arith.constant 1792 : index
    %114 = vector.load %arg14[%c0_79, %c1792] : memref<2x9216xf32, #tpu.memory_space<vmem>>, vector<1x256xf32>
    %115 = vector.shape_cast %114 : vector<1x256xf32> to vector<256xf32>
    %116 = vector.shape_cast %113 : vector<256xf32> to vector<1x256xf32>
    tpu.vector_store %arg14[%c0_79, %c1792], %116 {strides = array<i32>} : memref<2x9216xf32, #tpu.memory_space<vmem>>, vector<1x256xf32>,
    %c7_80 = arith.constant 7 : index
    %c256_81 = arith.constant 256 : index
    %117 = vector.load %arg13[%c7_80, %c256_81] : memref<36x512xf32, #tpu.memory_space<vmem>>, vector<1x256xf32>
    %118 = vector.shape_cast %117 : vector<1x256xf32> to vector<256xf32>
    %c1_82 = arith.constant 1 : index
    %c1792_83 = arith.constant 1792 : index
    %119 = vector.load %arg14[%c1_82, %c1792_83] : memref<2x9216xf32, #tpu.memory_space<vmem>>, vector<1x256xf32>
    %120 = vector.shape_cast %119 : vector<1x256xf32> to vector<256xf32>
    %121 = vector.shape_cast %118 : vector<256xf32> to vector<1x256xf32>
    tpu.vector_store %arg14[%c1_82, %c1792_83], %121 {strides = array<i32>} : memref<2x9216xf32, #tpu.memory_space<vmem>>, vector<1x256xf32>,
    %c8 = arith.constant 8 : index
    %c0_84 = arith.constant 0 : index
    %122 = vector.load %arg13[%c8, %c0_84] : memref<36x512xf32, #tpu.memory_space<vmem>>, vector<1x256xf32>
    %123 = vector.shape_cast %122 : vector<1x256xf32> to vector<256xf32>
    %c0_85 = arith.constant 0 : index
    %c2048 = arith.constant 2048 : index
    %124 = vector.load %arg14[%c0_85, %c2048] : memref<2x9216xf32, #tpu.memory_space<vmem>>, vector<1x256xf32>
    %125 = vector.shape_cast %124 : vector<1x256xf32> to vector<256xf32>
    %126 = vector.shape_cast %123 : vector<256xf32> to vector<1x256xf32>
    tpu.vector_store %arg14[%c0_85, %c2048], %126 {strides = array<i32>} : memref<2x9216xf32, #tpu.memory_space<vmem>>, vector<1x256xf32>,
    %c8_86 = arith.constant 8 : index
    %c256_87 = arith.constant 256 : index
    %127 = vector.load %arg13[%c8_86, %c256_87] : memref<36x512xf32, #tpu.memory_space<vmem>>, vector<1x256xf32>
    %128 = vector.shape_cast %127 : vector<1x256xf32> to vector<256xf32>
    %c1_88 = arith.constant 1 : index
    %c2048_89 = arith.constant 2048 : index
    %129 = vector.load %arg14[%c1_88, %c2048_89] : memref<2x9216xf32, #tpu.memory_space<vmem>>, vector<1x256xf32>
    %130 = vector.shape_cast %129 : vector<1x256xf32> to vector<256xf32>
    %131 = vector.shape_cast %128 : vector<256xf32> to vector<1x256xf32>
    tpu.vector_store %arg14[%c1_88, %c2048_89], %131 {strides = array<i32>} : memref<2x9216xf32, #tpu.memory_space<vmem>>, vector<1x256xf32>,
    %c9 = arith.constant 9 : index
    %c0_90 = arith.constant 0 : index
    %132 = vector.load %arg13[%c9, %c0_90] : memref<36x512xf32, #tpu.memory_space<vmem>>, vector<1x256xf32>
    %133 = vector.shape_cast %132 : vector<1x256xf32> to vector<256xf32>
    %c0_91 = arith.constant 0 : index
    %c2304 = arith.constant 2304 : index
    %134 = vector.load %arg14[%c0_91, %c2304] : memref<2x9216xf32, #tpu.memory_space<vmem>>, vector<1x256xf32>
    %135 = vector.shape_cast %134 : vector<1x256xf32> to vector<256xf32>
    %136 = vector.shape_cast %133 : vector<256xf32> to vector<1x256xf32>
    tpu.vector_store %arg14[%c0_91, %c2304], %136 {strides = array<i32>} : memref<2x9216xf32, #tpu.memory_space<vmem>>, vector<1x256xf32>,
    %c9_92 = arith.constant 9 : index
    %c256_93 = arith.constant 256 : index
    %137 = vector.load %arg13[%c9_92, %c256_93] : memref<36x512xf32, #tpu.memory_space<vmem>>, vector<1x256xf32>
    %138 = vector.shape_cast %137 : vector<1x256xf32> to vector<256xf32>
    %c1_94 = arith.constant 1 : index
    %c2304_95 = arith.constant 2304 : index
    %139 = vector.load %arg14[%c1_94, %c2304_95] : memref<2x9216xf32, #tpu.memory_space<vmem>>, vector<1x256xf32>
    %140 = vector.shape_cast %139 : vector<1x256xf32> to vector<256xf32>
    %141 = vector.shape_cast %138 : vector<256xf32> to vector<1x256xf32>
    tpu.vector_store %arg14[%c1_94, %c2304_95], %141 {strides = array<i32>} : memref<2x9216xf32, #tpu.memory_space<vmem>>, vector<1x256xf32>,
    %c10 = arith.constant 10 : index
    %c0_96 = arith.constant 0 : index
    %142 = vector.load %arg13[%c10, %c0_96] : memref<36x512xf32, #tpu.memory_space<vmem>>, vector<1x256xf32>
    %143 = vector.shape_cast %142 : vector<1x256xf32> to vector<256xf32>
    %c0_97 = arith.constant 0 : index
    %c2560 = arith.constant 2560 : index
    %144 = vector.load %arg14[%c0_97, %c2560] : memref<2x9216xf32, #tpu.memory_space<vmem>>, vector<1x256xf32>
    %145 = vector.shape_cast %144 : vector<1x256xf32> to vector<256xf32>
    %146 = vector.shape_cast %143 : vector<256xf32> to vector<1x256xf32>
    tpu.vector_store %arg14[%c0_97, %c2560], %146 {strides = array<i32>} : memref<2x9216xf32, #tpu.memory_space<vmem>>, vector<1x256xf32>,
    %c10_98 = arith.constant 10 : index
    %c256_99 = arith.constant 256 : index
    %147 = vector.load %arg13[%c10_98, %c256_99] : memref<36x512xf32, #tpu.memory_space<vmem>>, vector<1x256xf32>
    %148 = vector.shape_cast %147 : vector<1x256xf32> to vector<256xf32>
    %c1_100 = arith.constant 1 : index
    %c2560_101 = arith.constant 2560 : index
    %149 = vector.load %arg14[%c1_100, %c2560_101] : memref<2x9216xf32, #tpu.memory_space<vmem>>, vector<1x256xf32>
    %150 = vector.shape_cast %149 : vector<1x256xf32> to vector<256xf32>
    %151 = vector.shape_cast %148 : vector<256xf32> to vector<1x256xf32>
    tpu.vector_store %arg14[%c1_100, %c2560_101], %151 {strides = array<i32>} : memref<2x9216xf32, #tpu.memory_space<vmem>>, vector<1x256xf32>,
    %c11 = arith.constant 11 : index
    %c0_102 = arith.constant 0 : index
    %152 = vector.load %arg13[%c11, %c0_102] : memref<36x512xf32, #tpu.memory_space<vmem>>, vector<1x256xf32>
    %153 = vector.shape_cast %152 : vector<1x256xf32> to vector<256xf32>
    %c0_103 = arith.constant 0 : index
    %c2816 = arith.constant 2816 : index
    %154 = vector.load %arg14[%c0_103, %c2816] : memref<2x9216xf32, #tpu.memory_space<vmem>>, vector<1x256xf32>
    %155 = vector.shape_cast %154 : vector<1x256xf32> to vector<256xf32>
    %156 = vector.shape_cast %153 : vector<256xf32> to vector<1x256xf32>
    tpu.vector_store %arg14[%c0_103, %c2816], %156 {strides = array<i32>} : memref<2x9216xf32, #tpu.memory_space<vmem>>, vector<1x256xf32>,
    %c11_104 = arith.constant 11 : index
    %c256_105 = arith.constant 256 : index
    %157 = vector.load %arg13[%c11_104, %c256_105] : memref<36x512xf32, #tpu.memory_space<vmem>>, vector<1x256xf32>
    %158 = vector.shape_cast %157 : vector<1x256xf32> to vector<256xf32>
    %c1_106 = arith.constant 1 : index
    %c2816_107 = arith.constant 2816 : index
    %159 = vector.load %arg14[%c1_106, %c2816_107] : memref<2x9216xf32, #tpu.memory_space<vmem>>, vector<1x256xf32>
    %160 = vector.shape_cast %159 : vector<1x256xf32> to vector<256xf32>
    %161 = vector.shape_cast %158 : vector<256xf32> to vector<1x256xf32>
    tpu.vector_store %arg14[%c1_106, %c2816_107], %161 {strides = array<i32>} : memref<2x9216xf32, #tpu.memory_space<vmem>>, vector<1x256xf32>,
    %c12 = arith.constant 12 : index
    %c0_108 = arith.constant 0 : index
    %162 = vector.load %arg13[%c12, %c0_108] : memref<36x512xf32, #tpu.memory_space<vmem>>, vector<1x256xf32>
    %163 = vector.shape_cast %162 : vector<1x256xf32> to vector<256xf32>
    %c0_109 = arith.constant 0 : index
    %c3072 = arith.constant 3072 : index
    %164 = vector.load %arg14[%c0_109, %c3072] : memref<2x9216xf32, #tpu.memory_space<vmem>>, vector<1x256xf32>
    %165 = vector.shape_cast %164 : vector<1x256xf32> to vector<256xf32>
    %166 = vector.shape_cast %163 : vector<256xf32> to vector<1x256xf32>
    tpu.vector_store %arg14[%c0_109, %c3072], %166 {strides = array<i32>} : memref<2x9216xf32, #tpu.memory_space<vmem>>, vector<1x256xf32>,
    %c12_110 = arith.constant 12 : index
    %c256_111 = arith.constant 256 : index
    %167 = vector.load %arg13[%c12_110, %c256_111] : memref<36x512xf32, #tpu.memory_space<vmem>>, vector<1x256xf32>
    %168 = vector.shape_cast %167 : vector<1x256xf32> to vector<256xf32>
    %c1_112 = arith.constant 1 : index
    %c3072_113 = arith.constant 3072 : index
    %169 = vector.load %arg14[%c1_112, %c3072_113] : memref<2x9216xf32, #tpu.memory_space<vmem>>, vector<1x256xf32>
    %170 = vector.shape_cast %169 : vector<1x256xf32> to vector<256xf32>
    %171 = vector.shape_cast %168 : vector<256xf32> to vector<1x256xf32>
    tpu.vector_store %arg14[%c1_112, %c3072_113], %171 {strides = array<i32>} : memref<2x9216xf32, #tpu.memory_space<vmem>>, vector<1x256xf32>,
    %c13 = arith.constant 13 : index
    %c0_114 = arith.constant 0 : index
    %172 = vector.load %arg13[%c13, %c0_114] : memref<36x512xf32, #tpu.memory_space<vmem>>, vector<1x256xf32>
    %173 = vector.shape_cast %172 : vector<1x256xf32> to vector<256xf32>
    %c0_115 = arith.constant 0 : index
    %c3328 = arith.constant 3328 : index
    %174 = vector.load %arg14[%c0_115, %c3328] : memref<2x9216xf32, #tpu.memory_space<vmem>>, vector<1x256xf32>
    %175 = vector.shape_cast %174 : vector<1x256xf32> to vector<256xf32>
    %176 = vector.shape_cast %173 : vector<256xf32> to vector<1x256xf32>
    tpu.vector_store %arg14[%c0_115, %c3328], %176 {strides = array<i32>} : memref<2x9216xf32, #tpu.memory_space<vmem>>, vector<1x256xf32>,
    %c13_116 = arith.constant 13 : index
    %c256_117 = arith.constant 256 : index
    %177 = vector.load %arg13[%c13_116, %c256_117] : memref<36x512xf32, #tpu.memory_space<vmem>>, vector<1x256xf32>
    %178 = vector.shape_cast %177 : vector<1x256xf32> to vector<256xf32>
    %c1_118 = arith.constant 1 : index
    %c3328_119 = arith.constant 3328 : index
    %179 = vector.load %arg14[%c1_118, %c3328_119] : memref<2x9216xf32, #tpu.memory_space<vmem>>, vector<1x256xf32>
    %180 = vector.shape_cast %179 : vector<1x256xf32> to vector<256xf32>
    %181 = vector.shape_cast %178 : vector<256xf32> to vector<1x256xf32>
    tpu.vector_store %arg14[%c1_118, %c3328_119], %181 {strides = array<i32>} : memref<2x9216xf32, #tpu.memory_space<vmem>>, vector<1x256xf32>,
    %c14 = arith.constant 14 : index
    %c0_120 = arith.constant 0 : index
    %182 = vector.load %arg13[%c14, %c0_120] : memref<36x512xf32, #tpu.memory_space<vmem>>, vector<1x256xf32>
    %183 = vector.shape_cast %182 : vector<1x256xf32> to vector<256xf32>
    %c0_121 = arith.constant 0 : index
    %c3584 = arith.constant 3584 : index
    %184 = vector.load %arg14[%c0_121, %c3584] : memref<2x9216xf32, #tpu.memory_space<vmem>>, vector<1x256xf32>
    %185 = vector.shape_cast %184 : vector<1x256xf32> to vector<256xf32>
    %186 = vector.shape_cast %183 : vector<256xf32> to vector<1x256xf32>
    tpu.vector_store %arg14[%c0_121, %c3584], %186 {strides = array<i32>} : memref<2x9216xf32, #tpu.memory_space<vmem>>, vector<1x256xf32>,
    %c14_122 = arith.constant 14 : index
    %c256_123 = arith.constant 256 : index
    %187 = vector.load %arg13[%c14_122, %c256_123] : memref<36x512xf32, #tpu.memory_space<vmem>>, vector<1x256xf32>
    %188 = vector.shape_cast %187 : vector<1x256xf32> to vector<256xf32>
    %c1_124 = arith.constant 1 : index
    %c3584_125 = arith.constant 3584 : index
    %189 = vector.load %arg14[%c1_124, %c3584_125] : memref<2x9216xf32, #tpu.memory_space<vmem>>, vector<1x256xf32>
    %190 = vector.shape_cast %189 : vector<1x256xf32> to vector<256xf32>
    %191 = vector.shape_cast %188 : vector<256xf32> to vector<1x256xf32>
    tpu.vector_store %arg14[%c1_124, %c3584_125], %191 {strides = array<i32>} : memref<2x9216xf32, #tpu.memory_space<vmem>>, vector<1x256xf32>,
    %c15 = arith.constant 15 : index
    %c0_126 = arith.constant 0 : index
    %192 = vector.load %arg13[%c15, %c0_126] : memref<36x512xf32, #tpu.memory_space<vmem>>, vector<1x256xf32>
    %193 = vector.shape_cast %192 : vector<1x256xf32> to vector<256xf32>
    %c0_127 = arith.constant 0 : index
    %c3840 = arith.constant 3840 : index
    %194 = vector.load %arg14[%c0_127, %c3840] : memref<2x9216xf32, #tpu.memory_space<vmem>>, vector<1x256xf32>
    %195 = vector.shape_cast %194 : vector<1x256xf32> to vector<256xf32>
    %196 = vector.shape_cast %193 : vector<256xf32> to vector<1x256xf32>
    tpu.vector_store %arg14[%c0_127, %c3840], %196 {strides = array<i32>} : memref<2x9216xf32, #tpu.memory_space<vmem>>, vector<1x256xf32>,
    %c15_128 = arith.constant 15 : index
    %c256_129 = arith.constant 256 : index
    %197 = vector.load %arg13[%c15_128, %c256_129] : memref<36x512xf32, #tpu.memory_space<vmem>>, vector<1x256xf32>
    %198 = vector.shape_cast %197 : vector<1x256xf32> to vector<256xf32>
    %c1_130 = arith.constant 1 : index
    %c3840_131 = arith.constant 3840 : index
    %199 = vector.load %arg14[%c1_130, %c3840_131] : memref<2x9216xf32, #tpu.memory_space<vmem>>, vector<1x256xf32>
    %200 = vector.shape_cast %199 : vector<1x256xf32> to vector<256xf32>
    %201 = vector.shape_cast %198 : vector<256xf32> to vector<1x256xf32>
    tpu.vector_store %arg14[%c1_130, %c3840_131], %201 {strides = array<i32>} : memref<2x9216xf32, #tpu.memory_space<vmem>>, vector<1x256xf32>,
    %c16 = arith.constant 16 : index
    %c0_132 = arith.constant 0 : index
    %202 = vector.load %arg13[%c16, %c0_132] : memref<36x512xf32, #tpu.memory_space<vmem>>, vector<1x256xf32>
    %203 = vector.shape_cast %202 : vector<1x256xf32> to vector<256xf32>
    %c0_133 = arith.constant 0 : index
    %c4096 = arith.constant 4096 : index
    %204 = vector.load %arg14[%c0_133, %c4096] : memref<2x9216xf32, #tpu.memory_space<vmem>>, vector<1x256xf32>
    %205 = vector.shape_cast %204 : vector<1x256xf32> to vector<256xf32>
    %206 = vector.shape_cast %203 : vector<256xf32> to vector<1x256xf32>
    tpu.vector_store %arg14[%c0_133, %c4096], %206 {strides = array<i32>} : memref<2x9216xf32, #tpu.memory_space<vmem>>, vector<1x256xf32>,
    %c16_134 = arith.constant 16 : index
    %c256_135 = arith.constant 256 : index
    %207 = vector.load %arg13[%c16_134, %c256_135] : memref<36x512xf32, #tpu.memory_space<vmem>>, vector<1x256xf32>
    %208 = vector.shape_cast %207 : vector<1x256xf32> to vector<256xf32>
    %c1_136 = arith.constant 1 : index
    %c4096_137 = arith.constant 4096 : index
    %209 = vector.load %arg14[%c1_136, %c4096_137] : memref<2x9216xf32, #tpu.memory_space<vmem>>, vector<1x256xf32>
    %210 = vector.shape_cast %209 : vector<1x256xf32> to vector<256xf32>
    %211 = vector.shape_cast %208 : vector<256xf32> to vector<1x256xf32>
    tpu.vector_store %arg14[%c1_136, %c4096_137], %211 {strides = array<i32>} : memref<2x9216xf32, #tpu.memory_space<vmem>>, vector<1x256xf32>,
    %c17 = arith.constant 17 : index
    %c0_138 = arith.constant 0 : index
    %212 = vector.load %arg13[%c17, %c0_138] : memref<36x512xf32, #tpu.memory_space<vmem>>, vector<1x256xf32>
    %213 = vector.shape_cast %212 : vector<1x256xf32> to vector<256xf32>
    %c0_139 = arith.constant 0 : index
    %c4352 = arith.constant 4352 : index
    %214 = vector.load %arg14[%c0_139, %c4352] : memref<2x9216xf32, #tpu.memory_space<vmem>>, vector<1x256xf32>
    %215 = vector.shape_cast %214 : vector<1x256xf32> to vector<256xf32>
    %216 = vector.shape_cast %213 : vector<256xf32> to vector<1x256xf32>
    tpu.vector_store %arg14[%c0_139, %c4352], %216 {strides = array<i32>} : memref<2x9216xf32, #tpu.memory_space<vmem>>, vector<1x256xf32>,
    %c17_140 = arith.constant 17 : index
    %c256_141 = arith.constant 256 : index
    %217 = vector.load %arg13[%c17_140, %c256_141] : memref<36x512xf32, #tpu.memory_space<vmem>>, vector<1x256xf32>
    %218 = vector.shape_cast %217 : vector<1x256xf32> to vector<256xf32>
    %c1_142 = arith.constant 1 : index
    %c4352_143 = arith.constant 4352 : index
    %219 = vector.load %arg14[%c1_142, %c4352_143] : memref<2x9216xf32, #tpu.memory_space<vmem>>, vector<1x256xf32>
    %220 = vector.shape_cast %219 : vector<1x256xf32> to vector<256xf32>
    %221 = vector.shape_cast %218 : vector<256xf32> to vector<1x256xf32>
    tpu.vector_store %arg14[%c1_142, %c4352_143], %221 {strides = array<i32>} : memref<2x9216xf32, #tpu.memory_space<vmem>>, vector<1x256xf32>,
    %c18 = arith.constant 18 : index
    %c0_144 = arith.constant 0 : index
    %222 = vector.load %arg13[%c18, %c0_144] : memref<36x512xf32, #tpu.memory_space<vmem>>, vector<1x256xf32>
    %223 = vector.shape_cast %222 : vector<1x256xf32> to vector<256xf32>
    %c0_145 = arith.constant 0 : index
    %c4608 = arith.constant 4608 : index
    %224 = vector.load %arg14[%c0_145, %c4608] : memref<2x9216xf32, #tpu.memory_space<vmem>>, vector<1x256xf32>
    %225 = vector.shape_cast %224 : vector<1x256xf32> to vector<256xf32>
    %226 = vector.shape_cast %223 : vector<256xf32> to vector<1x256xf32>
    tpu.vector_store %arg14[%c0_145, %c4608], %226 {strides = array<i32>} : memref<2x9216xf32, #tpu.memory_space<vmem>>, vector<1x256xf32>,
    %c18_146 = arith.constant 18 : index
    %c256_147 = arith.constant 256 : index
    %227 = vector.load %arg13[%c18_146, %c256_147] : memref<36x512xf32, #tpu.memory_space<vmem>>, vector<1x256xf32>
    %228 = vector.shape_cast %227 : vector<1x256xf32> to vector<256xf32>
    %c1_148 = arith.constant 1 : index
    %c4608_149 = arith.constant 4608 : index
    %229 = vector.load %arg14[%c1_148, %c4608_149] : memref<2x9216xf32, #tpu.memory_space<vmem>>, vector<1x256xf32>
    %230 = vector.shape_cast %229 : vector<1x256xf32> to vector<256xf32>
    %231 = vector.shape_cast %228 : vector<256xf32> to vector<1x256xf32>
    tpu.vector_store %arg14[%c1_148, %c4608_149], %231 {strides = array<i32>} : memref<2x9216xf32, #tpu.memory_space<vmem>>, vector<1x256xf32>,
    %c19 = arith.constant 19 : index
    %c0_150 = arith.constant 0 : index
    %232 = vector.load %arg13[%c19, %c0_150] : memref<36x512xf32, #tpu.memory_space<vmem>>, vector<1x256xf32>
    %233 = vector.shape_cast %232 : vector<1x256xf32> to vector<256xf32>
    %c0_151 = arith.constant 0 : index
    %c4864 = arith.constant 4864 : index
    %234 = vector.load %arg14[%c0_151, %c4864] : memref<2x9216xf32, #tpu.memory_space<vmem>>, vector<1x256xf32>
    %235 = vector.shape_cast %234 : vector<1x256xf32> to vector<256xf32>
    %236 = vector.shape_cast %233 : vector<256xf32> to vector<1x256xf32>
    tpu.vector_store %arg14[%c0_151, %c4864], %236 {strides = array<i32>} : memref<2x9216xf32, #tpu.memory_space<vmem>>, vector<1x256xf32>,
    %c19_152 = arith.constant 19 : index
    %c256_153 = arith.constant 256 : index
    %237 = vector.load %arg13[%c19_152, %c256_153] : memref<36x512xf32, #tpu.memory_space<vmem>>, vector<1x256xf32>
    %238 = vector.shape_cast %237 : vector<1x256xf32> to vector<256xf32>
    %c1_154 = arith.constant 1 : index
    %c4864_155 = arith.constant 4864 : index
    %239 = vector.load %arg14[%c1_154, %c4864_155] : memref<2x9216xf32, #tpu.memory_space<vmem>>, vector<1x256xf32>
    %240 = vector.shape_cast %239 : vector<1x256xf32> to vector<256xf32>
    %241 = vector.shape_cast %238 : vector<256xf32> to vector<1x256xf32>
    tpu.vector_store %arg14[%c1_154, %c4864_155], %241 {strides = array<i32>} : memref<2x9216xf32, #tpu.memory_space<vmem>>, vector<1x256xf32>,
    %c20 = arith.constant 20 : index
    %c0_156 = arith.constant 0 : index
    %242 = vector.load %arg13[%c20, %c0_156] : memref<36x512xf32, #tpu.memory_space<vmem>>, vector<1x256xf32>
    %243 = vector.shape_cast %242 : vector<1x256xf32> to vector<256xf32>
    %c0_157 = arith.constant 0 : index
    %c5120 = arith.constant 5120 : index
    %244 = vector.load %arg14[%c0_157, %c5120] : memref<2x9216xf32, #tpu.memory_space<vmem>>, vector<1x256xf32>
    %245 = vector.shape_cast %244 : vector<1x256xf32> to vector<256xf32>
    %246 = vector.shape_cast %243 : vector<256xf32> to vector<1x256xf32>
    tpu.vector_store %arg14[%c0_157, %c5120], %246 {strides = array<i32>} : memref<2x9216xf32, #tpu.memory_space<vmem>>, vector<1x256xf32>,
    %c20_158 = arith.constant 20 : index
    %c256_159 = arith.constant 256 : index
    %247 = vector.load %arg13[%c20_158, %c256_159] : memref<36x512xf32, #tpu.memory_space<vmem>>, vector<1x256xf32>
    %248 = vector.shape_cast %247 : vector<1x256xf32> to vector<256xf32>
    %c1_160 = arith.constant 1 : index
    %c5120_161 = arith.constant 5120 : index
    %249 = vector.load %arg14[%c1_160, %c5120_161] : memref<2x9216xf32, #tpu.memory_space<vmem>>, vector<1x256xf32>
    %250 = vector.shape_cast %249 : vector<1x256xf32> to vector<256xf32>
    %251 = vector.shape_cast %248 : vector<256xf32> to vector<1x256xf32>
    tpu.vector_store %arg14[%c1_160, %c5120_161], %251 {strides = array<i32>} : memref<2x9216xf32, #tpu.memory_space<vmem>>, vector<1x256xf32>,
    %c21 = arith.constant 21 : index
    %c0_162 = arith.constant 0 : index
    %252 = vector.load %arg13[%c21, %c0_162] : memref<36x512xf32, #tpu.memory_space<vmem>>, vector<1x256xf32>
    %253 = vector.shape_cast %252 : vector<1x256xf32> to vector<256xf32>
    %c0_163 = arith.constant 0 : index
    %c5376 = arith.constant 5376 : index
    %254 = vector.load %arg14[%c0_163, %c5376] : memref<2x9216xf32, #tpu.memory_space<vmem>>, vector<1x256xf32>
    %255 = vector.shape_cast %254 : vector<1x256xf32> to vector<256xf32>
    %256 = vector.shape_cast %253 : vector<256xf32> to vector<1x256xf32>
    tpu.vector_store %arg14[%c0_163, %c5376], %256 {strides = array<i32>} : memref<2x9216xf32, #tpu.memory_space<vmem>>, vector<1x256xf32>,
    %c21_164 = arith.constant 21 : index
    %c256_165 = arith.constant 256 : index
    %257 = vector.load %arg13[%c21_164, %c256_165] : memref<36x512xf32, #tpu.memory_space<vmem>>, vector<1x256xf32>
    %258 = vector.shape_cast %257 : vector<1x256xf32> to vector<256xf32>
    %c1_166 = arith.constant 1 : index
    %c5376_167 = arith.constant 5376 : index
    %259 = vector.load %arg14[%c1_166, %c5376_167] : memref<2x9216xf32, #tpu.memory_space<vmem>>, vector<1x256xf32>
    %260 = vector.shape_cast %259 : vector<1x256xf32> to vector<256xf32>
    %261 = vector.shape_cast %258 : vector<256xf32> to vector<1x256xf32>
    tpu.vector_store %arg14[%c1_166, %c5376_167], %261 {strides = array<i32>} : memref<2x9216xf32, #tpu.memory_space<vmem>>, vector<1x256xf32>,
    %c22 = arith.constant 22 : index
    %c0_168 = arith.constant 0 : index
    %262 = vector.load %arg13[%c22, %c0_168] : memref<36x512xf32, #tpu.memory_space<vmem>>, vector<1x256xf32>
    %263 = vector.shape_cast %262 : vector<1x256xf32> to vector<256xf32>
    %c0_169 = arith.constant 0 : index
    %c5632 = arith.constant 5632 : index
    %264 = vector.load %arg14[%c0_169, %c5632] : memref<2x9216xf32, #tpu.memory_space<vmem>>, vector<1x256xf32>
    %265 = vector.shape_cast %264 : vector<1x256xf32> to vector<256xf32>
    %266 = vector.shape_cast %263 : vector<256xf32> to vector<1x256xf32>
    tpu.vector_store %arg14[%c0_169, %c5632], %266 {strides = array<i32>} : memref<2x9216xf32, #tpu.memory_space<vmem>>, vector<1x256xf32>,
    %c22_170 = arith.constant 22 : index
    %c256_171 = arith.constant 256 : index
    %267 = vector.load %arg13[%c22_170, %c256_171] : memref<36x512xf32, #tpu.memory_space<vmem>>, vector<1x256xf32>
    %268 = vector.shape_cast %267 : vector<1x256xf32> to vector<256xf32>
    %c1_172 = arith.constant 1 : index
    %c5632_173 = arith.constant 5632 : index
    %269 = vector.load %arg14[%c1_172, %c5632_173] : memref<2x9216xf32, #tpu.memory_space<vmem>>, vector<1x256xf32>
    %270 = vector.shape_cast %269 : vector<1x256xf32> to vector<256xf32>
    %271 = vector.shape_cast %268 : vector<256xf32> to vector<1x256xf32>
    tpu.vector_store %arg14[%c1_172, %c5632_173], %271 {strides = array<i32>} : memref<2x9216xf32, #tpu.memory_space<vmem>>, vector<1x256xf32>,
    %c23 = arith.constant 23 : index
    %c0_174 = arith.constant 0 : index
    %272 = vector.load %arg13[%c23, %c0_174] : memref<36x512xf32, #tpu.memory_space<vmem>>, vector<1x256xf32>
    %273 = vector.shape_cast %272 : vector<1x256xf32> to vector<256xf32>
    %c0_175 = arith.constant 0 : index
    %c5888 = arith.constant 5888 : index
    %274 = vector.load %arg14[%c0_175, %c5888] : memref<2x9216xf32, #tpu.memory_space<vmem>>, vector<1x256xf32>
    %275 = vector.shape_cast %274 : vector<1x256xf32> to vector<256xf32>
    %276 = vector.shape_cast %273 : vector<256xf32> to vector<1x256xf32>
    tpu.vector_store %arg14[%c0_175, %c5888], %276 {strides = array<i32>} : memref<2x9216xf32, #tpu.memory_space<vmem>>, vector<1x256xf32>,
    %c23_176 = arith.constant 23 : index
    %c256_177 = arith.constant 256 : index
    %277 = vector.load %arg13[%c23_176, %c256_177] : memref<36x512xf32, #tpu.memory_space<vmem>>, vector<1x256xf32>
    %278 = vector.shape_cast %277 : vector<1x256xf32> to vector<256xf32>
    %c1_178 = arith.constant 1 : index
    %c5888_179 = arith.constant 5888 : index
    %279 = vector.load %arg14[%c1_178, %c5888_179] : memref<2x9216xf32, #tpu.memory_space<vmem>>, vector<1x256xf32>
    %280 = vector.shape_cast %279 : vector<1x256xf32> to vector<256xf32>
    %281 = vector.shape_cast %278 : vector<256xf32> to vector<1x256xf32>
    tpu.vector_store %arg14[%c1_178, %c5888_179], %281 {strides = array<i32>} : memref<2x9216xf32, #tpu.memory_space<vmem>>, vector<1x256xf32>,
    %c24 = arith.constant 24 : index
    %c0_180 = arith.constant 0 : index
    %282 = vector.load %arg13[%c24, %c0_180] : memref<36x512xf32, #tpu.memory_space<vmem>>, vector<1x256xf32>
    %283 = vector.shape_cast %282 : vector<1x256xf32> to vector<256xf32>
    %c0_181 = arith.constant 0 : index
    %c6144 = arith.constant 6144 : index
    %284 = vector.load %arg14[%c0_181, %c6144] : memref<2x9216xf32, #tpu.memory_space<vmem>>, vector<1x256xf32>
    %285 = vector.shape_cast %284 : vector<1x256xf32> to vector<256xf32>
    %286 = vector.shape_cast %283 : vector<256xf32> to vector<1x256xf32>
    tpu.vector_store %arg14[%c0_181, %c6144], %286 {strides = array<i32>} : memref<2x9216xf32, #tpu.memory_space<vmem>>, vector<1x256xf32>,
    %c24_182 = arith.constant 24 : index
    %c256_183 = arith.constant 256 : index
    %287 = vector.load %arg13[%c24_182, %c256_183] : memref<36x512xf32, #tpu.memory_space<vmem>>, vector<1x256xf32>
    %288 = vector.shape_cast %287 : vector<1x256xf32> to vector<256xf32>
    %c1_184 = arith.constant 1 : index
    %c6144_185 = arith.constant 6144 : index
    %289 = vector.load %arg14[%c1_184, %c6144_185] : memref<2x9216xf32, #tpu.memory_space<vmem>>, vector<1x256xf32>
    %290 = vector.shape_cast %289 : vector<1x256xf32> to vector<256xf32>
    %291 = vector.shape_cast %288 : vector<256xf32> to vector<1x256xf32>
    tpu.vector_store %arg14[%c1_184, %c6144_185], %291 {strides = array<i32>} : memref<2x9216xf32, #tpu.memory_space<vmem>>, vector<1x256xf32>,
    %c25 = arith.constant 25 : index
    %c0_186 = arith.constant 0 : index
    %292 = vector.load %arg13[%c25, %c0_186] : memref<36x512xf32, #tpu.memory_space<vmem>>, vector<1x256xf32>
    %293 = vector.shape_cast %292 : vector<1x256xf32> to vector<256xf32>
    %c0_187 = arith.constant 0 : index
    %c6400 = arith.constant 6400 : index
    %294 = vector.load %arg14[%c0_187, %c6400] : memref<2x9216xf32, #tpu.memory_space<vmem>>, vector<1x256xf32>
    %295 = vector.shape_cast %294 : vector<1x256xf32> to vector<256xf32>
    %296 = vector.shape_cast %293 : vector<256xf32> to vector<1x256xf32>
    tpu.vector_store %arg14[%c0_187, %c6400], %296 {strides = array<i32>} : memref<2x9216xf32, #tpu.memory_space<vmem>>, vector<1x256xf32>,
    %c25_188 = arith.constant 25 : index
    %c256_189 = arith.constant 256 : index
    %297 = vector.load %arg13[%c25_188, %c256_189] : memref<36x512xf32, #tpu.memory_space<vmem>>, vector<1x256xf32>
    %298 = vector.shape_cast %297 : vector<1x256xf32> to vector<256xf32>
    %c1_190 = arith.constant 1 : index
    %c6400_191 = arith.constant 6400 : index
    %299 = vector.load %arg14[%c1_190, %c6400_191] : memref<2x9216xf32, #tpu.memory_space<vmem>>, vector<1x256xf32>
    %300 = vector.shape_cast %299 : vector<1x256xf32> to vector<256xf32>
    %301 = vector.shape_cast %298 : vector<256xf32> to vector<1x256xf32>
    tpu.vector_store %arg14[%c1_190, %c6400_191], %301 {strides = array<i32>} : memref<2x9216xf32, #tpu.memory_space<vmem>>, vector<1x256xf32>,
    %c26 = arith.constant 26 : index
    %c0_192 = arith.constant 0 : index
    %302 = vector.load %arg13[%c26, %c0_192] : memref<36x512xf32, #tpu.memory_space<vmem>>, vector<1x256xf32>
    %303 = vector.shape_cast %302 : vector<1x256xf32> to vector<256xf32>
    %c0_193 = arith.constant 0 : index
    %c6656 = arith.constant 6656 : index
    %304 = vector.load %arg14[%c0_193, %c6656] : memref<2x9216xf32, #tpu.memory_space<vmem>>, vector<1x256xf32>
    %305 = vector.shape_cast %304 : vector<1x256xf32> to vector<256xf32>
    %306 = vector.shape_cast %303 : vector<256xf32> to vector<1x256xf32>
    tpu.vector_store %arg14[%c0_193, %c6656], %306 {strides = array<i32>} : memref<2x9216xf32, #tpu.memory_space<vmem>>, vector<1x256xf32>,
    %c26_194 = arith.constant 26 : index
    %c256_195 = arith.constant 256 : index
    %307 = vector.load %arg13[%c26_194, %c256_195] : memref<36x512xf32, #tpu.memory_space<vmem>>, vector<1x256xf32>
    %308 = vector.shape_cast %307 : vector<1x256xf32> to vector<256xf32>
    %c1_196 = arith.constant 1 : index
    %c6656_197 = arith.constant 6656 : index
    %309 = vector.load %arg14[%c1_196, %c6656_197] : memref<2x9216xf32, #tpu.memory_space<vmem>>, vector<1x256xf32>
    %310 = vector.shape_cast %309 : vector<1x256xf32> to vector<256xf32>
    %311 = vector.shape_cast %308 : vector<256xf32> to vector<1x256xf32>
    tpu.vector_store %arg14[%c1_196, %c6656_197], %311 {strides = array<i32>} : memref<2x9216xf32, #tpu.memory_space<vmem>>, vector<1x256xf32>,
    %c27 = arith.constant 27 : index
    %c0_198 = arith.constant 0 : index
    %312 = vector.load %arg13[%c27, %c0_198] : memref<36x512xf32, #tpu.memory_space<vmem>>, vector<1x256xf32>
    %313 = vector.shape_cast %312 : vector<1x256xf32> to vector<256xf32>
    %c0_199 = arith.constant 0 : index
    %c6912 = arith.constant 6912 : index
    %314 = vector.load %arg14[%c0_199, %c6912] : memref<2x9216xf32, #tpu.memory_space<vmem>>, vector<1x256xf32>
    %315 = vector.shape_cast %314 : vector<1x256xf32> to vector<256xf32>
    %316 = vector.shape_cast %313 : vector<256xf32> to vector<1x256xf32>
    tpu.vector_store %arg14[%c0_199, %c6912], %316 {strides = array<i32>} : memref<2x9216xf32, #tpu.memory_space<vmem>>, vector<1x256xf32>,
    %c27_200 = arith.constant 27 : index
    %c256_201 = arith.constant 256 : index
    %317 = vector.load %arg13[%c27_200, %c256_201] : memref<36x512xf32, #tpu.memory_space<vmem>>, vector<1x256xf32>
    %318 = vector.shape_cast %317 : vector<1x256xf32> to vector<256xf32>
    %c1_202 = arith.constant 1 : index
    %c6912_203 = arith.constant 6912 : index
    %319 = vector.load %arg14[%c1_202, %c6912_203] : memref<2x9216xf32, #tpu.memory_space<vmem>>, vector<1x256xf32>
    %320 = vector.shape_cast %319 : vector<1x256xf32> to vector<256xf32>
    %321 = vector.shape_cast %318 : vector<256xf32> to vector<1x256xf32>
    tpu.vector_store %arg14[%c1_202, %c6912_203], %321 {strides = array<i32>} : memref<2x9216xf32, #tpu.memory_space<vmem>>, vector<1x256xf32>,
    %c28 = arith.constant 28 : index
    %c0_204 = arith.constant 0 : index
    %322 = vector.load %arg13[%c28, %c0_204] : memref<36x512xf32, #tpu.memory_space<vmem>>, vector<1x256xf32>
    %323 = vector.shape_cast %322 : vector<1x256xf32> to vector<256xf32>
    %c0_205 = arith.constant 0 : index
    %c7168 = arith.constant 7168 : index
    %324 = vector.load %arg14[%c0_205, %c7168] : memref<2x9216xf32, #tpu.memory_space<vmem>>, vector<1x256xf32>
    %325 = vector.shape_cast %324 : vector<1x256xf32> to vector<256xf32>
    %326 = vector.shape_cast %323 : vector<256xf32> to vector<1x256xf32>
    tpu.vector_store %arg14[%c0_205, %c7168], %326 {strides = array<i32>} : memref<2x9216xf32, #tpu.memory_space<vmem>>, vector<1x256xf32>,
    %c28_206 = arith.constant 28 : index
    %c256_207 = arith.constant 256 : index
    %327 = vector.load %arg13[%c28_206, %c256_207] : memref<36x512xf32, #tpu.memory_space<vmem>>, vector<1x256xf32>
    %328 = vector.shape_cast %327 : vector<1x256xf32> to vector<256xf32>
    %c1_208 = arith.constant 1 : index
    %c7168_209 = arith.constant 7168 : index
    %329 = vector.load %arg14[%c1_208, %c7168_209] : memref<2x9216xf32, #tpu.memory_space<vmem>>, vector<1x256xf32>
    %330 = vector.shape_cast %329 : vector<1x256xf32> to vector<256xf32>
    %331 = vector.shape_cast %328 : vector<256xf32> to vector<1x256xf32>
    tpu.vector_store %arg14[%c1_208, %c7168_209], %331 {strides = array<i32>} : memref<2x9216xf32, #tpu.memory_space<vmem>>, vector<1x256xf32>,
    %c29 = arith.constant 29 : index
    %c0_210 = arith.constant 0 : index
    %332 = vector.load %arg13[%c29, %c0_210] : memref<36x512xf32, #tpu.memory_space<vmem>>, vector<1x256xf32>
    %333 = vector.shape_cast %332 : vector<1x256xf32> to vector<256xf32>
    %c0_211 = arith.constant 0 : index
    %c7424 = arith.constant 7424 : index
    %334 = vector.load %arg14[%c0_211, %c7424] : memref<2x9216xf32, #tpu.memory_space<vmem>>, vector<1x256xf32>
    %335 = vector.shape_cast %334 : vector<1x256xf32> to vector<256xf32>
    %336 = vector.shape_cast %333 : vector<256xf32> to vector<1x256xf32>
    tpu.vector_store %arg14[%c0_211, %c7424], %336 {strides = array<i32>} : memref<2x9216xf32, #tpu.memory_space<vmem>>, vector<1x256xf32>,
    %c29_212 = arith.constant 29 : index
    %c256_213 = arith.constant 256 : index
    %337 = vector.load %arg13[%c29_212, %c256_213] : memref<36x512xf32, #tpu.memory_space<vmem>>, vector<1x256xf32>
    %338 = vector.shape_cast %337 : vector<1x256xf32> to vector<256xf32>
    %c1_214 = arith.constant 1 : index
    %c7424_215 = arith.constant 7424 : index
    %339 = vector.load %arg14[%c1_214, %c7424_215] : memref<2x9216xf32, #tpu.memory_space<vmem>>, vector<1x256xf32>
    %340 = vector.shape_cast %339 : vector<1x256xf32> to vector<256xf32>
    %341 = vector.shape_cast %338 : vector<256xf32> to vector<1x256xf32>
    tpu.vector_store %arg14[%c1_214, %c7424_215], %341 {strides = array<i32>} : memref<2x9216xf32, #tpu.memory_space<vmem>>, vector<1x256xf32>,
    %c30 = arith.constant 30 : index
    %c0_216 = arith.constant 0 : index
    %342 = vector.load %arg13[%c30, %c0_216] : memref<36x512xf32, #tpu.memory_space<vmem>>, vector<1x256xf32>
    %343 = vector.shape_cast %342 : vector<1x256xf32> to vector<256xf32>
    %c0_217 = arith.constant 0 : index
    %c7680 = arith.constant 7680 : index
    %344 = vector.load %arg14[%c0_217, %c7680] : memref<2x9216xf32, #tpu.memory_space<vmem>>, vector<1x256xf32>
    %345 = vector.shape_cast %344 : vector<1x256xf32> to vector<256xf32>
    %346 = vector.shape_cast %343 : vector<256xf32> to vector<1x256xf32>
    tpu.vector_store %arg14[%c0_217, %c7680], %346 {strides = array<i32>} : memref<2x9216xf32, #tpu.memory_space<vmem>>, vector<1x256xf32>,
    %c30_218 = arith.constant 30 : index
    %c256_219 = arith.constant 256 : index
    %347 = vector.load %arg13[%c30_218, %c256_219] : memref<36x512xf32, #tpu.memory_space<vmem>>, vector<1x256xf32>
    %348 = vector.shape_cast %347 : vector<1x256xf32> to vector<256xf32>
    %c1_220 = arith.constant 1 : index
    %c7680_221 = arith.constant 7680 : index
    %349 = vector.load %arg14[%c1_220, %c7680_221] : memref<2x9216xf32, #tpu.memory_space<vmem>>, vector<1x256xf32>
    %350 = vector.shape_cast %349 : vector<1x256xf32> to vector<256xf32>
    %351 = vector.shape_cast %348 : vector<256xf32> to vector<1x256xf32>
    tpu.vector_store %arg14[%c1_220, %c7680_221], %351 {strides = array<i32>} : memref<2x9216xf32, #tpu.memory_space<vmem>>, vector<1x256xf32>,
    %c31 = arith.constant 31 : index
    %c0_222 = arith.constant 0 : index
    %352 = vector.load %arg13[%c31, %c0_222] : memref<36x512xf32, #tpu.memory_space<vmem>>, vector<1x256xf32>
    %353 = vector.shape_cast %352 : vector<1x256xf32> to vector<256xf32>
    %c0_223 = arith.constant 0 : index
    %c7936 = arith.constant 7936 : index
    %354 = vector.load %arg14[%c0_223, %c7936] : memref<2x9216xf32, #tpu.memory_space<vmem>>, vector<1x256xf32>
    %355 = vector.shape_cast %354 : vector<1x256xf32> to vector<256xf32>
    %356 = vector.shape_cast %353 : vector<256xf32> to vector<1x256xf32>
    tpu.vector_store %arg14[%c0_223, %c7936], %356 {strides = array<i32>} : memref<2x9216xf32, #tpu.memory_space<vmem>>, vector<1x256xf32>,
    %c31_224 = arith.constant 31 : index
    %c256_225 = arith.constant 256 : index
    %357 = vector.load %arg13[%c31_224, %c256_225] : memref<36x512xf32, #tpu.memory_space<vmem>>, vector<1x256xf32>
    %358 = vector.shape_cast %357 : vector<1x256xf32> to vector<256xf32>
    %c1_226 = arith.constant 1 : index
    %c7936_227 = arith.constant 7936 : index
    %359 = vector.load %arg14[%c1_226, %c7936_227] : memref<2x9216xf32, #tpu.memory_space<vmem>>, vector<1x256xf32>
    %360 = vector.shape_cast %359 : vector<1x256xf32> to vector<256xf32>
    %361 = vector.shape_cast %358 : vector<256xf32> to vector<1x256xf32>
    tpu.vector_store %arg14[%c1_226, %c7936_227], %361 {strides = array<i32>} : memref<2x9216xf32, #tpu.memory_space<vmem>>, vector<1x256xf32>,
    %c32 = arith.constant 32 : index
    %c0_228 = arith.constant 0 : index
    %362 = vector.load %arg13[%c32, %c0_228] : memref<36x512xf32, #tpu.memory_space<vmem>>, vector<1x256xf32>
    %363 = vector.shape_cast %362 : vector<1x256xf32> to vector<256xf32>
    %c0_229 = arith.constant 0 : index
    %c8192 = arith.constant 8192 : index
    %364 = vector.load %arg14[%c0_229, %c8192] : memref<2x9216xf32, #tpu.memory_space<vmem>>, vector<1x256xf32>
    %365 = vector.shape_cast %364 : vector<1x256xf32> to vector<256xf32>
    %366 = vector.shape_cast %363 : vector<256xf32> to vector<1x256xf32>
    tpu.vector_store %arg14[%c0_229, %c8192], %366 {strides = array<i32>} : memref<2x9216xf32, #tpu.memory_space<vmem>>, vector<1x256xf32>,
    %c32_230 = arith.constant 32 : index
    %c256_231 = arith.constant 256 : index
    %367 = vector.load %arg13[%c32_230, %c256_231] : memref<36x512xf32, #tpu.memory_space<vmem>>, vector<1x256xf32>
    %368 = vector.shape_cast %367 : vector<1x256xf32> to vector<256xf32>
    %c1_232 = arith.constant 1 : index
    %c8192_233 = arith.constant 8192 : index
    %369 = vector.load %arg14[%c1_232, %c8192_233] : memref<2x9216xf32, #tpu.memory_space<vmem>>, vector<1x256xf32>
    %370 = vector.shape_cast %369 : vector<1x256xf32> to vector<256xf32>
    %371 = vector.shape_cast %368 : vector<256xf32> to vector<1x256xf32>
    tpu.vector_store %arg14[%c1_232, %c8192_233], %371 {strides = array<i32>} : memref<2x9216xf32, #tpu.memory_space<vmem>>, vector<1x256xf32>,
    %c33 = arith.constant 33 : index
    %c0_234 = arith.constant 0 : index
    %372 = vector.load %arg13[%c33, %c0_234] : memref<36x512xf32, #tpu.memory_space<vmem>>, vector<1x256xf32>
    %373 = vector.shape_cast %372 : vector<1x256xf32> to vector<256xf32>
    %c0_235 = arith.constant 0 : index
    %c8448 = arith.constant 8448 : index
    %374 = vector.load %arg14[%c0_235, %c8448] : memref<2x9216xf32, #tpu.memory_space<vmem>>, vector<1x256xf32>
    %375 = vector.shape_cast %374 : vector<1x256xf32> to vector<256xf32>
    %376 = vector.shape_cast %373 : vector<256xf32> to vector<1x256xf32>
    tpu.vector_store %arg14[%c0_235, %c8448], %376 {strides = array<i32>} : memref<2x9216xf32, #tpu.memory_space<vmem>>, vector<1x256xf32>,
    %c33_236 = arith.constant 33 : index
    %c256_237 = arith.constant 256 : index
    %377 = vector.load %arg13[%c33_236, %c256_237] : memref<36x512xf32, #tpu.memory_space<vmem>>, vector<1x256xf32>
    %378 = vector.shape_cast %377 : vector<1x256xf32> to vector<256xf32>
    %c1_238 = arith.constant 1 : index
    %c8448_239 = arith.constant 8448 : index
    %379 = vector.load %arg14[%c1_238, %c8448_239] : memref<2x9216xf32, #tpu.memory_space<vmem>>, vector<1x256xf32>
    %380 = vector.shape_cast %379 : vector<1x256xf32> to vector<256xf32>
    %381 = vector.shape_cast %378 : vector<256xf32> to vector<1x256xf32>
    tpu.vector_store %arg14[%c1_238, %c8448_239], %381 {strides = array<i32>} : memref<2x9216xf32, #tpu.memory_space<vmem>>, vector<1x256xf32>,
    %c34 = arith.constant 34 : index
    %c0_240 = arith.constant 0 : index
    %382 = vector.load %arg13[%c34, %c0_240] : memref<36x512xf32, #tpu.memory_space<vmem>>, vector<1x256xf32>
    %383 = vector.shape_cast %382 : vector<1x256xf32> to vector<256xf32>
    %c0_241 = arith.constant 0 : index
    %c8704 = arith.constant 8704 : index
    %384 = vector.load %arg14[%c0_241, %c8704] : memref<2x9216xf32, #tpu.memory_space<vmem>>, vector<1x256xf32>
    %385 = vector.shape_cast %384 : vector<1x256xf32> to vector<256xf32>
    %386 = vector.shape_cast %383 : vector<256xf32> to vector<1x256xf32>
    tpu.vector_store %arg14[%c0_241, %c8704], %386 {strides = array<i32>} : memref<2x9216xf32, #tpu.memory_space<vmem>>, vector<1x256xf32>,
    %c34_242 = arith.constant 34 : index
    %c256_243 = arith.constant 256 : index
    %387 = vector.load %arg13[%c34_242, %c256_243] : memref<36x512xf32, #tpu.memory_space<vmem>>, vector<1x256xf32>
    %388 = vector.shape_cast %387 : vector<1x256xf32> to vector<256xf32>
    %c1_244 = arith.constant 1 : index
    %c8704_245 = arith.constant 8704 : index
    %389 = vector.load %arg14[%c1_244, %c8704_245] : memref<2x9216xf32, #tpu.memory_space<vmem>>, vector<1x256xf32>
    %390 = vector.shape_cast %389 : vector<1x256xf32> to vector<256xf32>
    %391 = vector.shape_cast %388 : vector<256xf32> to vector<1x256xf32>
    tpu.vector_store %arg14[%c1_244, %c8704_245], %391 {strides = array<i32>} : memref<2x9216xf32, #tpu.memory_space<vmem>>, vector<1x256xf32>,
    %c35 = arith.constant 35 : index
    %c0_246 = arith.constant 0 : index
    %392 = vector.load %arg13[%c35, %c0_246] : memref<36x512xf32, #tpu.memory_space<vmem>>, vector<1x256xf32>
    %393 = vector.shape_cast %392 : vector<1x256xf32> to vector<256xf32>
    %c0_247 = arith.constant 0 : index
    %c8960 = arith.constant 8960 : index
    %394 = vector.load %arg14[%c0_247, %c8960] : memref<2x9216xf32, #tpu.memory_space<vmem>>, vector<1x256xf32>
    %395 = vector.shape_cast %394 : vector<1x256xf32> to vector<256xf32>
    %396 = vector.shape_cast %393 : vector<256xf32> to vector<1x256xf32>
    tpu.vector_store %arg14[%c0_247, %c8960], %396 {strides = array<i32>} : memref<2x9216xf32, #tpu.memory_space<vmem>>, vector<1x256xf32>,
    %c35_248 = arith.constant 35 : index
    %c256_249 = arith.constant 256 : index
    %397 = vector.load %arg13[%c35_248, %c256_249] : memref<36x512xf32, #tpu.memory_space<vmem>>, vector<1x256xf32>
    %398 = vector.shape_cast %397 : vector<1x256xf32> to vector<256xf32>
    %c1_250 = arith.constant 1 : index
    %c8960_251 = arith.constant 8960 : index
    %399 = vector.load %arg14[%c1_250, %c8960_251] : memref<2x9216xf32, #tpu.memory_space<vmem>>, vector<1x256xf32>
    %400 = vector.shape_cast %399 : vector<1x256xf32> to vector<256xf32>
    %401 = vector.shape_cast %398 : vector<256xf32> to vector<1x256xf32>
    tpu.vector_store %arg14[%c1_250, %c8960_251], %401 {strides = array<i32>} : memref<2x9216xf32, #tpu.memory_space<vmem>>, vector<1x256xf32>,
    %c0_252 = arith.constant 0 : index
    %c0_253 = arith.constant 0 : index
    %402 = vector.load %arg14[%c0_252, %c0_253] : memref<2x9216xf32, #tpu.memory_space<vmem>>, vector<2x3072xf32>
    %403 = arith.truncf %402 : vector<2x3072xf32> to vector<2x3072xbf16>
    %c0_254 = arith.constant 0 : index
    %c0_255 = arith.constant 0 : index
    %c0_256 = arith.constant 0 : index
    %404 = vector.load %arg6[%c0_254, %c0_255, %c0_256] : memref<3x3072x12xbf16, #tpu.memory_space<vmem>>, vector<1x3072x12xbf16>
    %405 = vector.shape_cast %404 : vector<1x3072x12xbf16> to vector<3072x12xbf16>
    %cst_257 = arith.constant dense<0.000000e+00> : vector<2x12xf32>
    %406 = tpu.matmul %403, %405, %cst_257 {dimension_numbers = #tpu.dot_dimension_numbers<[1], [0], [0], [1], [0, 0, 1, 1], [], []>} : vector<2x3072xbf16>, vector<3072x12xbf16>, vector<2x12xf32> -> vector<2x12xf32>
    %c0_258 = arith.constant 0 : index
    %c0_259 = arith.constant 0 : index
    %c0_260 = arith.constant 0 : index
    %407 = vector.load %arg7[%c0_258, %c0_259, %c0_260] : memref<3x1x12xf32, #tpu.memory_space<vmem>>, vector<1x1x12xf32>
    %408 = vector.shape_cast %407 : vector<1x1x12xf32> to vector<1x12xf32>
    %409 = vector.broadcast %408 : vector<1x12xf32> to vector<2x12xf32>
    %410 = arith.addf %406, %409 : vector<2x12xf32>
    %cst_261 = arith.constant 0.000000e+00 : f32
    %411 = vector.broadcast %cst_261 : f32 to vector<2x12xf32>
    %412 = arith.maximumf %410, %411 : vector<2x12xf32>
    %c0_262 = arith.constant 0 : index
    %c0_263 = arith.constant 0 : index
    %c0_264 = arith.constant 0 : index
    %413 = vector.load %arg8[%c0_262, %c0_263, %c0_264] : memref<3x12x6xf32, #tpu.memory_space<vmem>>, vector<1x12x6xf32>
    %414 = vector.shape_cast %413 : vector<1x12x6xf32> to vector<12x6xf32>
    %cst_265 = arith.constant dense<0.000000e+00> : vector<2x6xf32>
    %415 = tpu.matmul %412, %414, %cst_265 {dimension_numbers = #tpu.dot_dimension_numbers<[1], [0], [0], [1], [0, 0, 1, 1], [], []>} : vector<2x12xf32>, vector<12x6xf32>, vector<2x6xf32> -> vector<2x6xf32>
    %c0_266 = arith.constant 0 : index
    %c0_267 = arith.constant 0 : index
    %c0_268 = arith.constant 0 : index
    %416 = vector.load %arg9[%c0_266, %c0_267, %c0_268] : memref<3x1x6xf32, #tpu.memory_space<vmem>>, vector<1x1x6xf32>
    %417 = vector.shape_cast %416 : vector<1x1x6xf32> to vector<1x6xf32>
    %418 = vector.broadcast %417 : vector<1x6xf32> to vector<2x6xf32>
    %419 = arith.addf %415, %418 : vector<2x6xf32>
    %cst_269 = arith.constant 0.000000e+00 : f32
    %420 = vector.broadcast %cst_269 : f32 to vector<2x6xf32>
    %421 = arith.maximumf %419, %420 : vector<2x6xf32>
    %c0_270 = arith.constant 0 : index
    %c0_271 = arith.constant 0 : index
    %c0_272 = arith.constant 0 : index
    %422 = vector.load %arg10[%c0_270, %c0_271, %c0_272] : memref<3x1x6xf32, #tpu.memory_space<vmem>>, vector<1x1x6xf32>
    %423 = vector.shape_cast %422 : vector<1x1x6xf32> to vector<1x6xf32>
    %424 = vector.broadcast %423 : vector<1x6xf32> to vector<2x6xf32>
    %425 = arith.mulf %421, %424 : vector<2x6xf32>
    %cst_273 = arith.constant dense<0.000000e+00> : vector<2xf32>
    %426 = vector.multi_reduction <add>, %425, %cst_273 [1] : vector<2x6xf32> to vector<2xf32>
    %427 = vector.shape_cast %426 : vector<2xf32> to vector<2x1xf32>
    %c0_274 = arith.constant 0 : index
    %c3072_275 = arith.constant 3072 : index
    %428 = vector.load %arg14[%c0_274, %c3072_275] : memref<2x9216xf32, #tpu.memory_space<vmem>>, vector<2x3072xf32>
    %429 = arith.truncf %428 : vector<2x3072xf32> to vector<2x3072xbf16>
    %c1_276 = arith.constant 1 : index
    %c0_277 = arith.constant 0 : index
    %c0_278 = arith.constant 0 : index
    %430 = vector.load %arg6[%c1_276, %c0_277, %c0_278] : memref<3x3072x12xbf16, #tpu.memory_space<vmem>>, vector<1x3072x12xbf16>
    %431 = vector.shape_cast %430 : vector<1x3072x12xbf16> to vector<3072x12xbf16>
    %cst_279 = arith.constant dense<0.000000e+00> : vector<2x12xf32>
    %432 = tpu.matmul %429, %431, %cst_279 {dimension_numbers = #tpu.dot_dimension_numbers<[1], [0], [0], [1], [0, 0, 1, 1], [], []>} : vector<2x3072xbf16>, vector<3072x12xbf16>, vector<2x12xf32> -> vector<2x12xf32>
    %c1_280 = arith.constant 1 : index
    %c0_281 = arith.constant 0 : index
    %c0_282 = arith.constant 0 : index
    %433 = vector.load %arg7[%c1_280, %c0_281, %c0_282] : memref<3x1x12xf32, #tpu.memory_space<vmem>>, vector<1x1x12xf32>
    %434 = vector.shape_cast %433 : vector<1x1x12xf32> to vector<1x12xf32>
    %435 = vector.broadcast %434 : vector<1x12xf32> to vector<2x12xf32>
    %436 = arith.addf %432, %435 : vector<2x12xf32>
    %cst_283 = arith.constant 0.000000e+00 : f32
    %437 = vector.broadcast %cst_283 : f32 to vector<2x12xf32>
    %438 = arith.maximumf %436, %437 : vector<2x12xf32>
    %c1_284 = arith.constant 1 : index
    %c0_285 = arith.constant 0 : index
    %c0_286 = arith.constant 0 : index
    %439 = vector.load %arg8[%c1_284, %c0_285, %c0_286] : memref<3x12x6xf32, #tpu.memory_space<vmem>>, vector<1x12x6xf32>
    %440 = vector.shape_cast %439 : vector<1x12x6xf32> to vector<12x6xf32>
    %cst_287 = arith.constant dense<0.000000e+00> : vector<2x6xf32>
    %441 = tpu.matmul %438, %440, %cst_287 {dimension_numbers = #tpu.dot_dimension_numbers<[1], [0], [0], [1], [0, 0, 1, 1], [], []>} : vector<2x12xf32>, vector<12x6xf32>, vector<2x6xf32> -> vector<2x6xf32>
    %c1_288 = arith.constant 1 : index
    %c0_289 = arith.constant 0 : index
    %c0_290 = arith.constant 0 : index
    %442 = vector.load %arg9[%c1_288, %c0_289, %c0_290] : memref<3x1x6xf32, #tpu.memory_space<vmem>>, vector<1x1x6xf32>
    %443 = vector.shape_cast %442 : vector<1x1x6xf32> to vector<1x6xf32>
    %444 = vector.broadcast %443 : vector<1x6xf32> to vector<2x6xf32>
    %445 = arith.addf %441, %444 : vector<2x6xf32>
    %cst_291 = arith.constant 0.000000e+00 : f32
    %446 = vector.broadcast %cst_291 : f32 to vector<2x6xf32>
    %447 = arith.maximumf %445, %446 : vector<2x6xf32>
    %c1_292 = arith.constant 1 : index
    %c0_293 = arith.constant 0 : index
    %c0_294 = arith.constant 0 : index
    %448 = vector.load %arg10[%c1_292, %c0_293, %c0_294] : memref<3x1x6xf32, #tpu.memory_space<vmem>>, vector<1x1x6xf32>
    %449 = vector.shape_cast %448 : vector<1x1x6xf32> to vector<1x6xf32>
    %450 = vector.broadcast %449 : vector<1x6xf32> to vector<2x6xf32>
    %451 = arith.mulf %447, %450 : vector<2x6xf32>
    %cst_295 = arith.constant dense<0.000000e+00> : vector<2xf32>
    %452 = vector.multi_reduction <add>, %451, %cst_295 [1] : vector<2x6xf32> to vector<2xf32>
    %453 = vector.shape_cast %452 : vector<2xf32> to vector<2x1xf32>
    %c0_296 = arith.constant 0 : index
    %c6144_297 = arith.constant 6144 : index
    %454 = vector.load %arg14[%c0_296, %c6144_297] : memref<2x9216xf32, #tpu.memory_space<vmem>>, vector<2x3072xf32>
    %455 = arith.truncf %454 : vector<2x3072xf32> to vector<2x3072xbf16>
    %c2_298 = arith.constant 2 : index
    %c0_299 = arith.constant 0 : index
    %c0_300 = arith.constant 0 : index
    %456 = vector.load %arg6[%c2_298, %c0_299, %c0_300] : memref<3x3072x12xbf16, #tpu.memory_space<vmem>>, vector<1x3072x12xbf16>
    %457 = vector.shape_cast %456 : vector<1x3072x12xbf16> to vector<3072x12xbf16>
    %cst_301 = arith.constant dense<0.000000e+00> : vector<2x12xf32>
    %458 = tpu.matmul %455, %457, %cst_301 {dimension_numbers = #tpu.dot_dimension_numbers<[1], [0], [0], [1], [0, 0, 1, 1], [], []>} : vector<2x3072xbf16>, vector<3072x12xbf16>, vector<2x12xf32> -> vector<2x12xf32>
    %c2_302 = arith.constant 2 : index
    %c0_303 = arith.constant 0 : index
    %c0_304 = arith.constant 0 : index
    %459 = vector.load %arg7[%c2_302, %c0_303, %c0_304] : memref<3x1x12xf32, #tpu.memory_space<vmem>>, vector<1x1x12xf32>
    %460 = vector.shape_cast %459 : vector<1x1x12xf32> to vector<1x12xf32>
    %461 = vector.broadcast %460 : vector<1x12xf32> to vector<2x12xf32>
    %462 = arith.addf %458, %461 : vector<2x12xf32>
    %cst_305 = arith.constant 0.000000e+00 : f32
    %463 = vector.broadcast %cst_305 : f32 to vector<2x12xf32>
    %464 = arith.maximumf %462, %463 : vector<2x12xf32>
    %c2_306 = arith.constant 2 : index
    %c0_307 = arith.constant 0 : index
    %c0_308 = arith.constant 0 : index
    %465 = vector.load %arg8[%c2_306, %c0_307, %c0_308] : memref<3x12x6xf32, #tpu.memory_space<vmem>>, vector<1x12x6xf32>
    %466 = vector.shape_cast %465 : vector<1x12x6xf32> to vector<12x6xf32>
    %cst_309 = arith.constant dense<0.000000e+00> : vector<2x6xf32>
    %467 = tpu.matmul %464, %466, %cst_309 {dimension_numbers = #tpu.dot_dimension_numbers<[1], [0], [0], [1], [0, 0, 1, 1], [], []>} : vector<2x12xf32>, vector<12x6xf32>, vector<2x6xf32> -> vector<2x6xf32>
    %c2_310 = arith.constant 2 : index
    %c0_311 = arith.constant 0 : index
    %c0_312 = arith.constant 0 : index
    %468 = vector.load %arg9[%c2_310, %c0_311, %c0_312] : memref<3x1x6xf32, #tpu.memory_space<vmem>>, vector<1x1x6xf32>
    %469 = vector.shape_cast %468 : vector<1x1x6xf32> to vector<1x6xf32>
    %470 = vector.broadcast %469 : vector<1x6xf32> to vector<2x6xf32>
    %471 = arith.addf %467, %470 : vector<2x6xf32>
    %cst_313 = arith.constant 0.000000e+00 : f32
    %472 = vector.broadcast %cst_313 : f32 to vector<2x6xf32>
    %473 = arith.maximumf %471, %472 : vector<2x6xf32>
    %c2_314 = arith.constant 2 : index
    %c0_315 = arith.constant 0 : index
    %c0_316 = arith.constant 0 : index
    %474 = vector.load %arg10[%c2_314, %c0_315, %c0_316] : memref<3x1x6xf32, #tpu.memory_space<vmem>>, vector<1x1x6xf32>
    %475 = vector.shape_cast %474 : vector<1x1x6xf32> to vector<1x6xf32>
    %476 = vector.broadcast %475 : vector<1x6xf32> to vector<2x6xf32>
    %477 = arith.mulf %473, %476 : vector<2x6xf32>
    %cst_317 = arith.constant dense<0.000000e+00> : vector<2xf32>
    %478 = vector.multi_reduction <add>, %477, %cst_317 [1] : vector<2x6xf32> to vector<2xf32>
    %479 = vector.shape_cast %478 : vector<2xf32> to vector<2x1xf32>
    %480 = arith.addf %427, %453 : vector<2x1xf32>
    %481 = arith.addf %480, %479 : vector<2x1xf32>
    %c0_318 = arith.constant 0 : index
    %c0_319 = arith.constant 0 : index
    %482 = vector.load %arg11[%c0_318, %c0_319] : memref<1x1xf32, #tpu.memory_space<vmem>>, vector<1x1xf32>
    %483 = vector.broadcast %482 : vector<1x1xf32> to vector<2x1xf32>
    %484 = arith.addf %481, %483 : vector<2x1xf32>
    %485 = arith.negf %484 : vector<2x1xf32>
    %486 = math.exp %485 : vector<2x1xf32>
    %cst_320 = arith.constant 1.000000e+00 : f32
    %487 = vector.broadcast %cst_320 : f32 to vector<2x1xf32>
    %488 = arith.addf %487, %486 : vector<2x1xf32>
    %489 = arith.divf %487, %488 : vector<2x1xf32>
    %c0_321 = arith.constant 0 : index
    %c0_322 = arith.constant 0 : index
    %490 = vector.load %arg12[%c0_321, %c0_322] : memref<2x1xf32, #tpu.memory_space<vmem>>, vector<2x1xf32>
    tpu.vector_store %arg12[%c0_321, %c0_322], %489 {strides = array<i32>} : memref<2x1xf32, #tpu.memory_space<vmem>>, vector<2x1xf32>,
    return
  }
  func.func @transform_0(%arg0: i32) -> (i32, i32) {
    %c0_i32 = arith.constant 0 : i32
    %c0_i32_0 = arith.constant 0 : i32
    return %c0_i32, %arg0 : i32, i32
  }
  func.func @transform_1(%arg0: i32) -> (i32, i32, i32) {
    %c0_i32 = arith.constant 0 : i32
    %c0_i32_0 = arith.constant 0 : i32
    %c0_i32_1 = arith.constant 0 : i32
    %c0_i32_2 = arith.constant 0 : i32
    return %c0_i32, %c0_i32_0, %c0_i32_1 : i32, i32, i32
  }
  func.func @transform_2(%arg0: i32) -> (i32, i32) {
    %c0_i32 = arith.constant 0 : i32
    %c0_i32_0 = arith.constant 0 : i32
    %c0_i32_1 = arith.constant 0 : i32
    return %c0_i32, %c0_i32_0 : i32, i32
  }
  func.func @transform_3(%arg0: i32) -> (i32, i32, i32) {
    %c0_i32 = arith.constant 0 : i32
    %c0_i32_0 = arith.constant 0 : i32
    %c0_i32_1 = arith.constant 0 : i32
    %c0_i32_2 = arith.constant 0 : i32
    return %c0_i32, %c0_i32_0, %c0_i32_1 : i32, i32, i32
  }
  func.func @transform_4(%arg0: i32) -> (i32, i32) {
    %c0_i32 = arith.constant 0 : i32
    %c0_i32_0 = arith.constant 0 : i32
    %c0_i32_1 = arith.constant 0 : i32
    return %c0_i32, %c0_i32_0 : i32, i32
  }
  func.func @transform_5(%arg0: i32) -> (i32, i32, i32) {
    %c0_i32 = arith.constant 0 : i32
    %c0_i32_0 = arith.constant 0 : i32
    %c0_i32_1 = arith.constant 0 : i32
    %c0_i32_2 = arith.constant 0 : i32
    return %c0_i32, %c0_i32_0, %c0_i32_1 : i32, i32, i32
  }
  func.func @transform_6(%arg0: i32) -> (i32, i32, i32) {
    %c0_i32 = arith.constant 0 : i32
    %c0_i32_0 = arith.constant 0 : i32
    %c0_i32_1 = arith.constant 0 : i32
    %c0_i32_2 = arith.constant 0 : i32
    return %c0_i32, %c0_i32_0, %c0_i32_1 : i32, i32, i32
  }
  func.func @transform_7(%arg0: i32) -> (i32, i32, i32) {
    %c0_i32 = arith.constant 0 : i32
    %c0_i32_0 = arith.constant 0 : i32
    %c0_i32_1 = arith.constant 0 : i32
    %c0_i32_2 = arith.constant 0 : i32
    return %c0_i32, %c0_i32_0, %c0_i32_1 : i32, i32, i32
  }
  func.func @transform_8(%arg0: i32) -> (i32, i32, i32) {
    %c0_i32 = arith.constant 0 : i32
    %c0_i32_0 = arith.constant 0 : i32
    %c0_i32_1 = arith.constant 0 : i32
    %c0_i32_2 = arith.constant 0 : i32
    return %c0_i32, %c0_i32_0, %c0_i32_1 : i32, i32, i32
  }
  func.func @transform_9(%arg0: i32) -> (i32, i32, i32) {
    %c0_i32 = arith.constant 0 : i32
    %c0_i32_0 = arith.constant 0 : i32
    %c0_i32_1 = arith.constant 0 : i32
    %c0_i32_2 = arith.constant 0 : i32
    return %c0_i32, %c0_i32_0, %c0_i32_1 : i32, i32, i32
  }
  func.func @transform_10(%arg0: i32) -> (i32, i32) {
    %c0_i32 = arith.constant 0 : i32
    %c0_i32_0 = arith.constant 0 : i32
    %c0_i32_1 = arith.constant 0 : i32
    return %c0_i32, %c0_i32_0 : i32, i32
  }
  func.func @transform_11(%arg0: i32) -> (i32, i32) {
    %c0_i32 = arith.constant 0 : i32
    %c0_i32_0 = arith.constant 0 : i32
    return %arg0, %c0_i32 : i32, i32
  }
}

</mosaic_0001>

<llo_original>
// kernel: net_forward.1
$region0: #{net_forward.1}
  #allocation0 [shape = 'u32[]', space=smem, size = 0x4, offset = 0x4, fixed_abs, tag = 'smem constant byte address 0x4 - core index']
  #allocation1 [shape = 'u32[72,128]{1,0:T(1,128)}', space=vmem, size = 0x9000, scoped, tag = 'internal scratch']
  #allocation2 [shape = 'f32[36,512]{1,0:T(8,128)}', space=vmem, size = 0x14000, scoped, tag = 'scratch operand']
  #allocation3 [shape = 'f32[2,9216]{1,0:T(2,128)}', space=vmem, size = 0x12000, scoped, tag = 'scratch operand']
  #allocation4 [shape = 'f32[1,1]{1,0:T(1,128)S(1)}', space=vmem, size = 0x200, scoped, tag = 'scoped memory for net_forward.1']
  %s0 = inlined_call_operand.vmem [shape: f32[9,512], index: 0, kind: input, shape index: {}]
  %s1 = inlined_call_operand.vmem [shape: f32[3,18,9], index: 1, kind: input, shape index: {}]
  %s2 = inlined_call_operand.vmem [shape: f32[18,1], index: 2, kind: input, shape index: {}]
  %s3 = inlined_call_operand.vmem [shape: f32[3,36,18], index: 3, kind: input, shape index: {}]
  %s4 = inlined_call_operand.vmem [shape: f32[36,1], index: 4, kind: input, shape index: {}]
  %s5 = inlined_call_operand.vmem [shape: bf16[3,3072,12], index: 5, kind: input, shape index: {}]
  %s6 = inlined_call_operand.vmem [shape: f32[3,1,12], index: 6, kind: input, shape index: {}]
  %s7 = inlined_call_operand.vmem [shape: f32[3,12,6], index: 7, kind: input, shape index: {}]
  %s8 = inlined_call_operand.vmem [shape: f32[3,1,6], index: 8, kind: input, shape index: {}]
  %s9 = inlined_call_operand.vmem [shape: f32[3,1,6], index: 9, kind: input, shape index: {}]
  %s10 = inlined_call_operand.<no memory space> [shape: f32[1,1], index: 10, kind: input, shape index: {}]
  %s11 = inlined_call_operand.vmem [shape: f32[2,1], index: 11, kind: output, shape index: {}]
  %s12 = sld [smem:[#allocation0]]
  $region54: #{net_forward.1} parent=0
    _
  %s14 = ssub.s32 1, %s12
  %s15 = scalar_select 0, %s14, %s12
  %v16 = vstv %s10
  %17 = vst [vmem:[#allocation4] sm:$0x1] %v16
  // Predicated region
  $region2: #{net_forward.1} parent=0 // pred_check
    _
  $region3: #{net_forward.1} parent=0 // pred_check_branch
    %19 = sbr.rel (0) target = $region5
  $region4: #{net_forward.1} parent=0 // pred_region
    _
  $region5: #{net_forward.1} parent=0 // pred_fallthru
    _
  // Predicated region
  $region6: #{net_forward.1} parent=0 // pred_check
    _
  $region7: #{net_forward.1} parent=0 // pred_check_branch
    %21 = sbr.rel (0) target = $region9
  $region8: #{net_forward.1} parent=0 // pred_region
    _
  $region9: #{net_forward.1} parent=0 // pred_fallthru
    _
  // Predicated region
  $region10: #{net_forward.1} parent=0 // pred_check
    _
  $region11: #{net_forward.1} parent=0 // pred_check_branch
    %23 = sbr.rel (0) target = $region13
  $region12: #{net_forward.1} parent=0 // pred_region
    _
  $region13: #{net_forward.1} parent=0 // pred_fallthru
    _
  // Predicated region
  $region14: #{net_forward.1} parent=0 // pred_check
    _
  $region15: #{net_forward.1} parent=0 // pred_check_branch
    %25 = sbr.rel (0) target = $region17
  $region16: #{net_forward.1} parent=0 // pred_region
    _
  $region17: #{net_forward.1} parent=0 // pred_fallthru
    _
  // Predicated region
  $region18: #{net_forward.1} parent=0 // pred_check
    _
  $region19: #{net_forward.1} parent=0 // pred_check_branch
    %27 = sbr.rel (0) target = $region21
  $region20: #{net_forward.1} parent=0 // pred_region
    _
  $region21: #{net_forward.1} parent=0 // pred_fallthru
    _
  // Predicated region
  $region22: #{net_forward.1} parent=0 // pred_check
    _
  $region23: #{net_forward.1} parent=0 // pred_check_branch
    %29 = sbr.rel (0) target = $region25
  $region24: #{net_forward.1} parent=0 // pred_region
    _
  $region25: #{net_forward.1} parent=0 // pred_fallthru
    _
  // Predicated region
  $region26: #{net_forward.1} parent=0 // pred_check
    _
  $region27: #{net_forward.1} parent=0 // pred_check_branch
    %31 = sbr.rel (0) target = $region29
  $region28: #{net_forward.1} parent=0 // pred_region
    _
  $region29: #{net_forward.1} parent=0 // pred_fallthru
    _
  // Predicated region
  $region30: #{net_forward.1} parent=0 // pred_check
    _
  $region31: #{net_forward.1} parent=0 // pred_check_branch
    %33 = sbr.rel (0) target = $region33
  $region32: #{net_forward.1} parent=0 // pred_region
    _
  $region33: #{net_forward.1} parent=0 // pred_fallthru
    _
  // Predicated region
  $region34: #{net_forward.1} parent=0 // pred_check
    _
  $region35: #{net_forward.1} parent=0 // pred_check_branch
    %35 = sbr.rel (0) target = $region37
  $region36: #{net_forward.1} parent=0 // pred_region
    _
  $region37: #{net_forward.1} parent=0 // pred_fallthru
    _
  // Predicated region
  $region38: #{net_forward.1} parent=0 // pred_check
    _
  $region39: #{net_forward.1} parent=0 // pred_check_branch
    %37 = sbr.rel (0) target = $region41
  $region40: #{net_forward.1} parent=0 // pred_region
    _
  $region41: #{net_forward.1} parent=0 // pred_fallthru
    _
  // Predicated region
  $region42: #{net_forward.1} parent=0 // pred_check
    _
  $region43: #{net_forward.1} parent=0 // pred_check_branch
    %39 = sbr.rel (0) target = $region45
  $region44: #{net_forward.1} parent=0 // pred_region
    _
  $region45: #{net_forward.1} parent=0 // pred_fallthru
    _
  %v40 = vld [vmem:[%s0] sm:$0xff]
  %v41 = vld [vmem:[%s0 + $0x8] sm:$0xff]
  %v42 = vld [vmem:[%s0 + $0x10] sm:$0xff]
  %v43 = vld [vmem:[%s0 + $0x18] sm:$0xff]
  %v44 = vld [vmem:[%s0 + $0x20] sm:$0x1]
  %v45 = vld [vmem:[%s0 + $0x28] sm:$0x1]
  %v46 = vld [vmem:[%s0 + $0x30] sm:$0x1]
  %v47 = vld [vmem:[%s0 + $0x38] sm:$0x1]
  %v48 = vld [vmem:[%s1] sm:$0xff]
  %v49 = vld [vmem:[%s1 + $0x8] sm:$0xff]
  %v50 = vld [vmem:[%s1 + $0x10] sm:$0x3]
  %s51 = scalar_lea.vmem %s1, 24
  %v52 = vld [vmem:[%s51] sm:$0xff]
  %v53 = vld [vmem:[%s51 + $0x8] sm:$0xff]
  %v54 = vld [vmem:[%s51 + $0x10] sm:$0x3]
  %63 = vrot.lane.b32.xlu0 %v40, 127
  %v64 = vpop.permute.xlu0 %63
  %65 = vrot.lane.b32.xlu0 %v41, 127
  %v66 = vpop.permute.xlu0 %65
  %67 = vrot.lane.b32.xlu0 %v42, 127
  %v68 = vpop.permute.xlu0 %67
  %69 = vrot.lane.b32.xlu0 %v43, 127
  %v70 = vpop.permute.xlu0 %69
  %71 = vrot.lane.b32.xlu0 %v44, 127
  %v72 = vpop.permute.xlu0 %71
  %73 = vrot.lane.b32.xlu0 %v45, 127
  %v74 = vpop.permute.xlu0 %73
  %75 = vrot.lane.b32.xlu0 %v46, 127
  %v76 = vpop.permute.xlu0 %75
  %77 = vrot.lane.b32.xlu0 %v47, 127
  %v78 = vpop.permute.xlu0 %77
  %vm79 = vcmask 1039360
  %v80 = vsel %vm79, %v64, %v66
  %v81 = vsel %vm79, %v66, %v68
  %v82 = vsel %vm79, %v68, %v70
  %v83 = vsel %vm79, %v72, %v74
  %v84 = vsel %vm79, %v74, %v76
  %v85 = vsel %vm79, %v76, %v78
  %vm90 = vcmask 72704
  %v92 = vsel %vm90, %v52, 0
  %v95 = vsel %vm90, %v53, 0
  %v98 = vsel %vm90, %v54, 0
  %vm100 = vcmask 1040384
  %v101 = vsel %vm100, %v83, 0
  %v103 = vsel %vm100, %v84, 0
  %v105 = vsel %vm100, %v85, 0
  %v107 = vsel %vm100, %v78, 0
  %109 = vmatpush.msra.mxu0 0.0
  %110 = vmatpush.msra.mxu0 0.0
  %111 = vmatpush.msra.mxu0 0.0
  %112 = vmatpush.msra.mxu0 0.0
  %113 = vmatpush.msra.mxu0 0.0
  %114 = vmatpush.msra.mxu0 0.0
  %115 = vmatpush.msra.mxu0 0.0
  %116 = vmatpush.msra.mxu0 0.0
  %117 = vmatpush.msra.mxu0 0.0
  %118 = vmatpush.msra.mxu0 0.0
  %119 = vmatpush.msra.mxu0 0.0
  %120 = vmatpush.msra.mxu0 0.0
  %121 = vmatpush.msra.mxu0 0.0
  %122 = vmatpush.msra.mxu0 0.0
  %123 = vmatpush.msra.mxu0 %v101
  %124 = vmatpush.msra.mxu0 %v80
  %125 = vmatmul.f32.gmra.mxu0 %v92
  %v126 = vpop.f32.mrf.mxu0
  %v127 = vadd.f32 0.0, %v126
  %128 = vmatmul.f32.gmra.mxu0 %v95
  %v129 = vpop.f32.mrf.mxu0
  %v130 = vadd.f32 0.0, %v129
  %131 = vmatmul.f32.gmra.mxu0 %v98
  %v132 = vpop.f32.mrf.mxu0
  %v133 = vadd.f32 0.0, %v132
  %134 = vdwg.mxu0
  %135 = vmatpush.msra.mxu0 0.0
  %136 = vmatpush.msra.mxu0 0.0
  %137 = vmatpush.msra.mxu0 0.0
  %138 = vmatpush.msra.mxu0 0.0
  %139 = vmatpush.msra.mxu0 0.0
  %140 = vmatpush.msra.mxu0 0.0
  %141 = vmatpush.msra.mxu0 0.0
  %142 = vmatpush.msra.mxu0 0.0
  %143 = vmatpush.msra.mxu0 0.0
  %144 = vmatpush.msra.mxu0 0.0
  %145 = vmatpush.msra.mxu0 0.0
  %146 = vmatpush.msra.mxu0 0.0
  %147 = vmatpush.msra.mxu0 0.0
  %148 = vmatpush.msra.mxu0 0.0
  %149 = vmatpush.msra.mxu0 %v103
  %150 = vmatpush.msra.mxu0 %v81
  %151 = vmatmul.f32.gmra.mxu0 %v92
  %v152 = vpop.f32.mrf.mxu0
  %v153 = vadd.f32 0.0, %v152
  %154 = vmatmul.f32.gmra.mxu0 %v95
  %v155 = vpop.f32.mrf.mxu0
  %v156 = vadd.f32 0.0, %v155
  %157 = vmatmul.f32.gmra.mxu0 %v98
  %v158 = vpop.f32.mrf.mxu0
  %v159 = vadd.f32 0.0, %v158
  %160 = vdwg.mxu0
  %161 = vmatpush.msra.mxu0 0.0
  %162 = vmatpush.msra.mxu0 0.0
  %163 = vmatpush.msra.mxu0 0.0
  %164 = vmatpush.msra.mxu0 0.0
  %165 = vmatpush.msra.mxu0 0.0
  %166 = vmatpush.msra.mxu0 0.0
  %167 = vmatpush.msra.mxu0 0.0
  %168 = vmatpush.msra.mxu0 0.0
  %169 = vmatpush.msra.mxu0 0.0
  %170 = vmatpush.msra.mxu0 0.0
  %171 = vmatpush.msra.mxu0 0.0
  %172 = vmatpush.msra.mxu0 0.0
  %173 = vmatpush.msra.mxu0 0.0
  %174 = vmatpush.msra.mxu0 0.0
  %175 = vmatpush.msra.mxu0 %v105
  %176 = vmatpush.msra.mxu0 %v82
  %177 = vmatmul.f32.gmra.mxu0 %v92
  %v178 = vpop.f32.mrf.mxu0
  %v179 = vadd.f32 0.0, %v178
  %180 = vmatmul.f32.gmra.mxu0 %v95
  %v181 = vpop.f32.mrf.mxu0
  %v182 = vadd.f32 0.0, %v181
  %183 = vmatmul.f32.gmra.mxu0 %v98
  %v184 = vpop.f32.mrf.mxu0
  %v185 = vadd.f32 0.0, %v184
  %186 = vdwg.mxu0
  %187 = vmatpush.msra.mxu0 0.0
  %188 = vmatpush.msra.mxu0 0.0
  %189 = vmatpush.msra.mxu0 0.0
  %190 = vmatpush.msra.mxu0 0.0
  %191 = vmatpush.msra.mxu0 0.0
  %192 = vmatpush.msra.mxu0 0.0
  %193 = vmatpush.msra.mxu0 0.0
  %194 = vmatpush.msra.mxu0 0.0
  %195 = vmatpush.msra.mxu0 0.0
  %196 = vmatpush.msra.mxu0 0.0
  %197 = vmatpush.msra.mxu0 0.0
  %198 = vmatpush.msra.mxu0 0.0
  %199 = vmatpush.msra.mxu0 0.0
  %200 = vmatpush.msra.mxu0 0.0
  %201 = vmatpush.msra.mxu0 %v107
  %202 = vmatpush.msra.mxu0 %v70
  %203 = vmatmul.f32.gmra.mxu0 %v92
  %v204 = vpop.f32.mrf.mxu0
  %v205 = vadd.f32 0.0, %v204
  %206 = vmatmul.f32.gmra.mxu0 %v95
  %v207 = vpop.f32.mrf.mxu0
  %v208 = vadd.f32 0.0, %v207
  %209 = vmatmul.f32.gmra.mxu0 %v98
  %v210 = vpop.f32.mrf.mxu0
  %v211 = vadd.f32 0.0, %v210
  %212 = vdwg.mxu0
  %v214 = vsel %vm90, %v48, 0
  %v217 = vsel %vm90, %v49, 0
  %v220 = vsel %vm90, %v50, 0
  %v222 = vsel %vm100, %v44, 0
  %v224 = vsel %vm100, %v45, 0
  %v226 = vsel %vm100, %v46, 0
  %v228 = vsel %vm100, %v47, 0
  %230 = vmatpush.msra.mxu0 0.0
  %231 = vmatpush.msra.mxu0 0.0
  %232 = vmatpush.msra.mxu0 0.0
  %233 = vmatpush.msra.mxu0 0.0
  %234 = vmatpush.msra.mxu0 0.0
  %235 = vmatpush.msra.mxu0 0.0
  %236 = vmatpush.msra.mxu0 0.0
  %237 = vmatpush.msra.mxu0 0.0
  %238 = vmatpush.msra.mxu0 0.0
  %239 = vmatpush.msra.mxu0 0.0
  %240 = vmatpush.msra.mxu0 0.0
  %241 = vmatpush.msra.mxu0 0.0
  %242 = vmatpush.msra.mxu0 0.0
  %243 = vmatpush.msra.mxu0 0.0
  %244 = vmatpush.msra.mxu0 %v222
  %245 = vmatpush.msra.mxu0 %v40
  %246 = vmatmul.f32.gmra.mxu0 %v214
  %v247 = vpop.f32.mrf.mxu0
  %v248 = vadd.f32 %v127, %v247
  %249 = vmatmul.f32.gmra.mxu0 %v217
  %v250 = vpop.f32.mrf.mxu0
  %v251 = vadd.f32 %v130, %v250
  %252 = vmatmul.f32.gmra.mxu0 %v220
  %v253 = vpop.f32.mrf.mxu0
  %v254 = vadd.f32 %v133, %v253
  %255 = vdwg.mxu0
  %256 = vmatpush.msra.mxu0 0.0
  %257 = vmatpush.msra.mxu0 0.0
  %258 = vmatpush.msra.mxu0 0.0
  %259 = vmatpush.msra.mxu0 0.0
  %260 = vmatpush.msra.mxu0 0.0
  %261 = vmatpush.msra.mxu0 0.0
  %262 = vmatpush.msra.mxu0 0.0
  %263 = vmatpush.msra.mxu0 0.0
  %264 = vmatpush.msra.mxu0 0.0
  %265 = vmatpush.msra.mxu0 0.0
  %266 = vmatpush.msra.mxu0 0.0
  %267 = vmatpush.msra.mxu0 0.0
  %268 = vmatpush.msra.mxu0 0.0
  %269 = vmatpush.msra.mxu0 0.0
  %270 = vmatpush.msra.mxu0 %v224
  %271 = vmatpush.msra.mxu0 %v41
  %272 = vmatmul.f32.gmra.mxu0 %v214
  %v273 = vpop.f32.mrf.mxu0
  %v274 = vadd.f32 %v153, %v273
  %275 = vmatmul.f32.gmra.mxu0 %v217
  %v276 = vpop.f32.mrf.mxu0
  %v277 = vadd.f32 %v156, %v276
  %278 = vmatmul.f32.gmra.mxu0 %v220
  %v279 = vpop.f32.mrf.mxu0
  %v280 = vadd.f32 %v159, %v279
  %281 = vdwg.mxu0
  %282 = vmatpush.msra.mxu0 0.0
  %283 = vmatpush.msra.mxu0 0.0
  %284 = vmatpush.msra.mxu0 0.0
  %285 = vmatpush.msra.mxu0 0.0
  %286 = vmatpush.msra.mxu0 0.0
  %287 = vmatpush.msra.mxu0 0.0
  %288 = vmatpush.msra.mxu0 0.0
  %289 = vmatpush.msra.mxu0 0.0
  %290 = vmatpush.msra.mxu0 0.0
  %291 = vmatpush.msra.mxu0 0.0
  %292 = vmatpush.msra.mxu0 0.0
  %293 = vmatpush.msra.mxu0 0.0
  %294 = vmatpush.msra.mxu0 0.0
  %295 = vmatpush.msra.mxu0 0.0
  %296 = vmatpush.msra.mxu0 %v226
  %297 = vmatpush.msra.mxu0 %v42
  %298 = vmatmul.f32.gmra.mxu0 %v214
  %v299 = vpop.f32.mrf.mxu0
  %v300 = vadd.f32 %v179, %v299
  %301 = vmatmul.f32.gmra.mxu0 %v217
  %v302 = vpop.f32.mrf.mxu0
  %v303 = vadd.f32 %v182, %v302
  %304 = vmatmul.f32.gmra.mxu0 %v220
  %v305 = vpop.f32.mrf.mxu0
  %v306 = vadd.f32 %v185, %v305
  %307 = vdwg.mxu0
  %308 = vmatpush.msra.mxu0 0.0
  %309 = vmatpush.msra.mxu0 0.0
  %310 = vmatpush.msra.mxu0 0.0
  %311 = vmatpush.msra.mxu0 0.0
  %312 = vmatpush.msra.mxu0 0.0
  %313 = vmatpush.msra.mxu0 0.0
  %314 = vmatpush.msra.mxu0 0.0
  %315 = vmatpush.msra.mxu0 0.0
  %316 = vmatpush.msra.mxu0 0.0
  %317 = vmatpush.msra.mxu0 0.0
  %318 = vmatpush.msra.mxu0 0.0
  %319 = vmatpush.msra.mxu0 0.0
  %320 = vmatpush.msra.mxu0 0.0
  %321 = vmatpush.msra.mxu0 0.0
  %322 = vmatpush.msra.mxu0 %v228
  %323 = vmatpush.msra.mxu0 %v43
  %324 = vmatmul.f32.gmra.mxu0 %v214
  %v325 = vpop.f32.mrf.mxu0
  %v326 = vadd.f32 %v205, %v325
  %327 = vmatmul.f32.gmra.mxu0 %v217
  %v328 = vpop.f32.mrf.mxu0
  %v329 = vadd.f32 %v208, %v328
  %330 = vmatmul.f32.gmra.mxu0 %v220
  %v331 = vpop.f32.mrf.mxu0
  %v332 = vadd.f32 %v211, %v331
  %333 = vdwg.mxu0
  %s334 = scalar_lea.vmem %s1, 48
  %v335 = vld [vmem:[%s334] sm:$0xff]
  %v336 = vld [vmem:[%s334 + $0x8] sm:$0xff]
  %v337 = vld [vmem:[%s334 + $0x10] sm:$0x3]
  %338 = vrot.lane.b32.xlu0 %v40, 126
  %v339 = vpop.permute.xlu0 %338
  %340 = vrot.lane.b32.xlu0 %v41, 126
  %v341 = vpop.permute.xlu0 %340
  %342 = vrot.lane.b32.xlu0 %v42, 126
  %v343 = vpop.permute.xlu0 %342
  %344 = vrot.lane.b32.xlu0 %v43, 126
  %v345 = vpop.permute.xlu0 %344
  %346 = vrot.lane.b32.xlu0 %v44, 126
  %v347 = vpop.permute.xlu0 %346
  %348 = vrot.lane.b32.xlu0 %v45, 126
  %v349 = vpop.permute.xlu0 %348
  %350 = vrot.lane.b32.xlu0 %v46, 126
  %v351 = vpop.permute.xlu0 %350
  %352 = vrot.lane.b32.xlu0 %v47, 126
  %v353 = vpop.permute.xlu0 %352
  %vm354 = vcmask 1031168
  %v355 = vsel %vm354, %v339, %v341
  %v356 = vsel %vm354, %v341, %v343
  %v357 = vsel %vm354, %v343, %v345
  %v358 = vsel %vm354, %v347, %v349
  %v359 = vsel %vm354, %v349, %v351
  %v360 = vsel %vm354, %v351, %v353
  %v366 = vsel %vm90, %v335, 0
  %v369 = vsel %vm90, %v336, 0
  %v372 = vsel %vm90, %v337, 0
  %v374 = vsel %vm100, %v358, 0
  %v376 = vsel %vm100, %v359, 0
  %v378 = vsel %vm100, %v360, 0
  %v380 = vsel %vm100, %v353, 0
  %382 = vmatpush.msra.mxu0 0.0
  %383 = vmatpush.msra.mxu0 0.0
  %384 = vmatpush.msra.mxu0 0.0
  %385 = vmatpush.msra.mxu0 0.0
  %386 = vmatpush.msra.mxu0 0.0
  %387 = vmatpush.msra.mxu0 0.0
  %388 = vmatpush.msra.mxu0 0.0
  %389 = vmatpush.msra.mxu0 0.0
  %390 = vmatpush.msra.mxu0 0.0
  %391 = vmatpush.msra.mxu0 0.0
  %392 = vmatpush.msra.mxu0 0.0
  %393 = vmatpush.msra.mxu0 0.0
  %394 = vmatpush.msra.mxu0 0.0
  %395 = vmatpush.msra.mxu0 0.0
  %396 = vmatpush.msra.mxu0 %v374
  %397 = vmatpush.msra.mxu0 %v355
  %398 = vmatmul.f32.gmra.mxu0 %v366
  %v399 = vpop.f32.mrf.mxu0
  %v400 = vadd.f32 0.0, %v399
  %401 = vmatmul.f32.gmra.mxu0 %v369
  %v402 = vpop.f32.mrf.mxu0
  %v403 = vadd.f32 0.0, %v402
  %404 = vmatmul.f32.gmra.mxu0 %v372
  %v405 = vpop.f32.mrf.mxu0
  %v406 = vadd.f32 0.0, %v405
  %407 = vdwg.mxu0
  %408 = vmatpush.msra.mxu0 0.0
  %409 = vmatpush.msra.mxu0 0.0
  %410 = vmatpush.msra.mxu0 0.0
  %411 = vmatpush.msra.mxu0 0.0
  %412 = vmatpush.msra.mxu0 0.0
  %413 = vmatpush.msra.mxu0 0.0
  %414 = vmatpush.msra.mxu0 0.0
  %415 = vmatpush.msra.mxu0 0.0
  %416 = vmatpush.msra.mxu0 0.0
  %417 = vmatpush.msra.mxu0 0.0
  %418 = vmatpush.msra.mxu0 0.0
  %419 = vmatpush.msra.mxu0 0.0
  %420 = vmatpush.msra.mxu0 0.0
  %421 = vmatpush.msra.mxu0 0.0
  %422 = vmatpush.msra.mxu0 %v376
  %423 = vmatpush.msra.mxu0 %v356
  %424 = vmatmul.f32.gmra.mxu0 %v366
  %v425 = vpop.f32.mrf.mxu0
  %v426 = vadd.f32 0.0, %v425
  %427 = vmatmul.f32.gmra.mxu0 %v369
  %v428 = vpop.f32.mrf.mxu0
  %v429 = vadd.f32 0.0, %v428
  %430 = vmatmul.f32.gmra.mxu0 %v372
  %v431 = vpop.f32.mrf.mxu0
  %v432 = vadd.f32 0.0, %v431
  %433 = vdwg.mxu0
  %434 = vmatpush.msra.mxu0 0.0
  %435 = vmatpush.msra.mxu0 0.0
  %436 = vmatpush.msra.mxu0 0.0
  %437 = vmatpush.msra.mxu0 0.0
  %438 = vmatpush.msra.mxu0 0.0
  %439 = vmatpush.msra.mxu0 0.0
  %440 = vmatpush.msra.mxu0 0.0
  %441 = vmatpush.msra.mxu0 0.0
  %442 = vmatpush.msra.mxu0 0.0
  %443 = vmatpush.msra.mxu0 0.0
  %444 = vmatpush.msra.mxu0 0.0
  %445 = vmatpush.msra.mxu0 0.0
  %446 = vmatpush.msra.mxu0 0.0
  %447 = vmatpush.msra.mxu0 0.0
  %448 = vmatpush.msra.mxu0 %v378
  %449 = vmatpush.msra.mxu0 %v357
  %450 = vmatmul.f32.gmra.mxu0 %v366
  %v451 = vpop.f32.mrf.mxu0
  %v452 = vadd.f32 0.0, %v451
  %453 = vmatmul.f32.gmra.mxu0 %v369
  %v454 = vpop.f32.mrf.mxu0
  %v455 = vadd.f32 0.0, %v454
  %456 = vmatmul.f32.gmra.mxu0 %v372
  %v457 = vpop.f32.mrf.mxu0
  %v458 = vadd.f32 0.0, %v457
  %459 = vdwg.mxu0
  %460 = vmatpush.msra.mxu0 0.0
  %461 = vmatpush.msra.mxu0 0.0
  %462 = vmatpush.msra.mxu0 0.0
  %463 = vmatpush.msra.mxu0 0.0
  %464 = vmatpush.msra.mxu0 0.0
  %465 = vmatpush.msra.mxu0 0.0
  %466 = vmatpush.msra.mxu0 0.0
  %467 = vmatpush.msra.mxu0 0.0
  %468 = vmatpush.msra.mxu0 0.0
  %469 = vmatpush.msra.mxu0 0.0
  %470 = vmatpush.msra.mxu0 0.0
  %471 = vmatpush.msra.mxu0 0.0
  %472 = vmatpush.msra.mxu0 0.0
  %473 = vmatpush.msra.mxu0 0.0
  %474 = vmatpush.msra.mxu0 %v380
  %475 = vmatpush.msra.mxu0 %v345
  %476 = vmatmul.f32.gmra.mxu0 %v366
  %v477 = vpop.f32.mrf.mxu0
  %v478 = vadd.f32 0.0, %v477
  %479 = vmatmul.f32.gmra.mxu0 %v369
  %v480 = vpop.f32.mrf.mxu0
  %v481 = vadd.f32 0.0, %v480
  %482 = vmatmul.f32.gmra.mxu0 %v372
  %v483 = vpop.f32.mrf.mxu0
  %v484 = vadd.f32 0.0, %v483
  %485 = vdwg.mxu0
  %v486 = vadd.f32 %v248, %v400
  %v487 = vadd.f32 %v274, %v426
  %v488 = vadd.f32 %v300, %v452
  %v489 = vadd.f32 %v326, %v478
  %v490 = vadd.f32 %v251, %v403
  %v491 = vadd.f32 %v277, %v429
  %v492 = vadd.f32 %v303, %v455
  %v493 = vadd.f32 %v329, %v481
  %v494 = vadd.f32 %v254, %v406
  %v495 = vadd.f32 %v280, %v432
  %v496 = vadd.f32 %v306, %v458
  %v497 = vadd.f32 %v332, %v484
  %v498 = vld [vmem:[%s2] sm:$0xff]
  %v499 = vld [vmem:[%s2 + $0x8] sm:$0xff]
  %v500 = vld [vmem:[%s2 + $0x10] sm:$0x3]
  %502 = vset.pattern.permute.xlu0 0
  %503 = vperm.xlu0 %502, %v498
  %v504 = vpop.permute.xlu0 %503
  %507 = vset.pattern.permute.xlu0 0
  %508 = vperm.xlu0 %507, %v499
  %v509 = vpop.permute.xlu0 %508
  %512 = vset.pattern.permute.xlu0 0
  %513 = vperm.xlu0 %512, %v500
  %v514 = vpop.permute.xlu0 %513
  %v516 = vadd.f32 %v486, %v504
  %v517 = vadd.f32 %v487, %v504
  %v518 = vadd.f32 %v488, %v504
  %v519 = vadd.f32 %v489, %v504
  %v520 = vadd.f32 %v490, %v509
  %v521 = vadd.f32 %v491, %v509
  %v522 = vadd.f32 %v492, %v509
  %v523 = vadd.f32 %v493, %v509
  %v524 = vadd.f32 %v494, %v514
  %v525 = vadd.f32 %v495, %v514
  %v526 = vadd.f32 %v496, %v514
  %v527 = vadd.f32 %v497, %v514
  %v528 = vmax.f32 %v516, 0.0
  %v529 = vmax.f32 %v517, 0.0
  %v530 = vmax.f32 %v518, 0.0
  %v531 = vmax.f32 %v519, 0.0
  %v532 = vmax.f32 %v520, 0.0
  %v533 = vmax.f32 %v521, 0.0
  %v534 = vmax.f32 %v522, 0.0
  %v535 = vmax.f32 %v523, 0.0
  %v536 = vmax.f32 %v524, 0.0
  %v537 = vmax.f32 %v525, 0.0
  %v538 = vmax.f32 %v526, 0.0
  %v539 = vmax.f32 %v527, 0.0
  %v540 = vld [vmem:[%s3] sm:$0xff]
  %v541 = vld [vmem:[%s3 + $0x8] sm:$0xff]
  %v542 = vld [vmem:[%s3 + $0x10] sm:$0xff]
  %v543 = vld [vmem:[%s3 + $0x18] sm:$0xff]
  %v544 = vld [vmem:[%s3 + $0x20] sm:$0xf]
  %s545 = scalar_lea.vmem %s3, 40
  %v546 = vld [vmem:[%s545] sm:$0xff]
  %v547 = vld [vmem:[%s545 + $0x8] sm:$0xff]
  %v548 = vld [vmem:[%s545 + $0x10] sm:$0xff]
  %v549 = vld [vmem:[%s545 + $0x18] sm:$0xff]
  %v550 = vld [vmem:[%s545 + $0x20] sm:$0xf]
  %563 = vrot.lane.b32.xlu0 %v528, 127
  %v564 = vpop.permute.xlu0 %563
  %565 = vrot.lane.b32.xlu0 %v529, 127
  %v566 = vpop.permute.xlu0 %565
  %567 = vrot.lane.b32.xlu0 %v530, 127
  %v568 = vpop.permute.xlu0 %567
  %569 = vrot.lane.b32.xlu0 %v531, 127
  %v570 = vpop.permute.xlu0 %569
  %571 = vrot.lane.b32.xlu0 %v532, 127
  %v572 = vpop.permute.xlu0 %571
  %573 = vrot.lane.b32.xlu0 %v533, 127
  %v574 = vpop.permute.xlu0 %573
  %575 = vrot.lane.b32.xlu0 %v534, 127
  %v576 = vpop.permute.xlu0 %575
  %577 = vrot.lane.b32.xlu0 %v535, 127
  %v578 = vpop.permute.xlu0 %577
  %579 = vrot.lane.b32.xlu0 %v536, 127
  %v580 = vpop.permute.xlu0 %579
  %581 = vrot.lane.b32.xlu0 %v537, 127
  %v582 = vpop.permute.xlu0 %581
  %583 = vrot.lane.b32.xlu0 %v538, 127
  %v584 = vpop.permute.xlu0 %583
  %585 = vrot.lane.b32.xlu0 %v539, 127
  %v586 = vpop.permute.xlu0 %585
  %v587 = vsel %vm79, %v564, %v566
  %v588 = vsel %vm79, %v566, %v568
  %v589 = vsel %vm79, %v568, %v570
  %v590 = vsel %vm79, %v572, %v574
  %v591 = vsel %vm79, %v574, %v576
  %v592 = vsel %vm79, %v576, %v578
  %v593 = vsel %vm79, %v580, %v582
  %v594 = vsel %vm79, %v582, %v584
  %v595 = vsel %vm79, %v584, %v586
  %vm604 = vcmask 146432
  %v606 = vsel %vm604, %v546, 0
  %v609 = vsel %vm604, %v547, 0
  %v612 = vsel %vm604, %v548, 0
  %v615 = vsel %vm604, %v549, 0
  %v618 = vsel %vm604, %v550, 0
  %vm620 = vcmask 1041408
  %v621 = vsel %vm620, %v593, 0
  %v623 = vsel %vm620, %v594, 0
  %v625 = vsel %vm620, %v595, 0
  %v627 = vsel %vm620, %v586, 0
  %629 = vmatpush.msra.mxu0 0.0
  %630 = vmatpush.msra.mxu0 0.0
  %631 = vmatpush.msra.mxu0 0.0
  %632 = vmatpush.msra.mxu0 0.0
  %633 = vmatpush.msra.mxu0 0.0
  %634 = vmatpush.msra.mxu0 0.0
  %635 = vmatpush.msra.mxu0 0.0
  %636 = vmatpush.msra.mxu0 0.0
  %637 = vmatpush.msra.mxu0 0.0
  %638 = vmatpush.msra.mxu0 0.0
  %639 = vmatpush.msra.mxu0 0.0
  %640 = vmatpush.msra.mxu0 0.0
  %641 = vmatpush.msra.mxu0 0.0
  %642 = vmatpush.msra.mxu0 %v621
  %643 = vmatpush.msra.mxu0 %v590
  %644 = vmatpush.msra.mxu0 %v587
  %645 = vmatmul.f32.gmra.mxu0 %v606
  %v646 = vpop.f32.mrf.mxu0
  %v647 = vadd.f32 0.0, %v646
  %648 = vmatmul.f32.gmra.mxu0 %v609
  %v649 = vpop.f32.mrf.mxu0
  %v650 = vadd.f32 0.0, %v649
  %651 = vmatmul.f32.gmra.mxu0 %v612
  %v652 = vpop.f32.mrf.mxu0
  %v653 = vadd.f32 0.0, %v652
  %654 = vmatmul.f32.gmra.mxu0 %v615
  %v655 = vpop.f32.mrf.mxu0
  %v656 = vadd.f32 0.0, %v655
  %657 = vmatmul.f32.gmra.mxu0 %v618
  %v658 = vpop.f32.mrf.mxu0
  %v659 = vadd.f32 0.0, %v658
  %660 = vdwg.mxu0
  %661 = vmatpush.msra.mxu0 0.0
  %662 = vmatpush.msra.mxu0 0.0
  %663 = vmatpush.msra.mxu0 0.0
  %664 = vmatpush.msra.mxu0 0.0
  %665 = vmatpush.msra.mxu0 0.0
  %666 = vmatpush.msra.mxu0 0.0
  %667 = vmatpush.msra.mxu0 0.0
  %668 = vmatpush.msra.mxu0 0.0
  %669 = vmatpush.msra.mxu0 0.0
  %670 = vmatpush.msra.mxu0 0.0
  %671 = vmatpush.msra.mxu0 0.0
  %672 = vmatpush.msra.mxu0 0.0
  %673 = vmatpush.msra.mxu0 0.0
  %674 = vmatpush.msra.mxu0 %v623
  %675 = vmatpush.msra.mxu0 %v591
  %676 = vmatpush.msra.mxu0 %v588
  %677 = vmatmul.f32.gmra.mxu0 %v606
  %v678 = vpop.f32.mrf.mxu0
  %v679 = vadd.f32 0.0, %v678
  %680 = vmatmul.f32.gmra.mxu0 %v609
  %v681 = vpop.f32.mrf.mxu0
  %v682 = vadd.f32 0.0, %v681
  %683 = vmatmul.f32.gmra.mxu0 %v612
  %v684 = vpop.f32.mrf.mxu0
  %v685 = vadd.f32 0.0, %v684
  %686 = vmatmul.f32.gmra.mxu0 %v615
  %v687 = vpop.f32.mrf.mxu0
  %v688 = vadd.f32 0.0, %v687
  %689 = vmatmul.f32.gmra.mxu0 %v618
  %v690 = vpop.f32.mrf.mxu0
  %v691 = vadd.f32 0.0, %v690
  %692 = vdwg.mxu0
  %693 = vmatpush.msra.mxu0 0.0
  %694 = vmatpush.msra.mxu0 0.0
  %695 = vmatpush.msra.mxu0 0.0
  %696 = vmatpush.msra.mxu0 0.0
  %697 = vmatpush.msra.mxu0 0.0
  %698 = vmatpush.msra.mxu0 0.0
  %699 = vmatpush.msra.mxu0 0.0
  %700 = vmatpush.msra.mxu0 0.0
  %701 = vmatpush.msra.mxu0 0.0
  %702 = vmatpush.msra.mxu0 0.0
  %703 = vmatpush.msra.mxu0 0.0
  %704 = vmatpush.msra.mxu0 0.0
  %705 = vmatpush.msra.mxu0 0.0
  %706 = vmatpush.msra.mxu0 %v625
  %707 = vmatpush.msra.mxu0 %v592
  %708 = vmatpush.msra.mxu0 %v589
  %709 = vmatmul.f32.gmra.mxu0 %v606
  %v710 = vpop.f32.mrf.mxu0
  %v711 = vadd.f32 0.0, %v710
  %712 = vmatmul.f32.gmra.mxu0 %v609
  %v713 = vpop.f32.mrf.mxu0
  %v714 = vadd.f32 0.0, %v713
  %715 = vmatmul.f32.gmra.mxu0 %v612
  %v716 = vpop.f32.mrf.mxu0
  %v717 = vadd.f32 0.0, %v716
  %718 = vmatmul.f32.gmra.mxu0 %v615
  %v719 = vpop.f32.mrf.mxu0
  %v720 = vadd.f32 0.0, %v719
  %721 = vmatmul.f32.gmra.mxu0 %v618
  %v722 = vpop.f32.mrf.mxu0
  %v723 = vadd.f32 0.0, %v722
  %724 = vdwg.mxu0
  %725 = vmatpush.msra.mxu0 0.0
  %726 = vmatpush.msra.mxu0 0.0
  %727 = vmatpush.msra.mxu0 0.0
  %728 = vmatpush.msra.mxu0 0.0
  %729 = vmatpush.msra.mxu0 0.0
  %730 = vmatpush.msra.mxu0 0.0
  %731 = vmatpush.msra.mxu0 0.0
  %732 = vmatpush.msra.mxu0 0.0
  %733 = vmatpush.msra.mxu0 0.0
  %734 = vmatpush.msra.mxu0 0.0
  %735 = vmatpush.msra.mxu0 0.0
  %736 = vmatpush.msra.mxu0 0.0
  %737 = vmatpush.msra.mxu0 0.0
  %738 = vmatpush.msra.mxu0 %v627
  %739 = vmatpush.msra.mxu0 %v578
  %740 = vmatpush.msra.mxu0 %v570
  %741 = vmatmul.f32.gmra.mxu0 %v606
  %v742 = vpop.f32.mrf.mxu0
  %v743 = vadd.f32 0.0, %v742
  %744 = vmatmul.f32.gmra.mxu0 %v609
  %v745 = vpop.f32.mrf.mxu0
  %v746 = vadd.f32 0.0, %v745
  %747 = vmatmul.f32.gmra.mxu0 %v612
  %v748 = vpop.f32.mrf.mxu0
  %v749 = vadd.f32 0.0, %v748
  %750 = vmatmul.f32.gmra.mxu0 %v615
  %v751 = vpop.f32.mrf.mxu0
  %v752 = vadd.f32 0.0, %v751
  %753 = vmatmul.f32.gmra.mxu0 %v618
  %v754 = vpop.f32.mrf.mxu0
  %v755 = vadd.f32 0.0, %v754
  %756 = vdwg.mxu0
  %v758 = vsel %vm604, %v540, 0
  %v761 = vsel %vm604, %v541, 0
  %v764 = vsel %vm604, %v542, 0
  %v767 = vsel %vm604, %v543, 0
  %v770 = vsel %vm604, %v544, 0
  %v772 = vsel %vm620, %v536, 0
  %v774 = vsel %vm620, %v537, 0
  %v776 = vsel %vm620, %v538, 0
  %v778 = vsel %vm620, %v539, 0
  %780 = vmatpush.msra.mxu0 0.0
  %781 = vmatpush.msra.mxu0 0.0
  %782 = vmatpush.msra.mxu0 0.0
  %783 = vmatpush.msra.mxu0 0.0
  %784 = vmatpush.msra.mxu0 0.0
  %785 = vmatpush.msra.mxu0 0.0
  %786 = vmatpush.msra.mxu0 0.0
  %787 = vmatpush.msra.mxu0 0.0
  %788 = vmatpush.msra.mxu0 0.0
  %789 = vmatpush.msra.mxu0 0.0
  %790 = vmatpush.msra.mxu0 0.0
  %791 = vmatpush.msra.mxu0 0.0
  %792 = vmatpush.msra.mxu0 0.0
  %793 = vmatpush.msra.mxu0 %v772
  %794 = vmatpush.msra.mxu0 %v532
  %795 = vmatpush.msra.mxu0 %v528
  %796 = vmatmul.f32.gmra.mxu0 %v758
  %v797 = vpop.f32.mrf.mxu0
  %v798 = vadd.f32 %v647, %v797
  %799 = vmatmul.f32.gmra.mxu0 %v761
  %v800 = vpop.f32.mrf.mxu0
  %v801 = vadd.f32 %v650, %v800
  %802 = vmatmul.f32.gmra.mxu0 %v764
  %v803 = vpop.f32.mrf.mxu0
  %v804 = vadd.f32 %v653, %v803
  %805 = vmatmul.f32.gmra.mxu0 %v767
  %v806 = vpop.f32.mrf.mxu0
  %v807 = vadd.f32 %v656, %v806
  %808 = vmatmul.f32.gmra.mxu0 %v770
  %v809 = vpop.f32.mrf.mxu0
  %v810 = vadd.f32 %v659, %v809
  %811 = vdwg.mxu0
  %812 = vmatpush.msra.mxu0 0.0
  %813 = vmatpush.msra.mxu0 0.0
  %814 = vmatpush.msra.mxu0 0.0
  %815 = vmatpush.msra.mxu0 0.0
  %816 = vmatpush.msra.mxu0 0.0
  %817 = vmatpush.msra.mxu0 0.0
  %818 = vmatpush.msra.mxu0 0.0
  %819 = vmatpush.msra.mxu0 0.0
  %820 = vmatpush.msra.mxu0 0.0
  %821 = vmatpush.msra.mxu0 0.0
  %822 = vmatpush.msra.mxu0 0.0
  %823 = vmatpush.msra.mxu0 0.0
  %824 = vmatpush.msra.mxu0 0.0
  %825 = vmatpush.msra.mxu0 %v774
  %826 = vmatpush.msra.mxu0 %v533
  %827 = vmatpush.msra.mxu0 %v529
  %828 = vmatmul.f32.gmra.mxu0 %v758
  %v829 = vpop.f32.mrf.mxu0
  %v830 = vadd.f32 %v679, %v829
  %831 = vmatmul.f32.gmra.mxu0 %v761
  %v832 = vpop.f32.mrf.mxu0
  %v833 = vadd.f32 %v682, %v832
  %834 = vmatmul.f32.gmra.mxu0 %v764
  %v835 = vpop.f32.mrf.mxu0
  %v836 = vadd.f32 %v685, %v835
  %837 = vmatmul.f32.gmra.mxu0 %v767
  %v838 = vpop.f32.mrf.mxu0
  %v839 = vadd.f32 %v688, %v838
  %840 = vmatmul.f32.gmra.mxu0 %v770
  %v841 = vpop.f32.mrf.mxu0
  %v842 = vadd.f32 %v691, %v841
  %843 = vdwg.mxu0
  %844 = vmatpush.msra.mxu0 0.0
  %845 = vmatpush.msra.mxu0 0.0
  %846 = vmatpush.msra.mxu0 0.0
  %847 = vmatpush.msra.mxu0 0.0
  %848 = vmatpush.msra.mxu0 0.0
  %849 = vmatpush.msra.mxu0 0.0
  %850 = vmatpush.msra.mxu0 0.0
  %851 = vmatpush.msra.mxu0 0.0
  %852 = vmatpush.msra.mxu0 0.0
  %853 = vmatpush.msra.mxu0 0.0
  %854 = vmatpush.msra.mxu0 0.0
  %855 = vmatpush.msra.mxu0 0.0
  %856 = vmatpush.msra.mxu0 0.0
  %857 = vmatpush.msra.mxu0 %v776
  %858 = vmatpush.msra.mxu0 %v534
  %859 = vmatpush.msra.mxu0 %v530
  %860 = vmatmul.f32.gmra.mxu0 %v758
  %v861 = vpop.f32.mrf.mxu0
  %v862 = vadd.f32 %v711, %v861
  %863 = vmatmul.f32.gmra.mxu0 %v761
  %v864 = vpop.f32.mrf.mxu0
  %v865 = vadd.f32 %v714, %v864
  %866 = vmatmul.f32.gmra.mxu0 %v764
  %v867 = vpop.f32.mrf.mxu0
  %v868 = vadd.f32 %v717, %v867
  %869 = vmatmul.f32.gmra.mxu0 %v767
  %v870 = vpop.f32.mrf.mxu0
  %v871 = vadd.f32 %v720, %v870
  %872 = vmatmul.f32.gmra.mxu0 %v770
  %v873 = vpop.f32.mrf.mxu0
  %v874 = vadd.f32 %v723, %v873
  %875 = vdwg.mxu0
  %876 = vmatpush.msra.mxu0 0.0
  %877 = vmatpush.msra.mxu0 0.0
  %878 = vmatpush.msra.mxu0 0.0
  %879 = vmatpush.msra.mxu0 0.0
  %880 = vmatpush.msra.mxu0 0.0
  %881 = vmatpush.msra.mxu0 0.0
  %882 = vmatpush.msra.mxu0 0.0
  %883 = vmatpush.msra.mxu0 0.0
  %884 = vmatpush.msra.mxu0 0.0
  %885 = vmatpush.msra.mxu0 0.0
  %886 = vmatpush.msra.mxu0 0.0
  %887 = vmatpush.msra.mxu0 0.0
  %888 = vmatpush.msra.mxu0 0.0
  %889 = vmatpush.msra.mxu0 %v778
  %890 = vmatpush.msra.mxu0 %v535
  %891 = vmatpush.msra.mxu0 %v531
  %892 = vmatmul.f32.gmra.mxu0 %v758
  %v893 = vpop.f32.mrf.mxu0
  %v894 = vadd.f32 %v743, %v893
  %895 = vmatmul.f32.gmra.mxu0 %v761
  %v896 = vpop.f32.mrf.mxu0
  %v897 = vadd.f32 %v746, %v896
  %898 = vmatmul.f32.gmra.mxu0 %v764
  %v899 = vpop.f32.mrf.mxu0
  %v900 = vadd.f32 %v749, %v899
  %901 = vmatmul.f32.gmra.mxu0 %v767
  %v902 = vpop.f32.mrf.mxu0
  %v903 = vadd.f32 %v752, %v902
  %904 = vmatmul.f32.gmra.mxu0 %v770
  %v905 = vpop.f32.mrf.mxu0
  %v906 = vadd.f32 %v755, %v905
  %907 = vdwg.mxu0
  %s908 = scalar_lea.vmem %s3, 80
  %v909 = vld [vmem:[%s908] sm:$0xff]
  %v910 = vld [vmem:[%s908 + $0x8] sm:$0xff]
  %v911 = vld [vmem:[%s908 + $0x10] sm:$0xff]
  %v912 = vld [vmem:[%s908 + $0x18] sm:$0xff]
  %v913 = vld [vmem:[%s908 + $0x20] sm:$0xf]
  %914 = vrot.lane.b32.xlu0 %v528, 126
  %v915 = vpop.permute.xlu0 %914
  %916 = vrot.lane.b32.xlu0 %v529, 126
  %v917 = vpop.permute.xlu0 %916
  %918 = vrot.lane.b32.xlu0 %v530, 126
  %v919 = vpop.permute.xlu0 %918
  %920 = vrot.lane.b32.xlu0 %v531, 126
  %v921 = vpop.permute.xlu0 %920
  %922 = vrot.lane.b32.xlu0 %v532, 126
  %v923 = vpop.permute.xlu0 %922
  %924 = vrot.lane.b32.xlu0 %v533, 126
  %v925 = vpop.permute.xlu0 %924
  %926 = vrot.lane.b32.xlu0 %v534, 126
  %v927 = vpop.permute.xlu0 %926
  %928 = vrot.lane.b32.xlu0 %v535, 126
  %v929 = vpop.permute.xlu0 %928
  %930 = vrot.lane.b32.xlu0 %v536, 126
  %v931 = vpop.permute.xlu0 %930
  %932 = vrot.lane.b32.xlu0 %v537, 126
  %v933 = vpop.permute.xlu0 %932
  %934 = vrot.lane.b32.xlu0 %v538, 126
  %v935 = vpop.permute.xlu0 %934
  %936 = vrot.lane.b32.xlu0 %v539, 126
  %v937 = vpop.permute.xlu0 %936
  %v938 = vsel %vm354, %v915, %v917
  %v939 = vsel %vm354, %v917, %v919
  %v940 = vsel %vm354, %v919, %v921
  %v941 = vsel %vm354, %v923, %v925
  %v942 = vsel %vm354, %v925, %v927
  %v943 = vsel %vm354, %v927, %v929
  %v944 = vsel %vm354, %v931, %v933
  %v945 = vsel %vm354, %v933, %v935
  %v946 = vsel %vm354, %v935, %v937
  %v956 = vsel %vm604, %v909, 0
  %v959 = vsel %vm604, %v910, 0
  %v962 = vsel %vm604, %v911, 0
  %v965 = vsel %vm604, %v912, 0
  %v968 = vsel %vm604, %v913, 0
  %v970 = vsel %vm620, %v944, 0
  %v972 = vsel %vm620, %v945, 0
  %v974 = vsel %vm620, %v946, 0
  %v976 = vsel %vm620, %v937, 0
  %978 = vmatpush.msra.mxu0 0.0
  %979 = vmatpush.msra.mxu0 0.0
  %980 = vmatpush.msra.mxu0 0.0
  %981 = vmatpush.msra.mxu0 0.0
  %982 = vmatpush.msra.mxu0 0.0
  %983 = vmatpush.msra.mxu0 0.0
  %984 = vmatpush.msra.mxu0 0.0
  %985 = vmatpush.msra.mxu0 0.0
  %986 = vmatpush.msra.mxu0 0.0
  %987 = vmatpush.msra.mxu0 0.0
  %988 = vmatpush.msra.mxu0 0.0
  %989 = vmatpush.msra.mxu0 0.0
  %990 = vmatpush.msra.mxu0 0.0
  %991 = vmatpush.msra.mxu0 %v970
  %992 = vmatpush.msra.mxu0 %v941
  %993 = vmatpush.msra.mxu0 %v938
  %994 = vmatmul.f32.gmra.mxu0 %v956
  %v995 = vpop.f32.mrf.mxu0
  %v996 = vadd.f32 0.0, %v995
  %997 = vmatmul.f32.gmra.mxu0 %v959
  %v998 = vpop.f32.mrf.mxu0
  %v999 = vadd.f32 0.0, %v998
  %1000 = vmatmul.f32.gmra.mxu0 %v962
  %v1001 = vpop.f32.mrf.mxu0
  %v1002 = vadd.f32 0.0, %v1001
  %1003 = vmatmul.f32.gmra.mxu0 %v965
  %v1004 = vpop.f32.mrf.mxu0
  %v1005 = vadd.f32 0.0, %v1004
  %1006 = vmatmul.f32.gmra.mxu0 %v968
  %v1007 = vpop.f32.mrf.mxu0
  %v1008 = vadd.f32 0.0, %v1007
  %1009 = vdwg.mxu0
  %1010 = vmatpush.msra.mxu0 0.0
  %1011 = vmatpush.msra.mxu0 0.0
  %1012 = vmatpush.msra.mxu0 0.0
  %1013 = vmatpush.msra.mxu0 0.0
  %1014 = vmatpush.msra.mxu0 0.0
  %1015 = vmatpush.msra.mxu0 0.0
  %1016 = vmatpush.msra.mxu0 0.0
  %1017 = vmatpush.msra.mxu0 0.0
  %1018 = vmatpush.msra.mxu0 0.0
  %1019 = vmatpush.msra.mxu0 0.0
  %1020 = vmatpush.msra.mxu0 0.0
  %1021 = vmatpush.msra.mxu0 0.0
  %1022 = vmatpush.msra.mxu0 0.0
  %1023 = vmatpush.msra.mxu0 %v972
  %1024 = vmatpush.msra.mxu0 %v942
  %1025 = vmatpush.msra.mxu0 %v939
  %1026 = vmatmul.f32.gmra.mxu0 %v956
  %v1027 = vpop.f32.mrf.mxu0
  %v1028 = vadd.f32 0.0, %v1027
  %1029 = vmatmul.f32.gmra.mxu0 %v959
  %v1030 = vpop.f32.mrf.mxu0
  %v1031 = vadd.f32 0.0, %v1030
  %1032 = vmatmul.f32.gmra.mxu0 %v962
  %v1033 = vpop.f32.mrf.mxu0
  %v1034 = vadd.f32 0.0, %v1033
  %1035 = vmatmul.f32.gmra.mxu0 %v965
  %v1036 = vpop.f32.mrf.mxu0
  %v1037 = vadd.f32 0.0, %v1036
  %1038 = vmatmul.f32.gmra.mxu0 %v968
  %v1039 = vpop.f32.mrf.mxu0
  %v1040 = vadd.f32 0.0, %v1039
  %1041 = vdwg.mxu0
  %1042 = vmatpush.msra.mxu0 0.0
  %1043 = vmatpush.msra.mxu0 0.0
  %1044 = vmatpush.msra.mxu0 0.0
  %1045 = vmatpush.msra.mxu0 0.0
  %1046 = vmatpush.msra.mxu0 0.0
  %1047 = vmatpush.msra.mxu0 0.0
  %1048 = vmatpush.msra.mxu0 0.0
  %1049 = vmatpush.msra.mxu0 0.0
  %1050 = vmatpush.msra.mxu0 0.0
  %1051 = vmatpush.msra.mxu0 0.0
  %1052 = vmatpush.msra.mxu0 0.0
  %1053 = vmatpush.msra.mxu0 0.0
  %1054 = vmatpush.msra.mxu0 0.0
  %1055 = vmatpush.msra.mxu0 %v974
  %1056 = vmatpush.msra.mxu0 %v943
  %1057 = vmatpush.msra.mxu0 %v940
  %1058 = vmatmul.f32.gmra.mxu0 %v956
  %v1059 = vpop.f32.mrf.mxu0
  %v1060 = vadd.f32 0.0, %v1059
  %1061 = vmatmul.f32.gmra.mxu0 %v959
  %v1062 = vpop.f32.mrf.mxu0
  %v1063 = vadd.f32 0.0, %v1062
  %1064 = vmatmul.f32.gmra.mxu0 %v962
  %v1065 = vpop.f32.mrf.mxu0
  %v1066 = vadd.f32 0.0, %v1065
  %1067 = vmatmul.f32.gmra.mxu0 %v965
  %v1068 = vpop.f32.mrf.mxu0
  %v1069 = vadd.f32 0.0, %v1068
  %1070 = vmatmul.f32.gmra.mxu0 %v968
  %v1071 = vpop.f32.mrf.mxu0
  %v1072 = vadd.f32 0.0, %v1071
  %1073 = vdwg.mxu0
  %1074 = vmatpush.msra.mxu0 0.0
  %1075 = vmatpush.msra.mxu0 0.0
  %1076 = vmatpush.msra.mxu0 0.0
  %1077 = vmatpush.msra.mxu0 0.0
  %1078 = vmatpush.msra.mxu0 0.0
  %1079 = vmatpush.msra.mxu0 0.0
  %1080 = vmatpush.msra.mxu0 0.0
  %1081 = vmatpush.msra.mxu0 0.0
  %1082 = vmatpush.msra.mxu0 0.0
  %1083 = vmatpush.msra.mxu0 0.0
  %1084 = vmatpush.msra.mxu0 0.0
  %1085 = vmatpush.msra.mxu0 0.0
  %1086 = vmatpush.msra.mxu0 0.0
  %1087 = vmatpush.msra.mxu0 %v976
  %1088 = vmatpush.msra.mxu0 %v929
  %1089 = vmatpush.msra.mxu0 %v921
  %1090 = vmatmul.f32.gmra.mxu0 %v956
  %v1091 = vpop.f32.mrf.mxu0
  %v1092 = vadd.f32 0.0, %v1091
  %1093 = vmatmul.f32.gmra.mxu0 %v959
  %v1094 = vpop.f32.mrf.mxu0
  %v1095 = vadd.f32 0.0, %v1094
  %1096 = vmatmul.f32.gmra.mxu0 %v962
  %v1097 = vpop.f32.mrf.mxu0
  %v1098 = vadd.f32 0.0, %v1097
  %1099 = vmatmul.f32.gmra.mxu0 %v965
  %v1100 = vpop.f32.mrf.mxu0
  %v1101 = vadd.f32 0.0, %v1100
  %1102 = vmatmul.f32.gmra.mxu0 %v968
  %v1103 = vpop.f32.mrf.mxu0
  %v1104 = vadd.f32 0.0, %v1103
  %1105 = vdwg.mxu0
  %v1106 = vadd.f32 %v798, %v996
  %v1107 = vadd.f32 %v830, %v1028
  %v1108 = vadd.f32 %v862, %v1060
  %v1109 = vadd.f32 %v894, %v1092
  %v1110 = vadd.f32 %v801, %v999
  %v1111 = vadd.f32 %v833, %v1031
  %v1112 = vadd.f32 %v865, %v1063
  %v1113 = vadd.f32 %v897, %v1095
  %v1114 = vadd.f32 %v804, %v1002
  %v1115 = vadd.f32 %v836, %v1034
  %v1116 = vadd.f32 %v868, %v1066
  %v1117 = vadd.f32 %v900, %v1098
  %v1118 = vadd.f32 %v807, %v1005
  %v1119 = vadd.f32 %v839, %v1037
  %v1120 = vadd.f32 %v871, %v1069
  %v1121 = vadd.f32 %v903, %v1101
  %v1122 = vadd.f32 %v810, %v1008
  %v1123 = vadd.f32 %v842, %v1040
  %v1124 = vadd.f32 %v874, %v1072
  %v1125 = vadd.f32 %v906, %v1104
  %v1126 = vld [vmem:[%s4] sm:$0xff]
  %v1127 = vld [vmem:[%s4 + $0x8] sm:$0xff]
  %v1128 = vld [vmem:[%s4 + $0x10] sm:$0xff]
  %v1129 = vld [vmem:[%s4 + $0x18] sm:$0xff]
  %v1130 = vld [vmem:[%s4 + $0x20] sm:$0xf]
  %1132 = vset.pattern.permute.xlu0 0
  %1133 = vperm.xlu0 %1132, %v1126
  %v1134 = vpop.permute.xlu0 %1133
  %1137 = vset.pattern.permute.xlu0 0
  %1138 = vperm.xlu0 %1137, %v1127
  %v1139 = vpop.permute.xlu0 %1138
  %1142 = vset.pattern.permute.xlu0 0
  %1143 = vperm.xlu0 %1142, %v1128
  %v1144 = vpop.permute.xlu0 %1143
  %1147 = vset.pattern.permute.xlu0 0
  %1148 = vperm.xlu0 %1147, %v1129
  %v1149 = vpop.permute.xlu0 %1148
  %1152 = vset.pattern.permute.xlu0 0
  %1153 = vperm.xlu0 %1152, %v1130
  %v1154 = vpop.permute.xlu0 %1153
  %v1156 = vadd.f32 %v1106, %v1134
  %v1157 = vadd.f32 %v1107, %v1134
  %v1158 = vadd.f32 %v1108, %v1134
  %v1159 = vadd.f32 %v1109, %v1134
  %v1160 = vadd.f32 %v1110, %v1139
  %v1161 = vadd.f32 %v1111, %v1139
  %v1162 = vadd.f32 %v1112, %v1139
  %v1163 = vadd.f32 %v1113, %v1139
  %v1164 = vadd.f32 %v1114, %v1144
  %v1165 = vadd.f32 %v1115, %v1144
  %v1166 = vadd.f32 %v1116, %v1144
  %v1167 = vadd.f32 %v1117, %v1144
  %v1168 = vadd.f32 %v1118, %v1149
  %v1169 = vadd.f32 %v1119, %v1149
  %v1170 = vadd.f32 %v1120, %v1149
  %v1171 = vadd.f32 %v1121, %v1149
  %v1172 = vadd.f32 %v1122, %v1154
  %v1173 = vadd.f32 %v1123, %v1154
  %v1174 = vadd.f32 %v1124, %v1154
  %v1175 = vadd.f32 %v1125, %v1154
  %v1176 = vmax.f32 %v1156, 0.0
  %v1177 = vmax.f32 %v1157, 0.0
  %v1178 = vmax.f32 %v1158, 0.0
  %v1179 = vmax.f32 %v1159, 0.0
  %v1180 = vmax.f32 %v1160, 0.0
  %v1181 = vmax.f32 %v1161, 0.0
  %v1182 = vmax.f32 %v1162, 0.0
  %v1183 = vmax.f32 %v1163, 0.0
  %v1184 = vmax.f32 %v1164, 0.0
  %v1185 = vmax.f32 %v1165, 0.0
  %v1186 = vmax.f32 %v1166, 0.0
  %v1187 = vmax.f32 %v1167, 0.0
  %v1188 = vmax.f32 %v1168, 0.0
  %v1189 = vmax.f32 %v1169, 0.0
  %v1190 = vmax.f32 %v1170, 0.0
  %v1191 = vmax.f32 %v1171, 0.0
  %v1192 = vmax.f32 %v1172, 0.0
  %v1193 = vmax.f32 %v1173, 0.0
  %v1194 = vmax.f32 %v1174, 0.0
  %v1195 = vmax.f32 %v1175, 0.0
  %1196 = vst [vmem:[#allocation2] sm:$0xff] %v1176
  %1197 = vst [vmem:[#allocation2 + $0x8] sm:$0xff] %v1177
  %1198 = vst [vmem:[#allocation2 + $0x10] sm:$0xff] %v1178
  %vm1199 = vcmask 982016
  %1200 = vst.msk [vmem:[#allocation2 + $0x18] sm:$0xff] %vm1199, %v1179
  %1201 = vst [vmem:[#allocation2 + $0x20] sm:$0xff] %v1180
  %1202 = vst [vmem:[#allocation2 + $0x28] sm:$0xff] %v1181
  %1203 = vst [vmem:[#allocation2 + $0x30] sm:$0xff] %v1182
  %1204 = vst.msk [vmem:[#allocation2 + $0x38] sm:$0xff] %vm1199, %v1183
  %1205 = vst [vmem:[#allocation2 + $0x40] sm:$0xff] %v1184
  %1206 = vst [vmem:[#allocation2 + $0x48] sm:$0xff] %v1185
  %1207 = vst [vmem:[#allocation2 + $0x50] sm:$0xff] %v1186
  %1208 = vst.msk [vmem:[#allocation2 + $0x58] sm:$0xff] %vm1199, %v1187
  %1209 = vst [vmem:[#allocation2 + $0x60] sm:$0xff] %v1188
  %1210 = vst [vmem:[#allocation2 + $0x68] sm:$0xff] %v1189
  %1211 = vst [vmem:[#allocation2 + $0x70] sm:$0xff] %v1190
  %1212 = vst.msk [vmem:[#allocation2 + $0x78] sm:$0xff] %vm1199, %v1191
  %1213 = vst [vmem:[#allocation2 + $0x80] sm:$0xf] %v1192
  %1214 = vst [vmem:[#allocation2 + $0x88] sm:$0xf] %v1193
  %1215 = vst [vmem:[#allocation2 + $0x90] sm:$0xf] %v1194
  %vm1216 = vcmask 977920
  %1217 = vst.msk [vmem:[#allocation2 + $0x98] sm:$0xf] %vm1216, %v1195
  %vm1218 = vcmask 1048512
  %1219 = vst.msk [vmem:[#allocation2 + $0x18] sm:$0xff] %vm1218, 0.0
  %1220 = vst.msk [vmem:[#allocation2 + $0x38] sm:$0xff] %vm1218, 0.0
  %1221 = vst.msk [vmem:[#allocation2 + $0x58] sm:$0xff] %vm1218, 0.0
  %1222 = vst.msk [vmem:[#allocation2 + $0x78] sm:$0xff] %vm1218, 0.0
  %vm1223 = vcmask 1044416
  %1224 = vst.msk [vmem:[#allocation2 + $0x98] sm:$0xf] %vm1223, 0.0
  %v1225 = vld [vmem:[#allocation2] ss:$8 sm:$0x3]
  %v1226 = vlaneseq
  %vm1227 = vcmp.ge.s32.totalorder %v1226, 0
  %vm1228 = vcmp.lt.s32.totalorder %v1226, 256
  %vm1229 = vmand %vm1227, %vm1228
  %1230 = vst.msk [vmem:[#allocation3] ss:$2 sm:$0x3] %vm1229, %v1225
  %s1231 = scalar_lea.vmem [#allocation2], 16
  %v1232 = vld [vmem:[%s1231] ss:$8 sm:$0x3]
  %s1233 = scalar_lea.vmem [#allocation3], 1
  %1234 = vst.msk [vmem:[%s1233] ss:$2 sm:$0x3] %vm1229, %v1232
  %s1235 = scalar_lea.vmem [#allocation2], 1
  %v1236 = vld [vmem:[%s1235] ss:$8 sm:$0x3]
  %s1237 = scalar_lea.vmem [#allocation3], 4
  %1238 = vst.msk [vmem:[%s1237] ss:$2 sm:$0x3] %vm1229, %v1236
  %s1239 = scalar_lea.vmem [#allocation2], 17
  %v1240 = vld [vmem:[%s1239] ss:$8 sm:$0x3]
  %s1241 = scalar_lea.vmem [#allocation3], 5
  %1242 = vst.msk [vmem:[%s1241] ss:$2 sm:$0x3] %vm1229, %v1240
  %s1243 = scalar_lea.vmem [#allocation2], 2
  %v1244 = vld [vmem:[%s1243] ss:$8 sm:$0x3]
  %s1245 = scalar_lea.vmem [#allocation3], 8
  %1246 = vst.msk [vmem:[%s1245] ss:$2 sm:$0x3] %vm1229, %v1244
  %s1247 = scalar_lea.vmem [#allocation2], 18
  %v1248 = vld [vmem:[%s1247] ss:$8 sm:$0x3]
  %s1249 = scalar_lea.vmem [#allocation3], 9
  %1250 = vst.msk [vmem:[%s1249] ss:$2 sm:$0x3] %vm1229, %v1248
  %s1251 = scalar_lea.vmem [#allocation2], 3
  %v1252 = vld [vmem:[%s1251] ss:$8 sm:$0x3]
  %s1253 = scalar_lea.vmem [#allocation3], 12
  %1254 = vst.msk [vmem:[%s1253] ss:$2 sm:$0x3] %vm1229, %v1252
  %s1255 = scalar_lea.vmem [#allocation2], 19
  %v1256 = vld [vmem:[%s1255] ss:$8 sm:$0x3]
  %s1257 = scalar_lea.vmem [#allocation3], 13
  %1258 = vst.msk [vmem:[%s1257] ss:$2 sm:$0x3] %vm1229, %v1256
  %s1259 = scalar_lea.vmem [#allocation2], 4
  %v1260 = vld [vmem:[%s1259] ss:$8 sm:$0x3]
  %s1261 = scalar_lea.vmem [#allocation3], 16
  %1262 = vst.msk [vmem:[%s1261] ss:$2 sm:$0x3] %vm1229, %v1260
  %s1263 = scalar_lea.vmem [#allocation2], 20
  %v1264 = vld [vmem:[%s1263] ss:$8 sm:$0x3]
  %s1265 = scalar_lea.vmem [#allocation3], 17
  %1266 = vst.msk [vmem:[%s1265] ss:$2 sm:$0x3] %vm1229, %v1264
  %s1267 = scalar_lea.vmem [#allocation2], 5
  %v1268 = vld [vmem:[%s1267] ss:$8 sm:$0x3]
  %s1269 = scalar_lea.vmem [#allocation3], 20
  %1270 = vst.msk [vmem:[%s1269] ss:$2 sm:$0x3] %vm1229, %v1268
  %s1271 = scalar_lea.vmem [#allocation2], 21
  %v1272 = vld [vmem:[%s1271] ss:$8 sm:$0x3]
  %s1273 = scalar_lea.vmem [#allocation3], 21
  %1274 = vst.msk [vmem:[%s1273] ss:$2 sm:$0x3] %vm1229, %v1272
  %s1275 = scalar_lea.vmem [#allocation2], 6
  %v1276 = vld [vmem:[%s1275] ss:$8 sm:$0x3]
  %s1277 = scalar_lea.vmem [#allocation3], 24
  %1278 = vst.msk [vmem:[%s1277] ss:$2 sm:$0x3] %vm1229, %v1276
  %s1279 = scalar_lea.vmem [#allocation2], 22
  %v1280 = vld [vmem:[%s1279] ss:$8 sm:$0x3]
  %s1281 = scalar_lea.vmem [#allocation3], 25
  %1282 = vst.msk [vmem:[%s1281] ss:$2 sm:$0x3] %vm1229, %v1280
  %s1283 = scalar_lea.vmem [#allocation2], 7
  %v1284 = vld [vmem:[%s1283] ss:$8 sm:$0x3]
  %s1285 = scalar_lea.vmem [#allocation3], 28
  %1286 = vst.msk [vmem:[%s1285] ss:$2 sm:$0x3] %vm1229, %v1284
  %s1287 = scalar_lea.vmem [#allocation2], 23
  %v1288 = vld [vmem:[%s1287] ss:$8 sm:$0x3]
  %s1289 = scalar_lea.vmem [#allocation3], 29
  %1290 = vst.msk [vmem:[%s1289] ss:$2 sm:$0x3] %vm1229, %v1288
  %s1291 = scalar_lea.vmem [#allocation2], 32
  %v1292 = vld [vmem:[%s1291] ss:$8 sm:$0x3]
  %s1293 = scalar_lea.vmem [#allocation3], 32
  %1294 = vst.msk [vmem:[%s1293] ss:$2 sm:$0x3] %vm1229, %v1292
  %s1295 = scalar_lea.vmem [#allocation2], 48
  %v1296 = vld [vmem:[%s1295] ss:$8 sm:$0x3]
  %s1297 = scalar_lea.vmem [#allocation3], 33
  %1298 = vst.msk [vmem:[%s1297] ss:$2 sm:$0x3] %vm1229, %v1296
  %s1299 = scalar_lea.vmem [#allocation2], 33
  %v1300 = vld [vmem:[%s1299] ss:$8 sm:$0x3]
  %s1301 = scalar_lea.vmem [#allocation3], 36
  %1302 = vst.msk [vmem:[%s1301] ss:$2 sm:$0x3] %vm1229, %v1300
  %s1303 = scalar_lea.vmem [#allocation2], 49
  %v1304 = vld [vmem:[%s1303] ss:$8 sm:$0x3]
  %s1305 = scalar_lea.vmem [#allocation3], 37
  %1306 = vst.msk [vmem:[%s1305] ss:$2 sm:$0x3] %vm1229, %v1304
  %s1307 = scalar_lea.vmem [#allocation2], 34
  %v1308 = vld [vmem:[%s1307] ss:$8 sm:$0x3]
  %s1309 = scalar_lea.vmem [#allocation3], 40
  %1310 = vst.msk [vmem:[%s1309] ss:$2 sm:$0x3] %vm1229, %v1308
  %s1311 = scalar_lea.vmem [#allocation2], 50
  %v1312 = vld [vmem:[%s1311] ss:$8 sm:$0x3]
  %s1313 = scalar_lea.vmem [#allocation3], 41
  %1314 = vst.msk [vmem:[%s1313] ss:$2 sm:$0x3] %vm1229, %v1312
  %s1315 = scalar_lea.vmem [#allocation2], 35
  %v1316 = vld [vmem:[%s1315] ss:$8 sm:$0x3]
  %s1317 = scalar_lea.vmem [#allocation3], 44
  %1318 = vst.msk [vmem:[%s1317] ss:$2 sm:$0x3] %vm1229, %v1316
  %s1319 = scalar_lea.vmem [#allocation2], 51
  %v1320 = vld [vmem:[%s1319] ss:$8 sm:$0x3]
  %s1321 = scalar_lea.vmem [#allocation3], 45
  %1322 = vst.msk [vmem:[%s1321] ss:$2 sm:$0x3] %vm1229, %v1320
  %s1323 = scalar_lea.vmem [#allocation2], 36
  %v1324 = vld [vmem:[%s1323] ss:$8 sm:$0x3]
  %s1325 = scalar_lea.vmem [#allocation3], 48
  %1326 = vst.msk [vmem:[%s1325] ss:$2 sm:$0x3] %vm1229, %v1324
  %s1327 = scalar_lea.vmem [#allocation2], 52
  %v1328 = vld [vmem:[%s1327] ss:$8 sm:$0x3]
  %s1329 = scalar_lea.vmem [#allocation3], 49
  %1330 = vst.msk [vmem:[%s1329] ss:$2 sm:$0x3] %vm1229, %v1328
  %s1331 = scalar_lea.vmem [#allocation2], 37
  %v1332 = vld [vmem:[%s1331] ss:$8 sm:$0x3]
  %s1333 = scalar_lea.vmem [#allocation3], 52
  %1334 = vst.msk [vmem:[%s1333] ss:$2 sm:$0x3] %vm1229, %v1332
  %s1335 = scalar_lea.vmem [#allocation2], 53
  %v1336 = vld [vmem:[%s1335] ss:$8 sm:$0x3]
  %s1337 = scalar_lea.vmem [#allocation3], 53
  %1338 = vst.msk [vmem:[%s1337] ss:$2 sm:$0x3] %vm1229, %v1336
  %s1339 = scalar_lea.vmem [#allocation2], 38
  %v1340 = vld [vmem:[%s1339] ss:$8 sm:$0x3]
  %s1341 = scalar_lea.vmem [#allocation3], 56
  %1342 = vst.msk [vmem:[%s1341] ss:$2 sm:$0x3] %vm1229, %v1340
  %s1343 = scalar_lea.vmem [#allocation2], 54
  %v1344 = vld [vmem:[%s1343] ss:$8 sm:$0x3]
  %s1345 = scalar_lea.vmem [#allocation3], 57
  %1346 = vst.msk [vmem:[%s1345] ss:$2 sm:$0x3] %vm1229, %v1344
  %s1347 = scalar_lea.vmem [#allocation2], 39
  %v1348 = vld [vmem:[%s1347] ss:$8 sm:$0x3]
  %s1349 = scalar_lea.vmem [#allocation3], 60
  %1350 = vst.msk [vmem:[%s1349] ss:$2 sm:$0x3] %vm1229, %v1348
  %s1351 = scalar_lea.vmem [#allocation2], 55
  %v1352 = vld [vmem:[%s1351] ss:$8 sm:$0x3]
  %s1353 = scalar_lea.vmem [#allocation3], 61
  %1354 = vst.msk [vmem:[%s1353] ss:$2 sm:$0x3] %vm1229, %v1352
  %s1355 = scalar_lea.vmem [#allocation2], 64
  %v1356 = vld [vmem:[%s1355] ss:$8 sm:$0x3]
  %s1357 = scalar_lea.vmem [#allocation3], 64
  %1358 = vst.msk [vmem:[%s1357] ss:$2 sm:$0x3] %vm1229, %v1356
  %s1359 = scalar_lea.vmem [#allocation2], 80
  %v1360 = vld [vmem:[%s1359] ss:$8 sm:$0x3]
  %s1361 = scalar_lea.vmem [#allocation3], 65
  %1362 = vst.msk [vmem:[%s1361] ss:$2 sm:$0x3] %vm1229, %v1360
  %s1363 = scalar_lea.vmem [#allocation2], 65
  %v1364 = vld [vmem:[%s1363] ss:$8 sm:$0x3]
  %s1365 = scalar_lea.vmem [#allocation3], 68
  %1366 = vst.msk [vmem:[%s1365] ss:$2 sm:$0x3] %vm1229, %v1364
  %s1367 = scalar_lea.vmem [#allocation2], 81
  %v1368 = vld [vmem:[%s1367] ss:$8 sm:$0x3]
  %s1369 = scalar_lea.vmem [#allocation3], 69
  %1370 = vst.msk [vmem:[%s1369] ss:$2 sm:$0x3] %vm1229, %v1368
  %s1371 = scalar_lea.vmem [#allocation2], 66
  %v1372 = vld [vmem:[%s1371] ss:$8 sm:$0x3]
  %s1373 = scalar_lea.vmem [#allocation3], 72
  %1374 = vst.msk [vmem:[%s1373] ss:$2 sm:$0x3] %vm1229, %v1372
  %s1375 = scalar_lea.vmem [#allocation2], 82
  %v1376 = vld [vmem:[%s1375] ss:$8 sm:$0x3]
  %s1377 = scalar_lea.vmem [#allocation3], 73
  %1378 = vst.msk [vmem:[%s1377] ss:$2 sm:$0x3] %vm1229, %v1376
  %s1379 = scalar_lea.vmem [#allocation2], 67
  %v1380 = vld [vmem:[%s1379] ss:$8 sm:$0x3]
  %s1381 = scalar_lea.vmem [#allocation3], 76
  %1382 = vst.msk [vmem:[%s1381] ss:$2 sm:$0x3] %vm1229, %v1380
  %s1383 = scalar_lea.vmem [#allocation2], 83
  %v1384 = vld [vmem:[%s1383] ss:$8 sm:$0x3]
  %s1385 = scalar_lea.vmem [#allocation3], 77
  %1386 = vst.msk [vmem:[%s1385] ss:$2 sm:$0x3] %vm1229, %v1384
  %s1387 = scalar_lea.vmem [#allocation2], 68
  %v1388 = vld [vmem:[%s1387] ss:$8 sm:$0x3]
  %s1389 = scalar_lea.vmem [#allocation3], 80
  %1390 = vst.msk [vmem:[%s1389] ss:$2 sm:$0x3] %vm1229, %v1388
  %s1391 = scalar_lea.vmem [#allocation2], 84
  %v1392 = vld [vmem:[%s1391] ss:$8 sm:$0x3]
  %s1393 = scalar_lea.vmem [#allocation3], 81
  %1394 = vst.msk [vmem:[%s1393] ss:$2 sm:$0x3] %vm1229, %v1392
  %s1395 = scalar_lea.vmem [#allocation2], 69
  %v1396 = vld [vmem:[%s1395] ss:$8 sm:$0x3]
  %s1397 = scalar_lea.vmem [#allocation3], 84
  %1398 = vst.msk [vmem:[%s1397] ss:$2 sm:$0x3] %vm1229, %v1396
  %s1399 = scalar_lea.vmem [#allocation2], 85
  %v1400 = vld [vmem:[%s1399] ss:$8 sm:$0x3]
  %s1401 = scalar_lea.vmem [#allocation3], 85
  %1402 = vst.msk [vmem:[%s1401] ss:$2 sm:$0x3] %vm1229, %v1400
  %s1403 = scalar_lea.vmem [#allocation2], 70
  %v1404 = vld [vmem:[%s1403] ss:$8 sm:$0x3]
  %s1405 = scalar_lea.vmem [#allocation3], 88
  %1406 = vst.msk [vmem:[%s1405] ss:$2 sm:$0x3] %vm1229, %v1404
  %s1407 = scalar_lea.vmem [#allocation2], 86
  %v1408 = vld [vmem:[%s1407] ss:$8 sm:$0x3]
  %s1409 = scalar_lea.vmem [#allocation3], 89
  %1410 = vst.msk [vmem:[%s1409] ss:$2 sm:$0x3] %vm1229, %v1408
  %s1411 = scalar_lea.vmem [#allocation2], 71
  %v1412 = vld [vmem:[%s1411] ss:$8 sm:$0x3]
  %s1413 = scalar_lea.vmem [#allocation3], 92
  %1414 = vst.msk [vmem:[%s1413] ss:$2 sm:$0x3] %vm1229, %v1412
  %s1415 = scalar_lea.vmem [#allocation2], 87
  %v1416 = vld [vmem:[%s1415] ss:$8 sm:$0x3]
  %s1417 = scalar_lea.vmem [#allocation3], 93
  %1418 = vst.msk [vmem:[%s1417] ss:$2 sm:$0x3] %vm1229, %v1416
  %s1419 = scalar_lea.vmem [#allocation2], 96
  %v1420 = vld [vmem:[%s1419] ss:$8 sm:$0x3]
  %s1421 = scalar_lea.vmem [#allocation3], 96
  %1422 = vst.msk [vmem:[%s1421] ss:$2 sm:$0x3] %vm1229, %v1420
  %s1423 = scalar_lea.vmem [#allocation2], 112
  %v1424 = vld [vmem:[%s1423] ss:$8 sm:$0x3]
  %s1425 = scalar_lea.vmem [#allocation3], 97
  %1426 = vst.msk [vmem:[%s1425] ss:$2 sm:$0x3] %vm1229, %v1424
  %s1427 = scalar_lea.vmem [#allocation2], 97
  %v1428 = vld [vmem:[%s1427] ss:$8 sm:$0x3]
  %s1429 = scalar_lea.vmem [#allocation3], 100
  %1430 = vst.msk [vmem:[%s1429] ss:$2 sm:$0x3] %vm1229, %v1428
  %s1431 = scalar_lea.vmem [#allocation2], 113
  %v1432 = vld [vmem:[%s1431] ss:$8 sm:$0x3]
  %s1433 = scalar_lea.vmem [#allocation3], 101
  %1434 = vst.msk [vmem:[%s1433] ss:$2 sm:$0x3] %vm1229, %v1432
  %s1435 = scalar_lea.vmem [#allocation2], 98
  %v1436 = vld [vmem:[%s1435] ss:$8 sm:$0x3]
  %s1437 = scalar_lea.vmem [#allocation3], 104
  %1438 = vst.msk [vmem:[%s1437] ss:$2 sm:$0x3] %vm1229, %v1436
  %s1439 = scalar_lea.vmem [#allocation2], 114
  %v1440 = vld [vmem:[%s1439] ss:$8 sm:$0x3]
  %s1441 = scalar_lea.vmem [#allocation3], 105
  %1442 = vst.msk [vmem:[%s1441] ss:$2 sm:$0x3] %vm1229, %v1440
  %s1443 = scalar_lea.vmem [#allocation2], 99
  %v1444 = vld [vmem:[%s1443] ss:$8 sm:$0x3]
  %s1445 = scalar_lea.vmem [#allocation3], 108
  %1446 = vst.msk [vmem:[%s1445] ss:$2 sm:$0x3] %vm1229, %v1444
  %s1447 = scalar_lea.vmem [#allocation2], 115
  %v1448 = vld [vmem:[%s1447] ss:$8 sm:$0x3]
  %s1449 = scalar_lea.vmem [#allocation3], 109
  %1450 = vst.msk [vmem:[%s1449] ss:$2 sm:$0x3] %vm1229, %v1448
  %s1451 = scalar_lea.vmem [#allocation2], 100
  %v1452 = vld [vmem:[%s1451] ss:$8 sm:$0x3]
  %s1453 = scalar_lea.vmem [#allocation3], 112
  %1454 = vst.msk [vmem:[%s1453] ss:$2 sm:$0x3] %vm1229, %v1452
  %s1455 = scalar_lea.vmem [#allocation2], 116
  %v1456 = vld [vmem:[%s1455] ss:$8 sm:$0x3]
  %s1457 = scalar_lea.vmem [#allocation3], 113
  %1458 = vst.msk [vmem:[%s1457] ss:$2 sm:$0x3] %vm1229, %v1456
  %s1459 = scalar_lea.vmem [#allocation2], 101
  %v1460 = vld [vmem:[%s1459] ss:$8 sm:$0x3]
  %s1461 = scalar_lea.vmem [#allocation3], 116
  %1462 = vst.msk [vmem:[%s1461] ss:$2 sm:$0x3] %vm1229, %v1460
  %s1463 = scalar_lea.vmem [#allocation2], 117
  %v1464 = vld [vmem:[%s1463] ss:$8 sm:$0x3]
  %s1465 = scalar_lea.vmem [#allocation3], 117
  %1466 = vst.msk [vmem:[%s1465] ss:$2 sm:$0x3] %vm1229, %v1464
  %s1467 = scalar_lea.vmem [#allocation2], 102
  %v1468 = vld [vmem:[%s1467] ss:$8 sm:$0x3]
  %s1469 = scalar_lea.vmem [#allocation3], 120
  %1470 = vst.msk [vmem:[%s1469] ss:$2 sm:$0x3] %vm1229, %v1468
  %s1471 = scalar_lea.vmem [#allocation2], 118
  %v1472 = vld [vmem:[%s1471] ss:$8 sm:$0x3]
  %s1473 = scalar_lea.vmem [#allocation3], 121
  %1474 = vst.msk [vmem:[%s1473] ss:$2 sm:$0x3] %vm1229, %v1472
  %s1475 = scalar_lea.vmem [#allocation2], 103
  %v1476 = vld [vmem:[%s1475] ss:$8 sm:$0x3]
  %s1477 = scalar_lea.vmem [#allocation3], 124
  %1478 = vst.msk [vmem:[%s1477] ss:$2 sm:$0x3] %vm1229, %v1476
  %s1479 = scalar_lea.vmem [#allocation2], 119
  %v1480 = vld [vmem:[%s1479] ss:$8 sm:$0x3]
  %s1481 = scalar_lea.vmem [#allocation3], 125
  %1482 = vst.msk [vmem:[%s1481] ss:$2 sm:$0x3] %vm1229, %v1480
  %s1483 = scalar_lea.vmem [#allocation2], 128
  %v1484 = vld [vmem:[%s1483] ss:$8 sm:$0x3]
  %s1485 = scalar_lea.vmem [#allocation3], 128
  %1486 = vst.msk [vmem:[%s1485] ss:$2 sm:$0x3] %vm1229, %v1484
  %s1487 = scalar_lea.vmem [#allocation2], 144
  %v1488 = vld [vmem:[%s1487] ss:$8 sm:$0x3]
  %s1489 = scalar_lea.vmem [#allocation3], 129
  %1490 = vst.msk [vmem:[%s1489] ss:$2 sm:$0x3] %vm1229, %v1488
  %s1491 = scalar_lea.vmem [#allocation2], 129
  %v1492 = vld [vmem:[%s1491] ss:$8 sm:$0x3]
  %s1493 = scalar_lea.vmem [#allocation3], 132
  %1494 = vst.msk [vmem:[%s1493] ss:$2 sm:$0x3] %vm1229, %v1492
  %s1495 = scalar_lea.vmem [#allocation2], 145
  %v1496 = vld [vmem:[%s1495] ss:$8 sm:$0x3]
  %s1497 = scalar_lea.vmem [#allocation3], 133
  %1498 = vst.msk [vmem:[%s1497] ss:$2 sm:$0x3] %vm1229, %v1496
  %s1499 = scalar_lea.vmem [#allocation2], 130
  %v1500 = vld [vmem:[%s1499] ss:$8 sm:$0x3]
  %s1501 = scalar_lea.vmem [#allocation3], 136
  %1502 = vst.msk [vmem:[%s1501] ss:$2 sm:$0x3] %vm1229, %v1500
  %s1503 = scalar_lea.vmem [#allocation2], 146
  %v1504 = vld [vmem:[%s1503] ss:$8 sm:$0x3]
  %s1505 = scalar_lea.vmem [#allocation3], 137
  %1506 = vst.msk [vmem:[%s1505] ss:$2 sm:$0x3] %vm1229, %v1504
  %s1507 = scalar_lea.vmem [#allocation2], 131
  %v1508 = vld [vmem:[%s1507] ss:$8 sm:$0x3]
  %s1509 = scalar_lea.vmem [#allocation3], 140
  %1510 = vst.msk [vmem:[%s1509] ss:$2 sm:$0x3] %vm1229, %v1508
  %s1511 = scalar_lea.vmem [#allocation2], 147
  %v1512 = vld [vmem:[%s1511] ss:$8 sm:$0x3]
  %s1513 = scalar_lea.vmem [#allocation3], 141
  %1514 = vst.msk [vmem:[%s1513] ss:$2 sm:$0x3] %vm1229, %v1512
  %v1515 = vld [vmem:[#allocation3] sm:$0xff]
  %v1516 = vld [vmem:[#allocation3 + $0x8] sm:$0xff]
  %v1517 = vld [vmem:[#allocation3 + $0x10] sm:$0xff]
  %v1518 = vld [vmem:[#allocation3 + $0x18] sm:$0xff]
  %v1519 = vld [vmem:[#allocation3 + $0x20] sm:$0xff]
  %v1520 = vld [vmem:[#allocation3 + $0x28] sm:$0xff]
  %1527 = vst [vmem:[#allocation1] ss:$4 sm:$0xff] %v1515
  %s1528 = scalar_lea.vmem [#allocation1], 32
  %1529 = vst [vmem:[%s1528] ss:$4 sm:$0xff] %v1516
  %v1530 = vld.sshfl [vmem:[#allocation1] sm:$0xff pattern:$0x73625140]
  %v1531 = vld.sshfl [vmem:[#allocation1 + $0x8] sm:$0xff pattern:$0x73625140]
  %v1532 = vld.sshfl [vmem:[#allocation1 + $0x10] sm:$0xff pattern:$0x73625140]
  %v1533 = vld.sshfl [vmem:[#allocation1 + $0x18] sm:$0xff pattern:$0x73625140]
  %v1534 = vld.sshfl [vmem:[#allocation1 + $0x20] sm:$0xff pattern:$0x73625140]
  %v1535 = vld.sshfl [vmem:[#allocation1 + $0x28] sm:$0xff pattern:$0x73625140]
  %v1536 = vld.sshfl [vmem:[#allocation1 + $0x30] sm:$0xff pattern:$0x73625140]
  %v1537 = vld.sshfl [vmem:[#allocation1 + $0x38] sm:$0xff pattern:$0x73625140]
  %1538 = vst [vmem:[#allocation1] ss:$4 sm:$0xff] %v1517
  %1539 = vst [vmem:[%s1528] ss:$4 sm:$0xff] %v1518
  %v1540 = vld.sshfl [vmem:[#allocation1] sm:$0xff pattern:$0x73625140]
  %v1541 = vld.sshfl [vmem:[#allocation1 + $0x8] sm:$0xff pattern:$0x73625140]
  %v1542 = vld.sshfl [vmem:[#allocation1 + $0x10] sm:$0xff pattern:$0x73625140]
  %v1543 = vld.sshfl [vmem:[#allocation1 + $0x18] sm:$0xff pattern:$0x73625140]
  %v1544 = vld.sshfl [vmem:[#allocation1 + $0x20] sm:$0xff pattern:$0x73625140]
  %v1545 = vld.sshfl [vmem:[#allocation1 + $0x28] sm:$0xff pattern:$0x73625140]
  %v1546 = vld.sshfl [vmem:[#allocation1 + $0x30] sm:$0xff pattern:$0x73625140]
  %v1547 = vld.sshfl [vmem:[#allocation1 + $0x38] sm:$0xff pattern:$0x73625140]
  %1548 = vst [vmem:[#allocation1] ss:$4 sm:$0xff] %v1519
  %1549 = vst [vmem:[%s1528] ss:$4 sm:$0xff] %v1520
  %v1550 = vld.sshfl [vmem:[#allocation1] sm:$0xff pattern:$0x73625140]
  %v1551 = vld.sshfl [vmem:[#allocation1 + $0x8] sm:$0xff pattern:$0x73625140]
  %v1552 = vld.sshfl [vmem:[#allocation1 + $0x10] sm:$0xff pattern:$0x73625140]
  %v1553 = vld.sshfl [vmem:[#allocation1 + $0x18] sm:$0xff pattern:$0x73625140]
  %v1554 = vld.sshfl [vmem:[#allocation1 + $0x20] sm:$0xff pattern:$0x73625140]
  %v1555 = vld.sshfl [vmem:[#allocation1 + $0x28] sm:$0xff pattern:$0x73625140]
  %v1556 = vld.sshfl [vmem:[#allocation1 + $0x30] sm:$0xff pattern:$0x73625140]
  %v1557 = vld.sshfl [vmem:[#allocation1 + $0x38] sm:$0xff pattern:$0x73625140]
  %v1582 = vpack.c.bf16 %v1530, %v1530
  %v1583 = vpack.c.bf16 %v1531, %v1531
  %v1584 = vpack.c.bf16 %v1532, %v1532
  %v1585 = vpack.c.bf16 %v1533, %v1533
  %v1586 = vpack.c.bf16 %v1534, %v1534
  %v1587 = vpack.c.bf16 %v1535, %v1535
  %v1588 = vpack.c.bf16 %v1536, %v1536
  %v1589 = vpack.c.bf16 %v1537, %v1537
  %v1590 = vpack.c.bf16 %v1540, %v1540
  %v1591 = vpack.c.bf16 %v1541, %v1541
  %v1592 = vpack.c.bf16 %v1542, %v1542
  %v1593 = vpack.c.bf16 %v1543, %v1543
  %v1594 = vpack.c.bf16 %v1544, %v1544
  %v1595 = vpack.c.bf16 %v1545, %v1545
  %v1596 = vpack.c.bf16 %v1546, %v1546
  %v1597 = vpack.c.bf16 %v1547, %v1547
  %v1598 = vpack.c.bf16 %v1550, %v1550
  %v1599 = vpack.c.bf16 %v1551, %v1551
  %v1600 = vpack.c.bf16 %v1552, %v1552
  %v1601 = vpack.c.bf16 %v1553, %v1553
  %v1602 = vpack.c.bf16 %v1554, %v1554
  %v1603 = vpack.c.bf16 %v1555, %v1555
  %v1604 = vpack.c.bf16 %v1556, %v1556
  %v1605 = vpack.c.bf16 %v1557, %v1557
  %v1606 = vld [vmem:[%s5] sm:$0xf]
  %v1607 = vld [vmem:[%s5 + $0x4] sm:$0xf]
  %v1608 = vld [vmem:[%s5 + $0x8] sm:$0xf]
  %v1609 = vld [vmem:[%s5 + $0xc] sm:$0xf]
  %v1610 = vld [vmem:[%s5 + $0x10] sm:$0xf]
  %v1611 = vld [vmem:[%s5 + $0x14] sm:$0xf]
  %v1612 = vld [vmem:[%s5 + $0x18] sm:$0xf]
  %v1613 = vld [vmem:[%s5 + $0x1c] sm:$0xf]
  %v1614 = vld [vmem:[%s5 + $0x20] sm:$0xf]
  %v1615 = vld [vmem:[%s5 + $0x24] sm:$0xf]
  %v1616 = vld [vmem:[%s5 + $0x28] sm:$0xf]
  %v1617 = vld [vmem:[%s5 + $0x2c] sm:$0xf]
  %v1618 = vld [vmem:[%s5 + $0x30] sm:$0xf]
  %v1619 = vld [vmem:[%s5 + $0x34] sm:$0xf]
  %v1620 = vld [vmem:[%s5 + $0x38] sm:$0xf]
  %v1621 = vld [vmem:[%s5 + $0x3c] sm:$0xf]
  %v1622 = vld [vmem:[%s5 + $0x40] sm:$0xf]
  %v1623 = vld [vmem:[%s5 + $0x44] sm:$0xf]
  %v1624 = vld [vmem:[%s5 + $0x48] sm:$0xf]
  %v1625 = vld [vmem:[%s5 + $0x4c] sm:$0xf]
  %v1626 = vld [vmem:[%s5 + $0x50] sm:$0xf]
  %v1627 = vld [vmem:[%s5 + $0x54] sm:$0xf]
  %v1628 = vld [vmem:[%s5 + $0x58] sm:$0xf]
  %v1629 = vld [vmem:[%s5 + $0x5c] sm:$0xf]
  %v1630 = vld [vmem:[%s5 + $0x60] sm:$0xf]
  %v1631 = vld [vmem:[%s5 + $0x64] sm:$0xf]
  %v1632 = vld [vmem:[%s5 + $0x68] sm:$0xf]
  %v1633 = vld [vmem:[%s5 + $0x6c] sm:$0xf]
  %v1634 = vld [vmem:[%s5 + $0x70] sm:$0xf]
  %v1635 = vld [vmem:[%s5 + $0x74] sm:$0xf]
  %v1636 = vld [vmem:[%s5 + $0x78] sm:$0xf]
  %v1637 = vld [vmem:[%s5 + $0x7c] sm:$0xf]
  %v1638 = vld [vmem:[%s5 + $0x80] sm:$0xf]
  %v1639 = vld [vmem:[%s5 + $0x84] sm:$0xf]
  %v1640 = vld [vmem:[%s5 + $0x88] sm:$0xf]
  %v1641 = vld [vmem:[%s5 + $0x8c] sm:$0xf]
  %v1642 = vld [vmem:[%s5 + $0x90] sm:$0xf]
  %v1643 = vld [vmem:[%s5 + $0x94] sm:$0xf]
  %v1644 = vld [vmem:[%s5 + $0x98] sm:$0xf]
  %v1645 = vld [vmem:[%s5 + $0x9c] sm:$0xf]
  %v1646 = vld [vmem:[%s5 + $0xa0] sm:$0xf]
  %v1647 = vld [vmem:[%s5 + $0xa4] sm:$0xf]
  %v1648 = vld [vmem:[%s5 + $0xa8] sm:$0xf]
  %v1649 = vld [vmem:[%s5 + $0xac] sm:$0xf]
  %v1650 = vld [vmem:[%s5 + $0xb0] sm:$0xf]
  %v1651 = vld [vmem:[%s5 + $0xb4] sm:$0xf]
  %v1652 = vld [vmem:[%s5 + $0xb8] sm:$0xf]
  %v1653 = vld [vmem:[%s5 + $0xbc] sm:$0xf]
  %v1654 = vld [vmem:[%s5 + $0xc0] sm:$0xf]
  %v1655 = vld [vmem:[%s5 + $0xc4] sm:$0xf]
  %v1656 = vld [vmem:[%s5 + $0xc8] sm:$0xf]
  %v1657 = vld [vmem:[%s5 + $0xcc] sm:$0xf]
  %v1658 = vld [vmem:[%s5 + $0xd0] sm:$0xf]
  %v1659 = vld [vmem:[%s5 + $0xd4] sm:$0xf]
  %v1660 = vld [vmem:[%s5 + $0xd8] sm:$0xf]
  %v1661 = vld [vmem:[%s5 + $0xdc] sm:$0xf]
  %v1662 = vld [vmem:[%s5 + $0xe0] sm:$0xf]
  %v1663 = vld [vmem:[%s5 + $0xe4] sm:$0xf]
  %v1664 = vld [vmem:[%s5 + $0xe8] sm:$0xf]
  %v1665 = vld [vmem:[%s5 + $0xec] sm:$0xf]
  %v1666 = vld [vmem:[%s5 + $0xf0] sm:$0xf]
  %v1667 = vld [vmem:[%s5 + $0xf4] sm:$0xf]
  %v1668 = vld [vmem:[%s5 + $0xf8] sm:$0xf]
  %v1669 = vld [vmem:[%s5 + $0xfc] sm:$0xf]
  %v1670 = vld [vmem:[%s5 + $0x100] sm:$0xf]
  %v1671 = vld [vmem:[%s5 + $0x104] sm:$0xf]
  %v1672 = vld [vmem:[%s5 + $0x108] sm:$0xf]
  %v1673 = vld [vmem:[%s5 + $0x10c] sm:$0xf]
  %v1674 = vld [vmem:[%s5 + $0x110] sm:$0xf]
  %v1675 = vld [vmem:[%s5 + $0x114] sm:$0xf]
  %v1676 = vld [vmem:[%s5 + $0x118] sm:$0xf]
  %v1677 = vld [vmem:[%s5 + $0x11c] sm:$0xf]
  %v1678 = vld [vmem:[%s5 + $0x120] sm:$0xf]
  %v1679 = vld [vmem:[%s5 + $0x124] sm:$0xf]
  %v1680 = vld [vmem:[%s5 + $0x128] sm:$0xf]
  %v1681 = vld [vmem:[%s5 + $0x12c] sm:$0xf]
  %v1682 = vld [vmem:[%s5 + $0x130] sm:$0xf]
  %v1683 = vld [vmem:[%s5 + $0x134] sm:$0xf]
  %v1684 = vld [vmem:[%s5 + $0x138] sm:$0xf]
  %v1685 = vld [vmem:[%s5 + $0x13c] sm:$0xf]
  %v1686 = vld [vmem:[%s5 + $0x140] sm:$0xf]
  %v1687 = vld [vmem:[%s5 + $0x144] sm:$0xf]
  %v1688 = vld [vmem:[%s5 + $0x148] sm:$0xf]
  %v1689 = vld [vmem:[%s5 + $0x14c] sm:$0xf]
  %v1690 = vld [vmem:[%s5 + $0x150] sm:$0xf]
  %v1691 = vld [vmem:[%s5 + $0x154] sm:$0xf]
  %v1692 = vld [vmem:[%s5 + $0x158] sm:$0xf]
  %v1693 = vld [vmem:[%s5 + $0x15c] sm:$0xf]
  %v1694 = vld [vmem:[%s5 + $0x160] sm:$0xf]
  %v1695 = vld [vmem:[%s5 + $0x164] sm:$0xf]
  %v1696 = vld [vmem:[%s5 + $0x168] sm:$0xf]
  %v1697 = vld [vmem:[%s5 + $0x16c] sm:$0xf]
  %v1698 = vld [vmem:[%s5 + $0x170] sm:$0xf]
  %v1699 = vld [vmem:[%s5 + $0x174] sm:$0xf]
  %v1700 = vld [vmem:[%s5 + $0x178] sm:$0xf]
  %v1701 = vld [vmem:[%s5 + $0x17c] sm:$0xf]
  %v1702 = vld [vmem:[%s5 + $0x180] sm:$0xf]
  %v1703 = vld [vmem:[%s5 + $0x184] sm:$0xf]
  %v1704 = vld [vmem:[%s5 + $0x188] sm:$0xf]
  %v1705 = vld [vmem:[%s5 + $0x18c] sm:$0xf]
  %v1706 = vld [vmem:[%s5 + $0x190] sm:$0xf]
  %v1707 = vld [vmem:[%s5 + $0x194] sm:$0xf]
  %v1708 = vld [vmem:[%s5 + $0x198] sm:$0xf]
  %v1709 = vld [vmem:[%s5 + $0x19c] sm:$0xf]
  %v1710 = vld [vmem:[%s5 + $0x1a0] sm:$0xf]
  %v1711 = vld [vmem:[%s5 + $0x1a4] sm:$0xf]
  %v1712 = vld [vmem:[%s5 + $0x1a8] sm:$0xf]
  %v1713 = vld [vmem:[%s5 + $0x1ac] sm:$0xf]
  %v1714 = vld [vmem:[%s5 + $0x1b0] sm:$0xf]
  %v1715 = vld [vmem:[%s5 + $0x1b4] sm:$0xf]
  %v1716 = vld [vmem:[%s5 + $0x1b8] sm:$0xf]
  %v1717 = vld [vmem:[%s5 + $0x1bc] sm:$0xf]
  %v1718 = vld [vmem:[%s5 + $0x1c0] sm:$0xf]
  %v1719 = vld [vmem:[%s5 + $0x1c4] sm:$0xf]
  %v1720 = vld [vmem:[%s5 + $0x1c8] sm:$0xf]
  %v1721 = vld [vmem:[%s5 + $0x1cc] sm:$0xf]
  %v1722 = vld [vmem:[%s5 + $0x1d0] sm:$0xf]
  %v1723 = vld [vmem:[%s5 + $0x1d4] sm:$0xf]
  %v1724 = vld [vmem:[%s5 + $0x1d8] sm:$0xf]
  %v1725 = vld [vmem:[%s5 + $0x1dc] sm:$0xf]
  %v1726 = vld [vmem:[%s5 + $0x1e0] sm:$0xf]
  %v1727 = vld [vmem:[%s5 + $0x1e4] sm:$0xf]
  %v1728 = vld [vmem:[%s5 + $0x1e8] sm:$0xf]
  %v1729 = vld [vmem:[%s5 + $0x1ec] sm:$0xf]
  %v1730 = vld [vmem:[%s5 + $0x1f0] sm:$0xf]
  %v1731 = vld [vmem:[%s5 + $0x1f4] sm:$0xf]
  %v1732 = vld [vmem:[%s5 + $0x1f8] sm:$0xf]
  %v1733 = vld [vmem:[%s5 + $0x1fc] sm:$0xf]
  %v1734 = vld [vmem:[%s5 + $0x200] sm:$0xf]
  %v1735 = vld [vmem:[%s5 + $0x204] sm:$0xf]
  %v1736 = vld [vmem:[%s5 + $0x208] sm:$0xf]
  %v1737 = vld [vmem:[%s5 + $0x20c] sm:$0xf]
  %v1738 = vld [vmem:[%s5 + $0x210] sm:$0xf]
  %v1739 = vld [vmem:[%s5 + $0x214] sm:$0xf]
  %v1740 = vld [vmem:[%s5 + $0x218] sm:$0xf]
  %v1741 = vld [vmem:[%s5 + $0x21c] sm:$0xf]
  %v1742 = vld [vmem:[%s5 + $0x220] sm:$0xf]
  %v1743 = vld [vmem:[%s5 + $0x224] sm:$0xf]
  %v1744 = vld [vmem:[%s5 + $0x228] sm:$0xf]
  %v1745 = vld [vmem:[%s5 + $0x22c] sm:$0xf]
  %v1746 = vld [vmem:[%s5 + $0x230] sm:$0xf]
  %v1747 = vld [vmem:[%s5 + $0x234] sm:$0xf]
  %v1748 = vld [vmem:[%s5 + $0x238] sm:$0xf]
  %v1749 = vld [vmem:[%s5 + $0x23c] sm:$0xf]
  %v1750 = vld [vmem:[%s5 + $0x240] sm:$0xf]
  %v1751 = vld [vmem:[%s5 + $0x244] sm:$0xf]
  %v1752 = vld [vmem:[%s5 + $0x248] sm:$0xf]
  %v1753 = vld [vmem:[%s5 + $0x24c] sm:$0xf]
  %v1754 = vld [vmem:[%s5 + $0x250] sm:$0xf]
  %v1755 = vld [vmem:[%s5 + $0x254] sm:$0xf]
  %v1756 = vld [vmem:[%s5 + $0x258] sm:$0xf]
  %v1757 = vld [vmem:[%s5 + $0x25c] sm:$0xf]
  %v1758 = vld [vmem:[%s5 + $0x260] sm:$0xf]
  %v1759 = vld [vmem:[%s5 + $0x264] sm:$0xf]
  %v1760 = vld [vmem:[%s5 + $0x268] sm:$0xf]
  %v1761 = vld [vmem:[%s5 + $0x26c] sm:$0xf]
  %v1762 = vld [vmem:[%s5 + $0x270] sm:$0xf]
  %v1763 = vld [vmem:[%s5 + $0x274] sm:$0xf]
  %v1764 = vld [vmem:[%s5 + $0x278] sm:$0xf]
  %v1765 = vld [vmem:[%s5 + $0x27c] sm:$0xf]
  %v1766 = vld [vmem:[%s5 + $0x280] sm:$0xf]
  %v1767 = vld [vmem:[%s5 + $0x284] sm:$0xf]
  %v1768 = vld [vmem:[%s5 + $0x288] sm:$0xf]
  %v1769 = vld [vmem:[%s5 + $0x28c] sm:$0xf]
  %v1770 = vld [vmem:[%s5 + $0x290] sm:$0xf]
  %v1771 = vld [vmem:[%s5 + $0x294] sm:$0xf]
  %v1772 = vld [vmem:[%s5 + $0x298] sm:$0xf]
  %v1773 = vld [vmem:[%s5 + $0x29c] sm:$0xf]
  %v1774 = vld [vmem:[%s5 + $0x2a0] sm:$0xf]
  %v1775 = vld [vmem:[%s5 + $0x2a4] sm:$0xf]
  %v1776 = vld [vmem:[%s5 + $0x2a8] sm:$0xf]
  %v1777 = vld [vmem:[%s5 + $0x2ac] sm:$0xf]
  %v1778 = vld [vmem:[%s5 + $0x2b0] sm:$0xf]
  %v1779 = vld [vmem:[%s5 + $0x2b4] sm:$0xf]
  %v1780 = vld [vmem:[%s5 + $0x2b8] sm:$0xf]
  %v1781 = vld [vmem:[%s5 + $0x2bc] sm:$0xf]
  %v1782 = vld [vmem:[%s5 + $0x2c0] sm:$0xf]
  %v1783 = vld [vmem:[%s5 + $0x2c4] sm:$0xf]
  %v1784 = vld [vmem:[%s5 + $0x2c8] sm:$0xf]
  %v1785 = vld [vmem:[%s5 + $0x2cc] sm:$0xf]
  %v1786 = vld [vmem:[%s5 + $0x2d0] sm:$0xf]
  %v1787 = vld [vmem:[%s5 + $0x2d4] sm:$0xf]
  %v1788 = vld [vmem:[%s5 + $0x2d8] sm:$0xf]
  %v1789 = vld [vmem:[%s5 + $0x2dc] sm:$0xf]
  %v1790 = vld [vmem:[%s5 + $0x2e0] sm:$0xf]
  %v1791 = vld [vmem:[%s5 + $0x2e4] sm:$0xf]
  %v1792 = vld [vmem:[%s5 + $0x2e8] sm:$0xf]
  %v1793 = vld [vmem:[%s5 + $0x2ec] sm:$0xf]
  %v1794 = vld [vmem:[%s5 + $0x2f0] sm:$0xf]
  %v1795 = vld [vmem:[%s5 + $0x2f4] sm:$0xf]
  %v1796 = vld [vmem:[%s5 + $0x2f8] sm:$0xf]
  %v1797 = vld [vmem:[%s5 + $0x2fc] sm:$0xf]
  %v1798 = vld [vmem:[%s5 + $0x300] sm:$0xf]
  %v1799 = vld [vmem:[%s5 + $0x304] sm:$0xf]
  %v1800 = vld [vmem:[%s5 + $0x308] sm:$0xf]
  %v1801 = vld [vmem:[%s5 + $0x30c] sm:$0xf]
  %v1802 = vld [vmem:[%s5 + $0x310] sm:$0xf]
  %v1803 = vld [vmem:[%s5 + $0x314] sm:$0xf]
  %v1804 = vld [vmem:[%s5 + $0x318] sm:$0xf]
  %v1805 = vld [vmem:[%s5 + $0x31c] sm:$0xf]
  %v1806 = vld [vmem:[%s5 + $0x320] sm:$0xf]
  %v1807 = vld [vmem:[%s5 + $0x324] sm:$0xf]
  %v1808 = vld [vmem:[%s5 + $0x328] sm:$0xf]
  %v1809 = vld [vmem:[%s5 + $0x32c] sm:$0xf]
  %v1810 = vld [vmem:[%s5 + $0x330] sm:$0xf]
  %v1811 = vld [vmem:[%s5 + $0x334] sm:$0xf]
  %v1812 = vld [vmem:[%s5 + $0x338] sm:$0xf]
  %v1813 = vld [vmem:[%s5 + $0x33c] sm:$0xf]
  %v1814 = vld [vmem:[%s5 + $0x340] sm:$0xf]
  %v1815 = vld [vmem:[%s5 + $0x344] sm:$0xf]
  %v1816 = vld [vmem:[%s5 + $0x348] sm:$0xf]
  %v1817 = vld [vmem:[%s5 + $0x34c] sm:$0xf]
  %v1818 = vld [vmem:[%s5 + $0x350] sm:$0xf]
  %v1819 = vld [vmem:[%s5 + $0x354] sm:$0xf]
  %v1820 = vld [vmem:[%s5 + $0x358] sm:$0xf]
  %v1821 = vld [vmem:[%s5 + $0x35c] sm:$0xf]
  %v1822 = vld [vmem:[%s5 + $0x360] sm:$0xf]
  %v1823 = vld [vmem:[%s5 + $0x364] sm:$0xf]
  %v1824 = vld [vmem:[%s5 + $0x368] sm:$0xf]
  %v1825 = vld [vmem:[%s5 + $0x36c] sm:$0xf]
  %v1826 = vld [vmem:[%s5 + $0x370] sm:$0xf]
  %v1827 = vld [vmem:[%s5 + $0x374] sm:$0xf]
  %v1828 = vld [vmem:[%s5 + $0x378] sm:$0xf]
  %v1829 = vld [vmem:[%s5 + $0x37c] sm:$0xf]
  %v1830 = vld [vmem:[%s5 + $0x380] sm:$0xf]
  %v1831 = vld [vmem:[%s5 + $0x384] sm:$0xf]
  %v1832 = vld [vmem:[%s5 + $0x388] sm:$0xf]
  %v1833 = vld [vmem:[%s5 + $0x38c] sm:$0xf]
  %v1834 = vld [vmem:[%s5 + $0x390] sm:$0xf]
  %v1835 = vld [vmem:[%s5 + $0x394] sm:$0xf]
  %v1836 = vld [vmem:[%s5 + $0x398] sm:$0xf]
  %v1837 = vld [vmem:[%s5 + $0x39c] sm:$0xf]
  %v1838 = vld [vmem:[%s5 + $0x3a0] sm:$0xf]
  %v1839 = vld [vmem:[%s5 + $0x3a4] sm:$0xf]
  %v1840 = vld [vmem:[%s5 + $0x3a8] sm:$0xf]
  %v1841 = vld [vmem:[%s5 + $0x3ac] sm:$0xf]
  %v1842 = vld [vmem:[%s5 + $0x3b0] sm:$0xf]
  %v1843 = vld [vmem:[%s5 + $0x3b4] sm:$0xf]
  %v1844 = vld [vmem:[%s5 + $0x3b8] sm:$0xf]
  %v1845 = vld [vmem:[%s5 + $0x3bc] sm:$0xf]
  %v1846 = vld [vmem:[%s5 + $0x3c0] sm:$0xf]
  %v1847 = vld [vmem:[%s5 + $0x3c4] sm:$0xf]
  %v1848 = vld [vmem:[%s5 + $0x3c8] sm:$0xf]
  %v1849 = vld [vmem:[%s5 + $0x3cc] sm:$0xf]
  %v1850 = vld [vmem:[%s5 + $0x3d0] sm:$0xf]
  %v1851 = vld [vmem:[%s5 + $0x3d4] sm:$0xf]
  %v1852 = vld [vmem:[%s5 + $0x3d8] sm:$0xf]
  %v1853 = vld [vmem:[%s5 + $0x3dc] sm:$0xf]
  %v1854 = vld [vmem:[%s5 + $0x3e0] sm:$0xf]
  %v1855 = vld [vmem:[%s5 + $0x3e4] sm:$0xf]
  %v1856 = vld [vmem:[%s5 + $0x3e8] sm:$0xf]
  %v1857 = vld [vmem:[%s5 + $0x3ec] sm:$0xf]
  %v1858 = vld [vmem:[%s5 + $0x3f0] sm:$0xf]
  %v1859 = vld [vmem:[%s5 + $0x3f4] sm:$0xf]
  %v1860 = vld [vmem:[%s5 + $0x3f8] sm:$0xf]
  %v1861 = vld [vmem:[%s5 + $0x3fc] sm:$0xf]
  %v1862 = vld [vmem:[%s5 + $0x400] sm:$0xf]
  %v1863 = vld [vmem:[%s5 + $0x404] sm:$0xf]
  %v1864 = vld [vmem:[%s5 + $0x408] sm:$0xf]
  %v1865 = vld [vmem:[%s5 + $0x40c] sm:$0xf]
  %v1866 = vld [vmem:[%s5 + $0x410] sm:$0xf]
  %v1867 = vld [vmem:[%s5 + $0x414] sm:$0xf]
  %v1868 = vld [vmem:[%s5 + $0x418] sm:$0xf]
  %v1869 = vld [vmem:[%s5 + $0x41c] sm:$0xf]
  %v1870 = vld [vmem:[%s5 + $0x420] sm:$0xf]
  %v1871 = vld [vmem:[%s5 + $0x424] sm:$0xf]
  %v1872 = vld [vmem:[%s5 + $0x428] sm:$0xf]
  %v1873 = vld [vmem:[%s5 + $0x42c] sm:$0xf]
  %v1874 = vld [vmem:[%s5 + $0x430] sm:$0xf]
  %v1875 = vld [vmem:[%s5 + $0x434] sm:$0xf]
  %v1876 = vld [vmem:[%s5 + $0x438] sm:$0xf]
  %v1877 = vld [vmem:[%s5 + $0x43c] sm:$0xf]
  %v1878 = vld [vmem:[%s5 + $0x440] sm:$0xf]
  %v1879 = vld [vmem:[%s5 + $0x444] sm:$0xf]
  %v1880 = vld [vmem:[%s5 + $0x448] sm:$0xf]
  %v1881 = vld [vmem:[%s5 + $0x44c] sm:$0xf]
  %v1882 = vld [vmem:[%s5 + $0x450] sm:$0xf]
  %v1883 = vld [vmem:[%s5 + $0x454] sm:$0xf]
  %v1884 = vld [vmem:[%s5 + $0x458] sm:$0xf]
  %v1885 = vld [vmem:[%s5 + $0x45c] sm:$0xf]
  %v1886 = vld [vmem:[%s5 + $0x460] sm:$0xf]
  %v1887 = vld [vmem:[%s5 + $0x464] sm:$0xf]
  %v1888 = vld [vmem:[%s5 + $0x468] sm:$0xf]
  %v1889 = vld [vmem:[%s5 + $0x46c] sm:$0xf]
  %v1890 = vld [vmem:[%s5 + $0x470] sm:$0xf]
  %v1891 = vld [vmem:[%s5 + $0x474] sm:$0xf]
  %v1892 = vld [vmem:[%s5 + $0x478] sm:$0xf]
  %v1893 = vld [vmem:[%s5 + $0x47c] sm:$0xf]
  %v1894 = vld [vmem:[%s5 + $0x480] sm:$0xf]
  %v1895 = vld [vmem:[%s5 + $0x484] sm:$0xf]
  %v1896 = vld [vmem:[%s5 + $0x488] sm:$0xf]
  %v1897 = vld [vmem:[%s5 + $0x48c] sm:$0xf]
  %v1898 = vld [vmem:[%s5 + $0x490] sm:$0xf]
  %v1899 = vld [vmem:[%s5 + $0x494] sm:$0xf]
  %v1900 = vld [vmem:[%s5 + $0x498] sm:$0xf]
  %v1901 = vld [vmem:[%s5 + $0x49c] sm:$0xf]
  %v1902 = vld [vmem:[%s5 + $0x4a0] sm:$0xf]
  %v1903 = vld [vmem:[%s5 + $0x4a4] sm:$0xf]
  %v1904 = vld [vmem:[%s5 + $0x4a8] sm:$0xf]
  %v1905 = vld [vmem:[%s5 + $0x4ac] sm:$0xf]
  %v1906 = vld [vmem:[%s5 + $0x4b0] sm:$0xf]
  %v1907 = vld [vmem:[%s5 + $0x4b4] sm:$0xf]
  %v1908 = vld [vmem:[%s5 + $0x4b8] sm:$0xf]
  %v1909 = vld [vmem:[%s5 + $0x4bc] sm:$0xf]
  %v1910 = vld [vmem:[%s5 + $0x4c0] sm:$0xf]
  %v1911 = vld [vmem:[%s5 + $0x4c4] sm:$0xf]
  %v1912 = vld [vmem:[%s5 + $0x4c8] sm:$0xf]
  %v1913 = vld [vmem:[%s5 + $0x4cc] sm:$0xf]
  %v1914 = vld [vmem:[%s5 + $0x4d0] sm:$0xf]
  %v1915 = vld [vmem:[%s5 + $0x4d4] sm:$0xf]
  %v1916 = vld [vmem:[%s5 + $0x4d8] sm:$0xf]
  %v1917 = vld [vmem:[%s5 + $0x4dc] sm:$0xf]
  %v1918 = vld [vmem:[%s5 + $0x4e0] sm:$0xf]
  %v1919 = vld [vmem:[%s5 + $0x4e4] sm:$0xf]
  %v1920 = vld [vmem:[%s5 + $0x4e8] sm:$0xf]
  %v1921 = vld [vmem:[%s5 + $0x4ec] sm:$0xf]
  %v1922 = vld [vmem:[%s5 + $0x4f0] sm:$0xf]
  %v1923 = vld [vmem:[%s5 + $0x4f4] sm:$0xf]
  %v1924 = vld [vmem:[%s5 + $0x4f8] sm:$0xf]
  %v1925 = vld [vmem:[%s5 + $0x4fc] sm:$0xf]
  %v1926 = vld [vmem:[%s5 + $0x500] sm:$0xf]
  %v1927 = vld [vmem:[%s5 + $0x504] sm:$0xf]
  %v1928 = vld [vmem:[%s5 + $0x508] sm:$0xf]
  %v1929 = vld [vmem:[%s5 + $0x50c] sm:$0xf]
  %v1930 = vld [vmem:[%s5 + $0x510] sm:$0xf]
  %v1931 = vld [vmem:[%s5 + $0x514] sm:$0xf]
  %v1932 = vld [vmem:[%s5 + $0x518] sm:$0xf]
  %v1933 = vld [vmem:[%s5 + $0x51c] sm:$0xf]
  %v1934 = vld [vmem:[%s5 + $0x520] sm:$0xf]
  %v1935 = vld [vmem:[%s5 + $0x524] sm:$0xf]
  %v1936 = vld [vmem:[%s5 + $0x528] sm:$0xf]
  %v1937 = vld [vmem:[%s5 + $0x52c] sm:$0xf]
  %v1938 = vld [vmem:[%s5 + $0x530] sm:$0xf]
  %v1939 = vld [vmem:[%s5 + $0x534] sm:$0xf]
  %v1940 = vld [vmem:[%s5 + $0x538] sm:$0xf]
  %v1941 = vld [vmem:[%s5 + $0x53c] sm:$0xf]
  %v1942 = vld [vmem:[%s5 + $0x540] sm:$0xf]
  %v1943 = vld [vmem:[%s5 + $0x544] sm:$0xf]
  %v1944 = vld [vmem:[%s5 + $0x548] sm:$0xf]
  %v1945 = vld [vmem:[%s5 + $0x54c] sm:$0xf]
  %v1946 = vld [vmem:[%s5 + $0x550] sm:$0xf]
  %v1947 = vld [vmem:[%s5 + $0x554] sm:$0xf]
  %v1948 = vld [vmem:[%s5 + $0x558] sm:$0xf]
  %v1949 = vld [vmem:[%s5 + $0x55c] sm:$0xf]
  %v1950 = vld [vmem:[%s5 + $0x560] sm:$0xf]
  %v1951 = vld [vmem:[%s5 + $0x564] sm:$0xf]
  %v1952 = vld [vmem:[%s5 + $0x568] sm:$0xf]
  %v1953 = vld [vmem:[%s5 + $0x56c] sm:$0xf]
  %v1954 = vld [vmem:[%s5 + $0x570] sm:$0xf]
  %v1955 = vld [vmem:[%s5 + $0x574] sm:$0xf]
  %v1956 = vld [vmem:[%s5 + $0x578] sm:$0xf]
  %v1957 = vld [vmem:[%s5 + $0x57c] sm:$0xf]
  %v1958 = vld [vmem:[%s5 + $0x580] sm:$0xf]
  %v1959 = vld [vmem:[%s5 + $0x584] sm:$0xf]
  %v1960 = vld [vmem:[%s5 + $0x588] sm:$0xf]
  %v1961 = vld [vmem:[%s5 + $0x58c] sm:$0xf]
  %v1962 = vld [vmem:[%s5 + $0x590] sm:$0xf]
  %v1963 = vld [vmem:[%s5 + $0x594] sm:$0xf]
  %v1964 = vld [vmem:[%s5 + $0x598] sm:$0xf]
  %v1965 = vld [vmem:[%s5 + $0x59c] sm:$0xf]
  %v1966 = vld [vmem:[%s5 + $0x5a0] sm:$0xf]
  %v1967 = vld [vmem:[%s5 + $0x5a4] sm:$0xf]
  %v1968 = vld [vmem:[%s5 + $0x5a8] sm:$0xf]
  %v1969 = vld [vmem:[%s5 + $0x5ac] sm:$0xf]
  %v1970 = vld [vmem:[%s5 + $0x5b0] sm:$0xf]
  %v1971 = vld [vmem:[%s5 + $0x5b4] sm:$0xf]
  %v1972 = vld [vmem:[%s5 + $0x5b8] sm:$0xf]
  %v1973 = vld [vmem:[%s5 + $0x5bc] sm:$0xf]
  %v1974 = vld [vmem:[%s5 + $0x5c0] sm:$0xf]
  %v1975 = vld [vmem:[%s5 + $0x5c4] sm:$0xf]
  %v1976 = vld [vmem:[%s5 + $0x5c8] sm:$0xf]
  %v1977 = vld [vmem:[%s5 + $0x5cc] sm:$0xf]
  %v1978 = vld [vmem:[%s5 + $0x5d0] sm:$0xf]
  %v1979 = vld [vmem:[%s5 + $0x5d4] sm:$0xf]
  %v1980 = vld [vmem:[%s5 + $0x5d8] sm:$0xf]
  %v1981 = vld [vmem:[%s5 + $0x5dc] sm:$0xf]
  %v1982 = vld [vmem:[%s5 + $0x5e0] sm:$0xf]
  %v1983 = vld [vmem:[%s5 + $0x5e4] sm:$0xf]
  %v1984 = vld [vmem:[%s5 + $0x5e8] sm:$0xf]
  %v1985 = vld [vmem:[%s5 + $0x5ec] sm:$0xf]
  %v1986 = vld [vmem:[%s5 + $0x5f0] sm:$0xf]
  %v1987 = vld [vmem:[%s5 + $0x5f4] sm:$0xf]
  %v1988 = vld [vmem:[%s5 + $0x5f8] sm:$0xf]
  %v1989 = vld [vmem:[%s5 + $0x5fc] sm:$0xf]
  %v1990 = vld [vmem:[%s6] sm:$0x1]
  %v1992 = vperm.slane %v1990, 0
  %v2378 = vunpack.c.l.b16 %v1606
  %v2379 = vunpack.c.l.b16 %v1607
  %v2380 = vunpack.c.l.b16 %v1608
  %v2381 = vunpack.c.l.b16 %v1609
  %v2382 = vunpack.c.l.b16 %v1610
  %v2383 = vunpack.c.l.b16 %v1611
  %v2384 = vunpack.c.l.b16 %v1612
  %v2385 = vunpack.c.l.b16 %v1613
  %v2386 = vunpack.c.l.b16 %v1614
  %v2387 = vunpack.c.l.b16 %v1615
  %v2388 = vunpack.c.l.b16 %v1616
  %v2389 = vunpack.c.l.b16 %v1617
  %v2390 = vunpack.c.l.b16 %v1618
  %v2391 = vunpack.c.l.b16 %v1619
  %v2392 = vunpack.c.l.b16 %v1620
  %v2393 = vunpack.c.l.b16 %v1621
  %v2394 = vunpack.c.l.b16 %v1622
  %v2395 = vunpack.c.l.b16 %v1623
  %v2396 = vunpack.c.l.b16 %v1624
  %v2397 = vunpack.c.l.b16 %v1625
  %v2398 = vunpack.c.l.b16 %v1626
  %v2399 = vunpack.c.l.b16 %v1627
  %v2400 = vunpack.c.l.b16 %v1628
  %v2401 = vunpack.c.l.b16 %v1629
  %v2402 = vunpack.c.l.b16 %v1630
  %v2403 = vunpack.c.l.b16 %v1631
  %v2404 = vunpack.c.l.b16 %v1632
  %v2405 = vunpack.c.l.b16 %v1633
  %v2406 = vunpack.c.l.b16 %v1634
  %v2407 = vunpack.c.l.b16 %v1635
  %v2408 = vunpack.c.l.b16 %v1636
  %v2409 = vunpack.c.l.b16 %v1637
  %v2410 = vunpack.c.l.b16 %v1638
  %v2411 = vunpack.c.l.b16 %v1639
  %v2412 = vunpack.c.l.b16 %v1640
  %v2413 = vunpack.c.l.b16 %v1641
  %v2414 = vunpack.c.l.b16 %v1642
  %v2415 = vunpack.c.l.b16 %v1643
  %v2416 = vunpack.c.l.b16 %v1644
  %v2417 = vunpack.c.l.b16 %v1645
  %v2418 = vunpack.c.l.b16 %v1646
  %v2419 = vunpack.c.l.b16 %v1647
  %v2420 = vunpack.c.l.b16 %v1648
  %v2421 = vunpack.c.l.b16 %v1649
  %v2422 = vunpack.c.l.b16 %v1650
  %v2423 = vunpack.c.l.b16 %v1651
  %v2424 = vunpack.c.l.b16 %v1652
  %v2425 = vunpack.c.l.b16 %v1653
  %v2426 = vunpack.c.l.b16 %v1654
  %v2427 = vunpack.c.l.b16 %v1655
  %v2428 = vunpack.c.l.b16 %v1656
  %v2429 = vunpack.c.l.b16 %v1657
  %v2430 = vunpack.c.l.b16 %v1658
  %v2431 = vunpack.c.l.b16 %v1659
  %v2432 = vunpack.c.l.b16 %v1660
  %v2433 = vunpack.c.l.b16 %v1661
  %v2434 = vunpack.c.l.b16 %v1662
  %v2435 = vunpack.c.l.b16 %v1663
  %v2436 = vunpack.c.l.b16 %v1664
  %v2437 = vunpack.c.l.b16 %v1665
  %v2438 = vunpack.c.l.b16 %v1666
  %v2439 = vunpack.c.l.b16 %v1667
  %v2440 = vunpack.c.l.b16 %v1668
  %v2441 = vunpack.c.l.b16 %v1669
  %v2442 = vunpack.c.l.b16 %v1670
  %v2443 = vunpack.c.l.b16 %v1671
  %v2444 = vunpack.c.l.b16 %v1672
  %v2445 = vunpack.c.l.b16 %v1673
  %v2446 = vunpack.c.l.b16 %v1674
  %v2447 = vunpack.c.l.b16 %v1675
  %v2448 = vunpack.c.l.b16 %v1676
  %v2449 = vunpack.c.l.b16 %v1677
  %v2450 = vunpack.c.l.b16 %v1678
  %v2451 = vunpack.c.l.b16 %v1679
  %v2452 = vunpack.c.l.b16 %v1680
  %v2453 = vunpack.c.l.b16 %v1681
  %v2454 = vunpack.c.l.b16 %v1682
  %v2455 = vunpack.c.l.b16 %v1683
  %v2456 = vunpack.c.l.b16 %v1684
  %v2457 = vunpack.c.l.b16 %v1685
  %v2458 = vunpack.c.l.b16 %v1686
  %v2459 = vunpack.c.l.b16 %v1687
  %v2460 = vunpack.c.l.b16 %v1688
  %v2461 = vunpack.c.l.b16 %v1689
  %v2462 = vunpack.c.l.b16 %v1690
  %v2463 = vunpack.c.l.b16 %v1691
  %v2464 = vunpack.c.l.b16 %v1692
  %v2465 = vunpack.c.l.b16 %v1693
  %v2466 = vunpack.c.l.b16 %v1694
  %v2467 = vunpack.c.l.b16 %v1695
  %v2468 = vunpack.c.l.b16 %v1696
  %v2469 = vunpack.c.l.b16 %v1697
  %v2470 = vunpack.c.l.b16 %v1698
  %v2471 = vunpack.c.l.b16 %v1699
  %v2472 = vunpack.c.l.b16 %v1700
  %v2473 = vunpack.c.l.b16 %v1701
  %v2474 = vunpack.c.l.b16 %v1702
  %v2475 = vunpack.c.l.b16 %v1703
  %v2476 = vunpack.c.l.b16 %v1704
  %v2477 = vunpack.c.l.b16 %v1705
  %v2478 = vunpack.c.l.b16 %v1706
  %v2479 = vunpack.c.l.b16 %v1707
  %v2480 = vunpack.c.l.b16 %v1708
  %v2481 = vunpack.c.l.b16 %v1709
  %v2482 = vunpack.c.l.b16 %v1710
  %v2483 = vunpack.c.l.b16 %v1711
  %v2484 = vunpack.c.l.b16 %v1712
  %v2485 = vunpack.c.l.b16 %v1713
  %v2486 = vunpack.c.l.b16 %v1714
  %v2487 = vunpack.c.l.b16 %v1715
  %v2488 = vunpack.c.l.b16 %v1716
  %v2489 = vunpack.c.l.b16 %v1717
  %v2490 = vunpack.c.l.b16 %v1718
  %v2491 = vunpack.c.l.b16 %v1719
  %v2492 = vunpack.c.l.b16 %v1720
  %v2493 = vunpack.c.l.b16 %v1721
  %v2494 = vunpack.c.l.b16 %v1722
  %v2495 = vunpack.c.l.b16 %v1723
  %v2496 = vunpack.c.l.b16 %v1724
  %v2497 = vunpack.c.l.b16 %v1725
  %v2498 = vunpack.c.l.b16 %v1726
  %v2499 = vunpack.c.l.b16 %v1727
  %v2500 = vunpack.c.l.b16 %v1728
  %v2501 = vunpack.c.l.b16 %v1729
  %v2502 = vunpack.c.l.b16 %v1730
  %v2503 = vunpack.c.l.b16 %v1731
  %v2504 = vunpack.c.l.b16 %v1732
  %v2505 = vunpack.c.l.b16 %v1733
  %v2506 = vunpack.c.l.b16 %v1734
  %v2507 = vunpack.c.l.b16 %v1735
  %v2508 = vunpack.c.l.b16 %v1736
  %v2509 = vunpack.c.l.b16 %v1737
  %v2510 = vunpack.c.l.b16 %v1738
  %v2511 = vunpack.c.l.b16 %v1739
  %v2512 = vunpack.c.l.b16 %v1740
  %v2513 = vunpack.c.l.b16 %v1741
  %v2514 = vunpack.c.l.b16 %v1742
  %v2515 = vunpack.c.l.b16 %v1743
  %v2516 = vunpack.c.l.b16 %v1744
  %v2517 = vunpack.c.l.b16 %v1745
  %v2518 = vunpack.c.l.b16 %v1746
  %v2519 = vunpack.c.l.b16 %v1747
  %v2520 = vunpack.c.l.b16 %v1748
  %v2521 = vunpack.c.l.b16 %v1749
  %v2522 = vunpack.c.l.b16 %v1750
  %v2523 = vunpack.c.l.b16 %v1751
  %v2524 = vunpack.c.l.b16 %v1752
  %v2525 = vunpack.c.l.b16 %v1753
  %v2526 = vunpack.c.l.b16 %v1754
  %v2527 = vunpack.c.l.b16 %v1755
  %v2528 = vunpack.c.l.b16 %v1756
  %v2529 = vunpack.c.l.b16 %v1757
  %v2530 = vunpack.c.l.b16 %v1758
  %v2531 = vunpack.c.l.b16 %v1759
  %v2532 = vunpack.c.l.b16 %v1760
  %v2533 = vunpack.c.l.b16 %v1761
  %v2534 = vunpack.c.l.b16 %v1762
  %v2535 = vunpack.c.l.b16 %v1763
  %v2536 = vunpack.c.l.b16 %v1764
  %v2537 = vunpack.c.l.b16 %v1765
  %v2538 = vunpack.c.l.b16 %v1766
  %v2539 = vunpack.c.l.b16 %v1767
  %v2540 = vunpack.c.l.b16 %v1768
  %v2541 = vunpack.c.l.b16 %v1769
  %v2542 = vunpack.c.l.b16 %v1770
  %v2543 = vunpack.c.l.b16 %v1771
  %v2544 = vunpack.c.l.b16 %v1772
  %v2545 = vunpack.c.l.b16 %v1773
  %v2546 = vunpack.c.l.b16 %v1774
  %v2547 = vunpack.c.l.b16 %v1775
  %v2548 = vunpack.c.l.b16 %v1776
  %v2549 = vunpack.c.l.b16 %v1777
  %v2550 = vunpack.c.l.b16 %v1778
  %v2551 = vunpack.c.l.b16 %v1779
  %v2552 = vunpack.c.l.b16 %v1780
  %v2553 = vunpack.c.l.b16 %v1781
  %v2554 = vunpack.c.l.b16 %v1782
  %v2555 = vunpack.c.l.b16 %v1783
  %v2556 = vunpack.c.l.b16 %v1784
  %v2557 = vunpack.c.l.b16 %v1785
  %v2558 = vunpack.c.l.b16 %v1786
  %v2559 = vunpack.c.l.b16 %v1787
  %v2560 = vunpack.c.l.b16 %v1788
  %v2561 = vunpack.c.l.b16 %v1789
  %v2562 = vunpack.c.l.b16 %v1790
  %v2563 = vunpack.c.l.b16 %v1791
  %v2564 = vunpack.c.l.b16 %v1792
  %v2565 = vunpack.c.l.b16 %v1793
  %v2566 = vunpack.c.l.b16 %v1794
  %v2567 = vunpack.c.l.b16 %v1795
  %v2568 = vunpack.c.l.b16 %v1796
  %v2569 = vunpack.c.l.b16 %v1797
  %v2570 = vunpack.c.l.b16 %v1798
  %v2571 = vunpack.c.l.b16 %v1799
  %v2572 = vunpack.c.l.b16 %v1800
  %v2573 = vunpack.c.l.b16 %v1801
  %v2574 = vunpack.c.l.b16 %v1802
  %v2575 = vunpack.c.l.b16 %v1803
  %v2576 = vunpack.c.l.b16 %v1804
  %v2577 = vunpack.c.l.b16 %v1805
  %v2578 = vunpack.c.l.b16 %v1806
  %v2579 = vunpack.c.l.b16 %v1807
  %v2580 = vunpack.c.l.b16 %v1808
  %v2581 = vunpack.c.l.b16 %v1809
  %v2582 = vunpack.c.l.b16 %v1810
  %v2583 = vunpack.c.l.b16 %v1811
  %v2584 = vunpack.c.l.b16 %v1812
  %v2585 = vunpack.c.l.b16 %v1813
  %v2586 = vunpack.c.l.b16 %v1814
  %v2587 = vunpack.c.l.b16 %v1815
  %v2588 = vunpack.c.l.b16 %v1816
  %v2589 = vunpack.c.l.b16 %v1817
  %v2590 = vunpack.c.l.b16 %v1818
  %v2591 = vunpack.c.l.b16 %v1819
  %v2592 = vunpack.c.l.b16 %v1820
  %v2593 = vunpack.c.l.b16 %v1821
  %v2594 = vunpack.c.l.b16 %v1822
  %v2595 = vunpack.c.l.b16 %v1823
  %v2596 = vunpack.c.l.b16 %v1824
  %v2597 = vunpack.c.l.b16 %v1825
  %v2598 = vunpack.c.l.b16 %v1826
  %v2599 = vunpack.c.l.b16 %v1827
  %v2600 = vunpack.c.l.b16 %v1828
  %v2601 = vunpack.c.l.b16 %v1829
  %v2602 = vunpack.c.l.b16 %v1830
  %v2603 = vunpack.c.l.b16 %v1831
  %v2604 = vunpack.c.l.b16 %v1832
  %v2605 = vunpack.c.l.b16 %v1833
  %v2606 = vunpack.c.l.b16 %v1834
  %v2607 = vunpack.c.l.b16 %v1835
  %v2608 = vunpack.c.l.b16 %v1836
  %v2609 = vunpack.c.l.b16 %v1837
  %v2610 = vunpack.c.l.b16 %v1838
  %v2611 = vunpack.c.l.b16 %v1839
  %v2612 = vunpack.c.l.b16 %v1840
  %v2613 = vunpack.c.l.b16 %v1841
  %v2614 = vunpack.c.l.b16 %v1842
  %v2615 = vunpack.c.l.b16 %v1843
  %v2616 = vunpack.c.l.b16 %v1844
  %v2617 = vunpack.c.l.b16 %v1845
  %v2618 = vunpack.c.l.b16 %v1846
  %v2619 = vunpack.c.l.b16 %v1847
  %v2620 = vunpack.c.l.b16 %v1848
  %v2621 = vunpack.c.l.b16 %v1849
  %v2622 = vunpack.c.l.b16 %v1850
  %v2623 = vunpack.c.l.b16 %v1851
  %v2624 = vunpack.c.l.b16 %v1852
  %v2625 = vunpack.c.l.b16 %v1853
  %v2626 = vunpack.c.l.b16 %v1854
  %v2627 = vunpack.c.l.b16 %v1855
  %v2628 = vunpack.c.l.b16 %v1856
  %v2629 = vunpack.c.l.b16 %v1857
  %v2630 = vunpack.c.l.b16 %v1858
  %v2631 = vunpack.c.l.b16 %v1859
  %v2632 = vunpack.c.l.b16 %v1860
  %v2633 = vunpack.c.l.b16 %v1861
  %v2634 = vunpack.c.l.b16 %v1862
  %v2635 = vunpack.c.l.b16 %v1863
  %v2636 = vunpack.c.l.b16 %v1864
  %v2637 = vunpack.c.l.b16 %v1865
  %v2638 = vunpack.c.l.b16 %v1866
  %v2639 = vunpack.c.l.b16 %v1867
  %v2640 = vunpack.c.l.b16 %v1868
  %v2641 = vunpack.c.l.b16 %v1869
  %v2642 = vunpack.c.l.b16 %v1870
  %v2643 = vunpack.c.l.b16 %v1871
  %v2644 = vunpack.c.l.b16 %v1872
  %v2645 = vunpack.c.l.b16 %v1873
  %v2646 = vunpack.c.l.b16 %v1874
  %v2647 = vunpack.c.l.b16 %v1875
  %v2648 = vunpack.c.l.b16 %v1876
  %v2649 = vunpack.c.l.b16 %v1877
  %v2650 = vunpack.c.l.b16 %v1878
  %v2651 = vunpack.c.l.b16 %v1879
  %v2652 = vunpack.c.l.b16 %v1880
  %v2653 = vunpack.c.l.b16 %v1881
  %v2654 = vunpack.c.l.b16 %v1882
  %v2655 = vunpack.c.l.b16 %v1883
  %v2656 = vunpack.c.l.b16 %v1884
  %v2657 = vunpack.c.l.b16 %v1885
  %v2658 = vunpack.c.l.b16 %v1886
  %v2659 = vunpack.c.l.b16 %v1887
  %v2660 = vunpack.c.l.b16 %v1888
  %v2661 = vunpack.c.l.b16 %v1889
  %v2662 = vunpack.c.l.b16 %v1890
  %v2663 = vunpack.c.l.b16 %v1891
  %v2664 = vunpack.c.l.b16 %v1892
  %v2665 = vunpack.c.l.b16 %v1893
  %v2666 = vunpack.c.l.b16 %v1894
  %v2667 = vunpack.c.l.b16 %v1895
  %v2668 = vunpack.c.l.b16 %v1896
  %v2669 = vunpack.c.l.b16 %v1897
  %v2670 = vunpack.c.l.b16 %v1898
  %v2671 = vunpack.c.l.b16 %v1899
  %v2672 = vunpack.c.l.b16 %v1900
  %v2673 = vunpack.c.l.b16 %v1901
  %v2674 = vunpack.c.l.b16 %v1902
  %v2675 = vunpack.c.l.b16 %v1903
  %v2676 = vunpack.c.l.b16 %v1904
  %v2677 = vunpack.c.l.b16 %v1905
  %v2678 = vunpack.c.l.b16 %v1906
  %v2679 = vunpack.c.l.b16 %v1907
  %v2680 = vunpack.c.l.b16 %v1908
  %v2681 = vunpack.c.l.b16 %v1909
  %v2682 = vunpack.c.l.b16 %v1910
  %v2683 = vunpack.c.l.b16 %v1911
  %v2684 = vunpack.c.l.b16 %v1912
  %v2685 = vunpack.c.l.b16 %v1913
  %v2686 = vunpack.c.l.b16 %v1914
  %v2687 = vunpack.c.l.b16 %v1915
  %v2688 = vunpack.c.l.b16 %v1916
  %v2689 = vunpack.c.l.b16 %v1917
  %v2690 = vunpack.c.l.b16 %v1918
  %v2691 = vunpack.c.l.b16 %v1919
  %v2692 = vunpack.c.l.b16 %v1920
  %v2693 = vunpack.c.l.b16 %v1921
  %v2694 = vunpack.c.l.b16 %v1922
  %v2695 = vunpack.c.l.b16 %v1923
  %v2696 = vunpack.c.l.b16 %v1924
  %v2697 = vunpack.c.l.b16 %v1925
  %v2698 = vunpack.c.l.b16 %v1926
  %v2699 = vunpack.c.l.b16 %v1927
  %v2700 = vunpack.c.l.b16 %v1928
  %v2701 = vunpack.c.l.b16 %v1929
  %v2702 = vunpack.c.l.b16 %v1930
  %v2703 = vunpack.c.l.b16 %v1931
  %v2704 = vunpack.c.l.b16 %v1932
  %v2705 = vunpack.c.l.b16 %v1933
  %v2706 = vunpack.c.l.b16 %v1934
  %v2707 = vunpack.c.l.b16 %v1935
  %v2708 = vunpack.c.l.b16 %v1936
  %v2709 = vunpack.c.l.b16 %v1937
  %v2710 = vunpack.c.l.b16 %v1938
  %v2711 = vunpack.c.l.b16 %v1939
  %v2712 = vunpack.c.l.b16 %v1940
  %v2713 = vunpack.c.l.b16 %v1941
  %v2714 = vunpack.c.l.b16 %v1942
  %v2715 = vunpack.c.l.b16 %v1943
  %v2716 = vunpack.c.l.b16 %v1944
  %v2717 = vunpack.c.l.b16 %v1945
  %v2718 = vunpack.c.l.b16 %v1946
  %v2719 = vunpack.c.l.b16 %v1947
  %v2720 = vunpack.c.l.b16 %v1948
  %v2721 = vunpack.c.l.b16 %v1949
  %v2722 = vunpack.c.l.b16 %v1950
  %v2723 = vunpack.c.l.b16 %v1951
  %v2724 = vunpack.c.l.b16 %v1952
  %v2725 = vunpack.c.l.b16 %v1953
  %v2726 = vunpack.c.l.b16 %v1954
  %v2727 = vunpack.c.l.b16 %v1955
  %v2728 = vunpack.c.l.b16 %v1956
  %v2729 = vunpack.c.l.b16 %v1957
  %v2730 = vunpack.c.l.b16 %v1958
  %v2731 = vunpack.c.l.b16 %v1959
  %v2732 = vunpack.c.l.b16 %v1960
  %v2733 = vunpack.c.l.b16 %v1961
  %v2734 = vunpack.c.l.b16 %v1962
  %v2735 = vunpack.c.l.b16 %v1963
  %v2736 = vunpack.c.l.b16 %v1964
  %v2737 = vunpack.c.l.b16 %v1965
  %v2738 = vunpack.c.l.b16 %v1966
  %v2739 = vunpack.c.l.b16 %v1967
  %v2740 = vunpack.c.l.b16 %v1968
  %v2741 = vunpack.c.l.b16 %v1969
  %v2742 = vunpack.c.l.b16 %v1970
  %v2743 = vunpack.c.l.b16 %v1971
  %v2744 = vunpack.c.l.b16 %v1972
  %v2745 = vunpack.c.l.b16 %v1973
  %v2746 = vunpack.c.l.b16 %v1974
  %v2747 = vunpack.c.l.b16 %v1975
  %v2748 = vunpack.c.l.b16 %v1976
  %v2749 = vunpack.c.l.b16 %v1977
  %v2750 = vunpack.c.l.b16 %v1978
  %v2751 = vunpack.c.l.b16 %v1979
  %v2752 = vunpack.c.l.b16 %v1980
  %v2753 = vunpack.c.l.b16 %v1981
  %v2754 = vunpack.c.l.b16 %v1982
  %v2755 = vunpack.c.l.b16 %v1983
  %v2756 = vunpack.c.l.b16 %v1984
  %v2757 = vunpack.c.l.b16 %v1985
  %v2758 = vunpack.c.l.b16 %v1986
  %v2759 = vunpack.c.l.b16 %v1987
  %v2760 = vunpack.c.l.b16 %v1988
  %v2761 = vunpack.c.l.b16 %v1989
  %v2762 = vpack.c.b16 %v2379, %v2378
  %v2763 = vpack.c.b16 %v2381, %v2380
  %v2764 = vpack.c.b16 %v2383, %v2382
  %v2765 = vpack.c.b16 %v2385, %v2384
  %v2766 = vpack.c.b16 %v2387, %v2386
  %v2767 = vpack.c.b16 %v2389, %v2388
  %v2768 = vpack.c.b16 %v2391, %v2390
  %v2769 = vpack.c.b16 %v2393, %v2392
  %v2770 = vpack.c.b16 %v2395, %v2394
  %v2771 = vpack.c.b16 %v2397, %v2396
  %v2772 = vpack.c.b16 %v2399, %v2398
  %v2773 = vpack.c.b16 %v2401, %v2400
  %v2774 = vpack.c.b16 %v2403, %v2402
  %v2775 = vpack.c.b16 %v2405, %v2404
  %v2776 = vpack.c.b16 %v2407, %v2406
  %v2777 = vpack.c.b16 %v2409, %v2408
  %v2778 = vpack.c.b16 %v2411, %v2410
  %v2779 = vpack.c.b16 %v2413, %v2412
  %v2780 = vpack.c.b16 %v2415, %v2414
  %v2781 = vpack.c.b16 %v2417, %v2416
  %v2782 = vpack.c.b16 %v2419, %v2418
  %v2783 = vpack.c.b16 %v2421, %v2420
  %v2784 = vpack.c.b16 %v2423, %v2422
  %v2785 = vpack.c.b16 %v2425, %v2424
  %v2786 = vpack.c.b16 %v2427, %v2426
  %v2787 = vpack.c.b16 %v2429, %v2428
  %v2788 = vpack.c.b16 %v2431, %v2430
  %v2789 = vpack.c.b16 %v2433, %v2432
  %v2790 = vpack.c.b16 %v2435, %v2434
  %v2791 = vpack.c.b16 %v2437, %v2436
  %v2792 = vpack.c.b16 %v2439, %v2438
  %v2793 = vpack.c.b16 %v2441, %v2440
  %v2794 = vpack.c.b16 %v2443, %v2442
  %v2795 = vpack.c.b16 %v2445, %v2444
  %v2796 = vpack.c.b16 %v2447, %v2446
  %v2797 = vpack.c.b16 %v2449, %v2448
  %v2798 = vpack.c.b16 %v2451, %v2450
  %v2799 = vpack.c.b16 %v2453, %v2452
  %v2800 = vpack.c.b16 %v2455, %v2454
  %v2801 = vpack.c.b16 %v2457, %v2456
  %v2802 = vpack.c.b16 %v2459, %v2458
  %v2803 = vpack.c.b16 %v2461, %v2460
  %v2804 = vpack.c.b16 %v2463, %v2462
  %v2805 = vpack.c.b16 %v2465, %v2464
  %v2806 = vpack.c.b16 %v2467, %v2466
  %v2807 = vpack.c.b16 %v2469, %v2468
  %v2808 = vpack.c.b16 %v2471, %v2470
  %v2809 = vpack.c.b16 %v2473, %v2472
  %v2810 = vpack.c.b16 %v2475, %v2474
  %v2811 = vpack.c.b16 %v2477, %v2476
  %v2812 = vpack.c.b16 %v2479, %v2478
  %v2813 = vpack.c.b16 %v2481, %v2480
  %v2814 = vpack.c.b16 %v2483, %v2482
  %v2815 = vpack.c.b16 %v2485, %v2484
  %v2816 = vpack.c.b16 %v2487, %v2486
  %v2817 = vpack.c.b16 %v2489, %v2488
  %v2818 = vpack.c.b16 %v2491, %v2490
  %v2819 = vpack.c.b16 %v2493, %v2492
  %v2820 = vpack.c.b16 %v2495, %v2494
  %v2821 = vpack.c.b16 %v2497, %v2496
  %v2822 = vpack.c.b16 %v2499, %v2498
  %v2823 = vpack.c.b16 %v2501, %v2500
  %v2824 = vpack.c.b16 %v2503, %v2502
  %v2825 = vpack.c.b16 %v2505, %v2504
  %v2826 = vpack.c.b16 %v2507, %v2506
  %v2827 = vpack.c.b16 %v2509, %v2508
  %v2828 = vpack.c.b16 %v2511, %v2510
  %v2829 = vpack.c.b16 %v2513, %v2512
  %v2830 = vpack.c.b16 %v2515, %v2514
  %v2831 = vpack.c.b16 %v2517, %v2516
  %v2832 = vpack.c.b16 %v2519, %v2518
  %v2833 = vpack.c.b16 %v2521, %v2520
  %v2834 = vpack.c.b16 %v2523, %v2522
  %v2835 = vpack.c.b16 %v2525, %v2524
  %v2836 = vpack.c.b16 %v2527, %v2526
  %v2837 = vpack.c.b16 %v2529, %v2528
  %v2838 = vpack.c.b16 %v2531, %v2530
  %v2839 = vpack.c.b16 %v2533, %v2532
  %v2840 = vpack.c.b16 %v2535, %v2534
  %v2841 = vpack.c.b16 %v2537, %v2536
  %v2842 = vpack.c.b16 %v2539, %v2538
  %v2843 = vpack.c.b16 %v2541, %v2540
  %v2844 = vpack.c.b16 %v2543, %v2542
  %v2845 = vpack.c.b16 %v2545, %v2544
  %v2846 = vpack.c.b16 %v2547, %v2546
  %v2847 = vpack.c.b16 %v2549, %v2548
  %v2848 = vpack.c.b16 %v2551, %v2550
  %v2849 = vpack.c.b16 %v2553, %v2552
  %v2850 = vpack.c.b16 %v2555, %v2554
  %v2851 = vpack.c.b16 %v2557, %v2556
  %v2852 = vpack.c.b16 %v2559, %v2558
  %v2853 = vpack.c.b16 %v2561, %v2560
  %v2854 = vpack.c.b16 %v2563, %v2562
  %v2855 = vpack.c.b16 %v2565, %v2564
  %v2856 = vpack.c.b16 %v2567, %v2566
  %v2857 = vpack.c.b16 %v2569, %v2568
  %v2858 = vpack.c.b16 %v2571, %v2570
  %v2859 = vpack.c.b16 %v2573, %v2572
  %v2860 = vpack.c.b16 %v2575, %v2574
  %v2861 = vpack.c.b16 %v2577, %v2576
  %v2862 = vpack.c.b16 %v2579, %v2578
  %v2863 = vpack.c.b16 %v2581, %v2580
  %v2864 = vpack.c.b16 %v2583, %v2582
  %v2865 = vpack.c.b16 %v2585, %v2584
  %v2866 = vpack.c.b16 %v2587, %v2586
  %v2867 = vpack.c.b16 %v2589, %v2588
  %v2868 = vpack.c.b16 %v2591, %v2590
  %v2869 = vpack.c.b16 %v2593, %v2592
  %v2870 = vpack.c.b16 %v2595, %v2594
  %v2871 = vpack.c.b16 %v2597, %v2596
  %v2872 = vpack.c.b16 %v2599, %v2598
  %v2873 = vpack.c.b16 %v2601, %v2600
  %v2874 = vpack.c.b16 %v2603, %v2602
  %v2875 = vpack.c.b16 %v2605, %v2604
  %v2876 = vpack.c.b16 %v2607, %v2606
  %v2877 = vpack.c.b16 %v2609, %v2608
  %v2878 = vpack.c.b16 %v2611, %v2610
  %v2879 = vpack.c.b16 %v2613, %v2612
  %v2880 = vpack.c.b16 %v2615, %v2614
  %v2881 = vpack.c.b16 %v2617, %v2616
  %v2882 = vpack.c.b16 %v2619, %v2618
  %v2883 = vpack.c.b16 %v2621, %v2620
  %v2884 = vpack.c.b16 %v2623, %v2622
  %v2885 = vpack.c.b16 %v2625, %v2624
  %v2886 = vpack.c.b16 %v2627, %v2626
  %v2887 = vpack.c.b16 %v2629, %v2628
  %v2888 = vpack.c.b16 %v2631, %v2630
  %v2889 = vpack.c.b16 %v2633, %v2632
  %v2890 = vpack.c.b16 %v2635, %v2634
  %v2891 = vpack.c.b16 %v2637, %v2636
  %v2892 = vpack.c.b16 %v2639, %v2638
  %v2893 = vpack.c.b16 %v2641, %v2640
  %v2894 = vpack.c.b16 %v2643, %v2642
  %v2895 = vpack.c.b16 %v2645, %v2644
  %v2896 = vpack.c.b16 %v2647, %v2646
  %v2897 = vpack.c.b16 %v2649, %v2648
  %v2898 = vpack.c.b16 %v2651, %v2650
  %v2899 = vpack.c.b16 %v2653, %v2652
  %v2900 = vpack.c.b16 %v2655, %v2654
  %v2901 = vpack.c.b16 %v2657, %v2656
  %v2902 = vpack.c.b16 %v2659, %v2658
  %v2903 = vpack.c.b16 %v2661, %v2660
  %v2904 = vpack.c.b16 %v2663, %v2662
  %v2905 = vpack.c.b16 %v2665, %v2664
  %v2906 = vpack.c.b16 %v2667, %v2666
  %v2907 = vpack.c.b16 %v2669, %v2668
  %v2908 = vpack.c.b16 %v2671, %v2670
  %v2909 = vpack.c.b16 %v2673, %v2672
  %v2910 = vpack.c.b16 %v2675, %v2674
  %v2911 = vpack.c.b16 %v2677, %v2676
  %v2912 = vpack.c.b16 %v2679, %v2678
  %v2913 = vpack.c.b16 %v2681, %v2680
  %v2914 = vpack.c.b16 %v2683, %v2682
  %v2915 = vpack.c.b16 %v2685, %v2684
  %v2916 = vpack.c.b16 %v2687, %v2686
  %v2917 = vpack.c.b16 %v2689, %v2688
  %v2918 = vpack.c.b16 %v2691, %v2690
  %v2919 = vpack.c.b16 %v2693, %v2692
  %v2920 = vpack.c.b16 %v2695, %v2694
  %v2921 = vpack.c.b16 %v2697, %v2696
  %v2922 = vpack.c.b16 %v2699, %v2698
  %v2923 = vpack.c.b16 %v2701, %v2700
  %v2924 = vpack.c.b16 %v2703, %v2702
  %v2925 = vpack.c.b16 %v2705, %v2704
  %v2926 = vpack.c.b16 %v2707, %v2706
  %v2927 = vpack.c.b16 %v2709, %v2708
  %v2928 = vpack.c.b16 %v2711, %v2710
  %v2929 = vpack.c.b16 %v2713, %v2712
  %v2930 = vpack.c.b16 %v2715, %v2714
  %v2931 = vpack.c.b16 %v2717, %v2716
  %v2932 = vpack.c.b16 %v2719, %v2718
  %v2933 = vpack.c.b16 %v2721, %v2720
  %v2934 = vpack.c.b16 %v2723, %v2722
  %v2935 = vpack.c.b16 %v2725, %v2724
  %v2936 = vpack.c.b16 %v2727, %v2726
  %v2937 = vpack.c.b16 %v2729, %v2728
  %v2938 = vpack.c.b16 %v2731, %v2730
  %v2939 = vpack.c.b16 %v2733, %v2732
  %v2940 = vpack.c.b16 %v2735, %v2734
  %v2941 = vpack.c.b16 %v2737, %v2736
  %v2942 = vpack.c.b16 %v2739, %v2738
  %v2943 = vpack.c.b16 %v2741, %v2740
  %v2944 = vpack.c.b16 %v2743, %v2742
  %v2945 = vpack.c.b16 %v2745, %v2744
  %v2946 = vpack.c.b16 %v2747, %v2746
  %v2947 = vpack.c.b16 %v2749, %v2748
  %v2948 = vpack.c.b16 %v2751, %v2750
  %v2949 = vpack.c.b16 %v2753, %v2752
  %v2950 = vpack.c.b16 %v2755, %v2754
  %v2951 = vpack.c.b16 %v2757, %v2756
  %v2952 = vpack.c.b16 %v2759, %v2758
  %v2953 = vpack.c.b16 %v2761, %v2760
  %3146 = vmatpush.bf16.msra.mxu0 %v2769
  %3147 = vmatpush.bf16.msra.mxu0 %v2768
  %3148 = vmatpush.bf16.msra.mxu0 %v2767
  %3149 = vmatpush.bf16.msra.mxu0 %v2766
  %3150 = vmatpush.bf16.msra.mxu0 %v2765
  %3151 = vmatpush.bf16.msra.mxu0 %v2764
  %3152 = vmatpush.bf16.msra.mxu0 %v2763
  %3153 = vmatpush.bf16.msra.mxu0 %v2762
  %3154 = vmatmul.bf16.gmra.mxu0 %v1582
  %v3155 = vpop.f32.mrf.mxu0
  %v3156 = vadd.f32 %v1992, %v3155
  %v3157 = vpop.f32.mrf.mxu0
  %3158 = vdwg.mxu0
  %3159 = vmatpush.bf16.msra.mxu0 %v2777
  %3160 = vmatpush.bf16.msra.mxu0 %v2776
  %3161 = vmatpush.bf16.msra.mxu0 %v2775
  %3162 = vmatpush.bf16.msra.mxu0 %v2774
  %3163 = vmatpush.bf16.msra.mxu0 %v2773
  %3164 = vmatpush.bf16.msra.mxu0 %v2772
  %3165 = vmatpush.bf16.msra.mxu0 %v2771
  %3166 = vmatpush.bf16.msra.mxu0 %v2770
  %3167 = vmatmul.bf16.gmra.mxu0 %v1583
  %v3168 = vpop.f32.mrf.mxu0
  %v3169 = vadd.f32 %v3156, %v3168
  %v3170 = vpop.f32.mrf.mxu0
  %3171 = vdwg.mxu0
  %3172 = vmatpush.bf16.msra.mxu0 %v2785
  %3173 = vmatpush.bf16.msra.mxu0 %v2784
  %3174 = vmatpush.bf16.msra.mxu0 %v2783
  %3175 = vmatpush.bf16.msra.mxu0 %v2782
  %3176 = vmatpush.bf16.msra.mxu0 %v2781
  %3177 = vmatpush.bf16.msra.mxu0 %v2780
  %3178 = vmatpush.bf16.msra.mxu0 %v2779
  %3179 = vmatpush.bf16.msra.mxu0 %v2778
  %3180 = vmatmul.bf16.gmra.mxu0 %v1584
  %v3181 = vpop.f32.mrf.mxu0
  %v3182 = vadd.f32 %v3169, %v3181
  %v3183 = vpop.f32.mrf.mxu0
  %3184 = vdwg.mxu0
  %3185 = vmatpush.bf16.msra.mxu0 %v2793
  %3186 = vmatpush.bf16.msra.mxu0 %v2792
  %3187 = vmatpush.bf16.msra.mxu0 %v2791
  %3188 = vmatpush.bf16.msra.mxu0 %v2790
  %3189 = vmatpush.bf16.msra.mxu0 %v2789
  %3190 = vmatpush.bf16.msra.mxu0 %v2788
  %3191 = vmatpush.bf16.msra.mxu0 %v2787
  %3192 = vmatpush.bf16.msra.mxu0 %v2786
  %3193 = vmatmul.bf16.gmra.mxu0 %v1585
  %v3194 = vpop.f32.mrf.mxu0
  %v3195 = vadd.f32 %v3182, %v3194
  %v3196 = vpop.f32.mrf.mxu0
  %3197 = vdwg.mxu0
  %3198 = vmatpush.bf16.msra.mxu0 %v2801
  %3199 = vmatpush.bf16.msra.mxu0 %v2800
  %3200 = vmatpush.bf16.msra.mxu0 %v2799
  %3201 = vmatpush.bf16.msra.mxu0 %v2798
  %3202 = vmatpush.bf16.msra.mxu0 %v2797
  %3203 = vmatpush.bf16.msra.mxu0 %v2796
  %3204 = vmatpush.bf16.msra.mxu0 %v2795
  %3205 = vmatpush.bf16.msra.mxu0 %v2794
  %3206 = vmatmul.bf16.gmra.mxu0 %v1586
  %v3207 = vpop.f32.mrf.mxu0
  %v3208 = vadd.f32 %v3195, %v3207
  %v3209 = vpop.f32.mrf.mxu0
  %3210 = vdwg.mxu0
  %3211 = vmatpush.bf16.msra.mxu0 %v2809
  %3212 = vmatpush.bf16.msra.mxu0 %v2808
  %3213 = vmatpush.bf16.msra.mxu0 %v2807
  %3214 = vmatpush.bf16.msra.mxu0 %v2806
  %3215 = vmatpush.bf16.msra.mxu0 %v2805
  %3216 = vmatpush.bf16.msra.mxu0 %v2804
  %3217 = vmatpush.bf16.msra.mxu0 %v2803
  %3218 = vmatpush.bf16.msra.mxu0 %v2802
  %3219 = vmatmul.bf16.gmra.mxu0 %v1587
  %v3220 = vpop.f32.mrf.mxu0
  %v3221 = vadd.f32 %v3208, %v3220
  %v3222 = vpop.f32.mrf.mxu0
  %3223 = vdwg.mxu0
  %3224 = vmatpush.bf16.msra.mxu0 %v2817
  %3225 = vmatpush.bf16.msra.mxu0 %v2816
  %3226 = vmatpush.bf16.msra.mxu0 %v2815
  %3227 = vmatpush.bf16.msra.mxu0 %v2814
  %3228 = vmatpush.bf16.msra.mxu0 %v2813
  %3229 = vmatpush.bf16.msra.mxu0 %v2812
  %3230 = vmatpush.bf16.msra.mxu0 %v2811
  %3231 = vmatpush.bf16.msra.mxu0 %v2810
  %3232 = vmatmul.bf16.gmra.mxu0 %v1588
  %v3233 = vpop.f32.mrf.mxu0
  %v3234 = vadd.f32 %v3221, %v3233
  %v3235 = vpop.f32.mrf.mxu0
  %3236 = vdwg.mxu0
  %3237 = vmatpush.bf16.msra.mxu0 %v2825
  %3238 = vmatpush.bf16.msra.mxu0 %v2824
  %3239 = vmatpush.bf16.msra.mxu0 %v2823
  %3240 = vmatpush.bf16.msra.mxu0 %v2822
  %3241 = vmatpush.bf16.msra.mxu0 %v2821
  %3242 = vmatpush.bf16.msra.mxu0 %v2820
  %3243 = vmatpush.bf16.msra.mxu0 %v2819
  %3244 = vmatpush.bf16.msra.mxu0 %v2818
  %3245 = vmatmul.bf16.gmra.mxu0 %v1589
  %v3246 = vpop.f32.mrf.mxu0
  %v3247 = vadd.f32 %v3234, %v3246
  %v3248 = vpop.f32.mrf.mxu0
  %3249 = vdwg.mxu0
  %3250 = vmatpush.bf16.msra.mxu0 %v2833
  %3251 = vmatpush.bf16.msra.mxu0 %v2832
  %3252 = vmatpush.bf16.msra.mxu0 %v2831
  %3253 = vmatpush.bf16.msra.mxu0 %v2830
  %3254 = vmatpush.bf16.msra.mxu0 %v2829
  %3255 = vmatpush.bf16.msra.mxu0 %v2828
  %3256 = vmatpush.bf16.msra.mxu0 %v2827
  %3257 = vmatpush.bf16.msra.mxu0 %v2826
  %3258 = vmatmul.bf16.gmra.mxu0 %v1590
  %v3259 = vpop.f32.mrf.mxu0
  %v3260 = vadd.f32 %v3247, %v3259
  %v3261 = vpop.f32.mrf.mxu0
  %3262 = vdwg.mxu0
  %3263 = vmatpush.bf16.msra.mxu0 %v2841
  %3264 = vmatpush.bf16.msra.mxu0 %v2840
  %3265 = vmatpush.bf16.msra.mxu0 %v2839
  %3266 = vmatpush.bf16.msra.mxu0 %v2838
  %3267 = vmatpush.bf16.msra.mxu0 %v2837
  %3268 = vmatpush.bf16.msra.mxu0 %v2836
  %3269 = vmatpush.bf16.msra.mxu0 %v2835
  %3270 = vmatpush.bf16.msra.mxu0 %v2834
  %3271 = vmatmul.bf16.gmra.mxu0 %v1591
  %v3272 = vpop.f32.mrf.mxu0
  %v3273 = vadd.f32 %v3260, %v3272
  %v3274 = vpop.f32.mrf.mxu0
  %3275 = vdwg.mxu0
  %3276 = vmatpush.bf16.msra.mxu0 %v2849
  %3277 = vmatpush.bf16.msra.mxu0 %v2848
  %3278 = vmatpush.bf16.msra.mxu0 %v2847
  %3279 = vmatpush.bf16.msra.mxu0 %v2846
  %3280 = vmatpush.bf16.msra.mxu0 %v2845
  %3281 = vmatpush.bf16.msra.mxu0 %v2844
  %3282 = vmatpush.bf16.msra.mxu0 %v2843
  %3283 = vmatpush.bf16.msra.mxu0 %v2842
  %3284 = vmatmul.bf16.gmra.mxu0 %v1592
  %v3285 = vpop.f32.mrf.mxu0
  %v3286 = vadd.f32 %v3273, %v3285
  %v3287 = vpop.f32.mrf.mxu0
  %3288 = vdwg.mxu0
  %3289 = vmatpush.bf16.msra.mxu0 %v2857
  %3290 = vmatpush.bf16.msra.mxu0 %v2856
  %3291 = vmatpush.bf16.msra.mxu0 %v2855
  %3292 = vmatpush.bf16.msra.mxu0 %v2854
  %3293 = vmatpush.bf16.msra.mxu0 %v2853
  %3294 = vmatpush.bf16.msra.mxu0 %v2852
  %3295 = vmatpush.bf16.msra.mxu0 %v2851
  %3296 = vmatpush.bf16.msra.mxu0 %v2850
  %3297 = vmatmul.bf16.gmra.mxu0 %v1593
  %v3298 = vpop.f32.mrf.mxu0
  %v3299 = vadd.f32 %v3286, %v3298
  %v3300 = vpop.f32.mrf.mxu0
  %3301 = vdwg.mxu0
  %3302 = vmatpush.bf16.msra.mxu0 %v2865
  %3303 = vmatpush.bf16.msra.mxu0 %v2864
  %3304 = vmatpush.bf16.msra.mxu0 %v2863
  %3305 = vmatpush.bf16.msra.mxu0 %v2862
  %3306 = vmatpush.bf16.msra.mxu0 %v2861
  %3307 = vmatpush.bf16.msra.mxu0 %v2860
  %3308 = vmatpush.bf16.msra.mxu0 %v2859
  %3309 = vmatpush.bf16.msra.mxu0 %v2858
  %3310 = vmatmul.bf16.gmra.mxu0 %v1594
  %v3311 = vpop.f32.mrf.mxu0
  %v3312 = vadd.f32 %v3299, %v3311
  %v3313 = vpop.f32.mrf.mxu0
  %3314 = vdwg.mxu0
  %3315 = vmatpush.bf16.msra.mxu0 %v2873
  %3316 = vmatpush.bf16.msra.mxu0 %v2872
  %3317 = vmatpush.bf16.msra.mxu0 %v2871
  %3318 = vmatpush.bf16.msra.mxu0 %v2870
  %3319 = vmatpush.bf16.msra.mxu0 %v2869
  %3320 = vmatpush.bf16.msra.mxu0 %v2868
  %3321 = vmatpush.bf16.msra.mxu0 %v2867
  %3322 = vmatpush.bf16.msra.mxu0 %v2866
  %3323 = vmatmul.bf16.gmra.mxu0 %v1595
  %v3324 = vpop.f32.mrf.mxu0
  %v3325 = vadd.f32 %v3312, %v3324
  %v3326 = vpop.f32.mrf.mxu0
  %3327 = vdwg.mxu0
  %3328 = vmatpush.bf16.msra.mxu0 %v2881
  %3329 = vmatpush.bf16.msra.mxu0 %v2880
  %3330 = vmatpush.bf16.msra.mxu0 %v2879
  %3331 = vmatpush.bf16.msra.mxu0 %v2878
  %3332 = vmatpush.bf16.msra.mxu0 %v2877
  %3333 = vmatpush.bf16.msra.mxu0 %v2876
  %3334 = vmatpush.bf16.msra.mxu0 %v2875
  %3335 = vmatpush.bf16.msra.mxu0 %v2874
  %3336 = vmatmul.bf16.gmra.mxu0 %v1596
  %v3337 = vpop.f32.mrf.mxu0
  %v3338 = vadd.f32 %v3325, %v3337
  %v3339 = vpop.f32.mrf.mxu0
  %3340 = vdwg.mxu0
  %3341 = vmatpush.bf16.msra.mxu0 %v2889
  %3342 = vmatpush.bf16.msra.mxu0 %v2888
  %3343 = vmatpush.bf16.msra.mxu0 %v2887
  %3344 = vmatpush.bf16.msra.mxu0 %v2886
  %3345 = vmatpush.bf16.msra.mxu0 %v2885
  %3346 = vmatpush.bf16.msra.mxu0 %v2884
  %3347 = vmatpush.bf16.msra.mxu0 %v2883
  %3348 = vmatpush.bf16.msra.mxu0 %v2882
  %3349 = vmatmul.bf16.gmra.mxu0 %v1597
  %v3350 = vpop.f32.mrf.mxu0
  %v3351 = vadd.f32 %v3338, %v3350
  %v3352 = vpop.f32.mrf.mxu0
  %3353 = vdwg.mxu0
  %3354 = vmatpush.bf16.msra.mxu0 %v2897
  %3355 = vmatpush.bf16.msra.mxu0 %v2896
  %3356 = vmatpush.bf16.msra.mxu0 %v2895
  %3357 = vmatpush.bf16.msra.mxu0 %v2894
  %3358 = vmatpush.bf16.msra.mxu0 %v2893
  %3359 = vmatpush.bf16.msra.mxu0 %v2892
  %3360 = vmatpush.bf16.msra.mxu0 %v2891
  %3361 = vmatpush.bf16.msra.mxu0 %v2890
  %3362 = vmatmul.bf16.gmra.mxu0 %v1598
  %v3363 = vpop.f32.mrf.mxu0
  %v3364 = vadd.f32 %v3351, %v3363
  %v3365 = vpop.f32.mrf.mxu0
  %3366 = vdwg.mxu0
  %3367 = vmatpush.bf16.msra.mxu0 %v2905
  %3368 = vmatpush.bf16.msra.mxu0 %v2904
  %3369 = vmatpush.bf16.msra.mxu0 %v2903
  %3370 = vmatpush.bf16.msra.mxu0 %v2902
  %3371 = vmatpush.bf16.msra.mxu0 %v2901
  %3372 = vmatpush.bf16.msra.mxu0 %v2900
  %3373 = vmatpush.bf16.msra.mxu0 %v2899
  %3374 = vmatpush.bf16.msra.mxu0 %v2898
  %3375 = vmatmul.bf16.gmra.mxu0 %v1599
  %v3376 = vpop.f32.mrf.mxu0
  %v3377 = vadd.f32 %v3364, %v3376
  %v3378 = vpop.f32.mrf.mxu0
  %3379 = vdwg.mxu0
  %3380 = vmatpush.bf16.msra.mxu0 %v2913
  %3381 = vmatpush.bf16.msra.mxu0 %v2912
  %3382 = vmatpush.bf16.msra.mxu0 %v2911
  %3383 = vmatpush.bf16.msra.mxu0 %v2910
  %3384 = vmatpush.bf16.msra.mxu0 %v2909
  %3385 = vmatpush.bf16.msra.mxu0 %v2908
  %3386 = vmatpush.bf16.msra.mxu0 %v2907
  %3387 = vmatpush.bf16.msra.mxu0 %v2906
  %3388 = vmatmul.bf16.gmra.mxu0 %v1600
  %v3389 = vpop.f32.mrf.mxu0
  %v3390 = vadd.f32 %v3377, %v3389
  %v3391 = vpop.f32.mrf.mxu0
  %3392 = vdwg.mxu0
  %3393 = vmatpush.bf16.msra.mxu0 %v2921
  %3394 = vmatpush.bf16.msra.mxu0 %v2920
  %3395 = vmatpush.bf16.msra.mxu0 %v2919
  %3396 = vmatpush.bf16.msra.mxu0 %v2918
  %3397 = vmatpush.bf16.msra.mxu0 %v2917
  %3398 = vmatpush.bf16.msra.mxu0 %v2916
  %3399 = vmatpush.bf16.msra.mxu0 %v2915
  %3400 = vmatpush.bf16.msra.mxu0 %v2914
  %3401 = vmatmul.bf16.gmra.mxu0 %v1601
  %v3402 = vpop.f32.mrf.mxu0
  %v3403 = vadd.f32 %v3390, %v3402
  %v3404 = vpop.f32.mrf.mxu0
  %3405 = vdwg.mxu0
  %3406 = vmatpush.bf16.msra.mxu0 %v2929
  %3407 = vmatpush.bf16.msra.mxu0 %v2928
  %3408 = vmatpush.bf16.msra.mxu0 %v2927
  %3409 = vmatpush.bf16.msra.mxu0 %v2926
  %3410 = vmatpush.bf16.msra.mxu0 %v2925
  %3411 = vmatpush.bf16.msra.mxu0 %v2924
  %3412 = vmatpush.bf16.msra.mxu0 %v2923
  %3413 = vmatpush.bf16.msra.mxu0 %v2922
  %3414 = vmatmul.bf16.gmra.mxu0 %v1602
  %v3415 = vpop.f32.mrf.mxu0
  %v3416 = vadd.f32 %v3403, %v3415
  %v3417 = vpop.f32.mrf.mxu0
  %3418 = vdwg.mxu0
  %3419 = vmatpush.bf16.msra.mxu0 %v2937
  %3420 = vmatpush.bf16.msra.mxu0 %v2936
  %3421 = vmatpush.bf16.msra.mxu0 %v2935
  %3422 = vmatpush.bf16.msra.mxu0 %v2934
  %3423 = vmatpush.bf16.msra.mxu0 %v2933
  %3424 = vmatpush.bf16.msra.mxu0 %v2932
  %3425 = vmatpush.bf16.msra.mxu0 %v2931
  %3426 = vmatpush.bf16.msra.mxu0 %v2930
  %3427 = vmatmul.bf16.gmra.mxu0 %v1603
  %v3428 = vpop.f32.mrf.mxu0
  %v3429 = vadd.f32 %v3416, %v3428
  %v3430 = vpop.f32.mrf.mxu0
  %3431 = vdwg.mxu0
  %3432 = vmatpush.bf16.msra.mxu0 %v2945
  %3433 = vmatpush.bf16.msra.mxu0 %v2944
  %3434 = vmatpush.bf16.msra.mxu0 %v2943
  %3435 = vmatpush.bf16.msra.mxu0 %v2942
  %3436 = vmatpush.bf16.msra.mxu0 %v2941
  %3437 = vmatpush.bf16.msra.mxu0 %v2940
  %3438 = vmatpush.bf16.msra.mxu0 %v2939
  %3439 = vmatpush.bf16.msra.mxu0 %v2938
  %3440 = vmatmul.bf16.gmra.mxu0 %v1604
  %v3441 = vpop.f32.mrf.mxu0
  %v3442 = vadd.f32 %v3429, %v3441
  %v3443 = vpop.f32.mrf.mxu0
  %3444 = vdwg.mxu0
  %3445 = vmatpush.bf16.msra.mxu0 %v2953
  %3446 = vmatpush.bf16.msra.mxu0 %v2952
  %3447 = vmatpush.bf16.msra.mxu0 %v2951
  %3448 = vmatpush.bf16.msra.mxu0 %v2950
  %3449 = vmatpush.bf16.msra.mxu0 %v2949
  %3450 = vmatpush.bf16.msra.mxu0 %v2948
  %3451 = vmatpush.bf16.msra.mxu0 %v2947
  %3452 = vmatpush.bf16.msra.mxu0 %v2946
  %3453 = vmatmul.bf16.gmra.mxu0 %v1605
  %v3454 = vpop.f32.mrf.mxu0
  %v3455 = vadd.f32 %v3442, %v3454
  %v3456 = vpop.f32.mrf.mxu0
  %3457 = vdwg.mxu0
  %v3458 = vmax.f32 %v3455, 0.0
  %v3459 = vld [vmem:[%s7] sm:$0xff]
  %v3460 = vld [vmem:[%s7 + $0x8] sm:$0xf]
  %v3461 = vld [vmem:[%s8] sm:$0x1]
  %v3463 = vperm.slane %v3461, 0
  %vm3465 = vcmask 97280
  %v3467 = vsel %vm3465, %v3458, 0
  %vm3469 = vcmask 1043456
  %v3471 = vsel %vm3469, %v3460, 0
  %3473 = vmatpush.msra.mxu0 0.0
  %3474 = vmatpush.msra.mxu0 0.0
  %3475 = vmatpush.msra.mxu0 0.0
  %3476 = vmatpush.msra.mxu0 0.0
  %3477 = vmatpush.msra.mxu0 0.0
  %3478 = vmatpush.msra.mxu0 0.0
  %3479 = vmatpush.msra.mxu0 0.0
  %3480 = vmatpush.msra.mxu0 0.0
  %3481 = vmatpush.msra.mxu0 0.0
  %3482 = vmatpush.msra.mxu0 0.0
  %3483 = vmatpush.msra.mxu0 0.0
  %3484 = vmatpush.msra.mxu0 0.0
  %3485 = vmatpush.msra.mxu0 0.0
  %3486 = vmatpush.msra.mxu0 0.0
  %3487 = vmatpush.msra.mxu0 %v3471
  %3488 = vmatpush.msra.mxu0 %v3459
  %3489 = vmatmul.f32.gmra.mxu0 %v3467
  %v3490 = vpop.f32.mrf.mxu0
  %v3491 = vadd.f32 %v3463, %v3490
  %3492 = vdwg.mxu0
  %v3493 = vmax.f32 %v3491, 0.0
  %v3494 = vld [vmem:[%s9] sm:$0x1]
  %v3496 = vperm.slane %v3494, 0
  %v3498 = vmul.f32 %v3493, %v3496
  %vm3499 = vcmask 41984
  %v3500 = vsel %vm3499, %v3498, 0.0
  %3501 = vadd.xlane.f32.xlu0 %v3500
  %v3502 = vpop.xlane.xlu0 %3501
  %v3503 = vld [vmem:[#allocation3 + $0x30] sm:$0xff]
  %v3504 = vld [vmem:[#allocation3 + $0x38] sm:$0xff]
  %v3505 = vld [vmem:[#allocation3 + $0x40] sm:$0xff]
  %v3506 = vld [vmem:[#allocation3 + $0x48] sm:$0xff]
  %v3507 = vld [vmem:[#allocation3 + $0x50] sm:$0xff]
  %v3508 = vld [vmem:[#allocation3 + $0x58] sm:$0xff]
  %3515 = vst [vmem:[#allocation1] ss:$4 sm:$0xff] %v3503
  %s3516 = scalar_lea.vmem [#allocation1], 32
  %3517 = vst [vmem:[%s3516] ss:$4 sm:$0xff] %v3504
  %v3518 = vld.sshfl [vmem:[#allocation1] sm:$0xff pattern:$0x73625140]
  %v3519 = vld.sshfl [vmem:[#allocation1 + $0x8] sm:$0xff pattern:$0x73625140]
  %v3520 = vld.sshfl [vmem:[#allocation1 + $0x10] sm:$0xff pattern:$0x73625140]
  %v3521 = vld.sshfl [vmem:[#allocation1 + $0x18] sm:$0xff pattern:$0x73625140]
  %v3522 = vld.sshfl [vmem:[#allocation1 + $0x20] sm:$0xff pattern:$0x73625140]
  %v3523 = vld.sshfl [vmem:[#allocation1 + $0x28] sm:$0xff pattern:$0x73625140]
  %v3524 = vld.sshfl [vmem:[#allocation1 + $0x30] sm:$0xff pattern:$0x73625140]
  %v3525 = vld.sshfl [vmem:[#allocation1 + $0x38] sm:$0xff pattern:$0x73625140]
  %3526 = vst [vmem:[#allocation1] ss:$4 sm:$0xff] %v3505
  %3527 = vst [vmem:[%s3516] ss:$4 sm:$0xff] %v3506
  %v3528 = vld.sshfl [vmem:[#allocation1] sm:$0xff pattern:$0x73625140]
  %v3529 = vld.sshfl [vmem:[#allocation1 + $0x8] sm:$0xff pattern:$0x73625140]
  %v3530 = vld.sshfl [vmem:[#allocation1 + $0x10] sm:$0xff pattern:$0x73625140]
  %v3531 = vld.sshfl [vmem:[#allocation1 + $0x18] sm:$0xff pattern:$0x73625140]
  %v3532 = vld.sshfl [vmem:[#allocation1 + $0x20] sm:$0xff pattern:$0x73625140]
  %v3533 = vld.sshfl [vmem:[#allocation1 + $0x28] sm:$0xff pattern:$0x73625140]
  %v3534 = vld.sshfl [vmem:[#allocation1 + $0x30] sm:$0xff pattern:$0x73625140]
  %v3535 = vld.sshfl [vmem:[#allocation1 + $0x38] sm:$0xff pattern:$0x73625140]
  %3536 = vst [vmem:[#allocation1] ss:$4 sm:$0xff] %v3507
  %3537 = vst [vmem:[%s3516] ss:$4 sm:$0xff] %v3508
  %v3538 = vld.sshfl [vmem:[#allocation1] sm:$0xff pattern:$0x73625140]
  %v3539 = vld.sshfl [vmem:[#allocation1 + $0x8] sm:$0xff pattern:$0x73625140]
  %v3540 = vld.sshfl [vmem:[#allocation1 + $0x10] sm:$0xff pattern:$0x73625140]
  %v3541 = vld.sshfl [vmem:[#allocation1 + $0x18] sm:$0xff pattern:$0x73625140]
  %v3542 = vld.sshfl [vmem:[#allocation1 + $0x20] sm:$0xff pattern:$0x73625140]
  %v3543 = vld.sshfl [vmem:[#allocation1 + $0x28] sm:$0xff pattern:$0x73625140]
  %v3544 = vld.sshfl [vmem:[#allocation1 + $0x30] sm:$0xff pattern:$0x73625140]
  %v3545 = vld.sshfl [vmem:[#allocation1 + $0x38] sm:$0xff pattern:$0x73625140]
  %v3570 = vpack.c.bf16 %v3518, %v3518
  %v3571 = vpack.c.bf16 %v3519, %v3519
  %v3572 = vpack.c.bf16 %v3520, %v3520
  %v3573 = vpack.c.bf16 %v3521, %v3521
  %v3574 = vpack.c.bf16 %v3522, %v3522
  %v3575 = vpack.c.bf16 %v3523, %v3523
  %v3576 = vpack.c.bf16 %v3524, %v3524
  %v3577 = vpack.c.bf16 %v3525, %v3525
  %v3578 = vpack.c.bf16 %v3528, %v3528
  %v3579 = vpack.c.bf16 %v3529, %v3529
  %v3580 = vpack.c.bf16 %v3530, %v3530
  %v3581 = vpack.c.bf16 %v3531, %v3531
  %v3582 = vpack.c.bf16 %v3532, %v3532
  %v3583 = vpack.c.bf16 %v3533, %v3533
  %v3584 = vpack.c.bf16 %v3534, %v3534
  %v3585 = vpack.c.bf16 %v3535, %v3535
  %v3586 = vpack.c.bf16 %v3538, %v3538
  %v3587 = vpack.c.bf16 %v3539, %v3539
  %v3588 = vpack.c.bf16 %v3540, %v3540
  %v3589 = vpack.c.bf16 %v3541, %v3541
  %v3590 = vpack.c.bf16 %v3542, %v3542
  %v3591 = vpack.c.bf16 %v3543, %v3543
  %v3592 = vpack.c.bf16 %v3544, %v3544
  %v3593 = vpack.c.bf16 %v3545, %v3545
  %s3594 = scalar_lea.vmem %s5, 1536
  %v3595 = vld [vmem:[%s3594] sm:$0xf]
  %v3596 = vld [vmem:[%s3594 + $0x4] sm:$0xf]
  %v3597 = vld [vmem:[%s3594 + $0x8] sm:$0xf]
  %v3598 = vld [vmem:[%s3594 + $0xc] sm:$0xf]
  %v3599 = vld [vmem:[%s3594 + $0x10] sm:$0xf]
  %v3600 = vld [vmem:[%s3594 + $0x14] sm:$0xf]
  %v3601 = vld [vmem:[%s3594 + $0x18] sm:$0xf]
  %v3602 = vld [vmem:[%s3594 + $0x1c] sm:$0xf]
  %v3603 = vld [vmem:[%s3594 + $0x20] sm:$0xf]
  %v3604 = vld [vmem:[%s3594 + $0x24] sm:$0xf]
  %v3605 = vld [vmem:[%s3594 + $0x28] sm:$0xf]
  %v3606 = vld [vmem:[%s3594 + $0x2c] sm:$0xf]
  %v3607 = vld [vmem:[%s3594 + $0x30] sm:$0xf]
  %v3608 = vld [vmem:[%s3594 + $0x34] sm:$0xf]
  %v3609 = vld [vmem:[%s3594 + $0x38] sm:$0xf]
  %v3610 = vld [vmem:[%s3594 + $0x3c] sm:$0xf]
  %v3611 = vld [vmem:[%s3594 + $0x40] sm:$0xf]
  %v3612 = vld [vmem:[%s3594 + $0x44] sm:$0xf]
  %v3613 = vld [vmem:[%s3594 + $0x48] sm:$0xf]
  %v3614 = vld [vmem:[%s3594 + $0x4c] sm:$0xf]
  %v3615 = vld [vmem:[%s3594 + $0x50] sm:$0xf]
  %v3616 = vld [vmem:[%s3594 + $0x54] sm:$0xf]
  %v3617 = vld [vmem:[%s3594 + $0x58] sm:$0xf]
  %v3618 = vld [vmem:[%s3594 + $0x5c] sm:$0xf]
  %v3619 = vld [vmem:[%s3594 + $0x60] sm:$0xf]
  %v3620 = vld [vmem:[%s3594 + $0x64] sm:$0xf]
  %v3621 = vld [vmem:[%s3594 + $0x68] sm:$0xf]
  %v3622 = vld [vmem:[%s3594 + $0x6c] sm:$0xf]
  %v3623 = vld [vmem:[%s3594 + $0x70] sm:$0xf]
  %v3624 = vld [vmem:[%s3594 + $0x74] sm:$0xf]
  %v3625 = vld [vmem:[%s3594 + $0x78] sm:$0xf]
  %v3626 = vld [vmem:[%s3594 + $0x7c] sm:$0xf]
  %v3627 = vld [vmem:[%s3594 + $0x80] sm:$0xf]
  %v3628 = vld [vmem:[%s3594 + $0x84] sm:$0xf]
  %v3629 = vld [vmem:[%s3594 + $0x88] sm:$0xf]
  %v3630 = vld [vmem:[%s3594 + $0x8c] sm:$0xf]
  %v3631 = vld [vmem:[%s3594 + $0x90] sm:$0xf]
  %v3632 = vld [vmem:[%s3594 + $0x94] sm:$0xf]
  %v3633 = vld [vmem:[%s3594 + $0x98] sm:$0xf]
  %v3634 = vld [vmem:[%s3594 + $0x9c] sm:$0xf]
  %v3635 = vld [vmem:[%s3594 + $0xa0] sm:$0xf]
  %v3636 = vld [vmem:[%s3594 + $0xa4] sm:$0xf]
  %v3637 = vld [vmem:[%s3594 + $0xa8] sm:$0xf]
  %v3638 = vld [vmem:[%s3594 + $0xac] sm:$0xf]
  %v3639 = vld [vmem:[%s3594 + $0xb0] sm:$0xf]
  %v3640 = vld [vmem:[%s3594 + $0xb4] sm:$0xf]
  %v3641 = vld [vmem:[%s3594 + $0xb8] sm:$0xf]
  %v3642 = vld [vmem:[%s3594 + $0xbc] sm:$0xf]
  %v3643 = vld [vmem:[%s3594 + $0xc0] sm:$0xf]
  %v3644 = vld [vmem:[%s3594 + $0xc4] sm:$0xf]
  %v3645 = vld [vmem:[%s3594 + $0xc8] sm:$0xf]
  %v3646 = vld [vmem:[%s3594 + $0xcc] sm:$0xf]
  %v3647 = vld [vmem:[%s3594 + $0xd0] sm:$0xf]
  %v3648 = vld [vmem:[%s3594 + $0xd4] sm:$0xf]
  %v3649 = vld [vmem:[%s3594 + $0xd8] sm:$0xf]
  %v3650 = vld [vmem:[%s3594 + $0xdc] sm:$0xf]
  %v3651 = vld [vmem:[%s3594 + $0xe0] sm:$0xf]
  %v3652 = vld [vmem:[%s3594 + $0xe4] sm:$0xf]
  %v3653 = vld [vmem:[%s3594 + $0xe8] sm:$0xf]
  %v3654 = vld [vmem:[%s3594 + $0xec] sm:$0xf]
  %v3655 = vld [vmem:[%s3594 + $0xf0] sm:$0xf]
  %v3656 = vld [vmem:[%s3594 + $0xf4] sm:$0xf]
  %v3657 = vld [vmem:[%s3594 + $0xf8] sm:$0xf]
  %v3658 = vld [vmem:[%s3594 + $0xfc] sm:$0xf]
  %v3659 = vld [vmem:[%s3594 + $0x100] sm:$0xf]
  %v3660 = vld [vmem:[%s3594 + $0x104] sm:$0xf]
  %v3661 = vld [vmem:[%s3594 + $0x108] sm:$0xf]
  %v3662 = vld [vmem:[%s3594 + $0x10c] sm:$0xf]
  %v3663 = vld [vmem:[%s3594 + $0x110] sm:$0xf]
  %v3664 = vld [vmem:[%s3594 + $0x114] sm:$0xf]
  %v3665 = vld [vmem:[%s3594 + $0x118] sm:$0xf]
  %v3666 = vld [vmem:[%s3594 + $0x11c] sm:$0xf]
  %v3667 = vld [vmem:[%s3594 + $0x120] sm:$0xf]
  %v3668 = vld [vmem:[%s3594 + $0x124] sm:$0xf]
  %v3669 = vld [vmem:[%s3594 + $0x128] sm:$0xf]
  %v3670 = vld [vmem:[%s3594 + $0x12c] sm:$0xf]
  %v3671 = vld [vmem:[%s3594 + $0x130] sm:$0xf]
  %v3672 = vld [vmem:[%s3594 + $0x134] sm:$0xf]
  %v3673 = vld [vmem:[%s3594 + $0x138] sm:$0xf]
  %v3674 = vld [vmem:[%s3594 + $0x13c] sm:$0xf]
  %v3675 = vld [vmem:[%s3594 + $0x140] sm:$0xf]
  %v3676 = vld [vmem:[%s3594 + $0x144] sm:$0xf]
  %v3677 = vld [vmem:[%s3594 + $0x148] sm:$0xf]
  %v3678 = vld [vmem:[%s3594 + $0x14c] sm:$0xf]
  %v3679 = vld [vmem:[%s3594 + $0x150] sm:$0xf]
  %v3680 = vld [vmem:[%s3594 + $0x154] sm:$0xf]
  %v3681 = vld [vmem:[%s3594 + $0x158] sm:$0xf]
  %v3682 = vld [vmem:[%s3594 + $0x15c] sm:$0xf]
  %v3683 = vld [vmem:[%s3594 + $0x160] sm:$0xf]
  %v3684 = vld [vmem:[%s3594 + $0x164] sm:$0xf]
  %v3685 = vld [vmem:[%s3594 + $0x168] sm:$0xf]
  %v3686 = vld [vmem:[%s3594 + $0x16c] sm:$0xf]
  %v3687 = vld [vmem:[%s3594 + $0x170] sm:$0xf]
  %v3688 = vld [vmem:[%s3594 + $0x174] sm:$0xf]
  %v3689 = vld [vmem:[%s3594 + $0x178] sm:$0xf]
  %v3690 = vld [vmem:[%s3594 + $0x17c] sm:$0xf]
  %v3691 = vld [vmem:[%s3594 + $0x180] sm:$0xf]
  %v3692 = vld [vmem:[%s3594 + $0x184] sm:$0xf]
  %v3693 = vld [vmem:[%s3594 + $0x188] sm:$0xf]
  %v3694 = vld [vmem:[%s3594 + $0x18c] sm:$0xf]
  %v3695 = vld [vmem:[%s3594 + $0x190] sm:$0xf]
  %v3696 = vld [vmem:[%s3594 + $0x194] sm:$0xf]
  %v3697 = vld [vmem:[%s3594 + $0x198] sm:$0xf]
  %v3698 = vld [vmem:[%s3594 + $0x19c] sm:$0xf]
  %v3699 = vld [vmem:[%s3594 + $0x1a0] sm:$0xf]
  %v3700 = vld [vmem:[%s3594 + $0x1a4] sm:$0xf]
  %v3701 = vld [vmem:[%s3594 + $0x1a8] sm:$0xf]
  %v3702 = vld [vmem:[%s3594 + $0x1ac] sm:$0xf]
  %v3703 = vld [vmem:[%s3594 + $0x1b0] sm:$0xf]
  %v3704 = vld [vmem:[%s3594 + $0x1b4] sm:$0xf]
  %v3705 = vld [vmem:[%s3594 + $0x1b8] sm:$0xf]
  %v3706 = vld [vmem:[%s3594 + $0x1bc] sm:$0xf]
  %v3707 = vld [vmem:[%s3594 + $0x1c0] sm:$0xf]
  %v3708 = vld [vmem:[%s3594 + $0x1c4] sm:$0xf]
  %v3709 = vld [vmem:[%s3594 + $0x1c8] sm:$0xf]
  %v3710 = vld [vmem:[%s3594 + $0x1cc] sm:$0xf]
  %v3711 = vld [vmem:[%s3594 + $0x1d0] sm:$0xf]
  %v3712 = vld [vmem:[%s3594 + $0x1d4] sm:$0xf]
  %v3713 = vld [vmem:[%s3594 + $0x1d8] sm:$0xf]
  %v3714 = vld [vmem:[%s3594 + $0x1dc] sm:$0xf]
  %v3715 = vld [vmem:[%s3594 + $0x1e0] sm:$0xf]
  %v3716 = vld [vmem:[%s3594 + $0x1e4] sm:$0xf]
  %v3717 = vld [vmem:[%s3594 + $0x1e8] sm:$0xf]
  %v3718 = vld [vmem:[%s3594 + $0x1ec] sm:$0xf]
  %v3719 = vld [vmem:[%s3594 + $0x1f0] sm:$0xf]
  %v3720 = vld [vmem:[%s3594 + $0x1f4] sm:$0xf]
  %v3721 = vld [vmem:[%s3594 + $0x1f8] sm:$0xf]
  %v3722 = vld [vmem:[%s3594 + $0x1fc] sm:$0xf]
  %v3723 = vld [vmem:[%s3594 + $0x200] sm:$0xf]
  %v3724 = vld [vmem:[%s3594 + $0x204] sm:$0xf]
  %v3725 = vld [vmem:[%s3594 + $0x208] sm:$0xf]
  %v3726 = vld [vmem:[%s3594 + $0x20c] sm:$0xf]
  %v3727 = vld [vmem:[%s3594 + $0x210] sm:$0xf]
  %v3728 = vld [vmem:[%s3594 + $0x214] sm:$0xf]
  %v3729 = vld [vmem:[%s3594 + $0x218] sm:$0xf]
  %v3730 = vld [vmem:[%s3594 + $0x21c] sm:$0xf]
  %v3731 = vld [vmem:[%s3594 + $0x220] sm:$0xf]
  %v3732 = vld [vmem:[%s3594 + $0x224] sm:$0xf]
  %v3733 = vld [vmem:[%s3594 + $0x228] sm:$0xf]
  %v3734 = vld [vmem:[%s3594 + $0x22c] sm:$0xf]
  %v3735 = vld [vmem:[%s3594 + $0x230] sm:$0xf]
  %v3736 = vld [vmem:[%s3594 + $0x234] sm:$0xf]
  %v3737 = vld [vmem:[%s3594 + $0x238] sm:$0xf]
  %v3738 = vld [vmem:[%s3594 + $0x23c] sm:$0xf]
  %v3739 = vld [vmem:[%s3594 + $0x240] sm:$0xf]
  %v3740 = vld [vmem:[%s3594 + $0x244] sm:$0xf]
  %v3741 = vld [vmem:[%s3594 + $0x248] sm:$0xf]
  %v3742 = vld [vmem:[%s3594 + $0x24c] sm:$0xf]
  %v3743 = vld [vmem:[%s3594 + $0x250] sm:$0xf]
  %v3744 = vld [vmem:[%s3594 + $0x254] sm:$0xf]
  %v3745 = vld [vmem:[%s3594 + $0x258] sm:$0xf]
  %v3746 = vld [vmem:[%s3594 + $0x25c] sm:$0xf]
  %v3747 = vld [vmem:[%s3594 + $0x260] sm:$0xf]
  %v3748 = vld [vmem:[%s3594 + $0x264] sm:$0xf]
  %v3749 = vld [vmem:[%s3594 + $0x268] sm:$0xf]
  %v3750 = vld [vmem:[%s3594 + $0x26c] sm:$0xf]
  %v3751 = vld [vmem:[%s3594 + $0x270] sm:$0xf]
  %v3752 = vld [vmem:[%s3594 + $0x274] sm:$0xf]
  %v3753 = vld [vmem:[%s3594 + $0x278] sm:$0xf]
  %v3754 = vld [vmem:[%s3594 + $0x27c] sm:$0xf]
  %v3755 = vld [vmem:[%s3594 + $0x280] sm:$0xf]
  %v3756 = vld [vmem:[%s3594 + $0x284] sm:$0xf]
  %v3757 = vld [vmem:[%s3594 + $0x288] sm:$0xf]
  %v3758 = vld [vmem:[%s3594 + $0x28c] sm:$0xf]
  %v3759 = vld [vmem:[%s3594 + $0x290] sm:$0xf]
  %v3760 = vld [vmem:[%s3594 + $0x294] sm:$0xf]
  %v3761 = vld [vmem:[%s3594 + $0x298] sm:$0xf]
  %v3762 = vld [vmem:[%s3594 + $0x29c] sm:$0xf]
  %v3763 = vld [vmem:[%s3594 + $0x2a0] sm:$0xf]
  %v3764 = vld [vmem:[%s3594 + $0x2a4] sm:$0xf]
  %v3765 = vld [vmem:[%s3594 + $0x2a8] sm:$0xf]
  %v3766 = vld [vmem:[%s3594 + $0x2ac] sm:$0xf]
  %v3767 = vld [vmem:[%s3594 + $0x2b0] sm:$0xf]
  %v3768 = vld [vmem:[%s3594 + $0x2b4] sm:$0xf]
  %v3769 = vld [vmem:[%s3594 + $0x2b8] sm:$0xf]
  %v3770 = vld [vmem:[%s3594 + $0x2bc] sm:$0xf]
  %v3771 = vld [vmem:[%s3594 + $0x2c0] sm:$0xf]
  %v3772 = vld [vmem:[%s3594 + $0x2c4] sm:$0xf]
  %v3773 = vld [vmem:[%s3594 + $0x2c8] sm:$0xf]
  %v3774 = vld [vmem:[%s3594 + $0x2cc] sm:$0xf]
  %v3775 = vld [vmem:[%s3594 + $0x2d0] sm:$0xf]
  %v3776 = vld [vmem:[%s3594 + $0x2d4] sm:$0xf]
  %v3777 = vld [vmem:[%s3594 + $0x2d8] sm:$0xf]
  %v3778 = vld [vmem:[%s3594 + $0x2dc] sm:$0xf]
  %v3779 = vld [vmem:[%s3594 + $0x2e0] sm:$0xf]
  %v3780 = vld [vmem:[%s3594 + $0x2e4] sm:$0xf]
  %v3781 = vld [vmem:[%s3594 + $0x2e8] sm:$0xf]
  %v3782 = vld [vmem:[%s3594 + $0x2ec] sm:$0xf]
  %v3783 = vld [vmem:[%s3594 + $0x2f0] sm:$0xf]
  %v3784 = vld [vmem:[%s3594 + $0x2f4] sm:$0xf]
  %v3785 = vld [vmem:[%s3594 + $0x2f8] sm:$0xf]
  %v3786 = vld [vmem:[%s3594 + $0x2fc] sm:$0xf]
  %v3787 = vld [vmem:[%s3594 + $0x300] sm:$0xf]
  %v3788 = vld [vmem:[%s3594 + $0x304] sm:$0xf]
  %v3789 = vld [vmem:[%s3594 + $0x308] sm:$0xf]
  %v3790 = vld [vmem:[%s3594 + $0x30c] sm:$0xf]
  %v3791 = vld [vmem:[%s3594 + $0x310] sm:$0xf]
  %v3792 = vld [vmem:[%s3594 + $0x314] sm:$0xf]
  %v3793 = vld [vmem:[%s3594 + $0x318] sm:$0xf]
  %v3794 = vld [vmem:[%s3594 + $0x31c] sm:$0xf]
  %v3795 = vld [vmem:[%s3594 + $0x320] sm:$0xf]
  %v3796 = vld [vmem:[%s3594 + $0x324] sm:$0xf]
  %v3797 = vld [vmem:[%s3594 + $0x328] sm:$0xf]
  %v3798 = vld [vmem:[%s3594 + $0x32c] sm:$0xf]
  %v3799 = vld [vmem:[%s3594 + $0x330] sm:$0xf]
  %v3800 = vld [vmem:[%s3594 + $0x334] sm:$0xf]
  %v3801 = vld [vmem:[%s3594 + $0x338] sm:$0xf]
  %v3802 = vld [vmem:[%s3594 + $0x33c] sm:$0xf]
  %v3803 = vld [vmem:[%s3594 + $0x340] sm:$0xf]
  %v3804 = vld [vmem:[%s3594 + $0x344] sm:$0xf]
  %v3805 = vld [vmem:[%s3594 + $0x348] sm:$0xf]
  %v3806 = vld [vmem:[%s3594 + $0x34c] sm:$0xf]
  %v3807 = vld [vmem:[%s3594 + $0x350] sm:$0xf]
  %v3808 = vld [vmem:[%s3594 + $0x354] sm:$0xf]
  %v3809 = vld [vmem:[%s3594 + $0x358] sm:$0xf]
  %v3810 = vld [vmem:[%s3594 + $0x35c] sm:$0xf]
  %v3811 = vld [vmem:[%s3594 + $0x360] sm:$0xf]
  %v3812 = vld [vmem:[%s3594 + $0x364] sm:$0xf]
  %v3813 = vld [vmem:[%s3594 + $0x368] sm:$0xf]
  %v3814 = vld [vmem:[%s3594 + $0x36c] sm:$0xf]
  %v3815 = vld [vmem:[%s3594 + $0x370] sm:$0xf]
  %v3816 = vld [vmem:[%s3594 + $0x374] sm:$0xf]
  %v3817 = vld [vmem:[%s3594 + $0x378] sm:$0xf]
  %v3818 = vld [vmem:[%s3594 + $0x37c] sm:$0xf]
  %v3819 = vld [vmem:[%s3594 + $0x380] sm:$0xf]
  %v3820 = vld [vmem:[%s3594 + $0x384] sm:$0xf]
  %v3821 = vld [vmem:[%s3594 + $0x388] sm:$0xf]
  %v3822 = vld [vmem:[%s3594 + $0x38c] sm:$0xf]
  %v3823 = vld [vmem:[%s3594 + $0x390] sm:$0xf]
  %v3824 = vld [vmem:[%s3594 + $0x394] sm:$0xf]
  %v3825 = vld [vmem:[%s3594 + $0x398] sm:$0xf]
  %v3826 = vld [vmem:[%s3594 + $0x39c] sm:$0xf]
  %v3827 = vld [vmem:[%s3594 + $0x3a0] sm:$0xf]
  %v3828 = vld [vmem:[%s3594 + $0x3a4] sm:$0xf]
  %v3829 = vld [vmem:[%s3594 + $0x3a8] sm:$0xf]
  %v3830 = vld [vmem:[%s3594 + $0x3ac] sm:$0xf]
  %v3831 = vld [vmem:[%s3594 + $0x3b0] sm:$0xf]
  %v3832 = vld [vmem:[%s3594 + $0x3b4] sm:$0xf]
  %v3833 = vld [vmem:[%s3594 + $0x3b8] sm:$0xf]
  %v3834 = vld [vmem:[%s3594 + $0x3bc] sm:$0xf]
  %v3835 = vld [vmem:[%s3594 + $0x3c0] sm:$0xf]
  %v3836 = vld [vmem:[%s3594 + $0x3c4] sm:$0xf]
  %v3837 = vld [vmem:[%s3594 + $0x3c8] sm:$0xf]
  %v3838 = vld [vmem:[%s3594 + $0x3cc] sm:$0xf]
  %v3839 = vld [vmem:[%s3594 + $0x3d0] sm:$0xf]
  %v3840 = vld [vmem:[%s3594 + $0x3d4] sm:$0xf]
  %v3841 = vld [vmem:[%s3594 + $0x3d8] sm:$0xf]
  %v3842 = vld [vmem:[%s3594 + $0x3dc] sm:$0xf]
  %v3843 = vld [vmem:[%s3594 + $0x3e0] sm:$0xf]
  %v3844 = vld [vmem:[%s3594 + $0x3e4] sm:$0xf]
  %v3845 = vld [vmem:[%s3594 + $0x3e8] sm:$0xf]
  %v3846 = vld [vmem:[%s3594 + $0x3ec] sm:$0xf]
  %v3847 = vld [vmem:[%s3594 + $0x3f0] sm:$0xf]
  %v3848 = vld [vmem:[%s3594 + $0x3f4] sm:$0xf]
  %v3849 = vld [vmem:[%s3594 + $0x3f8] sm:$0xf]
  %v3850 = vld [vmem:[%s3594 + $0x3fc] sm:$0xf]
  %v3851 = vld [vmem:[%s3594 + $0x400] sm:$0xf]
  %v3852 = vld [vmem:[%s3594 + $0x404] sm:$0xf]
  %v3853 = vld [vmem:[%s3594 + $0x408] sm:$0xf]
  %v3854 = vld [vmem:[%s3594 + $0x40c] sm:$0xf]
  %v3855 = vld [vmem:[%s3594 + $0x410] sm:$0xf]
  %v3856 = vld [vmem:[%s3594 + $0x414] sm:$0xf]
  %v3857 = vld [vmem:[%s3594 + $0x418] sm:$0xf]
  %v3858 = vld [vmem:[%s3594 + $0x41c] sm:$0xf]
  %v3859 = vld [vmem:[%s3594 + $0x420] sm:$0xf]
  %v3860 = vld [vmem:[%s3594 + $0x424] sm:$0xf]
  %v3861 = vld [vmem:[%s3594 + $0x428] sm:$0xf]
  %v3862 = vld [vmem:[%s3594 + $0x42c] sm:$0xf]
  %v3863 = vld [vmem:[%s3594 + $0x430] sm:$0xf]
  %v3864 = vld [vmem:[%s3594 + $0x434] sm:$0xf]
  %v3865 = vld [vmem:[%s3594 + $0x438] sm:$0xf]
  %v3866 = vld [vmem:[%s3594 + $0x43c] sm:$0xf]
  %v3867 = vld [vmem:[%s3594 + $0x440] sm:$0xf]
  %v3868 = vld [vmem:[%s3594 + $0x444] sm:$0xf]
  %v3869 = vld [vmem:[%s3594 + $0x448] sm:$0xf]
  %v3870 = vld [vmem:[%s3594 + $0x44c] sm:$0xf]
  %v3871 = vld [vmem:[%s3594 + $0x450] sm:$0xf]
  %v3872 = vld [vmem:[%s3594 + $0x454] sm:$0xf]
  %v3873 = vld [vmem:[%s3594 + $0x458] sm:$0xf]
  %v3874 = vld [vmem:[%s3594 + $0x45c] sm:$0xf]
  %v3875 = vld [vmem:[%s3594 + $0x460] sm:$0xf]
  %v3876 = vld [vmem:[%s3594 + $0x464] sm:$0xf]
  %v3877 = vld [vmem:[%s3594 + $0x468] sm:$0xf]
  %v3878 = vld [vmem:[%s3594 + $0x46c] sm:$0xf]
  %v3879 = vld [vmem:[%s3594 + $0x470] sm:$0xf]
  %v3880 = vld [vmem:[%s3594 + $0x474] sm:$0xf]
  %v3881 = vld [vmem:[%s3594 + $0x478] sm:$0xf]
  %v3882 = vld [vmem:[%s3594 + $0x47c] sm:$0xf]
  %v3883 = vld [vmem:[%s3594 + $0x480] sm:$0xf]
  %v3884 = vld [vmem:[%s3594 + $0x484] sm:$0xf]
  %v3885 = vld [vmem:[%s3594 + $0x488] sm:$0xf]
  %v3886 = vld [vmem:[%s3594 + $0x48c] sm:$0xf]
  %v3887 = vld [vmem:[%s3594 + $0x490] sm:$0xf]
  %v3888 = vld [vmem:[%s3594 + $0x494] sm:$0xf]
  %v3889 = vld [vmem:[%s3594 + $0x498] sm:$0xf]
  %v3890 = vld [vmem:[%s3594 + $0x49c] sm:$0xf]
  %v3891 = vld [vmem:[%s3594 + $0x4a0] sm:$0xf]
  %v3892 = vld [vmem:[%s3594 + $0x4a4] sm:$0xf]
  %v3893 = vld [vmem:[%s3594 + $0x4a8] sm:$0xf]
  %v3894 = vld [vmem:[%s3594 + $0x4ac] sm:$0xf]
  %v3895 = vld [vmem:[%s3594 + $0x4b0] sm:$0xf]
  %v3896 = vld [vmem:[%s3594 + $0x4b4] sm:$0xf]
  %v3897 = vld [vmem:[%s3594 + $0x4b8] sm:$0xf]
  %v3898 = vld [vmem:[%s3594 + $0x4bc] sm:$0xf]
  %v3899 = vld [vmem:[%s3594 + $0x4c0] sm:$0xf]
  %v3900 = vld [vmem:[%s3594 + $0x4c4] sm:$0xf]
  %v3901 = vld [vmem:[%s3594 + $0x4c8] sm:$0xf]
  %v3902 = vld [vmem:[%s3594 + $0x4cc] sm:$0xf]
  %v3903 = vld [vmem:[%s3594 + $0x4d0] sm:$0xf]
  %v3904 = vld [vmem:[%s3594 + $0x4d4] sm:$0xf]
  %v3905 = vld [vmem:[%s3594 + $0x4d8] sm:$0xf]
  %v3906 = vld [vmem:[%s3594 + $0x4dc] sm:$0xf]
  %v3907 = vld [vmem:[%s3594 + $0x4e0] sm:$0xf]
  %v3908 = vld [vmem:[%s3594 + $0x4e4] sm:$0xf]
  %v3909 = vld [vmem:[%s3594 + $0x4e8] sm:$0xf]
  %v3910 = vld [vmem:[%s3594 + $0x4ec] sm:$0xf]
  %v3911 = vld [vmem:[%s3594 + $0x4f0] sm:$0xf]
  %v3912 = vld [vmem:[%s3594 + $0x4f4] sm:$0xf]
  %v3913 = vld [vmem:[%s3594 + $0x4f8] sm:$0xf]
  %v3914 = vld [vmem:[%s3594 + $0x4fc] sm:$0xf]
  %v3915 = vld [vmem:[%s3594 + $0x500] sm:$0xf]
  %v3916 = vld [vmem:[%s3594 + $0x504] sm:$0xf]
  %v3917 = vld [vmem:[%s3594 + $0x508] sm:$0xf]
  %v3918 = vld [vmem:[%s3594 + $0x50c] sm:$0xf]
  %v3919 = vld [vmem:[%s3594 + $0x510] sm:$0xf]
  %v3920 = vld [vmem:[%s3594 + $0x514] sm:$0xf]
  %v3921 = vld [vmem:[%s3594 + $0x518] sm:$0xf]
  %v3922 = vld [vmem:[%s3594 + $0x51c] sm:$0xf]
  %v3923 = vld [vmem:[%s3594 + $0x520] sm:$0xf]
  %v3924 = vld [vmem:[%s3594 + $0x524] sm:$0xf]
  %v3925 = vld [vmem:[%s3594 + $0x528] sm:$0xf]
  %v3926 = vld [vmem:[%s3594 + $0x52c] sm:$0xf]
  %v3927 = vld [vmem:[%s3594 + $0x530] sm:$0xf]
  %v3928 = vld [vmem:[%s3594 + $0x534] sm:$0xf]
  %v3929 = vld [vmem:[%s3594 + $0x538] sm:$0xf]
  %v3930 = vld [vmem:[%s3594 + $0x53c] sm:$0xf]
  %v3931 = vld [vmem:[%s3594 + $0x540] sm:$0xf]
  %v3932 = vld [vmem:[%s3594 + $0x544] sm:$0xf]
  %v3933 = vld [vmem:[%s3594 + $0x548] sm:$0xf]
  %v3934 = vld [vmem:[%s3594 + $0x54c] sm:$0xf]
  %v3935 = vld [vmem:[%s3594 + $0x550] sm:$0xf]
  %v3936 = vld [vmem:[%s3594 + $0x554] sm:$0xf]
  %v3937 = vld [vmem:[%s3594 + $0x558] sm:$0xf]
  %v3938 = vld [vmem:[%s3594 + $0x55c] sm:$0xf]
  %v3939 = vld [vmem:[%s3594 + $0x560] sm:$0xf]
  %v3940 = vld [vmem:[%s3594 + $0x564] sm:$0xf]
  %v3941 = vld [vmem:[%s3594 + $0x568] sm:$0xf]
  %v3942 = vld [vmem:[%s3594 + $0x56c] sm:$0xf]
  %v3943 = vld [vmem:[%s3594 + $0x570] sm:$0xf]
  %v3944 = vld [vmem:[%s3594 + $0x574] sm:$0xf]
  %v3945 = vld [vmem:[%s3594 + $0x578] sm:$0xf]
  %v3946 = vld [vmem:[%s3594 + $0x57c] sm:$0xf]
  %v3947 = vld [vmem:[%s3594 + $0x580] sm:$0xf]
  %v3948 = vld [vmem:[%s3594 + $0x584] sm:$0xf]
  %v3949 = vld [vmem:[%s3594 + $0x588] sm:$0xf]
  %v3950 = vld [vmem:[%s3594 + $0x58c] sm:$0xf]
  %v3951 = vld [vmem:[%s3594 + $0x590] sm:$0xf]
  %v3952 = vld [vmem:[%s3594 + $0x594] sm:$0xf]
  %v3953 = vld [vmem:[%s3594 + $0x598] sm:$0xf]
  %v3954 = vld [vmem:[%s3594 + $0x59c] sm:$0xf]
  %v3955 = vld [vmem:[%s3594 + $0x5a0] sm:$0xf]
  %v3956 = vld [vmem:[%s3594 + $0x5a4] sm:$0xf]
  %v3957 = vld [vmem:[%s3594 + $0x5a8] sm:$0xf]
  %v3958 = vld [vmem:[%s3594 + $0x5ac] sm:$0xf]
  %v3959 = vld [vmem:[%s3594 + $0x5b0] sm:$0xf]
  %v3960 = vld [vmem:[%s3594 + $0x5b4] sm:$0xf]
  %v3961 = vld [vmem:[%s3594 + $0x5b8] sm:$0xf]
  %v3962 = vld [vmem:[%s3594 + $0x5bc] sm:$0xf]
  %v3963 = vld [vmem:[%s3594 + $0x5c0] sm:$0xf]
  %v3964 = vld [vmem:[%s3594 + $0x5c4] sm:$0xf]
  %v3965 = vld [vmem:[%s3594 + $0x5c8] sm:$0xf]
  %v3966 = vld [vmem:[%s3594 + $0x5cc] sm:$0xf]
  %v3967 = vld [vmem:[%s3594 + $0x5d0] sm:$0xf]
  %v3968 = vld [vmem:[%s3594 + $0x5d4] sm:$0xf]
  %v3969 = vld [vmem:[%s3594 + $0x5d8] sm:$0xf]
  %v3970 = vld [vmem:[%s3594 + $0x5dc] sm:$0xf]
  %v3971 = vld [vmem:[%s3594 + $0x5e0] sm:$0xf]
  %v3972 = vld [vmem:[%s3594 + $0x5e4] sm:$0xf]
  %v3973 = vld [vmem:[%s3594 + $0x5e8] sm:$0xf]
  %v3974 = vld [vmem:[%s3594 + $0x5ec] sm:$0xf]
  %v3975 = vld [vmem:[%s3594 + $0x5f0] sm:$0xf]
  %v3976 = vld [vmem:[%s3594 + $0x5f4] sm:$0xf]
  %v3977 = vld [vmem:[%s3594 + $0x5f8] sm:$0xf]
  %v3978 = vld [vmem:[%s3594 + $0x5fc] sm:$0xf]
  %s3979 = scalar_lea.vmem %s6, 1
  %v3980 = vld [vmem:[%s3979] sm:$0x1]
  %v3982 = vperm.slane %v3980, 0
  %v4368 = vunpack.c.l.b16 %v3595
  %v4369 = vunpack.c.l.b16 %v3596
  %v4370 = vunpack.c.l.b16 %v3597
  %v4371 = vunpack.c.l.b16 %v3598
  %v4372 = vunpack.c.l.b16 %v3599
  %v4373 = vunpack.c.l.b16 %v3600
  %v4374 = vunpack.c.l.b16 %v3601
  %v4375 = vunpack.c.l.b16 %v3602
  %v4376 = vunpack.c.l.b16 %v3603
  %v4377 = vunpack.c.l.b16 %v3604
  %v4378 = vunpack.c.l.b16 %v3605
  %v4379 = vunpack.c.l.b16 %v3606
  %v4380 = vunpack.c.l.b16 %v3607
  %v4381 = vunpack.c.l.b16 %v3608
  %v4382 = vunpack.c.l.b16 %v3609
  %v4383 = vunpack.c.l.b16 %v3610
  %v4384 = vunpack.c.l.b16 %v3611
  %v4385 = vunpack.c.l.b16 %v3612
  %v4386 = vunpack.c.l.b16 %v3613
  %v4387 = vunpack.c.l.b16 %v3614
  %v4388 = vunpack.c.l.b16 %v3615
  %v4389 = vunpack.c.l.b16 %v3616
  %v4390 = vunpack.c.l.b16 %v3617
  %v4391 = vunpack.c.l.b16 %v3618
  %v4392 = vunpack.c.l.b16 %v3619
  %v4393 = vunpack.c.l.b16 %v3620
  %v4394 = vunpack.c.l.b16 %v3621
  %v4395 = vunpack.c.l.b16 %v3622
  %v4396 = vunpack.c.l.b16 %v3623
  %v4397 = vunpack.c.l.b16 %v3624
  %v4398 = vunpack.c.l.b16 %v3625
  %v4399 = vunpack.c.l.b16 %v3626
  %v4400 = vunpack.c.l.b16 %v3627
  %v4401 = vunpack.c.l.b16 %v3628
  %v4402 = vunpack.c.l.b16 %v3629
  %v4403 = vunpack.c.l.b16 %v3630
  %v4404 = vunpack.c.l.b16 %v3631
  %v4405 = vunpack.c.l.b16 %v3632
  %v4406 = vunpack.c.l.b16 %v3633
  %v4407 = vunpack.c.l.b16 %v3634
  %v4408 = vunpack.c.l.b16 %v3635
  %v4409 = vunpack.c.l.b16 %v3636
  %v4410 = vunpack.c.l.b16 %v3637
  %v4411 = vunpack.c.l.b16 %v3638
  %v4412 = vunpack.c.l.b16 %v3639
  %v4413 = vunpack.c.l.b16 %v3640
  %v4414 = vunpack.c.l.b16 %v3641
  %v4415 = vunpack.c.l.b16 %v3642
  %v4416 = vunpack.c.l.b16 %v3643
  %v4417 = vunpack.c.l.b16 %v3644
  %v4418 = vunpack.c.l.b16 %v3645
  %v4419 = vunpack.c.l.b16 %v3646
  %v4420 = vunpack.c.l.b16 %v3647
  %v4421 = vunpack.c.l.b16 %v3648
  %v4422 = vunpack.c.l.b16 %v3649
  %v4423 = vunpack.c.l.b16 %v3650
  %v4424 = vunpack.c.l.b16 %v3651
  %v4425 = vunpack.c.l.b16 %v3652
  %v4426 = vunpack.c.l.b16 %v3653
  %v4427 = vunpack.c.l.b16 %v3654
  %v4428 = vunpack.c.l.b16 %v3655
  %v4429 = vunpack.c.l.b16 %v3656
  %v4430 = vunpack.c.l.b16 %v3657
  %v4431 = vunpack.c.l.b16 %v3658
  %v4432 = vunpack.c.l.b16 %v3659
  %v4433 = vunpack.c.l.b16 %v3660
  %v4434 = vunpack.c.l.b16 %v3661
  %v4435 = vunpack.c.l.b16 %v3662
  %v4436 = vunpack.c.l.b16 %v3663
  %v4437 = vunpack.c.l.b16 %v3664
  %v4438 = vunpack.c.l.b16 %v3665
  %v4439 = vunpack.c.l.b16 %v3666
  %v4440 = vunpack.c.l.b16 %v3667
  %v4441 = vunpack.c.l.b16 %v3668
  %v4442 = vunpack.c.l.b16 %v3669
  %v4443 = vunpack.c.l.b16 %v3670
  %v4444 = vunpack.c.l.b16 %v3671
  %v4445 = vunpack.c.l.b16 %v3672
  %v4446 = vunpack.c.l.b16 %v3673
  %v4447 = vunpack.c.l.b16 %v3674
  %v4448 = vunpack.c.l.b16 %v3675
  %v4449 = vunpack.c.l.b16 %v3676
  %v4450 = vunpack.c.l.b16 %v3677
  %v4451 = vunpack.c.l.b16 %v3678
  %v4452 = vunpack.c.l.b16 %v3679
  %v4453 = vunpack.c.l.b16 %v3680
  %v4454 = vunpack.c.l.b16 %v3681
  %v4455 = vunpack.c.l.b16 %v3682
  %v4456 = vunpack.c.l.b16 %v3683
  %v4457 = vunpack.c.l.b16 %v3684
  %v4458 = vunpack.c.l.b16 %v3685
  %v4459 = vunpack.c.l.b16 %v3686
  %v4460 = vunpack.c.l.b16 %v3687
  %v4461 = vunpack.c.l.b16 %v3688
  %v4462 = vunpack.c.l.b16 %v3689
  %v4463 = vunpack.c.l.b16 %v3690
  %v4464 = vunpack.c.l.b16 %v3691
  %v4465 = vunpack.c.l.b16 %v3692
  %v4466 = vunpack.c.l.b16 %v3693
  %v4467 = vunpack.c.l.b16 %v3694
  %v4468 = vunpack.c.l.b16 %v3695
  %v4469 = vunpack.c.l.b16 %v3696
  %v4470 = vunpack.c.l.b16 %v3697
  %v4471 = vunpack.c.l.b16 %v3698
  %v4472 = vunpack.c.l.b16 %v3699
  %v4473 = vunpack.c.l.b16 %v3700
  %v4474 = vunpack.c.l.b16 %v3701
  %v4475 = vunpack.c.l.b16 %v3702
  %v4476 = vunpack.c.l.b16 %v3703
  %v4477 = vunpack.c.l.b16 %v3704
  %v4478 = vunpack.c.l.b16 %v3705
  %v4479 = vunpack.c.l.b16 %v3706
  %v4480 = vunpack.c.l.b16 %v3707
  %v4481 = vunpack.c.l.b16 %v3708
  %v4482 = vunpack.c.l.b16 %v3709
  %v4483 = vunpack.c.l.b16 %v3710
  %v4484 = vunpack.c.l.b16 %v3711
  %v4485 = vunpack.c.l.b16 %v3712
  %v4486 = vunpack.c.l.b16 %v3713
  %v4487 = vunpack.c.l.b16 %v3714
  %v4488 = vunpack.c.l.b16 %v3715
  %v4489 = vunpack.c.l.b16 %v3716
  %v4490 = vunpack.c.l.b16 %v3717
  %v4491 = vunpack.c.l.b16 %v3718
  %v4492 = vunpack.c.l.b16 %v3719
  %v4493 = vunpack.c.l.b16 %v3720
  %v4494 = vunpack.c.l.b16 %v3721
  %v4495 = vunpack.c.l.b16 %v3722
  %v4496 = vunpack.c.l.b16 %v3723
  %v4497 = vunpack.c.l.b16 %v3724
  %v4498 = vunpack.c.l.b16 %v3725
  %v4499 = vunpack.c.l.b16 %v3726
  %v4500 = vunpack.c.l.b16 %v3727
  %v4501 = vunpack.c.l.b16 %v3728
  %v4502 = vunpack.c.l.b16 %v3729
  %v4503 = vunpack.c.l.b16 %v3730
  %v4504 = vunpack.c.l.b16 %v3731
  %v4505 = vunpack.c.l.b16 %v3732
  %v4506 = vunpack.c.l.b16 %v3733
  %v4507 = vunpack.c.l.b16 %v3734
  %v4508 = vunpack.c.l.b16 %v3735
  %v4509 = vunpack.c.l.b16 %v3736
  %v4510 = vunpack.c.l.b16 %v3737
  %v4511 = vunpack.c.l.b16 %v3738
  %v4512 = vunpack.c.l.b16 %v3739
  %v4513 = vunpack.c.l.b16 %v3740
  %v4514 = vunpack.c.l.b16 %v3741
  %v4515 = vunpack.c.l.b16 %v3742
  %v4516 = vunpack.c.l.b16 %v3743
  %v4517 = vunpack.c.l.b16 %v3744
  %v4518 = vunpack.c.l.b16 %v3745
  %v4519 = vunpack.c.l.b16 %v3746
  %v4520 = vunpack.c.l.b16 %v3747
  %v4521 = vunpack.c.l.b16 %v3748
  %v4522 = vunpack.c.l.b16 %v3749
  %v4523 = vunpack.c.l.b16 %v3750
  %v4524 = vunpack.c.l.b16 %v3751
  %v4525 = vunpack.c.l.b16 %v3752
  %v4526 = vunpack.c.l.b16 %v3753
  %v4527 = vunpack.c.l.b16 %v3754
  %v4528 = vunpack.c.l.b16 %v3755
  %v4529 = vunpack.c.l.b16 %v3756
  %v4530 = vunpack.c.l.b16 %v3757
  %v4531 = vunpack.c.l.b16 %v3758
  %v4532 = vunpack.c.l.b16 %v3759
  %v4533 = vunpack.c.l.b16 %v3760
  %v4534 = vunpack.c.l.b16 %v3761
  %v4535 = vunpack.c.l.b16 %v3762
  %v4536 = vunpack.c.l.b16 %v3763
  %v4537 = vunpack.c.l.b16 %v3764
  %v4538 = vunpack.c.l.b16 %v3765
  %v4539 = vunpack.c.l.b16 %v3766
  %v4540 = vunpack.c.l.b16 %v3767
  %v4541 = vunpack.c.l.b16 %v3768
  %v4542 = vunpack.c.l.b16 %v3769
  %v4543 = vunpack.c.l.b16 %v3770
  %v4544 = vunpack.c.l.b16 %v3771
  %v4545 = vunpack.c.l.b16 %v3772
  %v4546 = vunpack.c.l.b16 %v3773
  %v4547 = vunpack.c.l.b16 %v3774
  %v4548 = vunpack.c.l.b16 %v3775
  %v4549 = vunpack.c.l.b16 %v3776
  %v4550 = vunpack.c.l.b16 %v3777
  %v4551 = vunpack.c.l.b16 %v3778
  %v4552 = vunpack.c.l.b16 %v3779
  %v4553 = vunpack.c.l.b16 %v3780
  %v4554 = vunpack.c.l.b16 %v3781
  %v4555 = vunpack.c.l.b16 %v3782
  %v4556 = vunpack.c.l.b16 %v3783
  %v4557 = vunpack.c.l.b16 %v3784
  %v4558 = vunpack.c.l.b16 %v3785
  %v4559 = vunpack.c.l.b16 %v3786
  %v4560 = vunpack.c.l.b16 %v3787
  %v4561 = vunpack.c.l.b16 %v3788
  %v4562 = vunpack.c.l.b16 %v3789
  %v4563 = vunpack.c.l.b16 %v3790
  %v4564 = vunpack.c.l.b16 %v3791
  %v4565 = vunpack.c.l.b16 %v3792
  %v4566 = vunpack.c.l.b16 %v3793
  %v4567 = vunpack.c.l.b16 %v3794
  %v4568 = vunpack.c.l.b16 %v3795
  %v4569 = vunpack.c.l.b16 %v3796
  %v4570 = vunpack.c.l.b16 %v3797
  %v4571 = vunpack.c.l.b16 %v3798
  %v4572 = vunpack.c.l.b16 %v3799
  %v4573 = vunpack.c.l.b16 %v3800
  %v4574 = vunpack.c.l.b16 %v3801
  %v4575 = vunpack.c.l.b16 %v3802
  %v4576 = vunpack.c.l.b16 %v3803
  %v4577 = vunpack.c.l.b16 %v3804
  %v4578 = vunpack.c.l.b16 %v3805
  %v4579 = vunpack.c.l.b16 %v3806
  %v4580 = vunpack.c.l.b16 %v3807
  %v4581 = vunpack.c.l.b16 %v3808
  %v4582 = vunpack.c.l.b16 %v3809
  %v4583 = vunpack.c.l.b16 %v3810
  %v4584 = vunpack.c.l.b16 %v3811
  %v4585 = vunpack.c.l.b16 %v3812
  %v4586 = vunpack.c.l.b16 %v3813
  %v4587 = vunpack.c.l.b16 %v3814
  %v4588 = vunpack.c.l.b16 %v3815
  %v4589 = vunpack.c.l.b16 %v3816
  %v4590 = vunpack.c.l.b16 %v3817
  %v4591 = vunpack.c.l.b16 %v3818
  %v4592 = vunpack.c.l.b16 %v3819
  %v4593 = vunpack.c.l.b16 %v3820
  %v4594 = vunpack.c.l.b16 %v3821
  %v4595 = vunpack.c.l.b16 %v3822
  %v4596 = vunpack.c.l.b16 %v3823
  %v4597 = vunpack.c.l.b16 %v3824
  %v4598 = vunpack.c.l.b16 %v3825
  %v4599 = vunpack.c.l.b16 %v3826
  %v4600 = vunpack.c.l.b16 %v3827
  %v4601 = vunpack.c.l.b16 %v3828
  %v4602 = vunpack.c.l.b16 %v3829
  %v4603 = vunpack.c.l.b16 %v3830
  %v4604 = vunpack.c.l.b16 %v3831
  %v4605 = vunpack.c.l.b16 %v3832
  %v4606 = vunpack.c.l.b16 %v3833
  %v4607 = vunpack.c.l.b16 %v3834
  %v4608 = vunpack.c.l.b16 %v3835
  %v4609 = vunpack.c.l.b16 %v3836
  %v4610 = vunpack.c.l.b16 %v3837
  %v4611 = vunpack.c.l.b16 %v3838
  %v4612 = vunpack.c.l.b16 %v3839
  %v4613 = vunpack.c.l.b16 %v3840
  %v4614 = vunpack.c.l.b16 %v3841
  %v4615 = vunpack.c.l.b16 %v3842
  %v4616 = vunpack.c.l.b16 %v3843
  %v4617 = vunpack.c.l.b16 %v3844
  %v4618 = vunpack.c.l.b16 %v3845
  %v4619 = vunpack.c.l.b16 %v3846
  %v4620 = vunpack.c.l.b16 %v3847
  %v4621 = vunpack.c.l.b16 %v3848
  %v4622 = vunpack.c.l.b16 %v3849
  %v4623 = vunpack.c.l.b16 %v3850
  %v4624 = vunpack.c.l.b16 %v3851
  %v4625 = vunpack.c.l.b16 %v3852
  %v4626 = vunpack.c.l.b16 %v3853
  %v4627 = vunpack.c.l.b16 %v3854
  %v4628 = vunpack.c.l.b16 %v3855
  %v4629 = vunpack.c.l.b16 %v3856
  %v4630 = vunpack.c.l.b16 %v3857
  %v4631 = vunpack.c.l.b16 %v3858
  %v4632 = vunpack.c.l.b16 %v3859
  %v4633 = vunpack.c.l.b16 %v3860
  %v4634 = vunpack.c.l.b16 %v3861
  %v4635 = vunpack.c.l.b16 %v3862
  %v4636 = vunpack.c.l.b16 %v3863
  %v4637 = vunpack.c.l.b16 %v3864
  %v4638 = vunpack.c.l.b16 %v3865
  %v4639 = vunpack.c.l.b16 %v3866
  %v4640 = vunpack.c.l.b16 %v3867
  %v4641 = vunpack.c.l.b16 %v3868
  %v4642 = vunpack.c.l.b16 %v3869
  %v4643 = vunpack.c.l.b16 %v3870
  %v4644 = vunpack.c.l.b16 %v3871
  %v4645 = vunpack.c.l.b16 %v3872
  %v4646 = vunpack.c.l.b16 %v3873
  %v4647 = vunpack.c.l.b16 %v3874
  %v4648 = vunpack.c.l.b16 %v3875
  %v4649 = vunpack.c.l.b16 %v3876
  %v4650 = vunpack.c.l.b16 %v3877
  %v4651 = vunpack.c.l.b16 %v3878
  %v4652 = vunpack.c.l.b16 %v3879
  %v4653 = vunpack.c.l.b16 %v3880
  %v4654 = vunpack.c.l.b16 %v3881
  %v4655 = vunpack.c.l.b16 %v3882
  %v4656 = vunpack.c.l.b16 %v3883
  %v4657 = vunpack.c.l.b16 %v3884
  %v4658 = vunpack.c.l.b16 %v3885
  %v4659 = vunpack.c.l.b16 %v3886
  %v4660 = vunpack.c.l.b16 %v3887
  %v4661 = vunpack.c.l.b16 %v3888
  %v4662 = vunpack.c.l.b16 %v3889
  %v4663 = vunpack.c.l.b16 %v3890
  %v4664 = vunpack.c.l.b16 %v3891
  %v4665 = vunpack.c.l.b16 %v3892
  %v4666 = vunpack.c.l.b16 %v3893
  %v4667 = vunpack.c.l.b16 %v3894
  %v4668 = vunpack.c.l.b16 %v3895
  %v4669 = vunpack.c.l.b16 %v3896
  %v4670 = vunpack.c.l.b16 %v3897
  %v4671 = vunpack.c.l.b16 %v3898
  %v4672 = vunpack.c.l.b16 %v3899
  %v4673 = vunpack.c.l.b16 %v3900
  %v4674 = vunpack.c.l.b16 %v3901
  %v4675 = vunpack.c.l.b16 %v3902
  %v4676 = vunpack.c.l.b16 %v3903
  %v4677 = vunpack.c.l.b16 %v3904
  %v4678 = vunpack.c.l.b16 %v3905
  %v4679 = vunpack.c.l.b16 %v3906
  %v4680 = vunpack.c.l.b16 %v3907
  %v4681 = vunpack.c.l.b16 %v3908
  %v4682 = vunpack.c.l.b16 %v3909
  %v4683 = vunpack.c.l.b16 %v3910
  %v4684 = vunpack.c.l.b16 %v3911
  %v4685 = vunpack.c.l.b16 %v3912
  %v4686 = vunpack.c.l.b16 %v3913
  %v4687 = vunpack.c.l.b16 %v3914
  %v4688 = vunpack.c.l.b16 %v3915
  %v4689 = vunpack.c.l.b16 %v3916
  %v4690 = vunpack.c.l.b16 %v3917
  %v4691 = vunpack.c.l.b16 %v3918
  %v4692 = vunpack.c.l.b16 %v3919
  %v4693 = vunpack.c.l.b16 %v3920
  %v4694 = vunpack.c.l.b16 %v3921
  %v4695 = vunpack.c.l.b16 %v3922
  %v4696 = vunpack.c.l.b16 %v3923
  %v4697 = vunpack.c.l.b16 %v3924
  %v4698 = vunpack.c.l.b16 %v3925
  %v4699 = vunpack.c.l.b16 %v3926
  %v4700 = vunpack.c.l.b16 %v3927
  %v4701 = vunpack.c.l.b16 %v3928
  %v4702 = vunpack.c.l.b16 %v3929
  %v4703 = vunpack.c.l.b16 %v3930
  %v4704 = vunpack.c.l.b16 %v3931
  %v4705 = vunpack.c.l.b16 %v3932
  %v4706 = vunpack.c.l.b16 %v3933
  %v4707 = vunpack.c.l.b16 %v3934
  %v4708 = vunpack.c.l.b16 %v3935
  %v4709 = vunpack.c.l.b16 %v3936
  %v4710 = vunpack.c.l.b16 %v3937
  %v4711 = vunpack.c.l.b16 %v3938
  %v4712 = vunpack.c.l.b16 %v3939
  %v4713 = vunpack.c.l.b16 %v3940
  %v4714 = vunpack.c.l.b16 %v3941
  %v4715 = vunpack.c.l.b16 %v3942
  %v4716 = vunpack.c.l.b16 %v3943
  %v4717 = vunpack.c.l.b16 %v3944
  %v4718 = vunpack.c.l.b16 %v3945
  %v4719 = vunpack.c.l.b16 %v3946
  %v4720 = vunpack.c.l.b16 %v3947
  %v4721 = vunpack.c.l.b16 %v3948
  %v4722 = vunpack.c.l.b16 %v3949
  %v4723 = vunpack.c.l.b16 %v3950
  %v4724 = vunpack.c.l.b16 %v3951
  %v4725 = vunpack.c.l.b16 %v3952
  %v4726 = vunpack.c.l.b16 %v3953
  %v4727 = vunpack.c.l.b16 %v3954
  %v4728 = vunpack.c.l.b16 %v3955
  %v4729 = vunpack.c.l.b16 %v3956
  %v4730 = vunpack.c.l.b16 %v3957
  %v4731 = vunpack.c.l.b16 %v3958
  %v4732 = vunpack.c.l.b16 %v3959
  %v4733 = vunpack.c.l.b16 %v3960
  %v4734 = vunpack.c.l.b16 %v3961
  %v4735 = vunpack.c.l.b16 %v3962
  %v4736 = vunpack.c.l.b16 %v3963
  %v4737 = vunpack.c.l.b16 %v3964
  %v4738 = vunpack.c.l.b16 %v3965
  %v4739 = vunpack.c.l.b16 %v3966
  %v4740 = vunpack.c.l.b16 %v3967
  %v4741 = vunpack.c.l.b16 %v3968
  %v4742 = vunpack.c.l.b16 %v3969
  %v4743 = vunpack.c.l.b16 %v3970
  %v4744 = vunpack.c.l.b16 %v3971
  %v4745 = vunpack.c.l.b16 %v3972
  %v4746 = vunpack.c.l.b16 %v3973
  %v4747 = vunpack.c.l.b16 %v3974
  %v4748 = vunpack.c.l.b16 %v3975
  %v4749 = vunpack.c.l.b16 %v3976
  %v4750 = vunpack.c.l.b16 %v3977
  %v4751 = vunpack.c.l.b16 %v3978
  %v4752 = vpack.c.b16 %v4369, %v4368
  %v4753 = vpack.c.b16 %v4371, %v4370
  %v4754 = vpack.c.b16 %v4373, %v4372
  %v4755 = vpack.c.b16 %v4375, %v4374
  %v4756 = vpack.c.b16 %v4377, %v4376
  %v4757 = vpack.c.b16 %v4379, %v4378
  %v4758 = vpack.c.b16 %v4381, %v4380
  %v4759 = vpack.c.b16 %v4383, %v4382
  %v4760 = vpack.c.b16 %v4385, %v4384
  %v4761 = vpack.c.b16 %v4387, %v4386
  %v4762 = vpack.c.b16 %v4389, %v4388
  %v4763 = vpack.c.b16 %v4391, %v4390
  %v4764 = vpack.c.b16 %v4393, %v4392
  %v4765 = vpack.c.b16 %v4395, %v4394
  %v4766 = vpack.c.b16 %v4397, %v4396
  %v4767 = vpack.c.b16 %v4399, %v4398
  %v4768 = vpack.c.b16 %v4401, %v4400
  %v4769 = vpack.c.b16 %v4403, %v4402
  %v4770 = vpack.c.b16 %v4405, %v4404
  %v4771 = vpack.c.b16 %v4407, %v4406
  %v4772 = vpack.c.b16 %v4409, %v4408
  %v4773 = vpack.c.b16 %v4411, %v4410
  %v4774 = vpack.c.b16 %v4413, %v4412
  %v4775 = vpack.c.b16 %v4415, %v4414
  %v4776 = vpack.c.b16 %v4417, %v4416
  %v4777 = vpack.c.b16 %v4419, %v4418
  %v4778 = vpack.c.b16 %v4421, %v4420
  %v4779 = vpack.c.b16 %v4423, %v4422
  %v4780 = vpack.c.b16 %v4425, %v4424
  %v4781 = vpack.c.b16 %v4427, %v4426
  %v4782 = vpack.c.b16 %v4429, %v4428
  %v4783 = vpack.c.b16 %v4431, %v4430
  %v4784 = vpack.c.b16 %v4433, %v4432
  %v4785 = vpack.c.b16 %v4435, %v4434
  %v4786 = vpack.c.b16 %v4437, %v4436
  %v4787 = vpack.c.b16 %v4439, %v4438
  %v4788 = vpack.c.b16 %v4441, %v4440
  %v4789 = vpack.c.b16 %v4443, %v4442
  %v4790 = vpack.c.b16 %v4445, %v4444
  %v4791 = vpack.c.b16 %v4447, %v4446
  %v4792 = vpack.c.b16 %v4449, %v4448
  %v4793 = vpack.c.b16 %v4451, %v4450
  %v4794 = vpack.c.b16 %v4453, %v4452
  %v4795 = vpack.c.b16 %v4455, %v4454
  %v4796 = vpack.c.b16 %v4457, %v4456
  %v4797 = vpack.c.b16 %v4459, %v4458
  %v4798 = vpack.c.b16 %v4461, %v4460
  %v4799 = vpack.c.b16 %v4463, %v4462
  %v4800 = vpack.c.b16 %v4465, %v4464
  %v4801 = vpack.c.b16 %v4467, %v4466
  %v4802 = vpack.c.b16 %v4469, %v4468
  %v4803 = vpack.c.b16 %v4471, %v4470
  %v4804 = vpack.c.b16 %v4473, %v4472
  %v4805 = vpack.c.b16 %v4475, %v4474
  %v4806 = vpack.c.b16 %v4477, %v4476
  %v4807 = vpack.c.b16 %v4479, %v4478
  %v4808 = vpack.c.b16 %v4481, %v4480
  %v4809 = vpack.c.b16 %v4483, %v4482
  %v4810 = vpack.c.b16 %v4485, %v4484
  %v4811 = vpack.c.b16 %v4487, %v4486
  %v4812 = vpack.c.b16 %v4489, %v4488
  %v4813 = vpack.c.b16 %v4491, %v4490
  %v4814 = vpack.c.b16 %v4493, %v4492
  %v4815 = vpack.c.b16 %v4495, %v4494
  %v4816 = vpack.c.b16 %v4497, %v4496
  %v4817 = vpack.c.b16 %v4499, %v4498
  %v4818 = vpack.c.b16 %v4501, %v4500
  %v4819 = vpack.c.b16 %v4503, %v4502
  %v4820 = vpack.c.b16 %v4505, %v4504
  %v4821 = vpack.c.b16 %v4507, %v4506
  %v4822 = vpack.c.b16 %v4509, %v4508
  %v4823 = vpack.c.b16 %v4511, %v4510
  %v4824 = vpack.c.b16 %v4513, %v4512
  %v4825 = vpack.c.b16 %v4515, %v4514
  %v4826 = vpack.c.b16 %v4517, %v4516
  %v4827 = vpack.c.b16 %v4519, %v4518
  %v4828 = vpack.c.b16 %v4521, %v4520
  %v4829 = vpack.c.b16 %v4523, %v4522
  %v4830 = vpack.c.b16 %v4525, %v4524
  %v4831 = vpack.c.b16 %v4527, %v4526
  %v4832 = vpack.c.b16 %v4529, %v4528
  %v4833 = vpack.c.b16 %v4531, %v4530
  %v4834 = vpack.c.b16 %v4533, %v4532
  %v4835 = vpack.c.b16 %v4535, %v4534
  %v4836 = vpack.c.b16 %v4537, %v4536
  %v4837 = vpack.c.b16 %v4539, %v4538
  %v4838 = vpack.c.b16 %v4541, %v4540
  %v4839 = vpack.c.b16 %v4543, %v4542
  %v4840 = vpack.c.b16 %v4545, %v4544
  %v4841 = vpack.c.b16 %v4547, %v4546
  %v4842 = vpack.c.b16 %v4549, %v4548
  %v4843 = vpack.c.b16 %v4551, %v4550
  %v4844 = vpack.c.b16 %v4553, %v4552
  %v4845 = vpack.c.b16 %v4555, %v4554
  %v4846 = vpack.c.b16 %v4557, %v4556
  %v4847 = vpack.c.b16 %v4559, %v4558
  %v4848 = vpack.c.b16 %v4561, %v4560
  %v4849 = vpack.c.b16 %v4563, %v4562
  %v4850 = vpack.c.b16 %v4565, %v4564
  %v4851 = vpack.c.b16 %v4567, %v4566
  %v4852 = vpack.c.b16 %v4569, %v4568
  %v4853 = vpack.c.b16 %v4571, %v4570
  %v4854 = vpack.c.b16 %v4573, %v4572
  %v4855 = vpack.c.b16 %v4575, %v4574
  %v4856 = vpack.c.b16 %v4577, %v4576
  %v4857 = vpack.c.b16 %v4579, %v4578
  %v4858 = vpack.c.b16 %v4581, %v4580
  %v4859 = vpack.c.b16 %v4583, %v4582
  %v4860 = vpack.c.b16 %v4585, %v4584
  %v4861 = vpack.c.b16 %v4587, %v4586
  %v4862 = vpack.c.b16 %v4589, %v4588
  %v4863 = vpack.c.b16 %v4591, %v4590
  %v4864 = vpack.c.b16 %v4593, %v4592
  %v4865 = vpack.c.b16 %v4595, %v4594
  %v4866 = vpack.c.b16 %v4597, %v4596
  %v4867 = vpack.c.b16 %v4599, %v4598
  %v4868 = vpack.c.b16 %v4601, %v4600
  %v4869 = vpack.c.b16 %v4603, %v4602
  %v4870 = vpack.c.b16 %v4605, %v4604
  %v4871 = vpack.c.b16 %v4607, %v4606
  %v4872 = vpack.c.b16 %v4609, %v4608
  %v4873 = vpack.c.b16 %v4611, %v4610
  %v4874 = vpack.c.b16 %v4613, %v4612
  %v4875 = vpack.c.b16 %v4615, %v4614
  %v4876 = vpack.c.b16 %v4617, %v4616
  %v4877 = vpack.c.b16 %v4619, %v4618
  %v4878 = vpack.c.b16 %v4621, %v4620
  %v4879 = vpack.c.b16 %v4623, %v4622
  %v4880 = vpack.c.b16 %v4625, %v4624
  %v4881 = vpack.c.b16 %v4627, %v4626
  %v4882 = vpack.c.b16 %v4629, %v4628
  %v4883 = vpack.c.b16 %v4631, %v4630
  %v4884 = vpack.c.b16 %v4633, %v4632
  %v4885 = vpack.c.b16 %v4635, %v4634
  %v4886 = vpack.c.b16 %v4637, %v4636
  %v4887 = vpack.c.b16 %v4639, %v4638
  %v4888 = vpack.c.b16 %v4641, %v4640
  %v4889 = vpack.c.b16 %v4643, %v4642
  %v4890 = vpack.c.b16 %v4645, %v4644
  %v4891 = vpack.c.b16 %v4647, %v4646
  %v4892 = vpack.c.b16 %v4649, %v4648
  %v4893 = vpack.c.b16 %v4651, %v4650
  %v4894 = vpack.c.b16 %v4653, %v4652
  %v4895 = vpack.c.b16 %v4655, %v4654
  %v4896 = vpack.c.b16 %v4657, %v4656
  %v4897 = vpack.c.b16 %v4659, %v4658
  %v4898 = vpack.c.b16 %v4661, %v4660
  %v4899 = vpack.c.b16 %v4663, %v4662
  %v4900 = vpack.c.b16 %v4665, %v4664
  %v4901 = vpack.c.b16 %v4667, %v4666
  %v4902 = vpack.c.b16 %v4669, %v4668
  %v4903 = vpack.c.b16 %v4671, %v4670
  %v4904 = vpack.c.b16 %v4673, %v4672
  %v4905 = vpack.c.b16 %v4675, %v4674
  %v4906 = vpack.c.b16 %v4677, %v4676
  %v4907 = vpack.c.b16 %v4679, %v4678
  %v4908 = vpack.c.b16 %v4681, %v4680
  %v4909 = vpack.c.b16 %v4683, %v4682
  %v4910 = vpack.c.b16 %v4685, %v4684
  %v4911 = vpack.c.b16 %v4687, %v4686
  %v4912 = vpack.c.b16 %v4689, %v4688
  %v4913 = vpack.c.b16 %v4691, %v4690
  %v4914 = vpack.c.b16 %v4693, %v4692
  %v4915 = vpack.c.b16 %v4695, %v4694
  %v4916 = vpack.c.b16 %v4697, %v4696
  %v4917 = vpack.c.b16 %v4699, %v4698
  %v4918 = vpack.c.b16 %v4701, %v4700
  %v4919 = vpack.c.b16 %v4703, %v4702
  %v4920 = vpack.c.b16 %v4705, %v4704
  %v4921 = vpack.c.b16 %v4707, %v4706
  %v4922 = vpack.c.b16 %v4709, %v4708
  %v4923 = vpack.c.b16 %v4711, %v4710
  %v4924 = vpack.c.b16 %v4713, %v4712
  %v4925 = vpack.c.b16 %v4715, %v4714
  %v4926 = vpack.c.b16 %v4717, %v4716
  %v4927 = vpack.c.b16 %v4719, %v4718
  %v4928 = vpack.c.b16 %v4721, %v4720
  %v4929 = vpack.c.b16 %v4723, %v4722
  %v4930 = vpack.c.b16 %v4725, %v4724
  %v4931 = vpack.c.b16 %v4727, %v4726
  %v4932 = vpack.c.b16 %v4729, %v4728
  %v4933 = vpack.c.b16 %v4731, %v4730
  %v4934 = vpack.c.b16 %v4733, %v4732
  %v4935 = vpack.c.b16 %v4735, %v4734
  %v4936 = vpack.c.b16 %v4737, %v4736
  %v4937 = vpack.c.b16 %v4739, %v4738
  %v4938 = vpack.c.b16 %v4741, %v4740
  %v4939 = vpack.c.b16 %v4743, %v4742
  %v4940 = vpack.c.b16 %v4745, %v4744
  %v4941 = vpack.c.b16 %v4747, %v4746
  %v4942 = vpack.c.b16 %v4749, %v4748
  %v4943 = vpack.c.b16 %v4751, %v4750
  %5136 = vmatpush.bf16.msra.mxu0 %v4759
  %5137 = vmatpush.bf16.msra.mxu0 %v4758
  %5138 = vmatpush.bf16.msra.mxu0 %v4757
  %5139 = vmatpush.bf16.msra.mxu0 %v4756
  %5140 = vmatpush.bf16.msra.mxu0 %v4755
  %5141 = vmatpush.bf16.msra.mxu0 %v4754
  %5142 = vmatpush.bf16.msra.mxu0 %v4753
  %5143 = vmatpush.bf16.msra.mxu0 %v4752
  %5144 = vmatmul.bf16.gmra.mxu0 %v3570
  %v5145 = vpop.f32.mrf.mxu0
  %v5146 = vadd.f32 %v3982, %v5145
  %v5147 = vpop.f32.mrf.mxu0
  %5148 = vdwg.mxu0
  %5149 = vmatpush.bf16.msra.mxu0 %v4767
  %5150 = vmatpush.bf16.msra.mxu0 %v4766
  %5151 = vmatpush.bf16.msra.mxu0 %v4765
  %5152 = vmatpush.bf16.msra.mxu0 %v4764
  %5153 = vmatpush.bf16.msra.mxu0 %v4763
  %5154 = vmatpush.bf16.msra.mxu0 %v4762
  %5155 = vmatpush.bf16.msra.mxu0 %v4761
  %5156 = vmatpush.bf16.msra.mxu0 %v4760
  %5157 = vmatmul.bf16.gmra.mxu0 %v3571
  %v5158 = vpop.f32.mrf.mxu0
  %v5159 = vadd.f32 %v5146, %v5158
  %v5160 = vpop.f32.mrf.mxu0
  %5161 = vdwg.mxu0
  %5162 = vmatpush.bf16.msra.mxu0 %v4775
  %5163 = vmatpush.bf16.msra.mxu0 %v4774
  %5164 = vmatpush.bf16.msra.mxu0 %v4773
  %5165 = vmatpush.bf16.msra.mxu0 %v4772
  %5166 = vmatpush.bf16.msra.mxu0 %v4771
  %5167 = vmatpush.bf16.msra.mxu0 %v4770
  %5168 = vmatpush.bf16.msra.mxu0 %v4769
  %5169 = vmatpush.bf16.msra.mxu0 %v4768
  %5170 = vmatmul.bf16.gmra.mxu0 %v3572
  %v5171 = vpop.f32.mrf.mxu0
  %v5172 = vadd.f32 %v5159, %v5171
  %v5173 = vpop.f32.mrf.mxu0
  %5174 = vdwg.mxu0
  %5175 = vmatpush.bf16.msra.mxu0 %v4783
  %5176 = vmatpush.bf16.msra.mxu0 %v4782
  %5177 = vmatpush.bf16.msra.mxu0 %v4781
  %5178 = vmatpush.bf16.msra.mxu0 %v4780
  %5179 = vmatpush.bf16.msra.mxu0 %v4779
  %5180 = vmatpush.bf16.msra.mxu0 %v4778
  %5181 = vmatpush.bf16.msra.mxu0 %v4777
  %5182 = vmatpush.bf16.msra.mxu0 %v4776
  %5183 = vmatmul.bf16.gmra.mxu0 %v3573
  %v5184 = vpop.f32.mrf.mxu0
  %v5185 = vadd.f32 %v5172, %v5184
  %v5186 = vpop.f32.mrf.mxu0
  %5187 = vdwg.mxu0
  %5188 = vmatpush.bf16.msra.mxu0 %v4791
  %5189 = vmatpush.bf16.msra.mxu0 %v4790
  %5190 = vmatpush.bf16.msra.mxu0 %v4789
  %5191 = vmatpush.bf16.msra.mxu0 %v4788
  %5192 = vmatpush.bf16.msra.mxu0 %v4787
  %5193 = vmatpush.bf16.msra.mxu0 %v4786
  %5194 = vmatpush.bf16.msra.mxu0 %v4785
  %5195 = vmatpush.bf16.msra.mxu0 %v4784
  %5196 = vmatmul.bf16.gmra.mxu0 %v3574
  %v5197 = vpop.f32.mrf.mxu0
  %v5198 = vadd.f32 %v5185, %v5197
  %v5199 = vpop.f32.mrf.mxu0
  %5200 = vdwg.mxu0
  %5201 = vmatpush.bf16.msra.mxu0 %v4799
  %5202 = vmatpush.bf16.msra.mxu0 %v4798
  %5203 = vmatpush.bf16.msra.mxu0 %v4797
  %5204 = vmatpush.bf16.msra.mxu0 %v4796
  %5205 = vmatpush.bf16.msra.mxu0 %v4795
  %5206 = vmatpush.bf16.msra.mxu0 %v4794
  %5207 = vmatpush.bf16.msra.mxu0 %v4793
  %5208 = vmatpush.bf16.msra.mxu0 %v4792
  %5209 = vmatmul.bf16.gmra.mxu0 %v3575
  %v5210 = vpop.f32.mrf.mxu0
  %v5211 = vadd.f32 %v5198, %v5210
  %v5212 = vpop.f32.mrf.mxu0
  %5213 = vdwg.mxu0
  %5214 = vmatpush.bf16.msra.mxu0 %v4807
  %5215 = vmatpush.bf16.msra.mxu0 %v4806
  %5216 = vmatpush.bf16.msra.mxu0 %v4805
  %5217 = vmatpush.bf16.msra.mxu0 %v4804
  %5218 = vmatpush.bf16.msra.mxu0 %v4803
  %5219 = vmatpush.bf16.msra.mxu0 %v4802
  %5220 = vmatpush.bf16.msra.mxu0 %v4801
  %5221 = vmatpush.bf16.msra.mxu0 %v4800
  %5222 = vmatmul.bf16.gmra.mxu0 %v3576
  %v5223 = vpop.f32.mrf.mxu0
  %v5224 = vadd.f32 %v5211, %v5223
  %v5225 = vpop.f32.mrf.mxu0
  %5226 = vdwg.mxu0
  %5227 = vmatpush.bf16.msra.mxu0 %v4815
  %5228 = vmatpush.bf16.msra.mxu0 %v4814
  %5229 = vmatpush.bf16.msra.mxu0 %v4813
  %5230 = vmatpush.bf16.msra.mxu0 %v4812
  %5231 = vmatpush.bf16.msra.mxu0 %v4811
  %5232 = vmatpush.bf16.msra.mxu0 %v4810
  %5233 = vmatpush.bf16.msra.mxu0 %v4809
  %5234 = vmatpush.bf16.msra.mxu0 %v4808
  %5235 = vmatmul.bf16.gmra.mxu0 %v3577
  %v5236 = vpop.f32.mrf.mxu0
  %v5237 = vadd.f32 %v5224, %v5236
  %v5238 = vpop.f32.mrf.mxu0
  %5239 = vdwg.mxu0
  %5240 = vmatpush.bf16.msra.mxu0 %v4823
  %5241 = vmatpush.bf16.msra.mxu0 %v4822
  %5242 = vmatpush.bf16.msra.mxu0 %v4821
  %5243 = vmatpush.bf16.msra.mxu0 %v4820
  %5244 = vmatpush.bf16.msra.mxu0 %v4819
  %5245 = vmatpush.bf16.msra.mxu0 %v4818
  %5246 = vmatpush.bf16.msra.mxu0 %v4817
  %5247 = vmatpush.bf16.msra.mxu0 %v4816
  %5248 = vmatmul.bf16.gmra.mxu0 %v3578
  %v5249 = vpop.f32.mrf.mxu0
  %v5250 = vadd.f32 %v5237, %v5249
  %v5251 = vpop.f32.mrf.mxu0
  %5252 = vdwg.mxu0
  %5253 = vmatpush.bf16.msra.mxu0 %v4831
  %5254 = vmatpush.bf16.msra.mxu0 %v4830
  %5255 = vmatpush.bf16.msra.mxu0 %v4829
  %5256 = vmatpush.bf16.msra.mxu0 %v4828
  %5257 = vmatpush.bf16.msra.mxu0 %v4827
  %5258 = vmatpush.bf16.msra.mxu0 %v4826
  %5259 = vmatpush.bf16.msra.mxu0 %v4825
  %5260 = vmatpush.bf16.msra.mxu0 %v4824
  %5261 = vmatmul.bf16.gmra.mxu0 %v3579
  %v5262 = vpop.f32.mrf.mxu0
  %v5263 = vadd.f32 %v5250, %v5262
  %v5264 = vpop.f32.mrf.mxu0
  %5265 = vdwg.mxu0
  %5266 = vmatpush.bf16.msra.mxu0 %v4839
  %5267 = vmatpush.bf16.msra.mxu0 %v4838
  %5268 = vmatpush.bf16.msra.mxu0 %v4837
  %5269 = vmatpush.bf16.msra.mxu0 %v4836
  %5270 = vmatpush.bf16.msra.mxu0 %v4835
  %5271 = vmatpush.bf16.msra.mxu0 %v4834
  %5272 = vmatpush.bf16.msra.mxu0 %v4833
  %5273 = vmatpush.bf16.msra.mxu0 %v4832
  %5274 = vmatmul.bf16.gmra.mxu0 %v3580
  %v5275 = vpop.f32.mrf.mxu0
  %v5276 = vadd.f32 %v5263, %v5275
  %v5277 = vpop.f32.mrf.mxu0
  %5278 = vdwg.mxu0
  %5279 = vmatpush.bf16.msra.mxu0 %v4847
  %5280 = vmatpush.bf16.msra.mxu0 %v4846
  %5281 = vmatpush.bf16.msra.mxu0 %v4845
  %5282 = vmatpush.bf16.msra.mxu0 %v4844
  %5283 = vmatpush.bf16.msra.mxu0 %v4843
  %5284 = vmatpush.bf16.msra.mxu0 %v4842
  %5285 = vmatpush.bf16.msra.mxu0 %v4841
  %5286 = vmatpush.bf16.msra.mxu0 %v4840
  %5287 = vmatmul.bf16.gmra.mxu0 %v3581
  %v5288 = vpop.f32.mrf.mxu0
  %v5289 = vadd.f32 %v5276, %v5288
  %v5290 = vpop.f32.mrf.mxu0
  %5291 = vdwg.mxu0
  %5292 = vmatpush.bf16.msra.mxu0 %v4855
  %5293 = vmatpush.bf16.msra.mxu0 %v4854
  %5294 = vmatpush.bf16.msra.mxu0 %v4853
  %5295 = vmatpush.bf16.msra.mxu0 %v4852
  %5296 = vmatpush.bf16.msra.mxu0 %v4851
  %5297 = vmatpush.bf16.msra.mxu0 %v4850
  %5298 = vmatpush.bf16.msra.mxu0 %v4849
  %5299 = vmatpush.bf16.msra.mxu0 %v4848
  %5300 = vmatmul.bf16.gmra.mxu0 %v3582
  %v5301 = vpop.f32.mrf.mxu0
  %v5302 = vadd.f32 %v5289, %v5301
  %v5303 = vpop.f32.mrf.mxu0
  %5304 = vdwg.mxu0
  %5305 = vmatpush.bf16.msra.mxu0 %v4863
  %5306 = vmatpush.bf16.msra.mxu0 %v4862
  %5307 = vmatpush.bf16.msra.mxu0 %v4861
  %5308 = vmatpush.bf16.msra.mxu0 %v4860
  %5309 = vmatpush.bf16.msra.mxu0 %v4859
  %5310 = vmatpush.bf16.msra.mxu0 %v4858
  %5311 = vmatpush.bf16.msra.mxu0 %v4857
  %5312 = vmatpush.bf16.msra.mxu0 %v4856
  %5313 = vmatmul.bf16.gmra.mxu0 %v3583
  %v5314 = vpop.f32.mrf.mxu0
  %v5315 = vadd.f32 %v5302, %v5314
  %v5316 = vpop.f32.mrf.mxu0
  %5317 = vdwg.mxu0
  %5318 = vmatpush.bf16.msra.mxu0 %v4871
  %5319 = vmatpush.bf16.msra.mxu0 %v4870
  %5320 = vmatpush.bf16.msra.mxu0 %v4869
  %5321 = vmatpush.bf16.msra.mxu0 %v4868
  %5322 = vmatpush.bf16.msra.mxu0 %v4867
  %5323 = vmatpush.bf16.msra.mxu0 %v4866
  %5324 = vmatpush.bf16.msra.mxu0 %v4865
  %5325 = vmatpush.bf16.msra.mxu0 %v4864
  %5326 = vmatmul.bf16.gmra.mxu0 %v3584
  %v5327 = vpop.f32.mrf.mxu0
  %v5328 = vadd.f32 %v5315, %v5327
  %v5329 = vpop.f32.mrf.mxu0
  %5330 = vdwg.mxu0
  %5331 = vmatpush.bf16.msra.mxu0 %v4879
  %5332 = vmatpush.bf16.msra.mxu0 %v4878
  %5333 = vmatpush.bf16.msra.mxu0 %v4877
  %5334 = vmatpush.bf16.msra.mxu0 %v4876
  %5335 = vmatpush.bf16.msra.mxu0 %v4875
  %5336 = vmatpush.bf16.msra.mxu0 %v4874
  %5337 = vmatpush.bf16.msra.mxu0 %v4873
  %5338 = vmatpush.bf16.msra.mxu0 %v4872
  %5339 = vmatmul.bf16.gmra.mxu0 %v3585
  %v5340 = vpop.f32.mrf.mxu0
  %v5341 = vadd.f32 %v5328, %v5340
  %v5342 = vpop.f32.mrf.mxu0
  %5343 = vdwg.mxu0
  %5344 = vmatpush.bf16.msra.mxu0 %v4887
  %5345 = vmatpush.bf16.msra.mxu0 %v4886
  %5346 = vmatpush.bf16.msra.mxu0 %v4885
  %5347 = vmatpush.bf16.msra.mxu0 %v4884
  %5348 = vmatpush.bf16.msra.mxu0 %v4883
  %5349 = vmatpush.bf16.msra.mxu0 %v4882
  %5350 = vmatpush.bf16.msra.mxu0 %v4881
  %5351 = vmatpush.bf16.msra.mxu0 %v4880
  %5352 = vmatmul.bf16.gmra.mxu0 %v3586
  %v5353 = vpop.f32.mrf.mxu0
  %v5354 = vadd.f32 %v5341, %v5353
  %v5355 = vpop.f32.mrf.mxu0
  %5356 = vdwg.mxu0
  %5357 = vmatpush.bf16.msra.mxu0 %v4895
  %5358 = vmatpush.bf16.msra.mxu0 %v4894
  %5359 = vmatpush.bf16.msra.mxu0 %v4893
  %5360 = vmatpush.bf16.msra.mxu0 %v4892
  %5361 = vmatpush.bf16.msra.mxu0 %v4891
  %5362 = vmatpush.bf16.msra.mxu0 %v4890
  %5363 = vmatpush.bf16.msra.mxu0 %v4889
  %5364 = vmatpush.bf16.msra.mxu0 %v4888
  %5365 = vmatmul.bf16.gmra.mxu0 %v3587
  %v5366 = vpop.f32.mrf.mxu0
  %v5367 = vadd.f32 %v5354, %v5366
  %v5368 = vpop.f32.mrf.mxu0
  %5369 = vdwg.mxu0
  %5370 = vmatpush.bf16.msra.mxu0 %v4903
  %5371 = vmatpush.bf16.msra.mxu0 %v4902
  %5372 = vmatpush.bf16.msra.mxu0 %v4901
  %5373 = vmatpush.bf16.msra.mxu0 %v4900
  %5374 = vmatpush.bf16.msra.mxu0 %v4899
  %5375 = vmatpush.bf16.msra.mxu0 %v4898
  %5376 = vmatpush.bf16.msra.mxu0 %v4897
  %5377 = vmatpush.bf16.msra.mxu0 %v4896
  %5378 = vmatmul.bf16.gmra.mxu0 %v3588
  %v5379 = vpop.f32.mrf.mxu0
  %v5380 = vadd.f32 %v5367, %v5379
  %v5381 = vpop.f32.mrf.mxu0
  %5382 = vdwg.mxu0
  %5383 = vmatpush.bf16.msra.mxu0 %v4911
  %5384 = vmatpush.bf16.msra.mxu0 %v4910
  %5385 = vmatpush.bf16.msra.mxu0 %v4909
  %5386 = vmatpush.bf16.msra.mxu0 %v4908
  %5387 = vmatpush.bf16.msra.mxu0 %v4907
  %5388 = vmatpush.bf16.msra.mxu0 %v4906
  %5389 = vmatpush.bf16.msra.mxu0 %v4905
  %5390 = vmatpush.bf16.msra.mxu0 %v4904
  %5391 = vmatmul.bf16.gmra.mxu0 %v3589
  %v5392 = vpop.f32.mrf.mxu0
  %v5393 = vadd.f32 %v5380, %v5392
  %v5394 = vpop.f32.mrf.mxu0
  %5395 = vdwg.mxu0
  %5396 = vmatpush.bf16.msra.mxu0 %v4919
  %5397 = vmatpush.bf16.msra.mxu0 %v4918
  %5398 = vmatpush.bf16.msra.mxu0 %v4917
  %5399 = vmatpush.bf16.msra.mxu0 %v4916
  %5400 = vmatpush.bf16.msra.mxu0 %v4915
  %5401 = vmatpush.bf16.msra.mxu0 %v4914
  %5402 = vmatpush.bf16.msra.mxu0 %v4913
  %5403 = vmatpush.bf16.msra.mxu0 %v4912
  %5404 = vmatmul.bf16.gmra.mxu0 %v3590
  %v5405 = vpop.f32.mrf.mxu0
  %v5406 = vadd.f32 %v5393, %v5405
  %v5407 = vpop.f32.mrf.mxu0
  %5408 = vdwg.mxu0
  %5409 = vmatpush.bf16.msra.mxu0 %v4927
  %5410 = vmatpush.bf16.msra.mxu0 %v4926
  %5411 = vmatpush.bf16.msra.mxu0 %v4925
  %5412 = vmatpush.bf16.msra.mxu0 %v4924
  %5413 = vmatpush.bf16.msra.mxu0 %v4923
  %5414 = vmatpush.bf16.msra.mxu0 %v4922
  %5415 = vmatpush.bf16.msra.mxu0 %v4921
  %5416 = vmatpush.bf16.msra.mxu0 %v4920
  %5417 = vmatmul.bf16.gmra.mxu0 %v3591
  %v5418 = vpop.f32.mrf.mxu0
  %v5419 = vadd.f32 %v5406, %v5418
  %v5420 = vpop.f32.mrf.mxu0
  %5421 = vdwg.mxu0
  %5422 = vmatpush.bf16.msra.mxu0 %v4935
  %5423 = vmatpush.bf16.msra.mxu0 %v4934
  %5424 = vmatpush.bf16.msra.mxu0 %v4933
  %5425 = vmatpush.bf16.msra.mxu0 %v4932
  %5426 = vmatpush.bf16.msra.mxu0 %v4931
  %5427 = vmatpush.bf16.msra.mxu0 %v4930
  %5428 = vmatpush.bf16.msra.mxu0 %v4929
  %5429 = vmatpush.bf16.msra.mxu0 %v4928
  %5430 = vmatmul.bf16.gmra.mxu0 %v3592
  %v5431 = vpop.f32.mrf.mxu0
  %v5432 = vadd.f32 %v5419, %v5431
  %v5433 = vpop.f32.mrf.mxu0
  %5434 = vdwg.mxu0
  %5435 = vmatpush.bf16.msra.mxu0 %v4943
  %5436 = vmatpush.bf16.msra.mxu0 %v4942
  %5437 = vmatpush.bf16.msra.mxu0 %v4941
  %5438 = vmatpush.bf16.msra.mxu0 %v4940
  %5439 = vmatpush.bf16.msra.mxu0 %v4939
  %5440 = vmatpush.bf16.msra.mxu0 %v4938
  %5441 = vmatpush.bf16.msra.mxu0 %v4937
  %5442 = vmatpush.bf16.msra.mxu0 %v4936
  %5443 = vmatmul.bf16.gmra.mxu0 %v3593
  %v5444 = vpop.f32.mrf.mxu0
  %v5445 = vadd.f32 %v5432, %v5444
  %v5446 = vpop.f32.mrf.mxu0
  %5447 = vdwg.mxu0
  %v5448 = vmax.f32 %v5445, 0.0
  %s5449 = scalar_lea.vmem %s7, 16
  %v5450 = vld [vmem:[%s5449] sm:$0xff]
  %v5451 = vld [vmem:[%s5449 + $0x8] sm:$0xf]
  %s5452 = scalar_lea.vmem %s8, 1
  %v5453 = vld [vmem:[%s5452] sm:$0x1]
  %v5455 = vperm.slane %v5453, 0
  %v5458 = vsel %vm3465, %v5448, 0
  %v5461 = vsel %vm3469, %v5451, 0
  %5463 = vmatpush.msra.mxu0 0.0
  %5464 = vmatpush.msra.mxu0 0.0
  %5465 = vmatpush.msra.mxu0 0.0
  %5466 = vmatpush.msra.mxu0 0.0
  %5467 = vmatpush.msra.mxu0 0.0
  %5468 = vmatpush.msra.mxu0 0.0
  %5469 = vmatpush.msra.mxu0 0.0
  %5470 = vmatpush.msra.mxu0 0.0
  %5471 = vmatpush.msra.mxu0 0.0
  %5472 = vmatpush.msra.mxu0 0.0
  %5473 = vmatpush.msra.mxu0 0.0
  %5474 = vmatpush.msra.mxu0 0.0
  %5475 = vmatpush.msra.mxu0 0.0
  %5476 = vmatpush.msra.mxu0 0.0
  %5477 = vmatpush.msra.mxu0 %v5461
  %5478 = vmatpush.msra.mxu0 %v5450
  %5479 = vmatmul.f32.gmra.mxu0 %v5458
  %v5480 = vpop.f32.mrf.mxu0
  %v5481 = vadd.f32 %v5455, %v5480
  %5482 = vdwg.mxu0
  %v5483 = vmax.f32 %v5481, 0.0
  %s5484 = scalar_lea.vmem %s9, 1
  %v5485 = vld [vmem:[%s5484] sm:$0x1]
  %v5487 = vperm.slane %v5485, 0
  %v5489 = vmul.f32 %v5483, %v5487
  %v5490 = vsel %vm3499, %v5489, 0.0
  %5491 = vadd.xlane.f32.xlu0 %v5490
  %v5492 = vpop.xlane.xlu0 %5491
  %v5493 = vld [vmem:[#allocation3 + $0x60] sm:$0xff]
  %v5494 = vld [vmem:[#allocation3 + $0x68] sm:$0xff]
  %v5495 = vld [vmem:[#allocation3 + $0x70] sm:$0xff]
  %v5496 = vld [vmem:[#allocation3 + $0x78] sm:$0xff]
  %v5497 = vld [vmem:[#allocation3 + $0x80] sm:$0xff]
  %v5498 = vld [vmem:[#allocation3 + $0x88] sm:$0xff]
  %5505 = vst [vmem:[#allocation1] ss:$4 sm:$0xff] %v5493
  %s5506 = scalar_lea.vmem [#allocation1], 32
  %5507 = vst [vmem:[%s5506] ss:$4 sm:$0xff] %v5494
  %v5508 = vld.sshfl [vmem:[#allocation1] sm:$0xff pattern:$0x73625140]
  %v5509 = vld.sshfl [vmem:[#allocation1 + $0x8] sm:$0xff pattern:$0x73625140]
  %v5510 = vld.sshfl [vmem:[#allocation1 + $0x10] sm:$0xff pattern:$0x73625140]
  %v5511 = vld.sshfl [vmem:[#allocation1 + $0x18] sm:$0xff pattern:$0x73625140]
  %v5512 = vld.sshfl [vmem:[#allocation1 + $0x20] sm:$0xff pattern:$0x73625140]
  %v5513 = vld.sshfl [vmem:[#allocation1 + $0x28] sm:$0xff pattern:$0x73625140]
  %v5514 = vld.sshfl [vmem:[#allocation1 + $0x30] sm:$0xff pattern:$0x73625140]
  %v5515 = vld.sshfl [vmem:[#allocation1 + $0x38] sm:$0xff pattern:$0x73625140]
  %5516 = vst [vmem:[#allocation1] ss:$4 sm:$0xff] %v5495
  %5517 = vst [vmem:[%s5506] ss:$4 sm:$0xff] %v5496
  %v5518 = vld.sshfl [vmem:[#allocation1] sm:$0xff pattern:$0x73625140]
  %v5519 = vld.sshfl [vmem:[#allocation1 + $0x8] sm:$0xff pattern:$0x73625140]
  %v5520 = vld.sshfl [vmem:[#allocation1 + $0x10] sm:$0xff pattern:$0x73625140]
  %v5521 = vld.sshfl [vmem:[#allocation1 + $0x18] sm:$0xff pattern:$0x73625140]
  %v5522 = vld.sshfl [vmem:[#allocation1 + $0x20] sm:$0xff pattern:$0x73625140]
  %v5523 = vld.sshfl [vmem:[#allocation1 + $0x28] sm:$0xff pattern:$0x73625140]
  %v5524 = vld.sshfl [vmem:[#allocation1 + $0x30] sm:$0xff pattern:$0x73625140]
  %v5525 = vld.sshfl [vmem:[#allocation1 + $0x38] sm:$0xff pattern:$0x73625140]
  %5526 = vst [vmem:[#allocation1] ss:$4 sm:$0xff] %v5497
  %5527 = vst [vmem:[%s5506] ss:$4 sm:$0xff] %v5498
  %v5528 = vld.sshfl [vmem:[#allocation1] sm:$0xff pattern:$0x73625140]
  %v5529 = vld.sshfl [vmem:[#allocation1 + $0x8] sm:$0xff pattern:$0x73625140]
  %v5530 = vld.sshfl [vmem:[#allocation1 + $0x10] sm:$0xff pattern:$0x73625140]
  %v5531 = vld.sshfl [vmem:[#allocation1 + $0x18] sm:$0xff pattern:$0x73625140]
  %v5532 = vld.sshfl [vmem:[#allocation1 + $0x20] sm:$0xff pattern:$0x73625140]
  %v5533 = vld.sshfl [vmem:[#allocation1 + $0x28] sm:$0xff pattern:$0x73625140]
  %v5534 = vld.sshfl [vmem:[#allocation1 + $0x30] sm:$0xff pattern:$0x73625140]
  %v5535 = vld.sshfl [vmem:[#allocation1 + $0x38] sm:$0xff pattern:$0x73625140]
  %v5560 = vpack.c.bf16 %v5508, %v5508
  %v5561 = vpack.c.bf16 %v5509, %v5509
  %v5562 = vpack.c.bf16 %v5510, %v5510
  %v5563 = vpack.c.bf16 %v5511, %v5511
  %v5564 = vpack.c.bf16 %v5512, %v5512
  %v5565 = vpack.c.bf16 %v5513, %v5513
  %v5566 = vpack.c.bf16 %v5514, %v5514
  %v5567 = vpack.c.bf16 %v5515, %v5515
  %v5568 = vpack.c.bf16 %v5518, %v5518
  %v5569 = vpack.c.bf16 %v5519, %v5519
  %v5570 = vpack.c.bf16 %v5520, %v5520
  %v5571 = vpack.c.bf16 %v5521, %v5521
  %v5572 = vpack.c.bf16 %v5522, %v5522
  %v5573 = vpack.c.bf16 %v5523, %v5523
  %v5574 = vpack.c.bf16 %v5524, %v5524
  %v5575 = vpack.c.bf16 %v5525, %v5525
  %v5576 = vpack.c.bf16 %v5528, %v5528
  %v5577 = vpack.c.bf16 %v5529, %v5529
  %v5578 = vpack.c.bf16 %v5530, %v5530
  %v5579 = vpack.c.bf16 %v5531, %v5531
  %v5580 = vpack.c.bf16 %v5532, %v5532
  %v5581 = vpack.c.bf16 %v5533, %v5533
  %v5582 = vpack.c.bf16 %v5534, %v5534
  %v5583 = vpack.c.bf16 %v5535, %v5535
  %s5584 = scalar_lea.vmem %s5, 3072
  %v5585 = vld [vmem:[%s5584] sm:$0xf]
  %v5586 = vld [vmem:[%s5584 + $0x4] sm:$0xf]
  %v5587 = vld [vmem:[%s5584 + $0x8] sm:$0xf]
  %v5588 = vld [vmem:[%s5584 + $0xc] sm:$0xf]
  %v5589 = vld [vmem:[%s5584 + $0x10] sm:$0xf]
  %v5590 = vld [vmem:[%s5584 + $0x14] sm:$0xf]
  %v5591 = vld [vmem:[%s5584 + $0x18] sm:$0xf]
  %v5592 = vld [vmem:[%s5584 + $0x1c] sm:$0xf]
  %v5593 = vld [vmem:[%s5584 + $0x20] sm:$0xf]
  %v5594 = vld [vmem:[%s5584 + $0x24] sm:$0xf]
  %v5595 = vld [vmem:[%s5584 + $0x28] sm:$0xf]
  %v5596 = vld [vmem:[%s5584 + $0x2c] sm:$0xf]
  %v5597 = vld [vmem:[%s5584 + $0x30] sm:$0xf]
  %v5598 = vld [vmem:[%s5584 + $0x34] sm:$0xf]
  %v5599 = vld [vmem:[%s5584 + $0x38] sm:$0xf]
  %v5600 = vld [vmem:[%s5584 + $0x3c] sm:$0xf]
  %v5601 = vld [vmem:[%s5584 + $0x40] sm:$0xf]
  %v5602 = vld [vmem:[%s5584 + $0x44] sm:$0xf]
  %v5603 = vld [vmem:[%s5584 + $0x48] sm:$0xf]
  %v5604 = vld [vmem:[%s5584 + $0x4c] sm:$0xf]
  %v5605 = vld [vmem:[%s5584 + $0x50] sm:$0xf]
  %v5606 = vld [vmem:[%s5584 + $0x54] sm:$0xf]
  %v5607 = vld [vmem:[%s5584 + $0x58] sm:$0xf]
  %v5608 = vld [vmem:[%s5584 + $0x5c] sm:$0xf]
  %v5609 = vld [vmem:[%s5584 + $0x60] sm:$0xf]
  %v5610 = vld [vmem:[%s5584 + $0x64] sm:$0xf]
  %v5611 = vld [vmem:[%s5584 + $0x68] sm:$0xf]
  %v5612 = vld [vmem:[%s5584 + $0x6c] sm:$0xf]
  %v5613 = vld [vmem:[%s5584 + $0x70] sm:$0xf]
  %v5614 = vld [vmem:[%s5584 + $0x74] sm:$0xf]
  %v5615 = vld [vmem:[%s5584 + $0x78] sm:$0xf]
  %v5616 = vld [vmem:[%s5584 + $0x7c] sm:$0xf]
  %v5617 = vld [vmem:[%s5584 + $0x80] sm:$0xf]
  %v5618 = vld [vmem:[%s5584 + $0x84] sm:$0xf]
  %v5619 = vld [vmem:[%s5584 + $0x88] sm:$0xf]
  %v5620 = vld [vmem:[%s5584 + $0x8c] sm:$0xf]
  %v5621 = vld [vmem:[%s5584 + $0x90] sm:$0xf]
  %v5622 = vld [vmem:[%s5584 + $0x94] sm:$0xf]
  %v5623 = vld [vmem:[%s5584 + $0x98] sm:$0xf]
  %v5624 = vld [vmem:[%s5584 + $0x9c] sm:$0xf]
  %v5625 = vld [vmem:[%s5584 + $0xa0] sm:$0xf]
  %v5626 = vld [vmem:[%s5584 + $0xa4] sm:$0xf]
  %v5627 = vld [vmem:[%s5584 + $0xa8] sm:$0xf]
  %v5628 = vld [vmem:[%s5584 + $0xac] sm:$0xf]
  %v5629 = vld [vmem:[%s5584 + $0xb0] sm:$0xf]
  %v5630 = vld [vmem:[%s5584 + $0xb4] sm:$0xf]
  %v5631 = vld [vmem:[%s5584 + $0xb8] sm:$0xf]
  %v5632 = vld [vmem:[%s5584 + $0xbc] sm:$0xf]
  %v5633 = vld [vmem:[%s5584 + $0xc0] sm:$0xf]
  %v5634 = vld [vmem:[%s5584 + $0xc4] sm:$0xf]
  %v5635 = vld [vmem:[%s5584 + $0xc8] sm:$0xf]
  %v5636 = vld [vmem:[%s5584 + $0xcc] sm:$0xf]
  %v5637 = vld [vmem:[%s5584 + $0xd0] sm:$0xf]
  %v5638 = vld [vmem:[%s5584 + $0xd4] sm:$0xf]
  %v5639 = vld [vmem:[%s5584 + $0xd8] sm:$0xf]
  %v5640 = vld [vmem:[%s5584 + $0xdc] sm:$0xf]
  %v5641 = vld [vmem:[%s5584 + $0xe0] sm:$0xf]
  %v5642 = vld [vmem:[%s5584 + $0xe4] sm:$0xf]
  %v5643 = vld [vmem:[%s5584 + $0xe8] sm:$0xf]
  %v5644 = vld [vmem:[%s5584 + $0xec] sm:$0xf]
  %v5645 = vld [vmem:[%s5584 + $0xf0] sm:$0xf]
  %v5646 = vld [vmem:[%s5584 + $0xf4] sm:$0xf]
  %v5647 = vld [vmem:[%s5584 + $0xf8] sm:$0xf]
  %v5648 = vld [vmem:[%s5584 + $0xfc] sm:$0xf]
  %v5649 = vld [vmem:[%s5584 + $0x100] sm:$0xf]
  %v5650 = vld [vmem:[%s5584 + $0x104] sm:$0xf]
  %v5651 = vld [vmem:[%s5584 + $0x108] sm:$0xf]
  %v5652 = vld [vmem:[%s5584 + $0x10c] sm:$0xf]
  %v5653 = vld [vmem:[%s5584 + $0x110] sm:$0xf]
  %v5654 = vld [vmem:[%s5584 + $0x114] sm:$0xf]
  %v5655 = vld [vmem:[%s5584 + $0x118] sm:$0xf]
  %v5656 = vld [vmem:[%s5584 + $0x11c] sm:$0xf]
  %v5657 = vld [vmem:[%s5584 + $0x120] sm:$0xf]
  %v5658 = vld [vmem:[%s5584 + $0x124] sm:$0xf]
  %v5659 = vld [vmem:[%s5584 + $0x128] sm:$0xf]
  %v5660 = vld [vmem:[%s5584 + $0x12c] sm:$0xf]
  %v5661 = vld [vmem:[%s5584 + $0x130] sm:$0xf]
  %v5662 = vld [vmem:[%s5584 + $0x134] sm:$0xf]
  %v5663 = vld [vmem:[%s5584 + $0x138] sm:$0xf]
  %v5664 = vld [vmem:[%s5584 + $0x13c] sm:$0xf]
  %v5665 = vld [vmem:[%s5584 + $0x140] sm:$0xf]
  %v5666 = vld [vmem:[%s5584 + $0x144] sm:$0xf]
  %v5667 = vld [vmem:[%s5584 + $0x148] sm:$0xf]
  %v5668 = vld [vmem:[%s5584 + $0x14c] sm:$0xf]
  %v5669 = vld [vmem:[%s5584 + $0x150] sm:$0xf]
  %v5670 = vld [vmem:[%s5584 + $0x154] sm:$0xf]
  %v5671 = vld [vmem:[%s5584 + $0x158] sm:$0xf]
  %v5672 = vld [vmem:[%s5584 + $0x15c] sm:$0xf]
  %v5673 = vld [vmem:[%s5584 + $0x160] sm:$0xf]
  %v5674 = vld [vmem:[%s5584 + $0x164] sm:$0xf]
  %v5675 = vld [vmem:[%s5584 + $0x168] sm:$0xf]
  %v5676 = vld [vmem:[%s5584 + $0x16c] sm:$0xf]
  %v5677 = vld [vmem:[%s5584 + $0x170] sm:$0xf]
  %v5678 = vld [vmem:[%s5584 + $0x174] sm:$0xf]
  %v5679 = vld [vmem:[%s5584 + $0x178] sm:$0xf]
  %v5680 = vld [vmem:[%s5584 + $0x17c] sm:$0xf]
  %v5681 = vld [vmem:[%s5584 + $0x180] sm:$0xf]
  %v5682 = vld [vmem:[%s5584 + $0x184] sm:$0xf]
  %v5683 = vld [vmem:[%s5584 + $0x188] sm:$0xf]
  %v5684 = vld [vmem:[%s5584 + $0x18c] sm:$0xf]
  %v5685 = vld [vmem:[%s5584 + $0x190] sm:$0xf]
  %v5686 = vld [vmem:[%s5584 + $0x194] sm:$0xf]
  %v5687 = vld [vmem:[%s5584 + $0x198] sm:$0xf]
  %v5688 = vld [vmem:[%s5584 + $0x19c] sm:$0xf]
  %v5689 = vld [vmem:[%s5584 + $0x1a0] sm:$0xf]
  %v5690 = vld [vmem:[%s5584 + $0x1a4] sm:$0xf]
  %v5691 = vld [vmem:[%s5584 + $0x1a8] sm:$0xf]
  %v5692 = vld [vmem:[%s5584 + $0x1ac] sm:$0xf]
  %v5693 = vld [vmem:[%s5584 + $0x1b0] sm:$0xf]
  %v5694 = vld [vmem:[%s5584 + $0x1b4] sm:$0xf]
  %v5695 = vld [vmem:[%s5584 + $0x1b8] sm:$0xf]
  %v5696 = vld [vmem:[%s5584 + $0x1bc] sm:$0xf]
  %v5697 = vld [vmem:[%s5584 + $0x1c0] sm:$0xf]
  %v5698 = vld [vmem:[%s5584 + $0x1c4] sm:$0xf]
  %v5699 = vld [vmem:[%s5584 + $0x1c8] sm:$0xf]
  %v5700 = vld [vmem:[%s5584 + $0x1cc] sm:$0xf]
  %v5701 = vld [vmem:[%s5584 + $0x1d0] sm:$0xf]
  %v5702 = vld [vmem:[%s5584 + $0x1d4] sm:$0xf]
  %v5703 = vld [vmem:[%s5584 + $0x1d8] sm:$0xf]
  %v5704 = vld [vmem:[%s5584 + $0x1dc] sm:$0xf]
  %v5705 = vld [vmem:[%s5584 + $0x1e0] sm:$0xf]
  %v5706 = vld [vmem:[%s5584 + $0x1e4] sm:$0xf]
  %v5707 = vld [vmem:[%s5584 + $0x1e8] sm:$0xf]
  %v5708 = vld [vmem:[%s5584 + $0x1ec] sm:$0xf]
  %v5709 = vld [vmem:[%s5584 + $0x1f0] sm:$0xf]
  %v5710 = vld [vmem:[%s5584 + $0x1f4] sm:$0xf]
  %v5711 = vld [vmem:[%s5584 + $0x1f8] sm:$0xf]
  %v5712 = vld [vmem:[%s5584 + $0x1fc] sm:$0xf]
  %v5713 = vld [vmem:[%s5584 + $0x200] sm:$0xf]
  %v5714 = vld [vmem:[%s5584 + $0x204] sm:$0xf]
  %v5715 = vld [vmem:[%s5584 + $0x208] sm:$0xf]
  %v5716 = vld [vmem:[%s5584 + $0x20c] sm:$0xf]
  %v5717 = vld [vmem:[%s5584 + $0x210] sm:$0xf]
  %v5718 = vld [vmem:[%s5584 + $0x214] sm:$0xf]
  %v5719 = vld [vmem:[%s5584 + $0x218] sm:$0xf]
  %v5720 = vld [vmem:[%s5584 + $0x21c] sm:$0xf]
  %v5721 = vld [vmem:[%s5584 + $0x220] sm:$0xf]
  %v5722 = vld [vmem:[%s5584 + $0x224] sm:$0xf]
  %v5723 = vld [vmem:[%s5584 + $0x228] sm:$0xf]
  %v5724 = vld [vmem:[%s5584 + $0x22c] sm:$0xf]
  %v5725 = vld [vmem:[%s5584 + $0x230] sm:$0xf]
  %v5726 = vld [vmem:[%s5584 + $0x234] sm:$0xf]
  %v5727 = vld [vmem:[%s5584 + $0x238] sm:$0xf]
  %v5728 = vld [vmem:[%s5584 + $0x23c] sm:$0xf]
  %v5729 = vld [vmem:[%s5584 + $0x240] sm:$0xf]
  %v5730 = vld [vmem:[%s5584 + $0x244] sm:$0xf]
  %v5731 = vld [vmem:[%s5584 + $0x248] sm:$0xf]
  %v5732 = vld [vmem:[%s5584 + $0x24c] sm:$0xf]
  %v5733 = vld [vmem:[%s5584 + $0x250] sm:$0xf]
  %v5734 = vld [vmem:[%s5584 + $0x254] sm:$0xf]
  %v5735 = vld [vmem:[%s5584 + $0x258] sm:$0xf]
  %v5736 = vld [vmem:[%s5584 + $0x25c] sm:$0xf]
  %v5737 = vld [vmem:[%s5584 + $0x260] sm:$0xf]
  %v5738 = vld [vmem:[%s5584 + $0x264] sm:$0xf]
  %v5739 = vld [vmem:[%s5584 + $0x268] sm:$0xf]
  %v5740 = vld [vmem:[%s5584 + $0x26c] sm:$0xf]
  %v5741 = vld [vmem:[%s5584 + $0x270] sm:$0xf]
  %v5742 = vld [vmem:[%s5584 + $0x274] sm:$0xf]
  %v5743 = vld [vmem:[%s5584 + $0x278] sm:$0xf]
  %v5744 = vld [vmem:[%s5584 + $0x27c] sm:$0xf]
  %v5745 = vld [vmem:[%s5584 + $0x280] sm:$0xf]
  %v5746 = vld [vmem:[%s5584 + $0x284] sm:$0xf]
  %v5747 = vld [vmem:[%s5584 + $0x288] sm:$0xf]
  %v5748 = vld [vmem:[%s5584 + $0x28c] sm:$0xf]
  %v5749 = vld [vmem:[%s5584 + $0x290] sm:$0xf]
  %v5750 = vld [vmem:[%s5584 + $0x294] sm:$0xf]
  %v5751 = vld [vmem:[%s5584 + $0x298] sm:$0xf]
  %v5752 = vld [vmem:[%s5584 + $0x29c] sm:$0xf]
  %v5753 = vld [vmem:[%s5584 + $0x2a0] sm:$0xf]
  %v5754 = vld [vmem:[%s5584 + $0x2a4] sm:$0xf]
  %v5755 = vld [vmem:[%s5584 + $0x2a8] sm:$0xf]
  %v5756 = vld [vmem:[%s5584 + $0x2ac] sm:$0xf]
  %v5757 = vld [vmem:[%s5584 + $0x2b0] sm:$0xf]
  %v5758 = vld [vmem:[%s5584 + $0x2b4] sm:$0xf]
  %v5759 = vld [vmem:[%s5584 + $0x2b8] sm:$0xf]
  %v5760 = vld [vmem:[%s5584 + $0x2bc] sm:$0xf]
  %v5761 = vld [vmem:[%s5584 + $0x2c0] sm:$0xf]
  %v5762 = vld [vmem:[%s5584 + $0x2c4] sm:$0xf]
  %v5763 = vld [vmem:[%s5584 + $0x2c8] sm:$0xf]
  %v5764 = vld [vmem:[%s5584 + $0x2cc] sm:$0xf]
  %v5765 = vld [vmem:[%s5584 + $0x2d0] sm:$0xf]
  %v5766 = vld [vmem:[%s5584 + $0x2d4] sm:$0xf]
  %v5767 = vld [vmem:[%s5584 + $0x2d8] sm:$0xf]
  %v5768 = vld [vmem:[%s5584 + $0x2dc] sm:$0xf]
  %v5769 = vld [vmem:[%s5584 + $0x2e0] sm:$0xf]
  %v5770 = vld [vmem:[%s5584 + $0x2e4] sm:$0xf]
  %v5771 = vld [vmem:[%s5584 + $0x2e8] sm:$0xf]
  %v5772 = vld [vmem:[%s5584 + $0x2ec] sm:$0xf]
  %v5773 = vld [vmem:[%s5584 + $0x2f0] sm:$0xf]
  %v5774 = vld [vmem:[%s5584 + $0x2f4] sm:$0xf]
  %v5775 = vld [vmem:[%s5584 + $0x2f8] sm:$0xf]
  %v5776 = vld [vmem:[%s5584 + $0x2fc] sm:$0xf]
  %v5777 = vld [vmem:[%s5584 + $0x300] sm:$0xf]
  %v5778 = vld [vmem:[%s5584 + $0x304] sm:$0xf]
  %v5779 = vld [vmem:[%s5584 + $0x308] sm:$0xf]
  %v5780 = vld [vmem:[%s5584 + $0x30c] sm:$0xf]
  %v5781 = vld [vmem:[%s5584 + $0x310] sm:$0xf]
  %v5782 = vld [vmem:[%s5584 + $0x314] sm:$0xf]
  %v5783 = vld [vmem:[%s5584 + $0x318] sm:$0xf]
  %v5784 = vld [vmem:[%s5584 + $0x31c] sm:$0xf]
  %v5785 = vld [vmem:[%s5584 + $0x320] sm:$0xf]
  %v5786 = vld [vmem:[%s5584 + $0x324] sm:$0xf]
  %v5787 = vld [vmem:[%s5584 + $0x328] sm:$0xf]
  %v5788 = vld [vmem:[%s5584 + $0x32c] sm:$0xf]
  %v5789 = vld [vmem:[%s5584 + $0x330] sm:$0xf]
  %v5790 = vld [vmem:[%s5584 + $0x334] sm:$0xf]
  %v5791 = vld [vmem:[%s5584 + $0x338] sm:$0xf]
  %v5792 = vld [vmem:[%s5584 + $0x33c] sm:$0xf]
  %v5793 = vld [vmem:[%s5584 + $0x340] sm:$0xf]
  %v5794 = vld [vmem:[%s5584 + $0x344] sm:$0xf]
  %v5795 = vld [vmem:[%s5584 + $0x348] sm:$0xf]
  %v5796 = vld [vmem:[%s5584 + $0x34c] sm:$0xf]
  %v5797 = vld [vmem:[%s5584 + $0x350] sm:$0xf]
  %v5798 = vld [vmem:[%s5584 + $0x354] sm:$0xf]
  %v5799 = vld [vmem:[%s5584 + $0x358] sm:$0xf]
  %v5800 = vld [vmem:[%s5584 + $0x35c] sm:$0xf]
  %v5801 = vld [vmem:[%s5584 + $0x360] sm:$0xf]
  %v5802 = vld [vmem:[%s5584 + $0x364] sm:$0xf]
  %v5803 = vld [vmem:[%s5584 + $0x368] sm:$0xf]
  %v5804 = vld [vmem:[%s5584 + $0x36c] sm:$0xf]
  %v5805 = vld [vmem:[%s5584 + $0x370] sm:$0xf]
  %v5806 = vld [vmem:[%s5584 + $0x374] sm:$0xf]
  %v5807 = vld [vmem:[%s5584 + $0x378] sm:$0xf]
  %v5808 = vld [vmem:[%s5584 + $0x37c] sm:$0xf]
  %v5809 = vld [vmem:[%s5584 + $0x380] sm:$0xf]
  %v5810 = vld [vmem:[%s5584 + $0x384] sm:$0xf]
  %v5811 = vld [vmem:[%s5584 + $0x388] sm:$0xf]
  %v5812 = vld [vmem:[%s5584 + $0x38c] sm:$0xf]
  %v5813 = vld [vmem:[%s5584 + $0x390] sm:$0xf]
  %v5814 = vld [vmem:[%s5584 + $0x394] sm:$0xf]
  %v5815 = vld [vmem:[%s5584 + $0x398] sm:$0xf]
  %v5816 = vld [vmem:[%s5584 + $0x39c] sm:$0xf]
  %v5817 = vld [vmem:[%s5584 + $0x3a0] sm:$0xf]
  %v5818 = vld [vmem:[%s5584 + $0x3a4] sm:$0xf]
  %v5819 = vld [vmem:[%s5584 + $0x3a8] sm:$0xf]
  %v5820 = vld [vmem:[%s5584 + $0x3ac] sm:$0xf]
  %v5821 = vld [vmem:[%s5584 + $0x3b0] sm:$0xf]
  %v5822 = vld [vmem:[%s5584 + $0x3b4] sm:$0xf]
  %v5823 = vld [vmem:[%s5584 + $0x3b8] sm:$0xf]
  %v5824 = vld [vmem:[%s5584 + $0x3bc] sm:$0xf]
  %v5825 = vld [vmem:[%s5584 + $0x3c0] sm:$0xf]
  %v5826 = vld [vmem:[%s5584 + $0x3c4] sm:$0xf]
  %v5827 = vld [vmem:[%s5584 + $0x3c8] sm:$0xf]
  %v5828 = vld [vmem:[%s5584 + $0x3cc] sm:$0xf]
  %v5829 = vld [vmem:[%s5584 + $0x3d0] sm:$0xf]
  %v5830 = vld [vmem:[%s5584 + $0x3d4] sm:$0xf]
  %v5831 = vld [vmem:[%s5584 + $0x3d8] sm:$0xf]
  %v5832 = vld [vmem:[%s5584 + $0x3dc] sm:$0xf]
  %v5833 = vld [vmem:[%s5584 + $0x3e0] sm:$0xf]
  %v5834 = vld [vmem:[%s5584 + $0x3e4] sm:$0xf]
  %v5835 = vld [vmem:[%s5584 + $0x3e8] sm:$0xf]
  %v5836 = vld [vmem:[%s5584 + $0x3ec] sm:$0xf]
  %v5837 = vld [vmem:[%s5584 + $0x3f0] sm:$0xf]
  %v5838 = vld [vmem:[%s5584 + $0x3f4] sm:$0xf]
  %v5839 = vld [vmem:[%s5584 + $0x3f8] sm:$0xf]
  %v5840 = vld [vmem:[%s5584 + $0x3fc] sm:$0xf]
  %v5841 = vld [vmem:[%s5584 + $0x400] sm:$0xf]
  %v5842 = vld [vmem:[%s5584 + $0x404] sm:$0xf]
  %v5843 = vld [vmem:[%s5584 + $0x408] sm:$0xf]
  %v5844 = vld [vmem:[%s5584 + $0x40c] sm:$0xf]
  %v5845 = vld [vmem:[%s5584 + $0x410] sm:$0xf]
  %v5846 = vld [vmem:[%s5584 + $0x414] sm:$0xf]
  %v5847 = vld [vmem:[%s5584 + $0x418] sm:$0xf]
  %v5848 = vld [vmem:[%s5584 + $0x41c] sm:$0xf]
  %v5849 = vld [vmem:[%s5584 + $0x420] sm:$0xf]
  %v5850 = vld [vmem:[%s5584 + $0x424] sm:$0xf]
  %v5851 = vld [vmem:[%s5584 + $0x428] sm:$0xf]
  %v5852 = vld [vmem:[%s5584 + $0x42c] sm:$0xf]
  %v5853 = vld [vmem:[%s5584 + $0x430] sm:$0xf]
  %v5854 = vld [vmem:[%s5584 + $0x434] sm:$0xf]
  %v5855 = vld [vmem:[%s5584 + $0x438] sm:$0xf]
  %v5856 = vld [vmem:[%s5584 + $0x43c] sm:$0xf]
  %v5857 = vld [vmem:[%s5584 + $0x440] sm:$0xf]
  %v5858 = vld [vmem:[%s5584 + $0x444] sm:$0xf]
  %v5859 = vld [vmem:[%s5584 + $0x448] sm:$0xf]
  %v5860 = vld [vmem:[%s5584 + $0x44c] sm:$0xf]
  %v5861 = vld [vmem:[%s5584 + $0x450] sm:$0xf]
  %v5862 = vld [vmem:[%s5584 + $0x454] sm:$0xf]
  %v5863 = vld [vmem:[%s5584 + $0x458] sm:$0xf]
  %v5864 = vld [vmem:[%s5584 + $0x45c] sm:$0xf]
  %v5865 = vld [vmem:[%s5584 + $0x460] sm:$0xf]
  %v5866 = vld [vmem:[%s5584 + $0x464] sm:$0xf]
  %v5867 = vld [vmem:[%s5584 + $0x468] sm:$0xf]
  %v5868 = vld [vmem:[%s5584 + $0x46c] sm:$0xf]
  %v5869 = vld [vmem:[%s5584 + $0x470] sm:$0xf]
  %v5870 = vld [vmem:[%s5584 + $0x474] sm:$0xf]
  %v5871 = vld [vmem:[%s5584 + $0x478] sm:$0xf]
  %v5872 = vld [vmem:[%s5584 + $0x47c] sm:$0xf]
  %v5873 = vld [vmem:[%s5584 + $0x480] sm:$0xf]
  %v5874 = vld [vmem:[%s5584 + $0x484] sm:$0xf]
  %v5875 = vld [vmem:[%s5584 + $0x488] sm:$0xf]
  %v5876 = vld [vmem:[%s5584 + $0x48c] sm:$0xf]
  %v5877 = vld [vmem:[%s5584 + $0x490] sm:$0xf]
  %v5878 = vld [vmem:[%s5584 + $0x494] sm:$0xf]
  %v5879 = vld [vmem:[%s5584 + $0x498] sm:$0xf]
  %v5880 = vld [vmem:[%s5584 + $0x49c] sm:$0xf]
  %v5881 = vld [vmem:[%s5584 + $0x4a0] sm:$0xf]
  %v5882 = vld [vmem:[%s5584 + $0x4a4] sm:$0xf]
  %v5883 = vld [vmem:[%s5584 + $0x4a8] sm:$0xf]
  %v5884 = vld [vmem:[%s5584 + $0x4ac] sm:$0xf]
  %v5885 = vld [vmem:[%s5584 + $0x4b0] sm:$0xf]
  %v5886 = vld [vmem:[%s5584 + $0x4b4] sm:$0xf]
  %v5887 = vld [vmem:[%s5584 + $0x4b8] sm:$0xf]
  %v5888 = vld [vmem:[%s5584 + $0x4bc] sm:$0xf]
  %v5889 = vld [vmem:[%s5584 + $0x4c0] sm:$0xf]
  %v5890 = vld [vmem:[%s5584 + $0x4c4] sm:$0xf]
  %v5891 = vld [vmem:[%s5584 + $0x4c8] sm:$0xf]
  %v5892 = vld [vmem:[%s5584 + $0x4cc] sm:$0xf]
  %v5893 = vld [vmem:[%s5584 + $0x4d0] sm:$0xf]
  %v5894 = vld [vmem:[%s5584 + $0x4d4] sm:$0xf]
  %v5895 = vld [vmem:[%s5584 + $0x4d8] sm:$0xf]
  %v5896 = vld [vmem:[%s5584 + $0x4dc] sm:$0xf]
  %v5897 = vld [vmem:[%s5584 + $0x4e0] sm:$0xf]
  %v5898 = vld [vmem:[%s5584 + $0x4e4] sm:$0xf]
  %v5899 = vld [vmem:[%s5584 + $0x4e8] sm:$0xf]
  %v5900 = vld [vmem:[%s5584 + $0x4ec] sm:$0xf]
  %v5901 = vld [vmem:[%s5584 + $0x4f0] sm:$0xf]
  %v5902 = vld [vmem:[%s5584 + $0x4f4] sm:$0xf]
  %v5903 = vld [vmem:[%s5584 + $0x4f8] sm:$0xf]
  %v5904 = vld [vmem:[%s5584 + $0x4fc] sm:$0xf]
  %v5905 = vld [vmem:[%s5584 + $0x500] sm:$0xf]
  %v5906 = vld [vmem:[%s5584 + $0x504] sm:$0xf]
  %v5907 = vld [vmem:[%s5584 + $0x508] sm:$0xf]
  %v5908 = vld [vmem:[%s5584 + $0x50c] sm:$0xf]
  %v5909 = vld [vmem:[%s5584 + $0x510] sm:$0xf]
  %v5910 = vld [vmem:[%s5584 + $0x514] sm:$0xf]
  %v5911 = vld [vmem:[%s5584 + $0x518] sm:$0xf]
  %v5912 = vld [vmem:[%s5584 + $0x51c] sm:$0xf]
  %v5913 = vld [vmem:[%s5584 + $0x520] sm:$0xf]
  %v5914 = vld [vmem:[%s5584 + $0x524] sm:$0xf]
  %v5915 = vld [vmem:[%s5584 + $0x528] sm:$0xf]
  %v5916 = vld [vmem:[%s5584 + $0x52c] sm:$0xf]
  %v5917 = vld [vmem:[%s5584 + $0x530] sm:$0xf]
  %v5918 = vld [vmem:[%s5584 + $0x534] sm:$0xf]
  %v5919 = vld [vmem:[%s5584 + $0x538] sm:$0xf]
  %v5920 = vld [vmem:[%s5584 + $0x53c] sm:$0xf]
  %v5921 = vld [vmem:[%s5584 + $0x540] sm:$0xf]
  %v5922 = vld [vmem:[%s5584 + $0x544] sm:$0xf]
  %v5923 = vld [vmem:[%s5584 + $0x548] sm:$0xf]
  %v5924 = vld [vmem:[%s5584 + $0x54c] sm:$0xf]
  %v5925 = vld [vmem:[%s5584 + $0x550] sm:$0xf]
  %v5926 = vld [vmem:[%s5584 + $0x554] sm:$0xf]
  %v5927 = vld [vmem:[%s5584 + $0x558] sm:$0xf]
  %v5928 = vld [vmem:[%s5584 + $0x55c] sm:$0xf]
  %v5929 = vld [vmem:[%s5584 + $0x560] sm:$0xf]
  %v5930 = vld [vmem:[%s5584 + $0x564] sm:$0xf]
  %v5931 = vld [vmem:[%s5584 + $0x568] sm:$0xf]
  %v5932 = vld [vmem:[%s5584 + $0x56c] sm:$0xf]
  %v5933 = vld [vmem:[%s5584 + $0x570] sm:$0xf]
  %v5934 = vld [vmem:[%s5584 + $0x574] sm:$0xf]
  %v5935 = vld [vmem:[%s5584 + $0x578] sm:$0xf]
  %v5936 = vld [vmem:[%s5584 + $0x57c] sm:$0xf]
  %v5937 = vld [vmem:[%s5584 + $0x580] sm:$0xf]
  %v5938 = vld [vmem:[%s5584 + $0x584] sm:$0xf]
  %v5939 = vld [vmem:[%s5584 + $0x588] sm:$0xf]
  %v5940 = vld [vmem:[%s5584 + $0x58c] sm:$0xf]
  %v5941 = vld [vmem:[%s5584 + $0x590] sm:$0xf]
  %v5942 = vld [vmem:[%s5584 + $0x594] sm:$0xf]
  %v5943 = vld [vmem:[%s5584 + $0x598] sm:$0xf]
  %v5944 = vld [vmem:[%s5584 + $0x59c] sm:$0xf]
  %v5945 = vld [vmem:[%s5584 + $0x5a0] sm:$0xf]
  %v5946 = vld [vmem:[%s5584 + $0x5a4] sm:$0xf]
  %v5947 = vld [vmem:[%s5584 + $0x5a8] sm:$0xf]
  %v5948 = vld [vmem:[%s5584 + $0x5ac] sm:$0xf]
  %v5949 = vld [vmem:[%s5584 + $0x5b0] sm:$0xf]
  %v5950 = vld [vmem:[%s5584 + $0x5b4] sm:$0xf]
  %v5951 = vld [vmem:[%s5584 + $0x5b8] sm:$0xf]
  %v5952 = vld [vmem:[%s5584 + $0x5bc] sm:$0xf]
  %v5953 = vld [vmem:[%s5584 + $0x5c0] sm:$0xf]
  %v5954 = vld [vmem:[%s5584 + $0x5c4] sm:$0xf]
  %v5955 = vld [vmem:[%s5584 + $0x5c8] sm:$0xf]
  %v5956 = vld [vmem:[%s5584 + $0x5cc] sm:$0xf]
  %v5957 = vld [vmem:[%s5584 + $0x5d0] sm:$0xf]
  %v5958 = vld [vmem:[%s5584 + $0x5d4] sm:$0xf]
  %v5959 = vld [vmem:[%s5584 + $0x5d8] sm:$0xf]
  %v5960 = vld [vmem:[%s5584 + $0x5dc] sm:$0xf]
  %v5961 = vld [vmem:[%s5584 + $0x5e0] sm:$0xf]
  %v5962 = vld [vmem:[%s5584 + $0x5e4] sm:$0xf]
  %v5963 = vld [vmem:[%s5584 + $0x5e8] sm:$0xf]
  %v5964 = vld [vmem:[%s5584 + $0x5ec] sm:$0xf]
  %v5965 = vld [vmem:[%s5584 + $0x5f0] sm:$0xf]
  %v5966 = vld [vmem:[%s5584 + $0x5f4] sm:$0xf]
  %v5967 = vld [vmem:[%s5584 + $0x5f8] sm:$0xf]
  %v5968 = vld [vmem:[%s5584 + $0x5fc] sm:$0xf]
  %s5969 = scalar_lea.vmem %s6, 2
  %v5970 = vld [vmem:[%s5969] sm:$0x1]
  %v5972 = vperm.slane %v5970, 0
  %v6358 = vunpack.c.l.b16 %v5585
  %v6359 = vunpack.c.l.b16 %v5586
  %v6360 = vunpack.c.l.b16 %v5587
  %v6361 = vunpack.c.l.b16 %v5588
  %v6362 = vunpack.c.l.b16 %v5589
  %v6363 = vunpack.c.l.b16 %v5590
  %v6364 = vunpack.c.l.b16 %v5591
  %v6365 = vunpack.c.l.b16 %v5592
  %v6366 = vunpack.c.l.b16 %v5593
  %v6367 = vunpack.c.l.b16 %v5594
  %v6368 = vunpack.c.l.b16 %v5595
  %v6369 = vunpack.c.l.b16 %v5596
  %v6370 = vunpack.c.l.b16 %v5597
  %v6371 = vunpack.c.l.b16 %v5598
  %v6372 = vunpack.c.l.b16 %v5599
  %v6373 = vunpack.c.l.b16 %v5600
  %v6374 = vunpack.c.l.b16 %v5601
  %v6375 = vunpack.c.l.b16 %v5602
  %v6376 = vunpack.c.l.b16 %v5603
  %v6377 = vunpack.c.l.b16 %v5604
  %v6378 = vunpack.c.l.b16 %v5605
  %v6379 = vunpack.c.l.b16 %v5606
  %v6380 = vunpack.c.l.b16 %v5607
  %v6381 = vunpack.c.l.b16 %v5608
  %v6382 = vunpack.c.l.b16 %v5609
  %v6383 = vunpack.c.l.b16 %v5610
  %v6384 = vunpack.c.l.b16 %v5611
  %v6385 = vunpack.c.l.b16 %v5612
  %v6386 = vunpack.c.l.b16 %v5613
  %v6387 = vunpack.c.l.b16 %v5614
  %v6388 = vunpack.c.l.b16 %v5615
  %v6389 = vunpack.c.l.b16 %v5616
  %v6390 = vunpack.c.l.b16 %v5617
  %v6391 = vunpack.c.l.b16 %v5618
  %v6392 = vunpack.c.l.b16 %v5619
  %v6393 = vunpack.c.l.b16 %v5620
  %v6394 = vunpack.c.l.b16 %v5621
  %v6395 = vunpack.c.l.b16 %v5622
  %v6396 = vunpack.c.l.b16 %v5623
  %v6397 = vunpack.c.l.b16 %v5624
  %v6398 = vunpack.c.l.b16 %v5625
  %v6399 = vunpack.c.l.b16 %v5626
  %v6400 = vunpack.c.l.b16 %v5627
  %v6401 = vunpack.c.l.b16 %v5628
  %v6402 = vunpack.c.l.b16 %v5629
  %v6403 = vunpack.c.l.b16 %v5630
  %v6404 = vunpack.c.l.b16 %v5631
  %v6405 = vunpack.c.l.b16 %v5632
  %v6406 = vunpack.c.l.b16 %v5633
  %v6407 = vunpack.c.l.b16 %v5634
  %v6408 = vunpack.c.l.b16 %v5635
  %v6409 = vunpack.c.l.b16 %v5636
  %v6410 = vunpack.c.l.b16 %v5637
  %v6411 = vunpack.c.l.b16 %v5638
  %v6412 = vunpack.c.l.b16 %v5639
  %v6413 = vunpack.c.l.b16 %v5640
  %v6414 = vunpack.c.l.b16 %v5641
  %v6415 = vunpack.c.l.b16 %v5642
  %v6416 = vunpack.c.l.b16 %v5643
  %v6417 = vunpack.c.l.b16 %v5644
  %v6418 = vunpack.c.l.b16 %v5645
  %v6419 = vunpack.c.l.b16 %v5646
  %v6420 = vunpack.c.l.b16 %v5647
  %v6421 = vunpack.c.l.b16 %v5648
  %v6422 = vunpack.c.l.b16 %v5649
  %v6423 = vunpack.c.l.b16 %v5650
  %v6424 = vunpack.c.l.b16 %v5651
  %v6425 = vunpack.c.l.b16 %v5652
  %v6426 = vunpack.c.l.b16 %v5653
  %v6427 = vunpack.c.l.b16 %v5654
  %v6428 = vunpack.c.l.b16 %v5655
  %v6429 = vunpack.c.l.b16 %v5656
  %v6430 = vunpack.c.l.b16 %v5657
  %v6431 = vunpack.c.l.b16 %v5658
  %v6432 = vunpack.c.l.b16 %v5659
  %v6433 = vunpack.c.l.b16 %v5660
  %v6434 = vunpack.c.l.b16 %v5661
  %v6435 = vunpack.c.l.b16 %v5662
  %v6436 = vunpack.c.l.b16 %v5663
  %v6437 = vunpack.c.l.b16 %v5664
  %v6438 = vunpack.c.l.b16 %v5665
  %v6439 = vunpack.c.l.b16 %v5666
  %v6440 = vunpack.c.l.b16 %v5667
  %v6441 = vunpack.c.l.b16 %v5668
  %v6442 = vunpack.c.l.b16 %v5669
  %v6443 = vunpack.c.l.b16 %v5670
  %v6444 = vunpack.c.l.b16 %v5671
  %v6445 = vunpack.c.l.b16 %v5672
  %v6446 = vunpack.c.l.b16 %v5673
  %v6447 = vunpack.c.l.b16 %v5674
  %v6448 = vunpack.c.l.b16 %v5675
  %v6449 = vunpack.c.l.b16 %v5676
  %v6450 = vunpack.c.l.b16 %v5677
  %v6451 = vunpack.c.l.b16 %v5678
  %v6452 = vunpack.c.l.b16 %v5679
  %v6453 = vunpack.c.l.b16 %v5680
  %v6454 = vunpack.c.l.b16 %v5681
  %v6455 = vunpack.c.l.b16 %v5682
  %v6456 = vunpack.c.l.b16 %v5683
  %v6457 = vunpack.c.l.b16 %v5684
  %v6458 = vunpack.c.l.b16 %v5685
  %v6459 = vunpack.c.l.b16 %v5686
  %v6460 = vunpack.c.l.b16 %v5687
  %v6461 = vunpack.c.l.b16 %v5688
  %v6462 = vunpack.c.l.b16 %v5689
  %v6463 = vunpack.c.l.b16 %v5690
  %v6464 = vunpack.c.l.b16 %v5691
  %v6465 = vunpack.c.l.b16 %v5692
  %v6466 = vunpack.c.l.b16 %v5693
  %v6467 = vunpack.c.l.b16 %v5694
  %v6468 = vunpack.c.l.b16 %v5695
  %v6469 = vunpack.c.l.b16 %v5696
  %v6470 = vunpack.c.l.b16 %v5697
  %v6471 = vunpack.c.l.b16 %v5698
  %v6472 = vunpack.c.l.b16 %v5699
  %v6473 = vunpack.c.l.b16 %v5700
  %v6474 = vunpack.c.l.b16 %v5701
  %v6475 = vunpack.c.l.b16 %v5702
  %v6476 = vunpack.c.l.b16 %v5703
  %v6477 = vunpack.c.l.b16 %v5704
  %v6478 = vunpack.c.l.b16 %v5705
  %v6479 = vunpack.c.l.b16 %v5706
  %v6480 = vunpack.c.l.b16 %v5707
  %v6481 = vunpack.c.l.b16 %v5708
  %v6482 = vunpack.c.l.b16 %v5709
  %v6483 = vunpack.c.l.b16 %v5710
  %v6484 = vunpack.c.l.b16 %v5711
  %v6485 = vunpack.c.l.b16 %v5712
  %v6486 = vunpack.c.l.b16 %v5713
  %v6487 = vunpack.c.l.b16 %v5714
  %v6488 = vunpack.c.l.b16 %v5715
  %v6489 = vunpack.c.l.b16 %v5716
  %v6490 = vunpack.c.l.b16 %v5717
  %v6491 = vunpack.c.l.b16 %v5718
  %v6492 = vunpack.c.l.b16 %v5719
  %v6493 = vunpack.c.l.b16 %v5720
  %v6494 = vunpack.c.l.b16 %v5721
  %v6495 = vunpack.c.l.b16 %v5722
  %v6496 = vunpack.c.l.b16 %v5723
  %v6497 = vunpack.c.l.b16 %v5724
  %v6498 = vunpack.c.l.b16 %v5725
  %v6499 = vunpack.c.l.b16 %v5726
  %v6500 = vunpack.c.l.b16 %v5727
  %v6501 = vunpack.c.l.b16 %v5728
  %v6502 = vunpack.c.l.b16 %v5729
  %v6503 = vunpack.c.l.b16 %v5730
  %v6504 = vunpack.c.l.b16 %v5731
  %v6505 = vunpack.c.l.b16 %v5732
  %v6506 = vunpack.c.l.b16 %v5733
  %v6507 = vunpack.c.l.b16 %v5734
  %v6508 = vunpack.c.l.b16 %v5735
  %v6509 = vunpack.c.l.b16 %v5736
  %v6510 = vunpack.c.l.b16 %v5737
  %v6511 = vunpack.c.l.b16 %v5738
  %v6512 = vunpack.c.l.b16 %v5739
  %v6513 = vunpack.c.l.b16 %v5740
  %v6514 = vunpack.c.l.b16 %v5741
  %v6515 = vunpack.c.l.b16 %v5742
  %v6516 = vunpack.c.l.b16 %v5743
  %v6517 = vunpack.c.l.b16 %v5744
  %v6518 = vunpack.c.l.b16 %v5745
  %v6519 = vunpack.c.l.b16 %v5746
  %v6520 = vunpack.c.l.b16 %v5747
  %v6521 = vunpack.c.l.b16 %v5748
  %v6522 = vunpack.c.l.b16 %v5749
  %v6523 = vunpack.c.l.b16 %v5750
  %v6524 = vunpack.c.l.b16 %v5751
  %v6525 = vunpack.c.l.b16 %v5752
  %v6526 = vunpack.c.l.b16 %v5753
  %v6527 = vunpack.c.l.b16 %v5754
  %v6528 = vunpack.c.l.b16 %v5755
  %v6529 = vunpack.c.l.b16 %v5756
  %v6530 = vunpack.c.l.b16 %v5757
  %v6531 = vunpack.c.l.b16 %v5758
  %v6532 = vunpack.c.l.b16 %v5759
  %v6533 = vunpack.c.l.b16 %v5760
  %v6534 = vunpack.c.l.b16 %v5761
  %v6535 = vunpack.c.l.b16 %v5762
  %v6536 = vunpack.c.l.b16 %v5763
  %v6537 = vunpack.c.l.b16 %v5764
  %v6538 = vunpack.c.l.b16 %v5765
  %v6539 = vunpack.c.l.b16 %v5766
  %v6540 = vunpack.c.l.b16 %v5767
  %v6541 = vunpack.c.l.b16 %v5768
  %v6542 = vunpack.c.l.b16 %v5769
  %v6543 = vunpack.c.l.b16 %v5770
  %v6544 = vunpack.c.l.b16 %v5771
  %v6545 = vunpack.c.l.b16 %v5772
  %v6546 = vunpack.c.l.b16 %v5773
  %v6547 = vunpack.c.l.b16 %v5774
  %v6548 = vunpack.c.l.b16 %v5775
  %v6549 = vunpack.c.l.b16 %v5776
  %v6550 = vunpack.c.l.b16 %v5777
  %v6551 = vunpack.c.l.b16 %v5778
  %v6552 = vunpack.c.l.b16 %v5779
  %v6553 = vunpack.c.l.b16 %v5780
  %v6554 = vunpack.c.l.b16 %v5781
  %v6555 = vunpack.c.l.b16 %v5782
  %v6556 = vunpack.c.l.b16 %v5783
  %v6557 = vunpack.c.l.b16 %v5784
  %v6558 = vunpack.c.l.b16 %v5785
  %v6559 = vunpack.c.l.b16 %v5786
  %v6560 = vunpack.c.l.b16 %v5787
  %v6561 = vunpack.c.l.b16 %v5788
  %v6562 = vunpack.c.l.b16 %v5789
  %v6563 = vunpack.c.l.b16 %v5790
  %v6564 = vunpack.c.l.b16 %v5791
  %v6565 = vunpack.c.l.b16 %v5792
  %v6566 = vunpack.c.l.b16 %v5793
  %v6567 = vunpack.c.l.b16 %v5794
  %v6568 = vunpack.c.l.b16 %v5795
  %v6569 = vunpack.c.l.b16 %v5796
  %v6570 = vunpack.c.l.b16 %v5797
  %v6571 = vunpack.c.l.b16 %v5798
  %v6572 = vunpack.c.l.b16 %v5799
  %v6573 = vunpack.c.l.b16 %v5800
  %v6574 = vunpack.c.l.b16 %v5801
  %v6575 = vunpack.c.l.b16 %v5802
  %v6576 = vunpack.c.l.b16 %v5803
  %v6577 = vunpack.c.l.b16 %v5804
  %v6578 = vunpack.c.l.b16 %v5805
  %v6579 = vunpack.c.l.b16 %v5806
  %v6580 = vunpack.c.l.b16 %v5807
  %v6581 = vunpack.c.l.b16 %v5808
  %v6582 = vunpack.c.l.b16 %v5809
  %v6583 = vunpack.c.l.b16 %v5810
  %v6584 = vunpack.c.l.b16 %v5811
  %v6585 = vunpack.c.l.b16 %v5812
  %v6586 = vunpack.c.l.b16 %v5813
  %v6587 = vunpack.c.l.b16 %v5814
  %v6588 = vunpack.c.l.b16 %v5815
  %v6589 = vunpack.c.l.b16 %v5816
  %v6590 = vunpack.c.l.b16 %v5817
  %v6591 = vunpack.c.l.b16 %v5818
  %v6592 = vunpack.c.l.b16 %v5819
  %v6593 = vunpack.c.l.b16 %v5820
  %v6594 = vunpack.c.l.b16 %v5821
  %v6595 = vunpack.c.l.b16 %v5822
  %v6596 = vunpack.c.l.b16 %v5823
  %v6597 = vunpack.c.l.b16 %v5824
  %v6598 = vunpack.c.l.b16 %v5825
  %v6599 = vunpack.c.l.b16 %v5826
  %v6600 = vunpack.c.l.b16 %v5827
  %v6601 = vunpack.c.l.b16 %v5828
  %v6602 = vunpack.c.l.b16 %v5829
  %v6603 = vunpack.c.l.b16 %v5830
  %v6604 = vunpack.c.l.b16 %v5831
  %v6605 = vunpack.c.l.b16 %v5832
  %v6606 = vunpack.c.l.b16 %v5833
  %v6607 = vunpack.c.l.b16 %v5834
  %v6608 = vunpack.c.l.b16 %v5835
  %v6609 = vunpack.c.l.b16 %v5836
  %v6610 = vunpack.c.l.b16 %v5837
  %v6611 = vunpack.c.l.b16 %v5838
  %v6612 = vunpack.c.l.b16 %v5839
  %v6613 = vunpack.c.l.b16 %v5840
  %v6614 = vunpack.c.l.b16 %v5841
  %v6615 = vunpack.c.l.b16 %v5842
  %v6616 = vunpack.c.l.b16 %v5843
  %v6617 = vunpack.c.l.b16 %v5844
  %v6618 = vunpack.c.l.b16 %v5845
  %v6619 = vunpack.c.l.b16 %v5846
  %v6620 = vunpack.c.l.b16 %v5847
  %v6621 = vunpack.c.l.b16 %v5848
  %v6622 = vunpack.c.l.b16 %v5849
  %v6623 = vunpack.c.l.b16 %v5850
  %v6624 = vunpack.c.l.b16 %v5851
  %v6625 = vunpack.c.l.b16 %v5852
  %v6626 = vunpack.c.l.b16 %v5853
  %v6627 = vunpack.c.l.b16 %v5854
  %v6628 = vunpack.c.l.b16 %v5855
  %v6629 = vunpack.c.l.b16 %v5856
  %v6630 = vunpack.c.l.b16 %v5857
  %v6631 = vunpack.c.l.b16 %v5858
  %v6632 = vunpack.c.l.b16 %v5859
  %v6633 = vunpack.c.l.b16 %v5860
  %v6634 = vunpack.c.l.b16 %v5861
  %v6635 = vunpack.c.l.b16 %v5862
  %v6636 = vunpack.c.l.b16 %v5863
  %v6637 = vunpack.c.l.b16 %v5864
  %v6638 = vunpack.c.l.b16 %v5865
  %v6639 = vunpack.c.l.b16 %v5866
  %v6640 = vunpack.c.l.b16 %v5867
  %v6641 = vunpack.c.l.b16 %v5868
  %v6642 = vunpack.c.l.b16 %v5869
  %v6643 = vunpack.c.l.b16 %v5870
  %v6644 = vunpack.c.l.b16 %v5871
  %v6645 = vunpack.c.l.b16 %v5872
  %v6646 = vunpack.c.l.b16 %v5873
  %v6647 = vunpack.c.l.b16 %v5874
  %v6648 = vunpack.c.l.b16 %v5875
  %v6649 = vunpack.c.l.b16 %v5876
  %v6650 = vunpack.c.l.b16 %v5877
  %v6651 = vunpack.c.l.b16 %v5878
  %v6652 = vunpack.c.l.b16 %v5879
  %v6653 = vunpack.c.l.b16 %v5880
  %v6654 = vunpack.c.l.b16 %v5881
  %v6655 = vunpack.c.l.b16 %v5882
  %v6656 = vunpack.c.l.b16 %v5883
  %v6657 = vunpack.c.l.b16 %v5884
  %v6658 = vunpack.c.l.b16 %v5885
  %v6659 = vunpack.c.l.b16 %v5886
  %v6660 = vunpack.c.l.b16 %v5887
  %v6661 = vunpack.c.l.b16 %v5888
  %v6662 = vunpack.c.l.b16 %v5889
  %v6663 = vunpack.c.l.b16 %v5890
  %v6664 = vunpack.c.l.b16 %v5891
  %v6665 = vunpack.c.l.b16 %v5892
  %v6666 = vunpack.c.l.b16 %v5893
  %v6667 = vunpack.c.l.b16 %v5894
  %v6668 = vunpack.c.l.b16 %v5895
  %v6669 = vunpack.c.l.b16 %v5896
  %v6670 = vunpack.c.l.b16 %v5897
  %v6671 = vunpack.c.l.b16 %v5898
  %v6672 = vunpack.c.l.b16 %v5899
  %v6673 = vunpack.c.l.b16 %v5900
  %v6674 = vunpack.c.l.b16 %v5901
  %v6675 = vunpack.c.l.b16 %v5902
  %v6676 = vunpack.c.l.b16 %v5903
  %v6677 = vunpack.c.l.b16 %v5904
  %v6678 = vunpack.c.l.b16 %v5905
  %v6679 = vunpack.c.l.b16 %v5906
  %v6680 = vunpack.c.l.b16 %v5907
  %v6681 = vunpack.c.l.b16 %v5908
  %v6682 = vunpack.c.l.b16 %v5909
  %v6683 = vunpack.c.l.b16 %v5910
  %v6684 = vunpack.c.l.b16 %v5911
  %v6685 = vunpack.c.l.b16 %v5912
  %v6686 = vunpack.c.l.b16 %v5913
  %v6687 = vunpack.c.l.b16 %v5914
  %v6688 = vunpack.c.l.b16 %v5915
  %v6689 = vunpack.c.l.b16 %v5916
  %v6690 = vunpack.c.l.b16 %v5917
  %v6691 = vunpack.c.l.b16 %v5918
  %v6692 = vunpack.c.l.b16 %v5919
  %v6693 = vunpack.c.l.b16 %v5920
  %v6694 = vunpack.c.l.b16 %v5921
  %v6695 = vunpack.c.l.b16 %v5922
  %v6696 = vunpack.c.l.b16 %v5923
  %v6697 = vunpack.c.l.b16 %v5924
  %v6698 = vunpack.c.l.b16 %v5925
  %v6699 = vunpack.c.l.b16 %v5926
  %v6700 = vunpack.c.l.b16 %v5927
  %v6701 = vunpack.c.l.b16 %v5928
  %v6702 = vunpack.c.l.b16 %v5929
  %v6703 = vunpack.c.l.b16 %v5930
  %v6704 = vunpack.c.l.b16 %v5931
  %v6705 = vunpack.c.l.b16 %v5932
  %v6706 = vunpack.c.l.b16 %v5933
  %v6707 = vunpack.c.l.b16 %v5934
  %v6708 = vunpack.c.l.b16 %v5935
  %v6709 = vunpack.c.l.b16 %v5936
  %v6710 = vunpack.c.l.b16 %v5937
  %v6711 = vunpack.c.l.b16 %v5938
  %v6712 = vunpack.c.l.b16 %v5939
  %v6713 = vunpack.c.l.b16 %v5940
  %v6714 = vunpack.c.l.b16 %v5941
  %v6715 = vunpack.c.l.b16 %v5942
  %v6716 = vunpack.c.l.b16 %v5943
  %v6717 = vunpack.c.l.b16 %v5944
  %v6718 = vunpack.c.l.b16 %v5945
  %v6719 = vunpack.c.l.b16 %v5946
  %v6720 = vunpack.c.l.b16 %v5947
  %v6721 = vunpack.c.l.b16 %v5948
  %v6722 = vunpack.c.l.b16 %v5949
  %v6723 = vunpack.c.l.b16 %v5950
  %v6724 = vunpack.c.l.b16 %v5951
  %v6725 = vunpack.c.l.b16 %v5952
  %v6726 = vunpack.c.l.b16 %v5953
  %v6727 = vunpack.c.l.b16 %v5954
  %v6728 = vunpack.c.l.b16 %v5955
  %v6729 = vunpack.c.l.b16 %v5956
  %v6730 = vunpack.c.l.b16 %v5957
  %v6731 = vunpack.c.l.b16 %v5958
  %v6732 = vunpack.c.l.b16 %v5959
  %v6733 = vunpack.c.l.b16 %v5960
  %v6734 = vunpack.c.l.b16 %v5961
  %v6735 = vunpack.c.l.b16 %v5962
  %v6736 = vunpack.c.l.b16 %v5963
  %v6737 = vunpack.c.l.b16 %v5964
  %v6738 = vunpack.c.l.b16 %v5965
  %v6739 = vunpack.c.l.b16 %v5966
  %v6740 = vunpack.c.l.b16 %v5967
  %v6741 = vunpack.c.l.b16 %v5968
  %v6742 = vpack.c.b16 %v6359, %v6358
  %v6743 = vpack.c.b16 %v6361, %v6360
  %v6744 = vpack.c.b16 %v6363, %v6362
  %v6745 = vpack.c.b16 %v6365, %v6364
  %v6746 = vpack.c.b16 %v6367, %v6366
  %v6747 = vpack.c.b16 %v6369, %v6368
  %v6748 = vpack.c.b16 %v6371, %v6370
  %v6749 = vpack.c.b16 %v6373, %v6372
  %v6750 = vpack.c.b16 %v6375, %v6374
  %v6751 = vpack.c.b16 %v6377, %v6376
  %v6752 = vpack.c.b16 %v6379, %v6378
  %v6753 = vpack.c.b16 %v6381, %v6380
  %v6754 = vpack.c.b16 %v6383, %v6382
  %v6755 = vpack.c.b16 %v6385, %v6384
  %v6756 = vpack.c.b16 %v6387, %v6386
  %v6757 = vpack.c.b16 %v6389, %v6388
  %v6758 = vpack.c.b16 %v6391, %v6390
  %v6759 = vpack.c.b16 %v6393, %v6392
  %v6760 = vpack.c.b16 %v6395, %v6394
  %v6761 = vpack.c.b16 %v6397, %v6396
  %v6762 = vpack.c.b16 %v6399, %v6398
  %v6763 = vpack.c.b16 %v6401, %v6400
  %v6764 = vpack.c.b16 %v6403, %v6402
  %v6765 = vpack.c.b16 %v6405, %v6404
  %v6766 = vpack.c.b16 %v6407, %v6406
  %v6767 = vpack.c.b16 %v6409, %v6408
  %v6768 = vpack.c.b16 %v6411, %v6410
  %v6769 = vpack.c.b16 %v6413, %v6412
  %v6770 = vpack.c.b16 %v6415, %v6414
  %v6771 = vpack.c.b16 %v6417, %v6416
  %v6772 = vpack.c.b16 %v6419, %v6418
  %v6773 = vpack.c.b16 %v6421, %v6420
  %v6774 = vpack.c.b16 %v6423, %v6422
  %v6775 = vpack.c.b16 %v6425, %v6424
  %v6776 = vpack.c.b16 %v6427, %v6426
  %v6777 = vpack.c.b16 %v6429, %v6428
  %v6778 = vpack.c.b16 %v6431, %v6430
  %v6779 = vpack.c.b16 %v6433, %v6432
  %v6780 = vpack.c.b16 %v6435, %v6434
  %v6781 = vpack.c.b16 %v6437, %v6436
  %v6782 = vpack.c.b16 %v6439, %v6438
  %v6783 = vpack.c.b16 %v6441, %v6440
  %v6784 = vpack.c.b16 %v6443, %v6442
  %v6785 = vpack.c.b16 %v6445, %v6444
  %v6786 = vpack.c.b16 %v6447, %v6446
  %v6787 = vpack.c.b16 %v6449, %v6448
  %v6788 = vpack.c.b16 %v6451, %v6450
  %v6789 = vpack.c.b16 %v6453, %v6452
  %v6790 = vpack.c.b16 %v6455, %v6454
  %v6791 = vpack.c.b16 %v6457, %v6456
  %v6792 = vpack.c.b16 %v6459, %v6458
  %v6793 = vpack.c.b16 %v6461, %v6460
  %v6794 = vpack.c.b16 %v6463, %v6462
  %v6795 = vpack.c.b16 %v6465, %v6464
  %v6796 = vpack.c.b16 %v6467, %v6466
  %v6797 = vpack.c.b16 %v6469, %v6468
  %v6798 = vpack.c.b16 %v6471, %v6470
  %v6799 = vpack.c.b16 %v6473, %v6472
  %v6800 = vpack.c.b16 %v6475, %v6474
  %v6801 = vpack.c.b16 %v6477, %v6476
  %v6802 = vpack.c.b16 %v6479, %v6478
  %v6803 = vpack.c.b16 %v6481, %v6480
  %v6804 = vpack.c.b16 %v6483, %v6482
  %v6805 = vpack.c.b16 %v6485, %v6484
  %v6806 = vpack.c.b16 %v6487, %v6486
  %v6807 = vpack.c.b16 %v6489, %v6488
  %v6808 = vpack.c.b16 %v6491, %v6490
  %v6809 = vpack.c.b16 %v6493, %v6492
  %v6810 = vpack.c.b16 %v6495, %v6494
  %v6811 = vpack.c.b16 %v6497, %v6496
  %v6812 = vpack.c.b16 %v6499, %v6498
  %v6813 = vpack.c.b16 %v6501, %v6500
  %v6814 = vpack.c.b16 %v6503, %v6502
  %v6815 = vpack.c.b16 %v6505, %v6504
  %v6816 = vpack.c.b16 %v6507, %v6506
  %v6817 = vpack.c.b16 %v6509, %v6508
  %v6818 = vpack.c.b16 %v6511, %v6510
  %v6819 = vpack.c.b16 %v6513, %v6512
  %v6820 = vpack.c.b16 %v6515, %v6514
  %v6821 = vpack.c.b16 %v6517, %v6516
  %v6822 = vpack.c.b16 %v6519, %v6518
  %v6823 = vpack.c.b16 %v6521, %v6520
  %v6824 = vpack.c.b16 %v6523, %v6522
  %v6825 = vpack.c.b16 %v6525, %v6524
  %v6826 = vpack.c.b16 %v6527, %v6526
  %v6827 = vpack.c.b16 %v6529, %v6528
  %v6828 = vpack.c.b16 %v6531, %v6530
  %v6829 = vpack.c.b16 %v6533, %v6532
  %v6830 = vpack.c.b16 %v6535, %v6534
  %v6831 = vpack.c.b16 %v6537, %v6536
  %v6832 = vpack.c.b16 %v6539, %v6538
  %v6833 = vpack.c.b16 %v6541, %v6540
  %v6834 = vpack.c.b16 %v6543, %v6542
  %v6835 = vpack.c.b16 %v6545, %v6544
  %v6836 = vpack.c.b16 %v6547, %v6546
  %v6837 = vpack.c.b16 %v6549, %v6548
  %v6838 = vpack.c.b16 %v6551, %v6550
  %v6839 = vpack.c.b16 %v6553, %v6552
  %v6840 = vpack.c.b16 %v6555, %v6554
  %v6841 = vpack.c.b16 %v6557, %v6556
  %v6842 = vpack.c.b16 %v6559, %v6558
  %v6843 = vpack.c.b16 %v6561, %v6560
  %v6844 = vpack.c.b16 %v6563, %v6562
  %v6845 = vpack.c.b16 %v6565, %v6564
  %v6846 = vpack.c.b16 %v6567, %v6566
  %v6847 = vpack.c.b16 %v6569, %v6568
  %v6848 = vpack.c.b16 %v6571, %v6570
  %v6849 = vpack.c.b16 %v6573, %v6572
  %v6850 = vpack.c.b16 %v6575, %v6574
  %v6851 = vpack.c.b16 %v6577, %v6576
  %v6852 = vpack.c.b16 %v6579, %v6578
  %v6853 = vpack.c.b16 %v6581, %v6580
  %v6854 = vpack.c.b16 %v6583, %v6582
  %v6855 = vpack.c.b16 %v6585, %v6584
  %v6856 = vpack.c.b16 %v6587, %v6586
  %v6857 = vpack.c.b16 %v6589, %v6588
  %v6858 = vpack.c.b16 %v6591, %v6590
  %v6859 = vpack.c.b16 %v6593, %v6592
  %v6860 = vpack.c.b16 %v6595, %v6594
  %v6861 = vpack.c.b16 %v6597, %v6596
  %v6862 = vpack.c.b16 %v6599, %v6598
  %v6863 = vpack.c.b16 %v6601, %v6600
  %v6864 = vpack.c.b16 %v6603, %v6602
  %v6865 = vpack.c.b16 %v6605, %v6604
  %v6866 = vpack.c.b16 %v6607, %v6606
  %v6867 = vpack.c.b16 %v6609, %v6608
  %v6868 = vpack.c.b16 %v6611, %v6610
  %v6869 = vpack.c.b16 %v6613, %v6612
  %v6870 = vpack.c.b16 %v6615, %v6614
  %v6871 = vpack.c.b16 %v6617, %v6616
  %v6872 = vpack.c.b16 %v6619, %v6618
  %v6873 = vpack.c.b16 %v6621, %v6620
  %v6874 = vpack.c.b16 %v6623, %v6622
  %v6875 = vpack.c.b16 %v6625, %v6624
  %v6876 = vpack.c.b16 %v6627, %v6626
  %v6877 = vpack.c.b16 %v6629, %v6628
  %v6878 = vpack.c.b16 %v6631, %v6630
  %v6879 = vpack.c.b16 %v6633, %v6632
  %v6880 = vpack.c.b16 %v6635, %v6634
  %v6881 = vpack.c.b16 %v6637, %v6636
  %v6882 = vpack.c.b16 %v6639, %v6638
  %v6883 = vpack.c.b16 %v6641, %v6640
  %v6884 = vpack.c.b16 %v6643, %v6642
  %v6885 = vpack.c.b16 %v6645, %v6644
  %v6886 = vpack.c.b16 %v6647, %v6646
  %v6887 = vpack.c.b16 %v6649, %v6648
  %v6888 = vpack.c.b16 %v6651, %v6650
  %v6889 = vpack.c.b16 %v6653, %v6652
  %v6890 = vpack.c.b16 %v6655, %v6654
  %v6891 = vpack.c.b16 %v6657, %v6656
  %v6892 = vpack.c.b16 %v6659, %v6658
  %v6893 = vpack.c.b16 %v6661, %v6660
  %v6894 = vpack.c.b16 %v6663, %v6662
  %v6895 = vpack.c.b16 %v6665, %v6664
  %v6896 = vpack.c.b16 %v6667, %v6666
  %v6897 = vpack.c.b16 %v6669, %v6668
  %v6898 = vpack.c.b16 %v6671, %v6670
  %v6899 = vpack.c.b16 %v6673, %v6672
  %v6900 = vpack.c.b16 %v6675, %v6674
  %v6901 = vpack.c.b16 %v6677, %v6676
  %v6902 = vpack.c.b16 %v6679, %v6678
  %v6903 = vpack.c.b16 %v6681, %v6680
  %v6904 = vpack.c.b16 %v6683, %v6682
  %v6905 = vpack.c.b16 %v6685, %v6684
  %v6906 = vpack.c.b16 %v6687, %v6686
  %v6907 = vpack.c.b16 %v6689, %v6688
  %v6908 = vpack.c.b16 %v6691, %v6690
  %v6909 = vpack.c.b16 %v6693, %v6692
  %v6910 = vpack.c.b16 %v6695, %v6694
  %v6911 = vpack.c.b16 %v6697, %v6696
  %v6912 = vpack.c.b16 %v6699, %v6698
  %v6913 = vpack.c.b16 %v6701, %v6700
  %v6914 = vpack.c.b16 %v6703, %v6702
  %v6915 = vpack.c.b16 %v6705, %v6704
  %v6916 = vpack.c.b16 %v6707, %v6706
  %v6917 = vpack.c.b16 %v6709, %v6708
  %v6918 = vpack.c.b16 %v6711, %v6710
  %v6919 = vpack.c.b16 %v6713, %v6712
  %v6920 = vpack.c.b16 %v6715, %v6714
  %v6921 = vpack.c.b16 %v6717, %v6716
  %v6922 = vpack.c.b16 %v6719, %v6718
  %v6923 = vpack.c.b16 %v6721, %v6720
  %v6924 = vpack.c.b16 %v6723, %v6722
  %v6925 = vpack.c.b16 %v6725, %v6724
  %v6926 = vpack.c.b16 %v6727, %v6726
  %v6927 = vpack.c.b16 %v6729, %v6728
  %v6928 = vpack.c.b16 %v6731, %v6730
  %v6929 = vpack.c.b16 %v6733, %v6732
  %v6930 = vpack.c.b16 %v6735, %v6734
  %v6931 = vpack.c.b16 %v6737, %v6736
  %v6932 = vpack.c.b16 %v6739, %v6738
  %v6933 = vpack.c.b16 %v6741, %v6740
  %7126 = vmatpush.bf16.msra.mxu0 %v6749
  %7127 = vmatpush.bf16.msra.mxu0 %v6748
  %7128 = vmatpush.bf16.msra.mxu0 %v6747
  %7129 = vmatpush.bf16.msra.mxu0 %v6746
  %7130 = vmatpush.bf16.msra.mxu0 %v6745
  %7131 = vmatpush.bf16.msra.mxu0 %v6744
  %7132 = vmatpush.bf16.msra.mxu0 %v6743
  %7133 = vmatpush.bf16.msra.mxu0 %v6742
  %7134 = vmatmul.bf16.gmra.mxu0 %v5560
  %v7135 = vpop.f32.mrf.mxu0
  %v7136 = vadd.f32 %v5972, %v7135
  %v7137 = vpop.f32.mrf.mxu0
  %7138 = vdwg.mxu0
  %7139 = vmatpush.bf16.msra.mxu0 %v6757
  %7140 = vmatpush.bf16.msra.mxu0 %v6756
  %7141 = vmatpush.bf16.msra.mxu0 %v6755
  %7142 = vmatpush.bf16.msra.mxu0 %v6754
  %7143 = vmatpush.bf16.msra.mxu0 %v6753
  %7144 = vmatpush.bf16.msra.mxu0 %v6752
  %7145 = vmatpush.bf16.msra.mxu0 %v6751
  %7146 = vmatpush.bf16.msra.mxu0 %v6750
  %7147 = vmatmul.bf16.gmra.mxu0 %v5561
  %v7148 = vpop.f32.mrf.mxu0
  %v7149 = vadd.f32 %v7136, %v7148
  %v7150 = vpop.f32.mrf.mxu0
  %7151 = vdwg.mxu0
  %7152 = vmatpush.bf16.msra.mxu0 %v6765
  %7153 = vmatpush.bf16.msra.mxu0 %v6764
  %7154 = vmatpush.bf16.msra.mxu0 %v6763
  %7155 = vmatpush.bf16.msra.mxu0 %v6762
  %7156 = vmatpush.bf16.msra.mxu0 %v6761
  %7157 = vmatpush.bf16.msra.mxu0 %v6760
  %7158 = vmatpush.bf16.msra.mxu0 %v6759
  %7159 = vmatpush.bf16.msra.mxu0 %v6758
  %7160 = vmatmul.bf16.gmra.mxu0 %v5562
  %v7161 = vpop.f32.mrf.mxu0
  %v7162 = vadd.f32 %v7149, %v7161
  %v7163 = vpop.f32.mrf.mxu0
  %7164 = vdwg.mxu0
  %7165 = vmatpush.bf16.msra.mxu0 %v6773
  %7166 = vmatpush.bf16.msra.mxu0 %v6772
  %7167 = vmatpush.bf16.msra.mxu0 %v6771
  %7168 = vmatpush.bf16.msra.mxu0 %v6770
  %7169 = vmatpush.bf16.msra.mxu0 %v6769
  %7170 = vmatpush.bf16.msra.mxu0 %v6768
  %7171 = vmatpush.bf16.msra.mxu0 %v6767
  %7172 = vmatpush.bf16.msra.mxu0 %v6766
  %7173 = vmatmul.bf16.gmra.mxu0 %v5563
  %v7174 = vpop.f32.mrf.mxu0
  %v7175 = vadd.f32 %v7162, %v7174
  %v7176 = vpop.f32.mrf.mxu0
  %7177 = vdwg.mxu0
  %7178 = vmatpush.bf16.msra.mxu0 %v6781
  %7179 = vmatpush.bf16.msra.mxu0 %v6780
  %7180 = vmatpush.bf16.msra.mxu0 %v6779
  %7181 = vmatpush.bf16.msra.mxu0 %v6778
  %7182 = vmatpush.bf16.msra.mxu0 %v6777
  %7183 = vmatpush.bf16.msra.mxu0 %v6776
  %7184 = vmatpush.bf16.msra.mxu0 %v6775
  %7185 = vmatpush.bf16.msra.mxu0 %v6774
  %7186 = vmatmul.bf16.gmra.mxu0 %v5564
  %v7187 = vpop.f32.mrf.mxu0
  %v7188 = vadd.f32 %v7175, %v7187
  %v7189 = vpop.f32.mrf.mxu0
  %7190 = vdwg.mxu0
  %7191 = vmatpush.bf16.msra.mxu0 %v6789
  %7192 = vmatpush.bf16.msra.mxu0 %v6788
  %7193 = vmatpush.bf16.msra.mxu0 %v6787
  %7194 = vmatpush.bf16.msra.mxu0 %v6786
  %7195 = vmatpush.bf16.msra.mxu0 %v6785
  %7196 = vmatpush.bf16.msra.mxu0 %v6784
  %7197 = vmatpush.bf16.msra.mxu0 %v6783
  %7198 = vmatpush.bf16.msra.mxu0 %v6782
  %7199 = vmatmul.bf16.gmra.mxu0 %v5565
  %v7200 = vpop.f32.mrf.mxu0
  %v7201 = vadd.f32 %v7188, %v7200
  %v7202 = vpop.f32.mrf.mxu0
  %7203 = vdwg.mxu0
  %7204 = vmatpush.bf16.msra.mxu0 %v6797
  %7205 = vmatpush.bf16.msra.mxu0 %v6796
  %7206 = vmatpush.bf16.msra.mxu0 %v6795
  %7207 = vmatpush.bf16.msra.mxu0 %v6794
  %7208 = vmatpush.bf16.msra.mxu0 %v6793
  %7209 = vmatpush.bf16.msra.mxu0 %v6792
  %7210 = vmatpush.bf16.msra.mxu0 %v6791
  %7211 = vmatpush.bf16.msra.mxu0 %v6790
  %7212 = vmatmul.bf16.gmra.mxu0 %v5566
  %v7213 = vpop.f32.mrf.mxu0
  %v7214 = vadd.f32 %v7201, %v7213
  %v7215 = vpop.f32.mrf.mxu0
  %7216 = vdwg.mxu0
  %7217 = vmatpush.bf16.msra.mxu0 %v6805
  %7218 = vmatpush.bf16.msra.mxu0 %v6804
  %7219 = vmatpush.bf16.msra.mxu0 %v6803
  %7220 = vmatpush.bf16.msra.mxu0 %v6802
  %7221 = vmatpush.bf16.msra.mxu0 %v6801
  %7222 = vmatpush.bf16.msra.mxu0 %v6800
  %7223 = vmatpush.bf16.msra.mxu0 %v6799
  %7224 = vmatpush.bf16.msra.mxu0 %v6798
  %7225 = vmatmul.bf16.gmra.mxu0 %v5567
  %v7226 = vpop.f32.mrf.mxu0
  %v7227 = vadd.f32 %v7214, %v7226
  %v7228 = vpop.f32.mrf.mxu0
  %7229 = vdwg.mxu0
  %7230 = vmatpush.bf16.msra.mxu0 %v6813
  %7231 = vmatpush.bf16.msra.mxu0 %v6812
  %7232 = vmatpush.bf16.msra.mxu0 %v6811
  %7233 = vmatpush.bf16.msra.mxu0 %v6810
  %7234 = vmatpush.bf16.msra.mxu0 %v6809
  %7235 = vmatpush.bf16.msra.mxu0 %v6808
  %7236 = vmatpush.bf16.msra.mxu0 %v6807
  %7237 = vmatpush.bf16.msra.mxu0 %v6806
  %7238 = vmatmul.bf16.gmra.mxu0 %v5568
  %v7239 = vpop.f32.mrf.mxu0
  %v7240 = vadd.f32 %v7227, %v7239
  %v7241 = vpop.f32.mrf.mxu0
  %7242 = vdwg.mxu0
  %7243 = vmatpush.bf16.msra.mxu0 %v6821
  %7244 = vmatpush.bf16.msra.mxu0 %v6820
  %7245 = vmatpush.bf16.msra.mxu0 %v6819
  %7246 = vmatpush.bf16.msra.mxu0 %v6818
  %7247 = vmatpush.bf16.msra.mxu0 %v6817
  %7248 = vmatpush.bf16.msra.mxu0 %v6816
  %7249 = vmatpush.bf16.msra.mxu0 %v6815
  %7250 = vmatpush.bf16.msra.mxu0 %v6814
  %7251 = vmatmul.bf16.gmra.mxu0 %v5569
  %v7252 = vpop.f32.mrf.mxu0
  %v7253 = vadd.f32 %v7240, %v7252
  %v7254 = vpop.f32.mrf.mxu0
  %7255 = vdwg.mxu0
  %7256 = vmatpush.bf16.msra.mxu0 %v6829
  %7257 = vmatpush.bf16.msra.mxu0 %v6828
  %7258 = vmatpush.bf16.msra.mxu0 %v6827
  %7259 = vmatpush.bf16.msra.mxu0 %v6826
  %7260 = vmatpush.bf16.msra.mxu0 %v6825
  %7261 = vmatpush.bf16.msra.mxu0 %v6824
  %7262 = vmatpush.bf16.msra.mxu0 %v6823
  %7263 = vmatpush.bf16.msra.mxu0 %v6822
  %7264 = vmatmul.bf16.gmra.mxu0 %v5570
  %v7265 = vpop.f32.mrf.mxu0
  %v7266 = vadd.f32 %v7253, %v7265
  %v7267 = vpop.f32.mrf.mxu0
  %7268 = vdwg.mxu0
  %7269 = vmatpush.bf16.msra.mxu0 %v6837
  %7270 = vmatpush.bf16.msra.mxu0 %v6836
  %7271 = vmatpush.bf16.msra.mxu0 %v6835
  %7272 = vmatpush.bf16.msra.mxu0 %v6834
  %7273 = vmatpush.bf16.msra.mxu0 %v6833
  %7274 = vmatpush.bf16.msra.mxu0 %v6832
  %7275 = vmatpush.bf16.msra.mxu0 %v6831
  %7276 = vmatpush.bf16.msra.mxu0 %v6830
  %7277 = vmatmul.bf16.gmra.mxu0 %v5571
  %v7278 = vpop.f32.mrf.mxu0
  %v7279 = vadd.f32 %v7266, %v7278
  %v7280 = vpop.f32.mrf.mxu0
  %7281 = vdwg.mxu0
  %7282 = vmatpush.bf16.msra.mxu0 %v6845
  %7283 = vmatpush.bf16.msra.mxu0 %v6844
  %7284 = vmatpush.bf16.msra.mxu0 %v6843
  %7285 = vmatpush.bf16.msra.mxu0 %v6842
  %7286 = vmatpush.bf16.msra.mxu0 %v6841
  %7287 = vmatpush.bf16.msra.mxu0 %v6840
  %7288 = vmatpush.bf16.msra.mxu0 %v6839
  %7289 = vmatpush.bf16.msra.mxu0 %v6838
  %7290 = vmatmul.bf16.gmra.mxu0 %v5572
  %v7291 = vpop.f32.mrf.mxu0
  %v7292 = vadd.f32 %v7279, %v7291
  %v7293 = vpop.f32.mrf.mxu0
  %7294 = vdwg.mxu0
  %7295 = vmatpush.bf16.msra.mxu0 %v6853
  %7296 = vmatpush.bf16.msra.mxu0 %v6852
  %7297 = vmatpush.bf16.msra.mxu0 %v6851
  %7298 = vmatpush.bf16.msra.mxu0 %v6850
  %7299 = vmatpush.bf16.msra.mxu0 %v6849
  %7300 = vmatpush.bf16.msra.mxu0 %v6848
  %7301 = vmatpush.bf16.msra.mxu0 %v6847
  %7302 = vmatpush.bf16.msra.mxu0 %v6846
  %7303 = vmatmul.bf16.gmra.mxu0 %v5573
  %v7304 = vpop.f32.mrf.mxu0
  %v7305 = vadd.f32 %v7292, %v7304
  %v7306 = vpop.f32.mrf.mxu0
  %7307 = vdwg.mxu0
  %7308 = vmatpush.bf16.msra.mxu0 %v6861
  %7309 = vmatpush.bf16.msra.mxu0 %v6860
  %7310 = vmatpush.bf16.msra.mxu0 %v6859
  %7311 = vmatpush.bf16.msra.mxu0 %v6858
  %7312 = vmatpush.bf16.msra.mxu0 %v6857
  %7313 = vmatpush.bf16.msra.mxu0 %v6856
  %7314 = vmatpush.bf16.msra.mxu0 %v6855
  %7315 = vmatpush.bf16.msra.mxu0 %v6854
  %7316 = vmatmul.bf16.gmra.mxu0 %v5574
  %v7317 = vpop.f32.mrf.mxu0
  %v7318 = vadd.f32 %v7305, %v7317
  %v7319 = vpop.f32.mrf.mxu0
  %7320 = vdwg.mxu0
  %7321 = vmatpush.bf16.msra.mxu0 %v6869
  %7322 = vmatpush.bf16.msra.mxu0 %v6868
  %7323 = vmatpush.bf16.msra.mxu0 %v6867
  %7324 = vmatpush.bf16.msra.mxu0 %v6866
  %7325 = vmatpush.bf16.msra.mxu0 %v6865
  %7326 = vmatpush.bf16.msra.mxu0 %v6864
  %7327 = vmatpush.bf16.msra.mxu0 %v6863
  %7328 = vmatpush.bf16.msra.mxu0 %v6862
  %7329 = vmatmul.bf16.gmra.mxu0 %v5575
  %v7330 = vpop.f32.mrf.mxu0
  %v7331 = vadd.f32 %v7318, %v7330
  %v7332 = vpop.f32.mrf.mxu0
  %7333 = vdwg.mxu0
  %7334 = vmatpush.bf16.msra.mxu0 %v6877
  %7335 = vmatpush.bf16.msra.mxu0 %v6876
  %7336 = vmatpush.bf16.msra.mxu0 %v6875
  %7337 = vmatpush.bf16.msra.mxu0 %v6874
  %7338 = vmatpush.bf16.msra.mxu0 %v6873
  %7339 = vmatpush.bf16.msra.mxu0 %v6872
  %7340 = vmatpush.bf16.msra.mxu0 %v6871
  %7341 = vmatpush.bf16.msra.mxu0 %v6870
  %7342 = vmatmul.bf16.gmra.mxu0 %v5576
  %v7343 = vpop.f32.mrf.mxu0
  %v7344 = vadd.f32 %v7331, %v7343
  %v7345 = vpop.f32.mrf.mxu0
  %7346 = vdwg.mxu0
  %7347 = vmatpush.bf16.msra.mxu0 %v6885
  %7348 = vmatpush.bf16.msra.mxu0 %v6884
  %7349 = vmatpush.bf16.msra.mxu0 %v6883
  %7350 = vmatpush.bf16.msra.mxu0 %v6882
  %7351 = vmatpush.bf16.msra.mxu0 %v6881
  %7352 = vmatpush.bf16.msra.mxu0 %v6880
  %7353 = vmatpush.bf16.msra.mxu0 %v6879
  %7354 = vmatpush.bf16.msra.mxu0 %v6878
  %7355 = vmatmul.bf16.gmra.mxu0 %v5577
  %v7356 = vpop.f32.mrf.mxu0
  %v7357 = vadd.f32 %v7344, %v7356
  %v7358 = vpop.f32.mrf.mxu0
  %7359 = vdwg.mxu0
  %7360 = vmatpush.bf16.msra.mxu0 %v6893
  %7361 = vmatpush.bf16.msra.mxu0 %v6892
  %7362 = vmatpush.bf16.msra.mxu0 %v6891
  %7363 = vmatpush.bf16.msra.mxu0 %v6890
  %7364 = vmatpush.bf16.msra.mxu0 %v6889
  %7365 = vmatpush.bf16.msra.mxu0 %v6888
  %7366 = vmatpush.bf16.msra.mxu0 %v6887
  %7367 = vmatpush.bf16.msra.mxu0 %v6886
  %7368 = vmatmul.bf16.gmra.mxu0 %v5578
  %v7369 = vpop.f32.mrf.mxu0
  %v7370 = vadd.f32 %v7357, %v7369
  %v7371 = vpop.f32.mrf.mxu0
  %7372 = vdwg.mxu0
  %7373 = vmatpush.bf16.msra.mxu0 %v6901
  %7374 = vmatpush.bf16.msra.mxu0 %v6900
  %7375 = vmatpush.bf16.msra.mxu0 %v6899
  %7376 = vmatpush.bf16.msra.mxu0 %v6898
  %7377 = vmatpush.bf16.msra.mxu0 %v6897
  %7378 = vmatpush.bf16.msra.mxu0 %v6896
  %7379 = vmatpush.bf16.msra.mxu0 %v6895
  %7380 = vmatpush.bf16.msra.mxu0 %v6894
  %7381 = vmatmul.bf16.gmra.mxu0 %v5579
  %v7382 = vpop.f32.mrf.mxu0
  %v7383 = vadd.f32 %v7370, %v7382
  %v7384 = vpop.f32.mrf.mxu0
  %7385 = vdwg.mxu0
  %7386 = vmatpush.bf16.msra.mxu0 %v6909
  %7387 = vmatpush.bf16.msra.mxu0 %v6908
  %7388 = vmatpush.bf16.msra.mxu0 %v6907
  %7389 = vmatpush.bf16.msra.mxu0 %v6906
  %7390 = vmatpush.bf16.msra.mxu0 %v6905
  %7391 = vmatpush.bf16.msra.mxu0 %v6904
  %7392 = vmatpush.bf16.msra.mxu0 %v6903
  %7393 = vmatpush.bf16.msra.mxu0 %v6902
  %7394 = vmatmul.bf16.gmra.mxu0 %v5580
  %v7395 = vpop.f32.mrf.mxu0
  %v7396 = vadd.f32 %v7383, %v7395
  %v7397 = vpop.f32.mrf.mxu0
  %7398 = vdwg.mxu0
  %7399 = vmatpush.bf16.msra.mxu0 %v6917
  %7400 = vmatpush.bf16.msra.mxu0 %v6916
  %7401 = vmatpush.bf16.msra.mxu0 %v6915
  %7402 = vmatpush.bf16.msra.mxu0 %v6914
  %7403 = vmatpush.bf16.msra.mxu0 %v6913
  %7404 = vmatpush.bf16.msra.mxu0 %v6912
  %7405 = vmatpush.bf16.msra.mxu0 %v6911
  %7406 = vmatpush.bf16.msra.mxu0 %v6910
  %7407 = vmatmul.bf16.gmra.mxu0 %v5581
  %v7408 = vpop.f32.mrf.mxu0
  %v7409 = vadd.f32 %v7396, %v7408
  %v7410 = vpop.f32.mrf.mxu0
  %7411 = vdwg.mxu0
  %7412 = vmatpush.bf16.msra.mxu0 %v6925
  %7413 = vmatpush.bf16.msra.mxu0 %v6924
  %7414 = vmatpush.bf16.msra.mxu0 %v6923
  %7415 = vmatpush.bf16.msra.mxu0 %v6922
  %7416 = vmatpush.bf16.msra.mxu0 %v6921
  %7417 = vmatpush.bf16.msra.mxu0 %v6920
  %7418 = vmatpush.bf16.msra.mxu0 %v6919
  %7419 = vmatpush.bf16.msra.mxu0 %v6918
  %7420 = vmatmul.bf16.gmra.mxu0 %v5582
  %v7421 = vpop.f32.mrf.mxu0
  %v7422 = vadd.f32 %v7409, %v7421
  %v7423 = vpop.f32.mrf.mxu0
  %7424 = vdwg.mxu0
  %7425 = vmatpush.bf16.msra.mxu0 %v6933
  %7426 = vmatpush.bf16.msra.mxu0 %v6932
  %7427 = vmatpush.bf16.msra.mxu0 %v6931
  %7428 = vmatpush.bf16.msra.mxu0 %v6930
  %7429 = vmatpush.bf16.msra.mxu0 %v6929
  %7430 = vmatpush.bf16.msra.mxu0 %v6928
  %7431 = vmatpush.bf16.msra.mxu0 %v6927
  %7432 = vmatpush.bf16.msra.mxu0 %v6926
  %7433 = vmatmul.bf16.gmra.mxu0 %v5583
  %v7434 = vpop.f32.mrf.mxu0
  %v7435 = vadd.f32 %v7422, %v7434
  %v7436 = vpop.f32.mrf.mxu0
  %7437 = vdwg.mxu0
  %v7438 = vmax.f32 %v7435, 0.0
  %s7439 = scalar_lea.vmem %s7, 32
  %v7440 = vld [vmem:[%s7439] sm:$0xff]
  %v7441 = vld [vmem:[%s7439 + $0x8] sm:$0xf]
  %s7442 = scalar_lea.vmem %s8, 2
  %v7443 = vld [vmem:[%s7442] sm:$0x1]
  %v7445 = vperm.slane %v7443, 0
  %v7448 = vsel %vm3465, %v7438, 0
  %v7451 = vsel %vm3469, %v7441, 0
  %7453 = vmatpush.msra.mxu0 0.0
  %7454 = vmatpush.msra.mxu0 0.0
  %7455 = vmatpush.msra.mxu0 0.0
  %7456 = vmatpush.msra.mxu0 0.0
  %7457 = vmatpush.msra.mxu0 0.0
  %7458 = vmatpush.msra.mxu0 0.0
  %7459 = vmatpush.msra.mxu0 0.0
  %7460 = vmatpush.msra.mxu0 0.0
  %7461 = vmatpush.msra.mxu0 0.0
  %7462 = vmatpush.msra.mxu0 0.0
  %7463 = vmatpush.msra.mxu0 0.0
  %7464 = vmatpush.msra.mxu0 0.0
  %7465 = vmatpush.msra.mxu0 0.0
  %7466 = vmatpush.msra.mxu0 0.0
  %7467 = vmatpush.msra.mxu0 %v7451
  %7468 = vmatpush.msra.mxu0 %v7440
  %7469 = vmatmul.f32.gmra.mxu0 %v7448
  %v7470 = vpop.f32.mrf.mxu0
  %v7471 = vadd.f32 %v7445, %v7470
  %7472 = vdwg.mxu0
  %v7473 = vmax.f32 %v7471, 0.0
  %s7474 = scalar_lea.vmem %s9, 2
  %v7475 = vld [vmem:[%s7474] sm:$0x1]
  %v7477 = vperm.slane %v7475, 0
  %v7479 = vmul.f32 %v7473, %v7477
  %v7480 = vsel %vm3499, %v7479, 0.0
  %7481 = vadd.xlane.f32.xlu0 %v7480
  %v7482 = vpop.xlane.xlu0 %7481
  %v7483 = vadd.f32 %v3502, %v5492
  %v7484 = vadd.f32 %v7483, %v7482
  %v7485 = vld [vmem:[#allocation4] sm:$0x1]
  %v7487 = vperm.slane %v7485, 0
  %v7489 = vadd.f32 %v7484, %v7487
  %v7490 = vxor.u32 %v7489, 2147483648
  %v7491 = vmul.f32 %v7490, 1.442695
  %v7492 = vpow.pop %v7491
  %v7493 = vadd.f32 %v7492, 1.0
  %v7494 = vrcp.pop %v7493
  %v7495 = vmul.f32 %v7493, %v7494
  %v7496 = vsub.f32 1.0, %v7495
  %v7497 = vmul.f32 %v7494, %v7496
  %v7498 = vadd.f32 %v7494, %v7497
  %vm7499 = vweird.f32 %v7493
  %vm7500 = vweird.f32 %v7494
  %vm7501 = vmor %vm7499, %vm7500
  %v7502 = vsel %vm7501, %v7494, %v7498
  %v7503 = vand.u32 2147483647, %v7493
  %vm7504 = vcmp.eq.f32.partialorder %v7503, 8.507059e+37
  %v7505 = vand.u32 %v7493, 2147483648
  %v7506 = vor.u32 1.1754944e-38, %v7505
  %v7507 = vsel %vm7504, %v7506, %v7502
  %v7508 = vmul.f32 1.0, %v7507
  %vm7509 = vcmask 1024
  %7510 = vst.msk [vmem:[%s11] sm:$0x3] %vm7509, %v7508
  // Predicated region
  $region46: #{net_forward.1} parent=0 // pred_check
    _
  $region47: #{net_forward.1} parent=0 // pred_check_branch
    %7512 = sbr.rel (0) target = $region49
  $region48: #{net_forward.1} parent=0 // pred_region
    _
  $region49: #{net_forward.1} parent=0 // pred_fallthru
    _
  // Predicated region
  $region50: #{net_forward.1} parent=0 // pred_check
    _
  $region51: #{net_forward.1} parent=0 // pred_check_branch
    %7514 = sbr.rel (0) target = $region53
  $region52: #{net_forward.1} parent=0 // pred_region
    _
  $region53: #{net_forward.1} parent=0 // pred_fallthru
    _

</llo_original>
